<compile_context>
chip_gen: v7x
topology: tpu7x:2x2x1
jax: 0.10.0
libtpu: 0.0.40
codegen_flags: <defaults>
</compile_context>

<pallas_src>
import functools

import jax
import jax.numpy as jnp
from jax.experimental import pallas as pl
from jax.experimental.pallas import tpu as pltpu

BN_EPS = 1e-5
TM = 512           # cap on the M row tile of the 1x1-conv GEMMs / epilogue
NEG_PAD = -1e30    # raw-value padding that maps to exactly 0 after BN+ReLU


# ----------------------------- Pallas kernels ------------------------------ #

def _write_stats(st_ref, y):
    """Per-tile per-channel sums: row 0 = sum, row 1 = sum of squares."""
    st_ref[0:1, :] = jnp.sum(y, axis=0, keepdims=True)
    st_ref[1:2, :] = jnp.sum(y * y, axis=0, keepdims=True)


def _dual_gemm_stats_kernel(x_ref, w1_ref, wsc_ref, y1_ref, ysc_ref,
                            st1_ref, stsc_ref):
    # layer_1 and shortcut 1x1 convs share a single x read (two MXU dots).
    x = x_ref[...]
    y1 = jnp.dot(x, w1_ref[...], preferred_element_type=jnp.float32)
    ysc = jnp.dot(x, wsc_ref[...], preferred_element_type=jnp.float32)
    y1_ref[...] = y1.astype(y1_ref.dtype)
    ysc_ref[...] = ysc.astype(ysc_ref.dtype)
    _write_stats(st1_ref, y1)
    _write_stats(stsc_ref, ysc)


def _gemm_norm_stats_kernel(yp_ref, ss_ref, w_ref, y_ref, st_ref):
    # Fused BN(prev)+ReLU prologue on the raw bf16 previous conv output.
    a = jnp.maximum(
        yp_ref[...].astype(jnp.float32) * ss_ref[0:1, :] + ss_ref[1:2, :], 0.0)
    y = jnp.dot(a.astype(jnp.bfloat16), w_ref[...],
                preferred_element_type=jnp.float32)
    y_ref[...] = y.astype(y_ref.dtype)
    _write_stats(st_ref, y)


def _conv3x3_norm_stats_kernel(s_ref, ss_ref, w_ref, y_ref, st_ref,
                               *, height, width, wpad):
    # Fused-im2col 3x3 conv (padding=1) on one whole NEG_PAD-padded image with
    # the previous BN+ReLU fused as a prologue.
    #   s : (1, Lp, Cin) bf16 raw slab, Lp = (H+3)*Wpad, Wpad % 8 == 0
    #   ss: (8, Cin) row0 = scale, row1 = shift of the previous BN
    #   w : (9, Cin, Cout) bf16 taps
    #   y : (1, L, Cout) bf16 raw conv output at padded width, L = H*Wpad
    #   st: (8, Cout) per-image [sum, sumsq] over the W valid columns only
    cout = y_ref.shape[-1]
    l = height * wpad
    a = jnp.maximum(
        s_ref[0].astype(jnp.float32) * ss_ref[0:1, :] + ss_ref[1:2, :], 0.0)
    acc = jnp.zeros((l, cout), jnp.float32)
    for dj in range(3):
        # 3 column-shifted copies reused across di; the di*wpad row offsets
        # below are 8-aligned because wpad is a multiple of 8.
        sh = a[dj:dj + l + 2 * wpad, :].astype(jnp.bfloat16)
        for di in range(3):
            acc = acc + jnp.dot(sh[di * wpad:di * wpad + l, :],
                                w_ref[di * 3 + dj],
                                preferred_element_type=jnp.float32)
    y_ref[...] = acc.reshape(y_ref.shape).astype(y_ref.dtype)
    col = jax.lax.broadcasted_iota(jnp.int32, (l, 1), 0) % wpad
    _write_stats(st_ref, jnp.where(col < width, acc, 0.0))


def _epilogue_kernel(y3_ref, ss3_ref, ysc_ref, sssc_ref, o_ref):
    # out = relu(bn3(y3)) + relu(bn_sc(y_sc)); lane-dense layout when C < 128.
    a3 = jnp.maximum(
        y3_ref[...].astype(jnp.float32) * ss3_ref[0:1, :] + ss3_ref[1:2, :], 0.0)
    asc = jnp.maximum(
        ysc_ref[...].astype(jnp.float32) * sssc_ref[0:1, :] + sssc_ref[1:2, :],
        0.0)
    o_ref[...] = (a3 + asc).astype(o_ref.dtype)


def _gemm_bias_kernel(x_ref, w_ref, b_ref, o_ref):
    y = jnp.dot(x_ref[...], w_ref[...], preferred_element_type=jnp.float32)
    o_ref[...] = (y + b_ref[...]).astype(o_ref.dtype)


# --------------------------------- helpers --------------------------------- #

def _cparams(n_axes):
    # 32 MiB scoped VMEM covers the double-buffered bridge 3x3 weights on every
    # generation (v5e default is only 16 MiB).
    return pltpu.CompilerParams(
        dimension_semantics=("parallel",) * n_axes,
        vmem_limit_bytes=32 * 1024 * 1024)


def _round_up(x, m):
    return -(-x // m) * m


def _pick_tm(m):
    # At least 2 grid steps whenever possible so both v7x TensorCores get work.
    half = _round_up(max(1, -(-m // 2)), 8)
    return max(8, min(TM, half))


def _pad_rows(x, mp, value=0.0):
    m = x.shape[0]
    if mp == m:
        return x
    return jnp.pad(x, ((0, mp - m), (0, 0)), constant_values=value)


def _finalize_stats(stats, m, c):
    """stats: (..., k*8, C) packed [sum, sumsq] -> packed (8, C) [scale, shift]."""
    st = stats.reshape(-1, 8, c)
    s = jnp.sum(st[:, 0, :], axis=0)
    ss = jnp.sum(st[:, 1, :], axis=0)
    mean = s / m
    var = jnp.maximum(ss / m - mean * mean, 0.0)   # biased, torch training mode
    scale = jax.lax.rsqrt(var + BN_EPS)            # gamma=1, beta=0 folded in
    shift = -mean * scale
    return jnp.zeros((8, c), jnp.float32).at[0].set(scale).at[1].set(shift)


# ------------------------------ conv wrappers ------------------------------- #

def _dual_gemm_stats(x2d, w1_mat, wsc_mat):
    """layer_1 + shortcut 1x1 convs in one call: raw bf16 outputs + BN stats."""
    m, k = x2d.shape
    c = w1_mat.shape[1]
    x2d = x2d.astype(jnp.bfloat16)
    w1_b = w1_mat.astype(jnp.bfloat16)
    wsc_b = wsc_mat.astype(jnp.bfloat16)
    if k % 8:                                      # enc1: Cin=3 -> pad K to 8
        kp = _round_up(k, 8)
        x2d = jnp.pad(x2d, ((0, 0), (0, kp - k)))
        w1_b = jnp.pad(w1_b, ((0, kp - k), (0, 0)))
        wsc_b = jnp.pad(wsc_b, ((0, kp - k), (0, 0)))
        k = kp
    tm = _pick_tm(m)
    mp = _round_up(m, tm)
    n_m = mp // tm
    xp = _pad_rows(x2d, mp)                        # zero rows -> zero conv out

    y1, ysc, st1, stsc = pl.pallas_call(
        _dual_gemm_stats_kernel,
        grid=(n_m,),
        in_specs=[pl.BlockSpec((tm, k), lambda i: (i, 0)),
                  pl.BlockSpec((k, c), lambda i: (0, 0)),
                  pl.BlockSpec((k, c), lambda i: (0, 0))],
        out_specs=(pl.BlockSpec((tm, c), lambda i: (i, 0)),
                   pl.BlockSpec((tm, c), lambda i: (i, 0)),
                   pl.BlockSpec((8, c), lambda i: (i, 0)),
                   pl.BlockSpec((8, c), lambda i: (i, 0))),
        out_shape=(jax.ShapeDtypeStruct((mp, c), jnp.bfloat16),
                   jax.ShapeDtypeStruct((mp, c), jnp.bfloat16),
                   jax.ShapeDtypeStruct((n_m * 8, c), jnp.float32),
                   jax.ShapeDtypeStruct((n_m * 8, c), jnp.float32)),
        compiler_params=_cparams(1),
    )(xp, w1_b, wsc_b)
    return (y1[:m], ysc[:m],
            _finalize_stats(st1, m, c), _finalize_stats(stsc, m, c))


def _gemm_norm_stats(y_prev, ss_prev, w_mat):
    """1x1 conv on relu(bn(y_prev)) with the BN+ReLU fused as a prologue."""
    m, k = y_prev.shape
    c = w_mat.shape[1]
    w_b = w_mat.astype(jnp.bfloat16)
    tm = _pick_tm(m)
    mp = _round_up(m, tm)
    n_m = mp // tm
    # padded rows must normalize+ReLU to exactly 0 -> NEG_PAD raw values
    yp = _pad_rows(y_prev, mp, NEG_PAD)

    y, st = pl.pallas_call(
        _gemm_norm_stats_kernel,
        grid=(n_m,),
        in_specs=[pl.BlockSpec((tm, k), lambda i: (i, 0)),
                  pl.BlockSpec((8, k), lambda i: (0, 0)),
                  pl.BlockSpec((k, c), lambda i: (0, 0))],
        out_specs=(pl.BlockSpec((tm, c), lambda i: (i, 0)),
                   pl.BlockSpec((8, c), lambda i: (i, 0))),
        out_shape=(jax.ShapeDtypeStruct((mp, c), jnp.bfloat16),
                   jax.ShapeDtypeStruct((n_m * 8, c), jnp.float32)),
        compiler_params=_cparams(1),
    )(yp, ss_prev, w_b)
    return y[:m], _finalize_stats(st, m, c)


def conv3x3_norm_stats(y1_nhwc, ss1, w_torch):
    """3x3 conv (padding=1) applied to relu(bn(y1)), BN+ReLU fused in-kernel.

    y1_nhwc is the raw bf16 output of layer_1; the spatial halo uses NEG_PAD so
    it maps to exactly 0 after the prologue (== torch's zero padding of the
    activated input).  Returns compact raw bf16 (M, Cout) + BN scale/shift."""
    n, h, w, cin = y1_nhwc.shape
    cout = w_torch.shape[0]
    wpad = _round_up(w + 2, 8)       # 8-aligned row pitch -> aligned tap offsets
    lp = (h + 3) * wpad              # +1 spare padded row for the largest tap
    l = h * wpad
    m = n * h * w

    xpad = jnp.pad(y1_nhwc, ((0, 0), (1, 2), (1, wpad - w - 1), (0, 0)),
                   constant_values=NEG_PAD)
    slab = xpad.reshape(n, lp, cin)
    w_taps = jnp.transpose(w_torch, (2, 3, 1, 0)).reshape(9, cin, cout)
    w_taps = w_taps.astype(jnp.bfloat16)

    y, stats = pl.pallas_call(
        functools.partial(_conv3x3_norm_stats_kernel,
                          height=h, width=w, wpad=wpad),
        grid=(n,),
        in_specs=[pl.BlockSpec((1, lp, cin), lambda b: (b, 0, 0)),
                  pl.BlockSpec((8, cin), lambda b: (0, 0)),
                  pl.BlockSpec((9, cin, cout), lambda b: (0, 0, 0))],
        out_specs=(pl.BlockSpec((1, l, cout), lambda b: (b, 0, 0)),
                   pl.BlockSpec((8, cout), lambda b: (b, 0))),
        out_shape=(jax.ShapeDtypeStruct((n, l, cout), jnp.bfloat16),
                   jax.ShapeDtypeStruct((n * 8, cout), jnp.float32)),
        compiler_params=_cparams(1),
    )(slab, ss1, w_taps)

    # TODO(synk): drop the (wpad - w) garbage columns inside the kernel (store
    # the compact (H*W, Cout) block directly) to save this XLA slice round trip.
    y2 = y.reshape(n, h, wpad, cout)[:, :, :w, :].reshape(m, cout)
    return y2, _finalize_stats(stats, m, cout)


def _bottleneck_epilogue(y3, ss3, ysc, ss_sc):
    """relu(bn3(y3)) + relu(bn_sc(y_sc)), lane-dense layout when C < 128."""
    m, c = y3.shape
    if c < 128 and 128 % c == 0 and (m * c) % 128 == 0:
        lanes = 128
        rep = lanes // c
        rows = m * c // lanes
        y3v = y3.reshape(rows, lanes)
        yscv = ysc.reshape(rows, lanes)
        ss3v = jnp.tile(ss3, (1, rep))
        sscv = jnp.tile(ss_sc, (1, rep))
    else:
        lanes, rows = c, m
        y3v, yscv, ss3v, sscv = y3, ysc, ss3, ss_sc

    tm = _pick_tm(rows)
    rp = _round_up(rows, tm)
    n_m = rp // tm
    y3p = _pad_rows(y3v, rp)
    yscp = _pad_rows(yscv, rp)

    out = pl.pallas_call(
        _epilogue_kernel,
        grid=(n_m,),
        in_specs=[pl.BlockSpec((tm, lanes), lambda i: (i, 0)),
                  pl.BlockSpec((8, lanes), lambda i: (0, 0)),
                  pl.BlockSpec((tm, lanes), lambda i: (i, 0)),
                  pl.BlockSpec((8, lanes), lambda i: (0, 0))],
        out_specs=pl.BlockSpec((tm, lanes), lambda i: (i, 0)),
        out_shape=jax.ShapeDtypeStruct((rp, lanes), jnp.bfloat16),
        compiler_params=_cparams(1),
    )(y3p, ss3v, yscp, sscv)
    return out[:rows].reshape(m, c)


def conv1x1_bias(x_nhwc, wb):
    """Plain Conv2d(1x1) + bias (the dec_upsample* convs), tiled over M."""
    w, b = wb
    n, h, wdt, cin = x_nhwc.shape
    cout = w.shape[0]
    m = n * h * wdt
    x2d = x_nhwc.reshape(m, cin).astype(jnp.bfloat16)
    w_mat = w.reshape(cout, cin).T.astype(jnp.bfloat16)
    bias = b.reshape(1, cout).astype(jnp.float32)
    tm = _pick_tm(m)
    mp = _round_up(m, tm)
    n_m = mp // tm
    xp = _pad_rows(x2d, mp)
    y = pl.pallas_call(
        _gemm_bias_kernel, grid=(n_m,),
        in_specs=[pl.BlockSpec((tm, cin), lambda i: (i, 0)),
                  pl.BlockSpec((cin, cout), lambda i: (0, 0)),
                  pl.BlockSpec((1, cout), lambda i: (0, 0))],
        out_specs=pl.BlockSpec((tm, cout), lambda i: (i, 0)),
        out_shape=jax.ShapeDtypeStruct((mp, cout), jnp.bfloat16),
        compiler_params=_cparams(1),
    )(xp, w_mat, bias)
    return y[:m].reshape(n, h, wdt, cout)


# ------------------------------ JAX glue ops -------------------------------- #

def maxpool2x2(x):  # NHWC
    n, h, w, c = x.shape
    return x.reshape(n, h // 2, 2, w // 2, 2, c).max(axis=(2, 4))


def upsample2x_nearest(x):  # NHWC
    return jnp.repeat(jnp.repeat(x, 2, axis=1), 2, axis=2)


# ------------------------------- parameters --------------------------------- #

def init_conv(key, cin, cout, k):
    kw, kb = jax.random.split(key)
    fan_in = cin * k * k
    bound = 1.0 / jnp.sqrt(jnp.float32(fan_in))
    w = jax.random.uniform(kw, (cout, cin, k, k), jnp.float32, -bound, bound)
    b = jax.random.uniform(kb, (cout,), jnp.float32, -bound, bound)
    return (w, b)


def init_bottleneck(key, cin, cout):
    k1, k2, k3, k4 = jax.random.split(key, 4)
    return {
        "l1": init_conv(k1, cin, cout, 1),   # 1x1
        "l2": init_conv(k2, cout, cout, 3),  # 3x3 pad 1
        "l3": init_conv(k3, cout, cout, 1),  # 1x1
        "sc": init_conv(k4, cin, cout, 1),   # shortcut 1x1
    }


def init_params(key):
    keys = jax.random.split(key, 15)
    return {
        "enc1": init_bottleneck(keys[0], 3, 32),
        "enc2": init_bottleneck(keys[1], 32, 64),
        "enc3": init_bottleneck(keys[2], 64, 128),
        "enc4": init_bottleneck(keys[3], 128, 256),
        "bridge": init_bottleneck(keys[4], 256, 512),
        "up1": init_conv(keys[5], 512, 256, 1),
        "dec1": init_bottleneck(keys[6], 512, 256),
        "up2": init_conv(keys[7], 256, 128, 1),
        "dec2": init_bottleneck(keys[8], 256, 128),
        "up3": init_conv(keys[9], 128, 64, 1),
        "dec3": init_bottleneck(keys[10], 128, 64),
        "up4": init_conv(keys[11], 64, 32, 1),
        "dec4": init_bottleneck(keys[12], 64, 32),
        "out": init_conv(keys[13], 32, 3, 1),
    }


# ------------------------------ model forward -------------------------------- #

def bottleneck_block(x_nhwc, p):
    """relu(bn(conv)) x4 with shortcut added after the final ReLU, exactly as
    in the reference.  Conv biases are unused on purpose: a bias added before
    training-mode BatchNorm is cancelled by the mean subtraction."""
    n, h, w, cin = x_nhwc.shape
    cout = p["l1"][0].shape[0]
    m = n * h * w

    # 1) layer_1 + shortcut 1x1 convs share one x read (one pallas_call)
    w1 = p["l1"][0].reshape(cout, cin).T
    wsc = p["sc"][0].reshape(cout, cin).T
    y1, ysc, ss1, ss_sc = _dual_gemm_stats(x_nhwc.reshape(m, cin), w1, wsc)

    # 2) 3x3 conv with layer_1's BN+ReLU fused as a prologue
    y2, ss2 = conv3x3_norm_stats(y1.reshape(n, h, w, cout), ss1, p["l2"][0])

    # 3) layer_3 1x1 conv with layer_2's BN+ReLU fused as a prologue
    w3 = p["l3"][0].reshape(cout, cout).T
    y3, ss3 = _gemm_norm_stats(y2, ss2, w3)

    # 4) epilogue: BN+ReLU for layer_3 and for the shortcut, plus residual add
    out2d = _bottleneck_epilogue(y3, ss3, ysc, ss_sc)
    return out2d.reshape(n, h, w, cout)


def resunet_forward(x_nchw, params):
    x = jnp.transpose(x_nchw, (0, 2, 3, 1))  # NCHW -> NHWC

    enc1 = bottleneck_block(x, params["enc1"])
    enc2 = bottleneck_block(maxpool2x2(enc1), params["enc2"])
    enc3 = bottleneck_block(maxpool2x2(enc2), params["enc3"])
    enc4 = bottleneck_block(maxpool2x2(enc3), params["enc4"])
    bridge = bottleneck_block(maxpool2x2(enc4), params["bridge"])

    # Decoder — faithful to the reference forward: it is computed but never
    # feeds the returned output (the head is applied to enc1), so under jit it
    # is dead code and gets eliminated; semantics unchanged.
    out = conv1x1_bias(upsample2x_nearest(bridge), params["up1"])
    out = bottleneck_block(jnp.concatenate([out, enc4], axis=-1), params["dec1"])
    out = conv1x1_bias(upsample2x_nearest(out), params["up2"])
    out = bottleneck_block(jnp.concatenate([out, enc3], axis=-1), params["dec2"])
    out = conv1x1_bias(upsample2x_nearest(out), params["up3"])
    out = bottleneck_block(jnp.concatenate([out, enc2], axis=-1), params["dec3"])
    out = conv1x1_bias(upsample2x_nearest(out), params["up4"])
    out = bottleneck_block(jnp.concatenate([out, enc1], axis=-1), params["dec4"])
    del out

    # Output head (1x1 conv, Cout=3) kept in plain XLA: a 3-wide lane output in
    # Pallas would force masked partial stores and ~2% MXU utilization.
    w, b = params["out"]
    head = jnp.einsum("nhwc,oc->nhwo", enc1.astype(jnp.float32),
                      w.reshape(3, 32)) + b
    return jnp.transpose(head, (0, 3, 1, 2))  # NHWC -> NCHW


# ---------------------------------- main -------------------------------------- #

if __name__ == "__main__":
    key = jax.random.PRNGKey(0)
    kx, kp = jax.random.split(key)

    # small shapes: batch=2, in_channels=3, spatial=16 (divisible by 2^4 pools)
    x = jax.random.normal(kx, (2, 3, 16, 16), jnp.float32)
    params = init_params(kp)

    fwd = jax.jit(resunet_forward)
    y = fwd(x, params)
    y = jax.block_until_ready(y)

    assert y.shape == (2, 3, 16, 16), y.shape
    assert y.dtype == jnp.float32
    assert bool(jnp.all(jnp.isfinite(y)))
    print("KERNEL_OK")
</pallas_src>

<mosaic_0001>
module attributes {stable_mosaic.version = 11 : i64} {
  func.func @_conv3x3_norm_stats_kernel(%arg0: i32, %arg1: memref<1x456x32xbf16, #tpu.memory_space<vmem>>, %arg2: memref<8x32xf32, #tpu.memory_space<vmem>>, %arg3: memref<9x32x32xbf16, #tpu.memory_space<vmem>>, %arg4: memref<1x384x32xbf16, #tpu.memory_space<vmem>>, %arg5: memref<8x32xf32, #tpu.memory_space<vmem>>) attributes {dimension_semantics = [#tpu.dimension_semantics<parallel>], iteration_bounds = array<i64: 2>, scalar_prefetch = 0 : i64, scratch_operands = 0 : i64, tpu.core_type = #tpu.core_type<tc>, window_params = [{transform_indices = @transform_0, window_bounds = array<i64: 1, 456, 32>}, {pipeline_mode = #tpu.pipeline_mode<synchronous>, transform_indices = @transform_1, window_bounds = array<i64: 8, 32>}, {pipeline_mode = #tpu.pipeline_mode<synchronous>, transform_indices = @transform_2, window_bounds = array<i64: 9, 32, 32>}, {transform_indices = @transform_3, window_bounds = array<i64: 1, 384, 32>}, {transform_indices = @transform_4, window_bounds = array<i64: 8, 32>}]} {
    %c0 = arith.constant 0 : index
    %c0_0 = arith.constant 0 : index
    %c0_1 = arith.constant 0 : index
    %0 = vector.load %arg1[%c0, %c0_0, %c0_1] : memref<1x456x32xbf16, #tpu.memory_space<vmem>>, vector<1x456x32xbf16>
    %1 = vector.shape_cast %0 : vector<1x456x32xbf16> to vector<456x32xbf16>
    %2 = arith.extf %1 : vector<456x32xbf16> to vector<456x32xf32>
    %c0_2 = arith.constant 0 : index
    %c0_3 = arith.constant 0 : index
    %3 = vector.load %arg2[%c0_2, %c0_3] : memref<8x32xf32, #tpu.memory_space<vmem>>, vector<1x32xf32>
    %4 = vector.broadcast %3 : vector<1x32xf32> to vector<456x32xf32>
    %5 = arith.mulf %2, %4 : vector<456x32xf32>
    %c1 = arith.constant 1 : index
    %c0_4 = arith.constant 0 : index
    %6 = vector.load %arg2[%c1, %c0_4] : memref<8x32xf32, #tpu.memory_space<vmem>>, vector<1x32xf32>
    %7 = vector.broadcast %6 : vector<1x32xf32> to vector<456x32xf32>
    %8 = arith.addf %5, %7 : vector<456x32xf32>
    %cst = arith.constant 0.000000e+00 : f32
    %9 = vector.broadcast %cst : f32 to vector<456x32xf32>
    %10 = arith.maximumf %8, %9 : vector<456x32xf32>
    %cst_5 = arith.constant 0.000000e+00 : f32
    %11 = vector.broadcast %cst_5 : f32 to vector<384x32xf32>
    %12 = vector.extract_strided_slice %10 {offsets = [0, 0], sizes = [432, 32], strides = [1, 1]} : vector<456x32xf32> to vector<432x32xf32>
    %13 = arith.truncf %12 : vector<432x32xf32> to vector<432x32xbf16>
    %14 = vector.extract_strided_slice %13 {offsets = [0, 0], sizes = [384, 32], strides = [1, 1]} : vector<432x32xbf16> to vector<384x32xbf16>
    %c0_6 = arith.constant 0 : index
    %c0_7 = arith.constant 0 : index
    %c0_8 = arith.constant 0 : index
    %15 = vector.load %arg3[%c0_6, %c0_7, %c0_8] : memref<9x32x32xbf16, #tpu.memory_space<vmem>>, vector<1x32x32xbf16>
    %16 = vector.shape_cast %15 : vector<1x32x32xbf16> to vector<32x32xbf16>
    %cst_9 = arith.constant dense<0.000000e+00> : vector<384x32xf32>
    %17 = tpu.matmul %14, %16, %cst_9 {dimension_numbers = #tpu.dot_dimension_numbers<[1], [0], [0], [1], [0, 0, 1, 1], [], []>} : vector<384x32xbf16>, vector<32x32xbf16>, vector<384x32xf32> -> vector<384x32xf32>
    %18 = arith.addf %11, %17 : vector<384x32xf32>
    %19 = vector.extract_strided_slice %13 {offsets = [24, 0], sizes = [384, 32], strides = [1, 1]} : vector<432x32xbf16> to vector<384x32xbf16>
    %c3 = arith.constant 3 : index
    %c0_10 = arith.constant 0 : index
    %c0_11 = arith.constant 0 : index
    %20 = vector.load %arg3[%c3, %c0_10, %c0_11] : memref<9x32x32xbf16, #tpu.memory_space<vmem>>, vector<1x32x32xbf16>
    %21 = vector.shape_cast %20 : vector<1x32x32xbf16> to vector<32x32xbf16>
    %cst_12 = arith.constant dense<0.000000e+00> : vector<384x32xf32>
    %22 = tpu.matmul %19, %21, %cst_12 {dimension_numbers = #tpu.dot_dimension_numbers<[1], [0], [0], [1], [0, 0, 1, 1], [], []>} : vector<384x32xbf16>, vector<32x32xbf16>, vector<384x32xf32> -> vector<384x32xf32>
    %23 = arith.addf %18, %22 : vector<384x32xf32>
    %24 = vector.extract_strided_slice %13 {offsets = [48, 0], sizes = [384, 32], strides = [1, 1]} : vector<432x32xbf16> to vector<384x32xbf16>
    %c6 = arith.constant 6 : index
    %c0_13 = arith.constant 0 : index
    %c0_14 = arith.constant 0 : index
    %25 = vector.load %arg3[%c6, %c0_13, %c0_14] : memref<9x32x32xbf16, #tpu.memory_space<vmem>>, vector<1x32x32xbf16>
    %26 = vector.shape_cast %25 : vector<1x32x32xbf16> to vector<32x32xbf16>
    %cst_15 = arith.constant dense<0.000000e+00> : vector<384x32xf32>
    %27 = tpu.matmul %24, %26, %cst_15 {dimension_numbers = #tpu.dot_dimension_numbers<[1], [0], [0], [1], [0, 0, 1, 1], [], []>} : vector<384x32xbf16>, vector<32x32xbf16>, vector<384x32xf32> -> vector<384x32xf32>
    %28 = arith.addf %23, %27 : vector<384x32xf32>
    %29 = vector.extract_strided_slice %10 {offsets = [1, 0], sizes = [432, 32], strides = [1, 1]} : vector<456x32xf32> to vector<432x32xf32>
    %30 = arith.truncf %29 : vector<432x32xf32> to vector<432x32xbf16>
    %31 = vector.extract_strided_slice %30 {offsets = [0, 0], sizes = [384, 32], strides = [1, 1]} : vector<432x32xbf16> to vector<384x32xbf16>
    %c1_16 = arith.constant 1 : index
    %c0_17 = arith.constant 0 : index
    %c0_18 = arith.constant 0 : index
    %32 = vector.load %arg3[%c1_16, %c0_17, %c0_18] : memref<9x32x32xbf16, #tpu.memory_space<vmem>>, vector<1x32x32xbf16>
    %33 = vector.shape_cast %32 : vector<1x32x32xbf16> to vector<32x32xbf16>
    %cst_19 = arith.constant dense<0.000000e+00> : vector<384x32xf32>
    %34 = tpu.matmul %31, %33, %cst_19 {dimension_numbers = #tpu.dot_dimension_numbers<[1], [0], [0], [1], [0, 0, 1, 1], [], []>} : vector<384x32xbf16>, vector<32x32xbf16>, vector<384x32xf32> -> vector<384x32xf32>
    %35 = arith.addf %28, %34 : vector<384x32xf32>
    %36 = vector.extract_strided_slice %30 {offsets = [24, 0], sizes = [384, 32], strides = [1, 1]} : vector<432x32xbf16> to vector<384x32xbf16>
    %c4 = arith.constant 4 : index
    %c0_20 = arith.constant 0 : index
    %c0_21 = arith.constant 0 : index
    %37 = vector.load %arg3[%c4, %c0_20, %c0_21] : memref<9x32x32xbf16, #tpu.memory_space<vmem>>, vector<1x32x32xbf16>
    %38 = vector.shape_cast %37 : vector<1x32x32xbf16> to vector<32x32xbf16>
    %cst_22 = arith.constant dense<0.000000e+00> : vector<384x32xf32>
    %39 = tpu.matmul %36, %38, %cst_22 {dimension_numbers = #tpu.dot_dimension_numbers<[1], [0], [0], [1], [0, 0, 1, 1], [], []>} : vector<384x32xbf16>, vector<32x32xbf16>, vector<384x32xf32> -> vector<384x32xf32>
    %40 = arith.addf %35, %39 : vector<384x32xf32>
    %41 = vector.extract_strided_slice %30 {offsets = [48, 0], sizes = [384, 32], strides = [1, 1]} : vector<432x32xbf16> to vector<384x32xbf16>
    %c7 = arith.constant 7 : index
    %c0_23 = arith.constant 0 : index
    %c0_24 = arith.constant 0 : index
    %42 = vector.load %arg3[%c7, %c0_23, %c0_24] : memref<9x32x32xbf16, #tpu.memory_space<vmem>>, vector<1x32x32xbf16>
    %43 = vector.shape_cast %42 : vector<1x32x32xbf16> to vector<32x32xbf16>
    %cst_25 = arith.constant dense<0.000000e+00> : vector<384x32xf32>
    %44 = tpu.matmul %41, %43, %cst_25 {dimension_numbers = #tpu.dot_dimension_numbers<[1], [0], [0], [1], [0, 0, 1, 1], [], []>} : vector<384x32xbf16>, vector<32x32xbf16>, vector<384x32xf32> -> vector<384x32xf32>
    %45 = arith.addf %40, %44 : vector<384x32xf32>
    %46 = vector.extract_strided_slice %10 {offsets = [2, 0], sizes = [432, 32], strides = [1, 1]} : vector<456x32xf32> to vector<432x32xf32>
    %47 = arith.truncf %46 : vector<432x32xf32> to vector<432x32xbf16>
    %48 = vector.extract_strided_slice %47 {offsets = [0, 0], sizes = [384, 32], strides = [1, 1]} : vector<432x32xbf16> to vector<384x32xbf16>
    %c2 = arith.constant 2 : index
    %c0_26 = arith.constant 0 : index
    %c0_27 = arith.constant 0 : index
    %49 = vector.load %arg3[%c2, %c0_26, %c0_27] : memref<9x32x32xbf16, #tpu.memory_space<vmem>>, vector<1x32x32xbf16>
    %50 = vector.shape_cast %49 : vector<1x32x32xbf16> to vector<32x32xbf16>
    %cst_28 = arith.constant dense<0.000000e+00> : vector<384x32xf32>
    %51 = tpu.matmul %48, %50, %cst_28 {dimension_numbers = #tpu.dot_dimension_numbers<[1], [0], [0], [1], [0, 0, 1, 1], [], []>} : vector<384x32xbf16>, vector<32x32xbf16>, vector<384x32xf32> -> vector<384x32xf32>
    %52 = arith.addf %45, %51 : vector<384x32xf32>
    %53 = vector.extract_strided_slice %47 {offsets = [24, 0], sizes = [384, 32], strides = [1, 1]} : vector<432x32xbf16> to vector<384x32xbf16>
    %c5 = arith.constant 5 : index
    %c0_29 = arith.constant 0 : index
    %c0_30 = arith.constant 0 : index
    %54 = vector.load %arg3[%c5, %c0_29, %c0_30] : memref<9x32x32xbf16, #tpu.memory_space<vmem>>, vector<1x32x32xbf16>
    %55 = vector.shape_cast %54 : vector<1x32x32xbf16> to vector<32x32xbf16>
    %cst_31 = arith.constant dense<0.000000e+00> : vector<384x32xf32>
    %56 = tpu.matmul %53, %55, %cst_31 {dimension_numbers = #tpu.dot_dimension_numbers<[1], [0], [0], [1], [0, 0, 1, 1], [], []>} : vector<384x32xbf16>, vector<32x32xbf16>, vector<384x32xf32> -> vector<384x32xf32>
    %57 = arith.addf %52, %56 : vector<384x32xf32>
    %58 = vector.extract_strided_slice %47 {offsets = [48, 0], sizes = [384, 32], strides = [1, 1]} : vector<432x32xbf16> to vector<384x32xbf16>
    %c8 = arith.constant 8 : index
    %c0_32 = arith.constant 0 : index
    %c0_33 = arith.constant 0 : index
    %59 = vector.load %arg3[%c8, %c0_32, %c0_33] : memref<9x32x32xbf16, #tpu.memory_space<vmem>>, vector<1x32x32xbf16>
    %60 = vector.shape_cast %59 : vector<1x32x32xbf16> to vector<32x32xbf16>
    %cst_34 = arith.constant dense<0.000000e+00> : vector<384x32xf32>
    %61 = tpu.matmul %58, %60, %cst_34 {dimension_numbers = #tpu.dot_dimension_numbers<[1], [0], [0], [1], [0, 0, 1, 1], [], []>} : vector<384x32xbf16>, vector<32x32xbf16>, vector<384x32xf32> -> vector<384x32xf32>
    %62 = arith.addf %57, %61 : vector<384x32xf32>
    %63 = vector.shape_cast %62 : vector<384x32xf32> to vector<1x384x32xf32>
    %64 = arith.truncf %63 : vector<1x384x32xf32> to vector<1x384x32xbf16>
    %c0_35 = arith.constant 0 : index
    %c0_36 = arith.constant 0 : index
    %c0_37 = arith.constant 0 : index
    %65 = vector.load %arg4[%c0_35, %c0_36, %c0_37] : memref<1x384x32xbf16, #tpu.memory_space<vmem>>, vector<1x384x32xbf16>
    tpu.vector_store %arg4[%c0_35, %c0_36, %c0_37], %64 {strides = array<i32>} : memref<1x384x32xbf16, #tpu.memory_space<vmem>>, vector<1x384x32xbf16>,
    %66 = tpu.iota {dimensions = array<i32: 0>} : vector<384x1xi32>
    %c24_i32 = arith.constant 24 : i32
    %c0_i32 = arith.constant 0 : i32
    %67 = arith.cmpi eq, %c24_i32, %c0_i32 : i32
    %c1_i32 = arith.constant 1 : i32
    %68 = arith.select %67, %c1_i32, %c24_i32 : i32
    %69 = vector.broadcast %68 : i32 to vector<384x1xi32>
    %70 = arith.remsi %66, %69 : vector<384x1xi32>
    %c0_i32_38 = arith.constant 0 : i32
    %71 = vector.broadcast %c0_i32_38 : i32 to vector<384x1xi32>
    %72 = arith.cmpi ne, %70, %71 : vector<384x1xi32>
    %c0_i32_39 = arith.constant 0 : i32
    %73 = vector.broadcast %c0_i32_39 : i32 to vector<384x1xi32>
    %74 = arith.cmpi slt, %70, %73 : vector<384x1xi32>
    %c0_i32_40 = arith.constant 0 : i32
    %75 = arith.cmpi slt, %68, %c0_i32_40 : i32
    %76 = vector.broadcast %75 : i1 to vector<384x1xi1>
    %77 = vector.broadcast %76 : vector<384x1xi1> to vector<384x1xi1>
    %78 = arith.xori %74, %77 : vector<384x1xi1>
    %79 = arith.andi %78, %72 : vector<384x1xi1>
    %80 = vector.broadcast %68 : i32 to vector<384x1xi32>
    %81 = arith.addi %70, %80 : vector<384x1xi32>
    %82 = arith.select %79, %81, %70 : vector<384x1xi1>, vector<384x1xi32>
    %c16_i32 = arith.constant 16 : i32
    %83 = vector.broadcast %c16_i32 : i32 to vector<384x1xi32>
    %84 = arith.cmpi slt, %82, %83 : vector<384x1xi32>
    %cst_41 = arith.constant 0.000000e+00 : f32
    %85 = vector.shape_cast %84 : vector<384x1xi1> to vector<384x1xi1>
    %86 = vector.broadcast %85 : vector<384x1xi1> to vector<384x32xi1>
    %87 = vector.broadcast %cst_41 : f32 to vector<384x32xf32>
    %88 = arith.select %86, %62, %87 : vector<384x32xi1>, vector<384x32xf32>
    %cst_42 = arith.constant dense<0.000000e+00> : vector<32xf32>
    %89 = vector.multi_reduction <add>, %88, %cst_42 [0] : vector<384x32xf32> to vector<32xf32>
    %90 = vector.shape_cast %89 : vector<32xf32> to vector<1x32xf32>
    %c0_43 = arith.constant 0 : index
    %c0_44 = arith.constant 0 : index
    %91 = vector.load %arg5[%c0_43, %c0_44] : memref<8x32xf32, #tpu.memory_space<vmem>>, vector<1x32xf32>
    tpu.vector_store %arg5[%c0_43, %c0_44], %90 {strides = array<i32>} : memref<8x32xf32, #tpu.memory_space<vmem>>, vector<1x32xf32>,
    %92 = arith.mulf %88, %88 : vector<384x32xf32>
    %cst_45 = arith.constant dense<0.000000e+00> : vector<32xf32>
    %93 = vector.multi_reduction <add>, %92, %cst_45 [0] : vector<384x32xf32> to vector<32xf32>
    %94 = vector.shape_cast %93 : vector<32xf32> to vector<1x32xf32>
    %c1_46 = arith.constant 1 : index
    %c0_47 = arith.constant 0 : index
    %95 = vector.load %arg5[%c1_46, %c0_47] : memref<8x32xf32, #tpu.memory_space<vmem>>, vector<1x32xf32>
    tpu.vector_store %arg5[%c1_46, %c0_47], %94 {strides = array<i32>} : memref<8x32xf32, #tpu.memory_space<vmem>>, vector<1x32xf32>,
    return
  }
  func.func @transform_0(%arg0: i32) -> (i32, i32, i32) {
    %c0_i32 = arith.constant 0 : i32
    %c0_i32_0 = arith.constant 0 : i32
    %c0_i32_1 = arith.constant 0 : i32
    return %arg0, %c0_i32, %c0_i32_0 : i32, i32, i32
  }
  func.func @transform_1(%arg0: i32) -> (i32, i32) {
    %c0_i32 = arith.constant 0 : i32
    %c0_i32_0 = arith.constant 0 : i32
    %c0_i32_1 = arith.constant 0 : i32
    return %c0_i32, %c0_i32_0 : i32, i32
  }
  func.func @transform_2(%arg0: i32) -> (i32, i32, i32) {
    %c0_i32 = arith.constant 0 : i32
    %c0_i32_0 = arith.constant 0 : i32
    %c0_i32_1 = arith.constant 0 : i32
    %c0_i32_2 = arith.constant 0 : i32
    return %c0_i32, %c0_i32_0, %c0_i32_1 : i32, i32, i32
  }
  func.func @transform_3(%arg0: i32) -> (i32, i32, i32) {
    %c0_i32 = arith.constant 0 : i32
    %c0_i32_0 = arith.constant 0 : i32
    %c0_i32_1 = arith.constant 0 : i32
    return %arg0, %c0_i32, %c0_i32_0 : i32, i32, i32
  }
  func.func @transform_4(%arg0: i32) -> (i32, i32) {
    %c0_i32 = arith.constant 0 : i32
    %c0_i32_0 = arith.constant 0 : i32
    return %arg0, %c0_i32 : i32, i32
  }
}

module attributes {stable_mosaic.version = 11 : i64} {
  func.func @_dual_gemm_stats_kernel(%arg0: i32, %arg1: memref<256x8xbf16, #tpu.memory_space<vmem>>, %arg2: memref<8x32xbf16, #tpu.memory_space<vmem>>, %arg3: memref<8x32xbf16, #tpu.memory_space<vmem>>, %arg4: memref<256x32xbf16, #tpu.memory_space<vmem>>, %arg5: memref<256x32xbf16, #tpu.memory_space<vmem>>, %arg6: memref<8x32xf32, #tpu.memory_space<vmem>>, %arg7: memref<8x32xf32, #tpu.memory_space<vmem>>) attributes {dimension_semantics = [#tpu.dimension_semantics<parallel>], iteration_bounds = array<i64: 2>, scalar_prefetch = 0 : i64, scratch_operands = 0 : i64, tpu.core_type = #tpu.core_type<tc>, window_params = [{transform_indices = @transform_0, window_bounds = array<i64: 256, 8>}, {pipeline_mode = #tpu.pipeline_mode<synchronous>, transform_indices = @transform_1, window_bounds = array<i64: 8, 32>}, {pipeline_mode = #tpu.pipeline_mode<synchronous>, transform_indices = @transform_2, window_bounds = array<i64: 8, 32>}, {transform_indices = @transform_3, window_bounds = array<i64: 256, 32>}, {transform_indices = @transform_4, window_bounds = array<i64: 256, 32>}, {transform_indices = @transform_5, window_bounds = array<i64: 8, 32>}, {transform_indices = @transform_6, window_bounds = array<i64: 8, 32>}]} {
    %c0 = arith.constant 0 : index
    %c0_0 = arith.constant 0 : index
    %0 = vector.load %arg1[%c0, %c0_0] : memref<256x8xbf16, #tpu.memory_space<vmem>>, vector<256x8xbf16>
    %c0_1 = arith.constant 0 : index
    %c0_2 = arith.constant 0 : index
    %1 = vector.load %arg2[%c0_1, %c0_2] : memref<8x32xbf16, #tpu.memory_space<vmem>>, vector<8x32xbf16>
    %cst = arith.constant dense<0.000000e+00> : vector<256x32xf32>
    %2 = tpu.matmul %0, %1, %cst {dimension_numbers = #tpu.dot_dimension_numbers<[1], [0], [0], [1], [0, 0, 1, 1], [], []>} : vector<256x8xbf16>, vector<8x32xbf16>, vector<256x32xf32> -> vector<256x32xf32>
    %c0_3 = arith.constant 0 : index
    %c0_4 = arith.constant 0 : index
    %3 = vector.load %arg3[%c0_3, %c0_4] : memref<8x32xbf16, #tpu.memory_space<vmem>>, vector<8x32xbf16>
    %cst_5 = arith.constant dense<0.000000e+00> : vector<256x32xf32>
    %4 = tpu.matmul %0, %3, %cst_5 {dimension_numbers = #tpu.dot_dimension_numbers<[1], [0], [0], [1], [0, 0, 1, 1], [], []>} : vector<256x8xbf16>, vector<8x32xbf16>, vector<256x32xf32> -> vector<256x32xf32>
    %5 = arith.truncf %2 : vector<256x32xf32> to vector<256x32xbf16>
    %c0_6 = arith.constant 0 : index
    %c0_7 = arith.constant 0 : index
    %6 = vector.load %arg4[%c0_6, %c0_7] : memref<256x32xbf16, #tpu.memory_space<vmem>>, vector<256x32xbf16>
    tpu.vector_store %arg4[%c0_6, %c0_7], %5 {strides = array<i32>} : memref<256x32xbf16, #tpu.memory_space<vmem>>, vector<256x32xbf16>,
    %7 = arith.truncf %4 : vector<256x32xf32> to vector<256x32xbf16>
    %c0_8 = arith.constant 0 : index
    %c0_9 = arith.constant 0 : index
    %8 = vector.load %arg5[%c0_8, %c0_9] : memref<256x32xbf16, #tpu.memory_space<vmem>>, vector<256x32xbf16>
    tpu.vector_store %arg5[%c0_8, %c0_9], %7 {strides = array<i32>} : memref<256x32xbf16, #tpu.memory_space<vmem>>, vector<256x32xbf16>,
    %cst_10 = arith.constant dense<0.000000e+00> : vector<32xf32>
    %9 = vector.multi_reduction <add>, %2, %cst_10 [0] : vector<256x32xf32> to vector<32xf32>
    %10 = vector.shape_cast %9 : vector<32xf32> to vector<1x32xf32>
    %c0_11 = arith.constant 0 : index
    %c0_12 = arith.constant 0 : index
    %11 = vector.load %arg6[%c0_11, %c0_12] : memref<8x32xf32, #tpu.memory_space<vmem>>, vector<1x32xf32>
    tpu.vector_store %arg6[%c0_11, %c0_12], %10 {strides = array<i32>} : memref<8x32xf32, #tpu.memory_space<vmem>>, vector<1x32xf32>,
    %12 = arith.mulf %2, %2 : vector<256x32xf32>
    %cst_13 = arith.constant dense<0.000000e+00> : vector<32xf32>
    %13 = vector.multi_reduction <add>, %12, %cst_13 [0] : vector<256x32xf32> to vector<32xf32>
    %14 = vector.shape_cast %13 : vector<32xf32> to vector<1x32xf32>
    %c1 = arith.constant 1 : index
    %c0_14 = arith.constant 0 : index
    %15 = vector.load %arg6[%c1, %c0_14] : memref<8x32xf32, #tpu.memory_space<vmem>>, vector<1x32xf32>
    tpu.vector_store %arg6[%c1, %c0_14], %14 {strides = array<i32>} : memref<8x32xf32, #tpu.memory_space<vmem>>, vector<1x32xf32>,
    %cst_15 = arith.constant dense<0.000000e+00> : vector<32xf32>
    %16 = vector.multi_reduction <add>, %4, %cst_15 [0] : vector<256x32xf32> to vector<32xf32>
    %17 = vector.shape_cast %16 : vector<32xf32> to vector<1x32xf32>
    %c0_16 = arith.constant 0 : index
    %c0_17 = arith.constant 0 : index
    %18 = vector.load %arg7[%c0_16, %c0_17] : memref<8x32xf32, #tpu.memory_space<vmem>>, vector<1x32xf32>
    tpu.vector_store %arg7[%c0_16, %c0_17], %17 {strides = array<i32>} : memref<8x32xf32, #tpu.memory_space<vmem>>, vector<1x32xf32>,
    %19 = arith.mulf %4, %4 : vector<256x32xf32>
    %cst_18 = arith.constant dense<0.000000e+00> : vector<32xf32>
    %20 = vector.multi_reduction <add>, %19, %cst_18 [0] : vector<256x32xf32> to vector<32xf32>
    %21 = vector.shape_cast %20 : vector<32xf32> to vector<1x32xf32>
    %c1_19 = arith.constant 1 : index
    %c0_20 = arith.constant 0 : index
    %22 = vector.load %arg7[%c1_19, %c0_20] : memref<8x32xf32, #tpu.memory_space<vmem>>, vector<1x32xf32>
    tpu.vector_store %arg7[%c1_19, %c0_20], %21 {strides = array<i32>} : memref<8x32xf32, #tpu.memory_space<vmem>>, vector<1x32xf32>,
    return
  }
  func.func @transform_0(%arg0: i32) -> (i32, i32) {
    %c0_i32 = arith.constant 0 : i32
    %c0_i32_0 = arith.constant 0 : i32
    return %arg0, %c0_i32 : i32, i32
  }
  func.func @transform_1(%arg0: i32) -> (i32, i32) {
    %c0_i32 = arith.constant 0 : i32
    %c0_i32_0 = arith.constant 0 : i32
    %c0_i32_1 = arith.constant 0 : i32
    return %c0_i32, %c0_i32_0 : i32, i32
  }
  func.func @transform_2(%arg0: i32) -> (i32, i32) {
    %c0_i32 = arith.constant 0 : i32
    %c0_i32_0 = arith.constant 0 : i32
    %c0_i32_1 = arith.constant 0 : i32
    return %c0_i32, %c0_i32_0 : i32, i32
  }
  func.func @transform_3(%arg0: i32) -> (i32, i32) {
    %c0_i32 = arith.constant 0 : i32
    %c0_i32_0 = arith.constant 0 : i32
    return %arg0, %c0_i32 : i32, i32
  }
  func.func @transform_4(%arg0: i32) -> (i32, i32) {
    %c0_i32 = arith.constant 0 : i32
    %c0_i32_0 = arith.constant 0 : i32
    return %arg0, %c0_i32 : i32, i32
  }
  func.func @transform_5(%arg0: i32) -> (i32, i32) {
    %c0_i32 = arith.constant 0 : i32
    %c0_i32_0 = arith.constant 0 : i32
    return %arg0, %c0_i32 : i32, i32
  }
  func.func @transform_6(%arg0: i32) -> (i32, i32) {
    %c0_i32 = arith.constant 0 : i32
    %c0_i32_0 = arith.constant 0 : i32
    return %arg0, %c0_i32 : i32, i32
  }
}

module attributes {stable_mosaic.version = 11 : i64} {
  func.func @_gemm_norm_stats_kernel(%arg0: i32, %arg1: memref<256x32xbf16, #tpu.memory_space<vmem>>, %arg2: memref<8x32xf32, #tpu.memory_space<vmem>>, %arg3: memref<32x32xbf16, #tpu.memory_space<vmem>>, %arg4: memref<256x32xbf16, #tpu.memory_space<vmem>>, %arg5: memref<8x32xf32, #tpu.memory_space<vmem>>) attributes {dimension_semantics = [#tpu.dimension_semantics<parallel>], iteration_bounds = array<i64: 2>, scalar_prefetch = 0 : i64, scratch_operands = 0 : i64, tpu.core_type = #tpu.core_type<tc>, window_params = [{transform_indices = @transform_0, window_bounds = array<i64: 256, 32>}, {pipeline_mode = #tpu.pipeline_mode<synchronous>, transform_indices = @transform_1, window_bounds = array<i64: 8, 32>}, {pipeline_mode = #tpu.pipeline_mode<synchronous>, transform_indices = @transform_2, window_bounds = array<i64: 32, 32>}, {transform_indices = @transform_3, window_bounds = array<i64: 256, 32>}, {transform_indices = @transform_4, window_bounds = array<i64: 8, 32>}]} {
    %c0 = arith.constant 0 : index
    %c0_0 = arith.constant 0 : index
    %0 = vector.load %arg1[%c0, %c0_0] : memref<256x32xbf16, #tpu.memory_space<vmem>>, vector<256x32xbf16>
    %1 = arith.extf %0 : vector<256x32xbf16> to vector<256x32xf32>
    %c0_1 = arith.constant 0 : index
    %c0_2 = arith.constant 0 : index
    %2 = vector.load %arg2[%c0_1, %c0_2] : memref<8x32xf32, #tpu.memory_space<vmem>>, vector<1x32xf32>
    %3 = vector.broadcast %2 : vector<1x32xf32> to vector<256x32xf32>
    %4 = arith.mulf %1, %3 : vector<256x32xf32>
    %c1 = arith.constant 1 : index
    %c0_3 = arith.constant 0 : index
    %5 = vector.load %arg2[%c1, %c0_3] : memref<8x32xf32, #tpu.memory_space<vmem>>, vector<1x32xf32>
    %6 = vector.broadcast %5 : vector<1x32xf32> to vector<256x32xf32>
    %7 = arith.addf %4, %6 : vector<256x32xf32>
    %cst = arith.constant 0.000000e+00 : f32
    %8 = vector.broadcast %cst : f32 to vector<256x32xf32>
    %9 = arith.maximumf %7, %8 : vector<256x32xf32>
    %10 = arith.truncf %9 : vector<256x32xf32> to vector<256x32xbf16>
    %c0_4 = arith.constant 0 : index
    %c0_5 = arith.constant 0 : index
    %11 = vector.load %arg3[%c0_4, %c0_5] : memref<32x32xbf16, #tpu.memory_space<vmem>>, vector<32x32xbf16>
    %cst_6 = arith.constant dense<0.000000e+00> : vector<256x32xf32>
    %12 = tpu.matmul %10, %11, %cst_6 {dimension_numbers = #tpu.dot_dimension_numbers<[1], [0], [0], [1], [0, 0, 1, 1], [], []>} : vector<256x32xbf16>, vector<32x32xbf16>, vector<256x32xf32> -> vector<256x32xf32>
    %13 = arith.truncf %12 : vector<256x32xf32> to vector<256x32xbf16>
    %c0_7 = arith.constant 0 : index
    %c0_8 = arith.constant 0 : index
    %14 = vector.load %arg4[%c0_7, %c0_8] : memref<256x32xbf16, #tpu.memory_space<vmem>>, vector<256x32xbf16>
    tpu.vector_store %arg4[%c0_7, %c0_8], %13 {strides = array<i32>} : memref<256x32xbf16, #tpu.memory_space<vmem>>, vector<256x32xbf16>,
    %cst_9 = arith.constant dense<0.000000e+00> : vector<32xf32>
    %15 = vector.multi_reduction <add>, %12, %cst_9 [0] : vector<256x32xf32> to vector<32xf32>
    %16 = vector.shape_cast %15 : vector<32xf32> to vector<1x32xf32>
    %c0_10 = arith.constant 0 : index
    %c0_11 = arith.constant 0 : index
    %17 = vector.load %arg5[%c0_10, %c0_11] : memref<8x32xf32, #tpu.memory_space<vmem>>, vector<1x32xf32>
    tpu.vector_store %arg5[%c0_10, %c0_11], %16 {strides = array<i32>} : memref<8x32xf32, #tpu.memory_space<vmem>>, vector<1x32xf32>,
    %18 = arith.mulf %12, %12 : vector<256x32xf32>
    %cst_12 = arith.constant dense<0.000000e+00> : vector<32xf32>
    %19 = vector.multi_reduction <add>, %18, %cst_12 [0] : vector<256x32xf32> to vector<32xf32>
    %20 = vector.shape_cast %19 : vector<32xf32> to vector<1x32xf32>
    %c1_13 = arith.constant 1 : index
    %c0_14 = arith.constant 0 : index
    %21 = vector.load %arg5[%c1_13, %c0_14] : memref<8x32xf32, #tpu.memory_space<vmem>>, vector<1x32xf32>
    tpu.vector_store %arg5[%c1_13, %c0_14], %20 {strides = array<i32>} : memref<8x32xf32, #tpu.memory_space<vmem>>, vector<1x32xf32>,
    return
  }
  func.func @transform_0(%arg0: i32) -> (i32, i32) {
    %c0_i32 = arith.constant 0 : i32
    %c0_i32_0 = arith.constant 0 : i32
    return %arg0, %c0_i32 : i32, i32
  }
  func.func @transform_1(%arg0: i32) -> (i32, i32) {
    %c0_i32 = arith.constant 0 : i32
    %c0_i32_0 = arith.constant 0 : i32
    %c0_i32_1 = arith.constant 0 : i32
    return %c0_i32, %c0_i32_0 : i32, i32
  }
  func.func @transform_2(%arg0: i32) -> (i32, i32) {
    %c0_i32 = arith.constant 0 : i32
    %c0_i32_0 = arith.constant 0 : i32
    %c0_i32_1 = arith.constant 0 : i32
    return %c0_i32, %c0_i32_0 : i32, i32
  }
  func.func @transform_3(%arg0: i32) -> (i32, i32) {
    %c0_i32 = arith.constant 0 : i32
    %c0_i32_0 = arith.constant 0 : i32
    return %arg0, %c0_i32 : i32, i32
  }
  func.func @transform_4(%arg0: i32) -> (i32, i32) {
    %c0_i32 = arith.constant 0 : i32
    %c0_i32_0 = arith.constant 0 : i32
    return %arg0, %c0_i32 : i32, i32
  }
}

module attributes {stable_mosaic.version = 11 : i64} {
  func.func @_epilogue_kernel(%arg0: i32, %arg1: memref<64x128xbf16, #tpu.memory_space<vmem>>, %arg2: memref<8x128xf32, #tpu.memory_space<vmem>>, %arg3: memref<64x128xbf16, #tpu.memory_space<vmem>>, %arg4: memref<8x128xf32, #tpu.memory_space<vmem>>, %arg5: memref<64x128xbf16, #tpu.memory_space<vmem>>) attributes {dimension_semantics = [#tpu.dimension_semantics<parallel>], iteration_bounds = array<i64: 2>, scalar_prefetch = 0 : i64, scratch_operands = 0 : i64, tpu.core_type = #tpu.core_type<tc>, window_params = [{transform_indices = @transform_0, window_bounds = array<i64: 64, 128>}, {pipeline_mode = #tpu.pipeline_mode<synchronous>, transform_indices = @transform_1, window_bounds = array<i64: 8, 128>}, {transform_indices = @transform_2, window_bounds = array<i64: 64, 128>}, {pipeline_mode = #tpu.pipeline_mode<synchronous>, transform_indices = @transform_3, window_bounds = array<i64: 8, 128>}, {transform_indices = @transform_4, window_bounds = array<i64: 64, 128>}]} {
    %c0 = arith.constant 0 : index
    %c0_0 = arith.constant 0 : index
    %0 = vector.load %arg1[%c0, %c0_0] : memref<64x128xbf16, #tpu.memory_space<vmem>>, vector<64x128xbf16>
    %1 = arith.extf %0 : vector<64x128xbf16> to vector<64x128xf32>
    %c0_1 = arith.constant 0 : index
    %c0_2 = arith.constant 0 : index
    %2 = vector.load %arg2[%c0_1, %c0_2] : memref<8x128xf32, #tpu.memory_space<vmem>>, vector<1x128xf32>
    %3 = vector.broadcast %2 : vector<1x128xf32> to vector<64x128xf32>
    %4 = arith.mulf %1, %3 : vector<64x128xf32>
    %c1 = arith.constant 1 : index
    %c0_3 = arith.constant 0 : index
    %5 = vector.load %arg2[%c1, %c0_3] : memref<8x128xf32, #tpu.memory_space<vmem>>, vector<1x128xf32>
    %6 = vector.broadcast %5 : vector<1x128xf32> to vector<64x128xf32>
    %7 = arith.addf %4, %6 : vector<64x128xf32>
    %cst = arith.constant 0.000000e+00 : f32
    %8 = vector.broadcast %cst : f32 to vector<64x128xf32>
    %9 = arith.maximumf %7, %8 : vector<64x128xf32>
    %c0_4 = arith.constant 0 : index
    %c0_5 = arith.constant 0 : index
    %10 = vector.load %arg3[%c0_4, %c0_5] : memref<64x128xbf16, #tpu.memory_space<vmem>>, vector<64x128xbf16>
    %11 = arith.extf %10 : vector<64x128xbf16> to vector<64x128xf32>
    %c0_6 = arith.constant 0 : index
    %c0_7 = arith.constant 0 : index
    %12 = vector.load %arg4[%c0_6, %c0_7] : memref<8x128xf32, #tpu.memory_space<vmem>>, vector<1x128xf32>
    %13 = vector.broadcast %12 : vector<1x128xf32> to vector<64x128xf32>
    %14 = arith.mulf %11, %13 : vector<64x128xf32>
    %c1_8 = arith.constant 1 : index
    %c0_9 = arith.constant 0 : index
    %15 = vector.load %arg4[%c1_8, %c0_9] : memref<8x128xf32, #tpu.memory_space<vmem>>, vector<1x128xf32>
    %16 = vector.broadcast %15 : vector<1x128xf32> to vector<64x128xf32>
    %17 = arith.addf %14, %16 : vector<64x128xf32>
    %cst_10 = arith.constant 0.000000e+00 : f32
    %18 = vector.broadcast %cst_10 : f32 to vector<64x128xf32>
    %19 = arith.maximumf %17, %18 : vector<64x128xf32>
    %20 = arith.addf %9, %19 : vector<64x128xf32>
    %21 = arith.truncf %20 : vector<64x128xf32> to vector<64x128xbf16>
    %c0_11 = arith.constant 0 : index
    %c0_12 = arith.constant 0 : index
    %22 = vector.load %arg5[%c0_11, %c0_12] : memref<64x128xbf16, #tpu.memory_space<vmem>>, vector<64x128xbf16>
    tpu.vector_store %arg5[%c0_11, %c0_12], %21 {strides = array<i32>} : memref<64x128xbf16, #tpu.memory_space<vmem>>, vector<64x128xbf16>,
    return
  }
  func.func @transform_0(%arg0: i32) -> (i32, i32) {
    %c0_i32 = arith.constant 0 : i32
    %c0_i32_0 = arith.constant 0 : i32
    return %arg0, %c0_i32 : i32, i32
  }
  func.func @transform_1(%arg0: i32) -> (i32, i32) {
    %c0_i32 = arith.constant 0 : i32
    %c0_i32_0 = arith.constant 0 : i32
    %c0_i32_1 = arith.constant 0 : i32
    return %c0_i32, %c0_i32_0 : i32, i32
  }
  func.func @transform_2(%arg0: i32) -> (i32, i32) {
    %c0_i32 = arith.constant 0 : i32
    %c0_i32_0 = arith.constant 0 : i32
    return %arg0, %c0_i32 : i32, i32
  }
  func.func @transform_3(%arg0: i32) -> (i32, i32) {
    %c0_i32 = arith.constant 0 : i32
    %c0_i32_0 = arith.constant 0 : i32
    %c0_i32_1 = arith.constant 0 : i32
    return %c0_i32, %c0_i32_0 : i32, i32
  }
  func.func @transform_4(%arg0: i32) -> (i32, i32) {
    %c0_i32 = arith.constant 0 : i32
    %c0_i32_0 = arith.constant 0 : i32
    return %arg0, %c0_i32 : i32, i32
  }
}

</mosaic_0001>

<llo_original>
// kernel: tile.19
$region0: #{tile.19}
  %s0 = inlined_call_operand.vmem [shape: f32[8,4,32], index: 0, kind: input, shape index: {}]
  %s1 = inlined_call_operand.vmem [shape: f32[8,128], index: 1, kind: output, shape index: {}]
  $region1: #{tile.19} parent=0
    #allocation0 [shape = 'u8[32768]{0}', space=vmem, size = 0x8000, scoped, tag = 'scoped mem for input reshape']
    %s3 = sshllo.u32 0, 4
    %s4 = smul.addr 4, 7
    %s5 = scalar_lea.vmem %s0, %s4
    %v6 = vld [vmem:[%s5] sm:%s3]
    %s7 = scalar_lea.vmem [#allocation0], 56
    %8 = vst [vmem:[%s7] sm:%s3] %v6
    %s9 = smul.addr 4, 6
    %s10 = scalar_lea.vmem %s0, %s9
    %v11 = vld [vmem:[%s10] sm:%s3]
    %s12 = scalar_lea.vmem [#allocation0], 48
    %13 = vst [vmem:[%s12] sm:%s3] %v11
    %s14 = smul.addr 4, 5
    %s15 = scalar_lea.vmem %s0, %s14
    %v16 = vld [vmem:[%s15] sm:%s3]
    %s17 = scalar_lea.vmem [#allocation0], 40
    %18 = vst [vmem:[%s17] sm:%s3] %v16
    %s19 = smul.addr 4, 4
    %s20 = scalar_lea.vmem %s0, %s19
    %v21 = vld [vmem:[%s20] sm:%s3]
    %s22 = scalar_lea.vmem [#allocation0], 32
    %23 = vst [vmem:[%s22] sm:%s3] %v21
    %s24 = smul.addr 4, 3
    %s25 = scalar_lea.vmem %s0, %s24
    %v26 = vld [vmem:[%s25] sm:%s3]
    %s27 = scalar_lea.vmem [#allocation0], 24
    %28 = vst [vmem:[%s27] sm:%s3] %v26
    %s29 = smul.addr 4, 2
    %s30 = scalar_lea.vmem %s0, %s29
    %v31 = vld [vmem:[%s30] sm:%s3]
    %s32 = scalar_lea.vmem [#allocation0], 16
    %33 = vst [vmem:[%s32] sm:%s3] %v31
    %s34 = scalar_lea.vmem %s0, 4
    %v35 = vld [vmem:[%s34] sm:%s3]
    %s36 = scalar_lea.vmem [#allocation0], 8
    %37 = vst [vmem:[%s36] sm:%s3] %v35
    %v38 = vld [vmem:[%s0] sm:%s3]
    %39 = vst [vmem:[#allocation0] sm:%s3] %v38
    %v40 = vld [vmem:[#allocation0] ss:$8 sm:$0xf]
    %v41 = vld [vmem:[#allocation0] ss:$8 sm:$0xf0]
    %vm42 = vcmask 1047556
    %v43 = vsel %vm42, %v41, %v40
    %vm44 = vcmask 261120
    %45 = vst.msk [vmem:[%s1] sm:$0xff] %vm44, %v43
    %s46 = scalar_lea.vmem [#allocation0], 3
    %v47 = vld [vmem:[%s46] ss:$8 sm:$0xf]
    %s48 = scalar_lea.vmem [#allocation0], 3
    %v49 = vld [vmem:[%s48] ss:$8 sm:$0xf0]
    %vm50 = vcmask 1047556
    %v51 = vsel %vm50, %v49, %v47
    %52 = vrot.lane.b32.xlu0 %v51, 96
    %v53 = vpop.permute.xlu0 %52
    %vm54 = vcmask 1048320
    %55 = vst.msk [vmem:[%s1] sm:$0xff] %vm54, %v53
    %s56 = scalar_lea.vmem [#allocation0], 2
    %v57 = vld [vmem:[%s56] ss:$8 sm:$0xf]
    %s58 = scalar_lea.vmem [#allocation0], 2
    %v59 = vld [vmem:[%s58] ss:$8 sm:$0xf0]
    %vm60 = vcmask 1047556
    %v61 = vsel %vm60, %v59, %v57
    %62 = vrot.lane.b32.xlu0 %v61, 64
    %v63 = vpop.permute.xlu0 %62
    %vm64 = vcmask 785920
    %65 = vst.msk [vmem:[%s1] sm:$0xff] %vm64, %v63
    %s66 = scalar_lea.vmem [#allocation0], 1
    %v67 = vld [vmem:[%s66] ss:$8 sm:$0xf]
    %s68 = scalar_lea.vmem [#allocation0], 1
    %v69 = vld [vmem:[%s68] ss:$8 sm:$0xf0]
    %vm70 = vcmask 1047556
    %v71 = vsel %vm70, %v69, %v67
    %72 = vrot.lane.b32.xlu0 %v71, 32
    %v73 = vpop.permute.xlu0 %72
    %vm74 = vcmask 523520
    %75 = vst.msk [vmem:[%s1] sm:$0xff] %vm74, %v73

// kernel: resunet_forward.6
$region0: #{resunet_forward.6}
  #allocation0 [shape = 'u32[]', space=smem, size = 0x4, offset = 0x4, fixed_abs, tag = 'smem constant byte address 0x4 - core index']
  #allocation1 [shape = 'u32[144,128]{1,0:T(1,128)}', space=vmem, size = 0x12000, scoped, tag = 'internal scratch']
  %s0 = inlined_call_operand.vmem [shape: bf16[512,32], index: 0, kind: input, shape index: {}]
  %s1 = inlined_call_operand.vmem [shape: f32[8,32], index: 1, kind: input, shape index: {}]
  %s2 = inlined_call_operand.vmem [shape: bf16[32,32], index: 2, kind: input, shape index: {}]
  %s3 = inlined_call_operand.vmem [shape: bf16[512,32], index: 3, kind: output, shape index: {0}]
  %s4 = inlined_call_operand.vmem [shape: f32[16,32], index: 4, kind: output, shape index: {1}]
  %5 = xla_tuple %s3, %s4
  %s6 = sld [smem:[#allocation0]]
  $region53: #{resunet_forward.6} parent=0
    _
  %s8 = ssub.s32 1, %s6
  %s9 = scalar_select 0, %s8, %s6
  loop: start=0, step=1, limit=4
  $region2: #{resunet_forward.6} parent=0 // loop_pre_header
    _
  $region3: #{resunet_forward.6} parent=0 // loop_header
    %s11 = sphi 0, %s15
    %p12 = scmp.ge.s32.totalorder %s11, 4
    %s21 = sphi 0, %s23
    %s24 = sphi 0, %s21
    %s25 = sphi 0, %s24
    %s41 = sphi 0, %s25
    %s45 = sphi 0, %s45
    %s47 = sphi 0, %s45
    %s48 = sphi 0, %s47
    %s62 = sphi 0, %s48
    %s66 = sphi 0, %s66
    %s68 = sphi 0, %s66
    %s69 = sphi 0, %s68
    %s83 = sphi 0, %s69
    %s89 = sphi 0, %s91
    %s92 = sphi 0, %s89
    %s93 = sphi 0, %s92
    %s109 = sphi 0, %s93
    %s115 = sphi 0, %s117
    %s118 = sphi 0, %s115
    %s119 = sphi 0, %s118
    %s135 = sphi 0, %s119
  $region4: #{resunet_forward.6} parent=0 // loop_header_branch
    %14 = sbr.rel (%p12) target = $region8
  $region5: #{resunet_forward.6} parent=0 // loop_body
    %s16 = ssub.s32 %s11, 1
    %s17 = ssub.s32 %s11, 2
    %s18 = sadd.s32 %s11, 1
    %s19 = ssub.s32 %s11, %s18
    %p20 = scmp.eq.s32.totalorder %s19, 0
    %s22 = sadd.s32 %s21, 1
    %s23 = scalar_select %p20, %s21, %s22
    %p26 = pneg %p20
    %p27 = scmp.eq.s32.totalorder %s11, 1
    %p28 = por %p26, %p27
    %p29 = scmp.ne.s32.totalorder %s21, %s24
    %p30 = scmp.eq.s32.totalorder %s11, 0
    %p31 = por %p29, %p30
    %p32 = scmp.ne.s32.totalorder %s21, %s24
    %p33 = scmp.eq.s32.totalorder %s16, 1
    %p34 = por %p32, %p33
    %p35 = scmp.ne.s32.totalorder %s24, %s25
    %p36 = scmp.eq.s32.totalorder %s16, 0
    %p37 = por %p35, %p36
    %p38 = scmp.ne.s32.totalorder %s24, %s25
    %p39 = scmp.eq.s32.totalorder %s17, 1
    %p40 = por %p38, %p39
    %p42 = scmp.ne.s32.totalorder %s25, %s41
    %p43 = scmp.eq.s32.totalorder %s17, 0
    %p44 = por %p42, %p43
    %s46 = sadd.s32 %s45, 1
    %p49 = scmp.eq.s32.totalorder %s11, 1
    %p50 = scmp.ne.s32.totalorder %s45, %s47
    %p51 = scmp.eq.s32.totalorder %s11, 0
    %p52 = por %p50, %p51
    %p53 = scmp.ne.s32.totalorder %s45, %s47
    %p54 = scmp.eq.s32.totalorder %s16, 1
    %p55 = por %p53, %p54
    %p56 = scmp.ne.s32.totalorder %s47, %s48
    %p57 = scmp.eq.s32.totalorder %s16, 0
    %p58 = por %p56, %p57
    %p59 = scmp.ne.s32.totalorder %s47, %s48
    %p60 = scmp.eq.s32.totalorder %s17, 1
    %p61 = por %p59, %p60
    %p63 = scmp.ne.s32.totalorder %s48, %s62
    %p64 = scmp.eq.s32.totalorder %s17, 0
    %p65 = por %p63, %p64
    %s67 = sadd.s32 %s66, 1
    %p70 = scmp.eq.s32.totalorder %s11, 1
    %p71 = scmp.ne.s32.totalorder %s66, %s68
    %p72 = scmp.eq.s32.totalorder %s11, 0
    %p73 = por %p71, %p72
    %p74 = scmp.ne.s32.totalorder %s66, %s68
    %p75 = scmp.eq.s32.totalorder %s16, 1
    %p76 = por %p74, %p75
    %p77 = scmp.ne.s32.totalorder %s68, %s69
    %p78 = scmp.eq.s32.totalorder %s16, 0
    %p79 = por %p77, %p78
    %p80 = scmp.ne.s32.totalorder %s68, %s69
    %p81 = scmp.eq.s32.totalorder %s17, 1
    %p82 = por %p80, %p81
    %p84 = scmp.ne.s32.totalorder %s69, %s83
    %p85 = scmp.eq.s32.totalorder %s17, 0
    %p86 = por %p84, %p85
    %s87 = ssub.s32 %s11, %s18
    %p88 = scmp.eq.s32.totalorder %s87, 0
    %s90 = sadd.s32 %s89, 1
    %s91 = scalar_select %p88, %s89, %s90
    %p94 = pneg %p88
    %p95 = scmp.eq.s32.totalorder %s11, 1
    %p96 = por %p94, %p95
    %p97 = scmp.ne.s32.totalorder %s89, %s92
    %p98 = scmp.eq.s32.totalorder %s11, 0
    %p99 = por %p97, %p98
    %p100 = scmp.ne.s32.totalorder %s89, %s92
    %p101 = scmp.eq.s32.totalorder %s16, 1
    %p102 = por %p100, %p101
    %p103 = scmp.ne.s32.totalorder %s92, %s93
    %p104 = scmp.eq.s32.totalorder %s16, 0
    %p105 = por %p103, %p104
    %p106 = scmp.ne.s32.totalorder %s92, %s93
    %p107 = scmp.eq.s32.totalorder %s17, 1
    %p108 = por %p106, %p107
    %p110 = scmp.ne.s32.totalorder %s93, %s109
    %p111 = scmp.eq.s32.totalorder %s17, 0
    %p112 = por %p110, %p111
    %s113 = ssub.s32 %s11, %s18
    %p114 = scmp.eq.s32.totalorder %s113, 0
    %s116 = sadd.s32 %s115, 1
    %s117 = scalar_select %p114, %s115, %s116
    %p120 = pneg %p114
    %p121 = scmp.eq.s32.totalorder %s11, 1
    %p122 = por %p120, %p121
    %p123 = scmp.ne.s32.totalorder %s115, %s118
    %p124 = scmp.eq.s32.totalorder %s11, 0
    %p125 = por %p123, %p124
    %p126 = scmp.ne.s32.totalorder %s115, %s118
    %p127 = scmp.eq.s32.totalorder %s16, 1
    %p128 = por %p126, %p127
    %p129 = scmp.ne.s32.totalorder %s118, %s119
    %p130 = scmp.eq.s32.totalorder %s16, 0
    %p131 = por %p129, %p130
    %p132 = scmp.ne.s32.totalorder %s118, %s119
    %p133 = scmp.eq.s32.totalorder %s17, 1
    %p134 = por %p132, %p133
    %p136 = scmp.ne.s32.totalorder %s119, %s135
    %p137 = scmp.eq.s32.totalorder %s17, 0
    %p138 = por %p136, %p137
    %p139 = scmp.le.s32.totalorder 1, %s11
    %p140 = scmp.lt.s32.totalorder %s11, 3
    %p141 = pnand %p139, %p140
    %p142 = pneg %p141
    // Predicated region
    $region9: #{resunet_forward.6} parent=5 // pred_check
      _
    $region10: #{resunet_forward.6} parent=5 // pred_check_branch
      %144 = sbr.rel (%p141) target = $region12
    $region11: #{resunet_forward.6} parent=5 // pred_region
      %s145 = ssub.s32 %s11, 1
      // Predicated region
      $region13: #{resunet_forward.6} parent=11 // pred_check
        %p146 = pneg %p58
      $region14: #{resunet_forward.6} parent=11 // pred_check_branch
        %148 = sbr.rel (%p146) target = $region16
      $region15: #{resunet_forward.6} parent=11 // pred_region
        _
      $region16: #{resunet_forward.6} parent=11 // pred_fallthru
        _
      // Predicated region
      $region17: #{resunet_forward.6} parent=11 // pred_check
        %p149 = pneg %p79
      $region18: #{resunet_forward.6} parent=11 // pred_check_branch
        %151 = sbr.rel (%p149) target = $region20
      $region19: #{resunet_forward.6} parent=11 // pred_region
        _
      $region20: #{resunet_forward.6} parent=11 // pred_fallthru
        _
    $region12: #{resunet_forward.6} parent=5 // pred_fallthru
      _
    %p152 = scmp.lt.s32.totalorder %s11, 2
    // Predicated region
    $region21: #{resunet_forward.6} parent=5 // pred_check
      %p153 = pneg %p152
    $region22: #{resunet_forward.6} parent=5 // pred_check_branch
      %155 = sbr.rel (%p153) target = $region24
    $region23: #{resunet_forward.6} parent=5 // pred_region
      // Predicated region
      $region25: #{resunet_forward.6} parent=23 // pred_check
        %p156 = pneg %p31
      $region26: #{resunet_forward.6} parent=23 // pred_check_branch
        %158 = sbr.rel (%p156) target = $region28
      $region27: #{resunet_forward.6} parent=23 // pred_region
        %s159 = smul.u32 32, %s11
        %p160 = scmp.lt.s32.totalorder %s159, 63
        %s161 = scalar_select %p160, %s159, 63
        %s162 = smul.addr %s161, 4
        %s163 = scalar_lea.vmem %s0, %s162
        %s164 = smul.u32 32, %s11
      $region28: #{resunet_forward.6} parent=23 // pred_fallthru
        _
    $region24: #{resunet_forward.6} parent=5 // pred_fallthru
      _
    %p165 = scmp.le.s32.totalorder 1, %s11
    %p166 = scmp.lt.s32.totalorder %s11, 3
    %p167 = pnand %p165, %p166
    %p168 = pneg %p167
    // Predicated region
    $region29: #{resunet_forward.6} parent=5 // pred_check
      _
    $region30: #{resunet_forward.6} parent=5 // pred_check_branch
      %170 = sbr.rel (%p167) target = $region32
    $region31: #{resunet_forward.6} parent=5 // pred_region
      %s171 = ssub.s32 %s11, 1
      %s172 = smul.u32 32, %s16
      %p173 = scmp.lt.s32.totalorder %s172, 63
      %s174 = scalar_select %p173, %s172, 63
      %s175 = smul.addr %s174, 4
      %s176 = scalar_lea.vmem %s0, %s175
      %p177 = pneg %p37
      %p178 = pneg %p34
      %p179 = pneg %p58
      %p180 = pneg %p55
      %p181 = pneg %p79
      %p182 = pneg %p76
      %p183 = pneg %p105
      %p184 = pneg %p102
      %s185 = smul.u32 32, %s16
      %p186 = scmp.lt.s32.totalorder %s185, 63
      %s187 = scalar_select %p186, %s185, 63
      %s188 = smul.addr %s187, 4
      %s189 = scalar_lea.vmem %s3, %s188
      %p190 = pneg %p131
      %p191 = pneg %p128
      %p192 = scmp.lt.s32.totalorder %s16, 1
      %s193 = scalar_select %p192, %s16, 1
      %s194 = smul.addr %s193, 8
      %s195 = scalar_lea.vmem %s4, %s194
      %s196 = smul.u32 32, %s16
      %p197 = scmp.lt.s32.totalorder %s196, 63
      %s198 = scalar_select %p197, %s196, 63
      %s199 = smul.addr %s198, 4
      %s200 = scalar_lea.vmem %s0, %s199
      %s201 = smul.u32 32, %s16
      %s202 = smul.u32 32, %s16
      %p203 = scmp.lt.s32.totalorder %s202, 63
      %s204 = scalar_select %p203, %s202, 63
      %s205 = smul.addr %s204, 4
      %s206 = scalar_lea.vmem %s3, %s205
      %s207 = smul.u32 32, %s16
      %p208 = scmp.lt.s32.totalorder %s16, 1
      %s209 = scalar_select %p208, %s16, 1
      %s210 = smul.addr %s209, 8
      %s211 = scalar_lea.vmem %s4, %s210
      %v213 = vld [vmem:[%s200] sm:$0xf]
      %v214 = vld [vmem:[%s200 + $0x4] sm:$0xf]
      %v215 = vld [vmem:[%s200 + $0x8] sm:$0xf]
      %v216 = vld [vmem:[%s200 + $0xc] sm:$0xf]
      %v217 = vld [vmem:[%s200 + $0x10] sm:$0xf]
      %v218 = vld [vmem:[%s200 + $0x14] sm:$0xf]
      %v219 = vld [vmem:[%s200 + $0x18] sm:$0xf]
      %v220 = vld [vmem:[%s200 + $0x1c] sm:$0xf]
      %v221 = vld [vmem:[%s200 + $0x20] sm:$0xf]
      %v222 = vld [vmem:[%s200 + $0x24] sm:$0xf]
      %v223 = vld [vmem:[%s200 + $0x28] sm:$0xf]
      %v224 = vld [vmem:[%s200 + $0x2c] sm:$0xf]
      %v225 = vld [vmem:[%s200 + $0x30] sm:$0xf]
      %v226 = vld [vmem:[%s200 + $0x34] sm:$0xf]
      %v227 = vld [vmem:[%s200 + $0x38] sm:$0xf]
      %v228 = vld [vmem:[%s200 + $0x3c] sm:$0xf]
      %v229 = vld [vmem:[%s200 + $0x40] sm:$0xf]
      %v230 = vld [vmem:[%s200 + $0x44] sm:$0xf]
      %v231 = vld [vmem:[%s200 + $0x48] sm:$0xf]
      %v232 = vld [vmem:[%s200 + $0x4c] sm:$0xf]
      %v233 = vld [vmem:[%s200 + $0x50] sm:$0xf]
      %v234 = vld [vmem:[%s200 + $0x54] sm:$0xf]
      %v235 = vld [vmem:[%s200 + $0x58] sm:$0xf]
      %v236 = vld [vmem:[%s200 + $0x5c] sm:$0xf]
      %v237 = vld [vmem:[%s200 + $0x60] sm:$0xf]
      %v238 = vld [vmem:[%s200 + $0x64] sm:$0xf]
      %v239 = vld [vmem:[%s200 + $0x68] sm:$0xf]
      %v240 = vld [vmem:[%s200 + $0x6c] sm:$0xf]
      %v241 = vld [vmem:[%s200 + $0x70] sm:$0xf]
      %v242 = vld [vmem:[%s200 + $0x74] sm:$0xf]
      %v243 = vld [vmem:[%s200 + $0x78] sm:$0xf]
      %v244 = vld [vmem:[%s200 + $0x7c] sm:$0xf]
      %v245 = vunpack.c.l.bf16 %v213
      %v246 = vunpack.c.l.bf16 %v214
      %v247 = vunpack.c.l.bf16 %v215
      %v248 = vunpack.c.l.bf16 %v216
      %v249 = vunpack.c.l.bf16 %v217
      %v250 = vunpack.c.l.bf16 %v218
      %v251 = vunpack.c.l.bf16 %v219
      %v252 = vunpack.c.l.bf16 %v220
      %v253 = vunpack.c.l.bf16 %v221
      %v254 = vunpack.c.l.bf16 %v222
      %v255 = vunpack.c.l.bf16 %v223
      %v256 = vunpack.c.l.bf16 %v224
      %v257 = vunpack.c.l.bf16 %v225
      %v258 = vunpack.c.l.bf16 %v226
      %v259 = vunpack.c.l.bf16 %v227
      %v260 = vunpack.c.l.bf16 %v228
      %v261 = vunpack.c.l.bf16 %v229
      %v262 = vunpack.c.l.bf16 %v230
      %v263 = vunpack.c.l.bf16 %v231
      %v264 = vunpack.c.l.bf16 %v232
      %v265 = vunpack.c.l.bf16 %v233
      %v266 = vunpack.c.l.bf16 %v234
      %v267 = vunpack.c.l.bf16 %v235
      %v268 = vunpack.c.l.bf16 %v236
      %v269 = vunpack.c.l.bf16 %v237
      %v270 = vunpack.c.l.bf16 %v238
      %v271 = vunpack.c.l.bf16 %v239
      %v272 = vunpack.c.l.bf16 %v240
      %v273 = vunpack.c.l.bf16 %v241
      %v274 = vunpack.c.l.bf16 %v242
      %v275 = vunpack.c.l.bf16 %v243
      %v276 = vunpack.c.l.bf16 %v244
      %v277 = vld [vmem:[%s1] sm:$0x1]
      %v278 = vlaneseq
      %v279 = vshrl.u32 %v278, 7
      %v280 = vsub.s32 0, %v279
      %v281 = vrot.slane %v277, %v280
      %v282 = vmul.f32 %v245, %v281
      %v283 = vmul.f32 %v246, %v281
      %v284 = vmul.f32 %v247, %v281
      %v285 = vmul.f32 %v248, %v281
      %v286 = vmul.f32 %v249, %v281
      %v287 = vmul.f32 %v250, %v281
      %v288 = vmul.f32 %v251, %v281
      %v289 = vmul.f32 %v252, %v281
      %v290 = vmul.f32 %v253, %v281
      %v291 = vmul.f32 %v254, %v281
      %v292 = vmul.f32 %v255, %v281
      %v293 = vmul.f32 %v256, %v281
      %v294 = vmul.f32 %v257, %v281
      %v295 = vmul.f32 %v258, %v281
      %v296 = vmul.f32 %v259, %v281
      %v297 = vmul.f32 %v260, %v281
      %v298 = vmul.f32 %v261, %v281
      %v299 = vmul.f32 %v262, %v281
      %v300 = vmul.f32 %v263, %v281
      %v301 = vmul.f32 %v264, %v281
      %v302 = vmul.f32 %v265, %v281
      %v303 = vmul.f32 %v266, %v281
      %v304 = vmul.f32 %v267, %v281
      %v305 = vmul.f32 %v268, %v281
      %v306 = vmul.f32 %v269, %v281
      %v307 = vmul.f32 %v270, %v281
      %v308 = vmul.f32 %v271, %v281
      %v309 = vmul.f32 %v272, %v281
      %v310 = vmul.f32 %v273, %v281
      %v311 = vmul.f32 %v274, %v281
      %v312 = vmul.f32 %v275, %v281
      %v313 = vmul.f32 %v276, %v281
      %v314 = vld [vmem:[%s1 + $0x1] sm:$0x1]
      %v315 = vlaneseq
      %v316 = vshrl.u32 %v315, 7
      %v317 = vsub.s32 0, %v316
      %v318 = vrot.slane %v314, %v317
      %v319 = vadd.f32 %v282, %v318
      %v320 = vadd.f32 %v283, %v318
      %v321 = vadd.f32 %v284, %v318
      %v322 = vadd.f32 %v285, %v318
      %v323 = vadd.f32 %v286, %v318
      %v324 = vadd.f32 %v287, %v318
      %v325 = vadd.f32 %v288, %v318
      %v326 = vadd.f32 %v289, %v318
      %v327 = vadd.f32 %v290, %v318
      %v328 = vadd.f32 %v291, %v318
      %v329 = vadd.f32 %v292, %v318
      %v330 = vadd.f32 %v293, %v318
      %v331 = vadd.f32 %v294, %v318
      %v332 = vadd.f32 %v295, %v318
      %v333 = vadd.f32 %v296, %v318
      %v334 = vadd.f32 %v297, %v318
      %v335 = vadd.f32 %v298, %v318
      %v336 = vadd.f32 %v299, %v318
      %v337 = vadd.f32 %v300, %v318
      %v338 = vadd.f32 %v301, %v318
      %v339 = vadd.f32 %v302, %v318
      %v340 = vadd.f32 %v303, %v318
      %v341 = vadd.f32 %v304, %v318
      %v342 = vadd.f32 %v305, %v318
      %v343 = vadd.f32 %v306, %v318
      %v344 = vadd.f32 %v307, %v318
      %v345 = vadd.f32 %v308, %v318
      %v346 = vadd.f32 %v309, %v318
      %v347 = vadd.f32 %v310, %v318
      %v348 = vadd.f32 %v311, %v318
      %v349 = vadd.f32 %v312, %v318
      %v350 = vadd.f32 %v313, %v318
      %v351 = vmax.f32 %v319, 0.0
      %v352 = vmax.f32 %v320, 0.0
      %v353 = vmax.f32 %v321, 0.0
      %v354 = vmax.f32 %v322, 0.0
      %v355 = vmax.f32 %v323, 0.0
      %v356 = vmax.f32 %v324, 0.0
      %v357 = vmax.f32 %v325, 0.0
      %v358 = vmax.f32 %v326, 0.0
      %v359 = vmax.f32 %v327, 0.0
      %v360 = vmax.f32 %v328, 0.0
      %v361 = vmax.f32 %v329, 0.0
      %v362 = vmax.f32 %v330, 0.0
      %v363 = vmax.f32 %v331, 0.0
      %v364 = vmax.f32 %v332, 0.0
      %v365 = vmax.f32 %v333, 0.0
      %v366 = vmax.f32 %v334, 0.0
      %v367 = vmax.f32 %v335, 0.0
      %v368 = vmax.f32 %v336, 0.0
      %v369 = vmax.f32 %v337, 0.0
      %v370 = vmax.f32 %v338, 0.0
      %v371 = vmax.f32 %v339, 0.0
      %v372 = vmax.f32 %v340, 0.0
      %v373 = vmax.f32 %v341, 0.0
      %v374 = vmax.f32 %v342, 0.0
      %v375 = vmax.f32 %v343, 0.0
      %v376 = vmax.f32 %v344, 0.0
      %v377 = vmax.f32 %v345, 0.0
      %v378 = vmax.f32 %v346, 0.0
      %v379 = vmax.f32 %v347, 0.0
      %v380 = vmax.f32 %v348, 0.0
      %v381 = vmax.f32 %v349, 0.0
      %v382 = vmax.f32 %v350, 0.0
      %v383 = vpack.c.bf16 %v352, %v351
      %v384 = vpack.c.bf16 %v354, %v353
      %v385 = vpack.c.bf16 %v356, %v355
      %v386 = vpack.c.bf16 %v358, %v357
      %v387 = vpack.c.bf16 %v360, %v359
      %v388 = vpack.c.bf16 %v362, %v361
      %v389 = vpack.c.bf16 %v364, %v363
      %v390 = vpack.c.bf16 %v366, %v365
      %v391 = vpack.c.bf16 %v368, %v367
      %v392 = vpack.c.bf16 %v370, %v369
      %v393 = vpack.c.bf16 %v372, %v371
      %v394 = vpack.c.bf16 %v374, %v373
      %v395 = vpack.c.bf16 %v376, %v375
      %v396 = vpack.c.bf16 %v378, %v377
      %v397 = vpack.c.bf16 %v380, %v379
      %v398 = vpack.c.bf16 %v382, %v381
      %v399 = vld [vmem:[%s2] sm:$0xf]
      %v400 = vld [vmem:[%s2 + $0x4] sm:$0xf]
      %v401 = vld [vmem:[%s2 + $0x8] sm:$0xf]
      %v402 = vld [vmem:[%s2 + $0xc] sm:$0xf]
      %v407 = vunpack.c.l.b16 %v399
      %v408 = vunpack.c.l.b16 %v400
      %v409 = vunpack.c.l.b16 %v401
      %v410 = vunpack.c.l.b16 %v402
      %v411 = vpack.c.b16 %v408, %v407
      %v412 = vpack.c.b16 %v410, %v409
      %vm415 = vcmask 261120
      %v417 = vsel %vm415, %v383, 0
      %v420 = vsel %vm415, %v384, 0
      %v423 = vsel %vm415, %v385, 0
      %v426 = vsel %vm415, %v386, 0
      %v429 = vsel %vm415, %v387, 0
      %v432 = vsel %vm415, %v388, 0
      %v435 = vsel %vm415, %v389, 0
      %v438 = vsel %vm415, %v390, 0
      %v441 = vsel %vm415, %v391, 0
      %v444 = vsel %vm415, %v392, 0
      %v447 = vsel %vm415, %v393, 0
      %v450 = vsel %vm415, %v394, 0
      %v453 = vsel %vm415, %v395, 0
      %v456 = vsel %vm415, %v396, 0
      %v459 = vsel %vm415, %v397, 0
      %v462 = vsel %vm415, %v398, 0
      %464 = vmatprep.subr.bf16.mxu0 0
      %465 = vmatpush1.bf16.msra.mxu0 %v411
      %466 = vmatprep.subr.bf16.mxu0 0
      %467 = vmatpush1.bf16.msra.mxu0 %v412
      %468 = vmatprep.subr.bf16.mxu0 0
      %469 = vmatpush1.bf16.msra.mxu0 0
      %470 = vmatprep.subr.bf16.mxu0 0
      %471 = vmatpush1.bf16.msra.mxu0 0
      %472 = vmatprep.subr.bf16.mxu0 0
      %473 = vmatpush1.bf16.msra.mxu0 0
      %474 = vmatprep.subr.bf16.mxu0 0
      %475 = vmatpush1.bf16.msra.mxu0 0
      %476 = vmatprep.subr.bf16.mxu0 0
      %477 = vmatpush1.bf16.msra.mxu0 0
      %478 = vmatprep.subr.bf16.mxu0 0
      %479 = vmatpush1.bf16.msra.mxu0 0
      %480 = vmatprep.subr.bf16.mxu0 0
      %481 = vmatpush1.bf16.msra.mxu0 0
      %482 = vmatprep.subr.bf16.mxu0 0
      %483 = vmatpush1.bf16.msra.mxu0 0
      %484 = vmatprep.subr.bf16.mxu0 0
      %485 = vmatpush1.bf16.msra.mxu0 0
      %486 = vmatprep.subr.bf16.mxu0 0
      %487 = vmatpush1.bf16.msra.mxu0 0
      %488 = vmatprep.subr.bf16.mxu0 0
      %489 = vmatpush1.bf16.msra.mxu0 0
      %490 = vmatprep.subr.bf16.mxu0 0
      %491 = vmatpush1.bf16.msra.mxu0 0
      %492 = vmatprep.subr.bf16.mxu0 0
      %493 = vmatpush1.bf16.msra.mxu0 0
      %494 = vmatprep.subr.bf16.mxu0 0
      %495 = vmatpush1.bf16.msra.mxu0 0
      %496 = vmatprep.mubr.bf16.mxu0 0
      %497 = vmatmul.mubr.bf16.gmra.mrb[0].mxu0 %v417
      %v498 = vpop.f32.mrb[0].mxu0
      %v499 = vadd.f32 0.0, %v498
      %v500 = vpop.f32.mrb[0].mxu0
      %v501 = vpop.f32.mrb[0].mxu0
      %v502 = vadd.f32 0.0, %v501
      %v503 = vpop.f32.mrb[0].mxu0
      %504 = vmatprep.mubr.bf16.mxu0 0
      %505 = vmatmul.mubr.bf16.gmra.mrb[0].mxu0 %v420
      %v506 = vpop.f32.mrb[0].mxu0
      %v507 = vadd.f32 0.0, %v506
      %v508 = vpop.f32.mrb[0].mxu0
      %v509 = vpop.f32.mrb[0].mxu0
      %v510 = vadd.f32 0.0, %v509
      %v511 = vpop.f32.mrb[0].mxu0
      %512 = vmatprep.mubr.bf16.mxu0 0
      %513 = vmatmul.mubr.bf16.gmra.mrb[0].mxu0 %v423
      %v514 = vpop.f32.mrb[0].mxu0
      %v515 = vadd.f32 0.0, %v514
      %v516 = vpop.f32.mrb[0].mxu0
      %v517 = vpop.f32.mrb[0].mxu0
      %v518 = vadd.f32 0.0, %v517
      %v519 = vpop.f32.mrb[0].mxu0
      %520 = vmatprep.mubr.bf16.mxu0 0
      %521 = vmatmul.mubr.bf16.gmra.mrb[0].mxu0 %v426
      %v522 = vpop.f32.mrb[0].mxu0
      %v523 = vadd.f32 0.0, %v522
      %v524 = vpop.f32.mrb[0].mxu0
      %v525 = vpop.f32.mrb[0].mxu0
      %v526 = vadd.f32 0.0, %v525
      %v527 = vpop.f32.mrb[0].mxu0
      %528 = vmatprep.mubr.bf16.mxu0 0
      %529 = vmatmul.mubr.bf16.gmra.mrb[0].mxu0 %v429
      %v530 = vpop.f32.mrb[0].mxu0
      %v531 = vadd.f32 0.0, %v530
      %v532 = vpop.f32.mrb[0].mxu0
      %v533 = vpop.f32.mrb[0].mxu0
      %v534 = vadd.f32 0.0, %v533
      %v535 = vpop.f32.mrb[0].mxu0
      %536 = vmatprep.mubr.bf16.mxu0 0
      %537 = vmatmul.mubr.bf16.gmra.mrb[0].mxu0 %v432
      %v538 = vpop.f32.mrb[0].mxu0
      %v539 = vadd.f32 0.0, %v538
      %v540 = vpop.f32.mrb[0].mxu0
      %v541 = vpop.f32.mrb[0].mxu0
      %v542 = vadd.f32 0.0, %v541
      %v543 = vpop.f32.mrb[0].mxu0
      %544 = vmatprep.mubr.bf16.mxu0 0
      %545 = vmatmul.mubr.bf16.gmra.mrb[0].mxu0 %v435
      %v546 = vpop.f32.mrb[0].mxu0
      %v547 = vadd.f32 0.0, %v546
      %v548 = vpop.f32.mrb[0].mxu0
      %v549 = vpop.f32.mrb[0].mxu0
      %v550 = vadd.f32 0.0, %v549
      %v551 = vpop.f32.mrb[0].mxu0
      %552 = vmatprep.mubr.bf16.mxu0 0
      %553 = vmatmul.mubr.bf16.gmra.mrb[0].mxu0 %v438
      %v554 = vpop.f32.mrb[0].mxu0
      %v555 = vadd.f32 0.0, %v554
      %v556 = vpop.f32.mrb[0].mxu0
      %v557 = vpop.f32.mrb[0].mxu0
      %v558 = vadd.f32 0.0, %v557
      %v559 = vpop.f32.mrb[0].mxu0
      %560 = vmatprep.mubr.bf16.mxu0 0
      %561 = vmatmul.mubr.bf16.gmra.mrb[0].mxu0 %v441
      %v562 = vpop.f32.mrb[0].mxu0
      %v563 = vadd.f32 0.0, %v562
      %v564 = vpop.f32.mrb[0].mxu0
      %v565 = vpop.f32.mrb[0].mxu0
      %v566 = vadd.f32 0.0, %v565
      %v567 = vpop.f32.mrb[0].mxu0
      %568 = vmatprep.mubr.bf16.mxu0 0
      %569 = vmatmul.mubr.bf16.gmra.mrb[0].mxu0 %v444
      %v570 = vpop.f32.mrb[0].mxu0
      %v571 = vadd.f32 0.0, %v570
      %v572 = vpop.f32.mrb[0].mxu0
      %v573 = vpop.f32.mrb[0].mxu0
      %v574 = vadd.f32 0.0, %v573
      %v575 = vpop.f32.mrb[0].mxu0
      %576 = vmatprep.mubr.bf16.mxu0 0
      %577 = vmatmul.mubr.bf16.gmra.mrb[0].mxu0 %v447
      %v578 = vpop.f32.mrb[0].mxu0
      %v579 = vadd.f32 0.0, %v578
      %v580 = vpop.f32.mrb[0].mxu0
      %v581 = vpop.f32.mrb[0].mxu0
      %v582 = vadd.f32 0.0, %v581
      %v583 = vpop.f32.mrb[0].mxu0
      %584 = vmatprep.mubr.bf16.mxu0 0
      %585 = vmatmul.mubr.bf16.gmra.mrb[0].mxu0 %v450
      %v586 = vpop.f32.mrb[0].mxu0
      %v587 = vadd.f32 0.0, %v586
      %v588 = vpop.f32.mrb[0].mxu0
      %v589 = vpop.f32.mrb[0].mxu0
      %v590 = vadd.f32 0.0, %v589
      %v591 = vpop.f32.mrb[0].mxu0
      %592 = vmatprep.mubr.bf16.mxu0 0
      %593 = vmatmul.mubr.bf16.gmra.mrb[0].mxu0 %v453
      %v594 = vpop.f32.mrb[0].mxu0
      %v595 = vadd.f32 0.0, %v594
      %v596 = vpop.f32.mrb[0].mxu0
      %v597 = vpop.f32.mrb[0].mxu0
      %v598 = vadd.f32 0.0, %v597
      %v599 = vpop.f32.mrb[0].mxu0
      %600 = vmatprep.mubr.bf16.mxu0 0
      %601 = vmatmul.mubr.bf16.gmra.mrb[0].mxu0 %v456
      %v602 = vpop.f32.mrb[0].mxu0
      %v603 = vadd.f32 0.0, %v602
      %v604 = vpop.f32.mrb[0].mxu0
      %v605 = vpop.f32.mrb[0].mxu0
      %v606 = vadd.f32 0.0, %v605
      %v607 = vpop.f32.mrb[0].mxu0
      %608 = vmatprep.mubr.bf16.mxu0 0
      %609 = vmatmul.mubr.bf16.gmra.mrb[0].mxu0 %v459
      %v610 = vpop.f32.mrb[0].mxu0
      %v611 = vadd.f32 0.0, %v610
      %v612 = vpop.f32.mrb[0].mxu0
      %v613 = vpop.f32.mrb[0].mxu0
      %v614 = vadd.f32 0.0, %v613
      %v615 = vpop.f32.mrb[0].mxu0
      %616 = vmatprep.mubr.bf16.mxu0 0
      %617 = vmatmul.mubr.bf16.gmra.mrb[0].mxu0 %v462
      %v618 = vpop.f32.mrb[0].mxu0
      %v619 = vadd.f32 0.0, %v618
      %v620 = vpop.f32.mrb[0].mxu0
      %v621 = vpop.f32.mrb[0].mxu0
      %v622 = vadd.f32 0.0, %v621
      %v623 = vpop.f32.mrb[0].mxu0
      %624 = vdwg.mxu0
      %v625 = vpack.c.bf16 %v502, %v499
      %v626 = vpack.c.bf16 %v510, %v507
      %v627 = vpack.c.bf16 %v518, %v515
      %v628 = vpack.c.bf16 %v526, %v523
      %v629 = vpack.c.bf16 %v534, %v531
      %v630 = vpack.c.bf16 %v542, %v539
      %v631 = vpack.c.bf16 %v550, %v547
      %v632 = vpack.c.bf16 %v558, %v555
      %v633 = vpack.c.bf16 %v566, %v563
      %v634 = vpack.c.bf16 %v574, %v571
      %v635 = vpack.c.bf16 %v582, %v579
      %v636 = vpack.c.bf16 %v590, %v587
      %v637 = vpack.c.bf16 %v598, %v595
      %v638 = vpack.c.bf16 %v606, %v603
      %v639 = vpack.c.bf16 %v614, %v611
      %v640 = vpack.c.bf16 %v622, %v619
      %v657 = vunpack.c.l.b16 %v625
      %v658 = vunpack.c.h.b16 %v625
      %v659 = vunpack.c.l.b16 %v626
      %v660 = vunpack.c.h.b16 %v626
      %v661 = vunpack.c.l.b16 %v627
      %v662 = vunpack.c.h.b16 %v627
      %v663 = vunpack.c.l.b16 %v628
      %v664 = vunpack.c.h.b16 %v628
      %v665 = vunpack.c.l.b16 %v629
      %v666 = vunpack.c.h.b16 %v629
      %v667 = vunpack.c.l.b16 %v630
      %v668 = vunpack.c.h.b16 %v630
      %v669 = vunpack.c.l.b16 %v631
      %v670 = vunpack.c.h.b16 %v631
      %v671 = vunpack.c.l.b16 %v632
      %v672 = vunpack.c.h.b16 %v632
      %v673 = vunpack.c.l.b16 %v633
      %v674 = vunpack.c.h.b16 %v633
      %v675 = vunpack.c.l.b16 %v634
      %v676 = vunpack.c.h.b16 %v634
      %v677 = vunpack.c.l.b16 %v635
      %v678 = vunpack.c.h.b16 %v635
      %v679 = vunpack.c.l.b16 %v636
      %v680 = vunpack.c.h.b16 %v636
      %v681 = vunpack.c.l.b16 %v637
      %v682 = vunpack.c.h.b16 %v637
      %v683 = vunpack.c.l.b16 %v638
      %v684 = vunpack.c.h.b16 %v638
      %v685 = vunpack.c.l.b16 %v639
      %v686 = vunpack.c.h.b16 %v639
      %v687 = vunpack.c.l.b16 %v640
      %v688 = vunpack.c.h.b16 %v640
      %v689 = vpack.c.b16 %v657, %v657
      %v690 = vpack.c.b16 %v658, %v658
      %v691 = vpack.c.b16 %v659, %v659
      %v692 = vpack.c.b16 %v660, %v660
      %v693 = vpack.c.b16 %v661, %v661
      %v694 = vpack.c.b16 %v662, %v662
      %v695 = vpack.c.b16 %v663, %v663
      %v696 = vpack.c.b16 %v664, %v664
      %v697 = vpack.c.b16 %v665, %v665
      %v698 = vpack.c.b16 %v666, %v666
      %v699 = vpack.c.b16 %v667, %v667
      %v700 = vpack.c.b16 %v668, %v668
      %v701 = vpack.c.b16 %v669, %v669
      %v702 = vpack.c.b16 %v670, %v670
      %v703 = vpack.c.b16 %v671, %v671
      %v704 = vpack.c.b16 %v672, %v672
      %v705 = vpack.c.b16 %v673, %v673
      %v706 = vpack.c.b16 %v674, %v674
      %v707 = vpack.c.b16 %v675, %v675
      %v708 = vpack.c.b16 %v676, %v676
      %v709 = vpack.c.b16 %v677, %v677
      %v710 = vpack.c.b16 %v678, %v678
      %v711 = vpack.c.b16 %v679, %v679
      %v712 = vpack.c.b16 %v680, %v680
      %v713 = vpack.c.b16 %v681, %v681
      %v714 = vpack.c.b16 %v682, %v682
      %v715 = vpack.c.b16 %v683, %v683
      %v716 = vpack.c.b16 %v684, %v684
      %v717 = vpack.c.b16 %v685, %v685
      %v718 = vpack.c.b16 %v686, %v686
      %v719 = vpack.c.b16 %v687, %v687
      %v720 = vpack.c.b16 %v688, %v688
      %vm753 = vcmask 257024
      %754 = vst.msk [vmem:[%s206] sm:$0xf] %vm753, %v689
      %755 = vst.msk [vmem:[%s206 + $0x4] sm:$0xf] %vm753, %v690
      %756 = vst.msk [vmem:[%s206 + $0x8] sm:$0xf] %vm753, %v691
      %757 = vst.msk [vmem:[%s206 + $0xc] sm:$0xf] %vm753, %v692
      %758 = vst.msk [vmem:[%s206 + $0x10] sm:$0xf] %vm753, %v693
      %759 = vst.msk [vmem:[%s206 + $0x14] sm:$0xf] %vm753, %v694
      %760 = vst.msk [vmem:[%s206 + $0x18] sm:$0xf] %vm753, %v695
      %761 = vst.msk [vmem:[%s206 + $0x1c] sm:$0xf] %vm753, %v696
      %762 = vst.msk [vmem:[%s206 + $0x20] sm:$0xf] %vm753, %v697
      %763 = vst.msk [vmem:[%s206 + $0x24] sm:$0xf] %vm753, %v698
      %764 = vst.msk [vmem:[%s206 + $0x28] sm:$0xf] %vm753, %v699
      %765 = vst.msk [vmem:[%s206 + $0x2c] sm:$0xf] %vm753, %v700
      %766 = vst.msk [vmem:[%s206 + $0x30] sm:$0xf] %vm753, %v701
      %767 = vst.msk [vmem:[%s206 + $0x34] sm:$0xf] %vm753, %v702
      %768 = vst.msk [vmem:[%s206 + $0x38] sm:$0xf] %vm753, %v703
      %769 = vst.msk [vmem:[%s206 + $0x3c] sm:$0xf] %vm753, %v704
      %770 = vst.msk [vmem:[%s206 + $0x40] sm:$0xf] %vm753, %v705
      %771 = vst.msk [vmem:[%s206 + $0x44] sm:$0xf] %vm753, %v706
      %772 = vst.msk [vmem:[%s206 + $0x48] sm:$0xf] %vm753, %v707
      %773 = vst.msk [vmem:[%s206 + $0x4c] sm:$0xf] %vm753, %v708
      %774 = vst.msk [vmem:[%s206 + $0x50] sm:$0xf] %vm753, %v709
      %775 = vst.msk [vmem:[%s206 + $0x54] sm:$0xf] %vm753, %v710
      %776 = vst.msk [vmem:[%s206 + $0x58] sm:$0xf] %vm753, %v711
      %777 = vst.msk [vmem:[%s206 + $0x5c] sm:$0xf] %vm753, %v712
      %778 = vst.msk [vmem:[%s206 + $0x60] sm:$0xf] %vm753, %v713
      %779 = vst.msk [vmem:[%s206 + $0x64] sm:$0xf] %vm753, %v714
      %780 = vst.msk [vmem:[%s206 + $0x68] sm:$0xf] %vm753, %v715
      %781 = vst.msk [vmem:[%s206 + $0x6c] sm:$0xf] %vm753, %v716
      %782 = vst.msk [vmem:[%s206 + $0x70] sm:$0xf] %vm753, %v717
      %783 = vst.msk [vmem:[%s206 + $0x74] sm:$0xf] %vm753, %v718
      %784 = vst.msk [vmem:[%s206 + $0x78] sm:$0xf] %vm753, %v719
      %785 = vst.msk [vmem:[%s206 + $0x7c] sm:$0xf] %vm753, %v720
      %v786 = vsel %vm415, %v499, 0.0
      %v787 = vsel %vm415, %v502, 0.0
      %v788 = vadd.f32 %v786, %v787
      %v789 = vsel %vm415, %v507, 0.0
      %v790 = vadd.f32 %v788, %v789
      %v791 = vsel %vm415, %v510, 0.0
      %v792 = vadd.f32 %v790, %v791
      %v793 = vsel %vm415, %v515, 0.0
      %v794 = vadd.f32 %v792, %v793
      %v795 = vsel %vm415, %v518, 0.0
      %v796 = vadd.f32 %v794, %v795
      %v797 = vsel %vm415, %v523, 0.0
      %v798 = vadd.f32 %v796, %v797
      %v799 = vsel %vm415, %v526, 0.0
      %v800 = vadd.f32 %v798, %v799
      %v801 = vsel %vm415, %v531, 0.0
      %v802 = vadd.f32 %v800, %v801
      %v803 = vsel %vm415, %v534, 0.0
      %v804 = vadd.f32 %v802, %v803
      %v805 = vsel %vm415, %v539, 0.0
      %v806 = vadd.f32 %v804, %v805
      %v807 = vsel %vm415, %v542, 0.0
      %v808 = vadd.f32 %v806, %v807
      %v809 = vsel %vm415, %v547, 0.0
      %v810 = vadd.f32 %v808, %v809
      %v811 = vsel %vm415, %v550, 0.0
      %v812 = vadd.f32 %v810, %v811
      %v813 = vsel %vm415, %v555, 0.0
      %v814 = vadd.f32 %v812, %v813
      %v815 = vsel %vm415, %v558, 0.0
      %v816 = vadd.f32 %v814, %v815
      %v817 = vsel %vm415, %v563, 0.0
      %v818 = vadd.f32 %v816, %v817
      %v819 = vsel %vm415, %v566, 0.0
      %v820 = vadd.f32 %v818, %v819
      %v821 = vsel %vm415, %v571, 0.0
      %v822 = vadd.f32 %v820, %v821
      %v823 = vsel %vm415, %v574, 0.0
      %v824 = vadd.f32 %v822, %v823
      %v825 = vsel %vm415, %v579, 0.0
      %v826 = vadd.f32 %v824, %v825
      %v827 = vsel %vm415, %v582, 0.0
      %v828 = vadd.f32 %v826, %v827
      %v829 = vsel %vm415, %v587, 0.0
      %v830 = vadd.f32 %v828, %v829
      %v831 = vsel %vm415, %v590, 0.0
      %v832 = vadd.f32 %v830, %v831
      %v833 = vsel %vm415, %v595, 0.0
      %v834 = vadd.f32 %v832, %v833
      %v835 = vsel %vm415, %v598, 0.0
      %v836 = vadd.f32 %v834, %v835
      %v837 = vsel %vm415, %v603, 0.0
      %v838 = vadd.f32 %v836, %v837
      %v839 = vsel %vm415, %v606, 0.0
      %v840 = vadd.f32 %v838, %v839
      %v841 = vsel %vm415, %v611, 0.0
      %v842 = vadd.f32 %v840, %v841
      %v843 = vsel %vm415, %v614, 0.0
      %v844 = vadd.f32 %v842, %v843
      %v845 = vsel %vm415, %v619, 0.0
      %v846 = vadd.f32 %v844, %v845
      %v847 = vsel %vm415, %v622, 0.0
      %v848 = vadd.f32 %v846, %v847
      %v849 = vrot.slane %v848, 4
      %v850 = vadd.f32 %v848, %v849
      %v851 = vrot.slane %v850, 2
      %v852 = vadd.f32 %v850, %v851
      %v853 = vrot.slane %v852, 1
      %v854 = vadd.f32 %v852, %v853
      %vm855 = vcmask 253952
      %856 = vst.msk [vmem:[%s211] sm:$0x1] %vm855, %v854
      %v857 = vmul.f32 %v499, %v499
      %v858 = vmul.f32 %v502, %v502
      %v859 = vmul.f32 %v507, %v507
      %v860 = vmul.f32 %v510, %v510
      %v861 = vmul.f32 %v515, %v515
      %v862 = vmul.f32 %v518, %v518
      %v863 = vmul.f32 %v523, %v523
      %v864 = vmul.f32 %v526, %v526
      %v865 = vmul.f32 %v531, %v531
      %v866 = vmul.f32 %v534, %v534
      %v867 = vmul.f32 %v539, %v539
      %v868 = vmul.f32 %v542, %v542
      %v869 = vmul.f32 %v547, %v547
      %v870 = vmul.f32 %v550, %v550
      %v871 = vmul.f32 %v555, %v555
      %v872 = vmul.f32 %v558, %v558
      %v873 = vmul.f32 %v563, %v563
      %v874 = vmul.f32 %v566, %v566
      %v875 = vmul.f32 %v571, %v571
      %v876 = vmul.f32 %v574, %v574
      %v877 = vmul.f32 %v579, %v579
      %v878 = vmul.f32 %v582, %v582
      %v879 = vmul.f32 %v587, %v587
      %v880 = vmul.f32 %v590, %v590
      %v881 = vmul.f32 %v595, %v595
      %v882 = vmul.f32 %v598, %v598
      %v883 = vmul.f32 %v603, %v603
      %v884 = vmul.f32 %v606, %v606
      %v885 = vmul.f32 %v611, %v611
      %v886 = vmul.f32 %v614, %v614
      %v887 = vmul.f32 %v619, %v619
      %v888 = vmul.f32 %v622, %v622
      %v889 = vsel %vm415, %v857, 0.0
      %v890 = vsel %vm415, %v858, 0.0
      %v891 = vadd.f32 %v889, %v890
      %v892 = vsel %vm415, %v859, 0.0
      %v893 = vadd.f32 %v891, %v892
      %v894 = vsel %vm415, %v860, 0.0
      %v895 = vadd.f32 %v893, %v894
      %v896 = vsel %vm415, %v861, 0.0
      %v897 = vadd.f32 %v895, %v896
      %v898 = vsel %vm415, %v862, 0.0
      %v899 = vadd.f32 %v897, %v898
      %v900 = vsel %vm415, %v863, 0.0
      %v901 = vadd.f32 %v899, %v900
      %v902 = vsel %vm415, %v864, 0.0
      %v903 = vadd.f32 %v901, %v902
      %v904 = vsel %vm415, %v865, 0.0
      %v905 = vadd.f32 %v903, %v904
      %v906 = vsel %vm415, %v866, 0.0
      %v907 = vadd.f32 %v905, %v906
      %v908 = vsel %vm415, %v867, 0.0
      %v909 = vadd.f32 %v907, %v908
      %v910 = vsel %vm415, %v868, 0.0
      %v911 = vadd.f32 %v909, %v910
      %v912 = vsel %vm415, %v869, 0.0
      %v913 = vadd.f32 %v911, %v912
      %v914 = vsel %vm415, %v870, 0.0
      %v915 = vadd.f32 %v913, %v914
      %v916 = vsel %vm415, %v871, 0.0
      %v917 = vadd.f32 %v915, %v916
      %v918 = vsel %vm415, %v872, 0.0
      %v919 = vadd.f32 %v917, %v918
      %v920 = vsel %vm415, %v873, 0.0
      %v921 = vadd.f32 %v919, %v920
      %v922 = vsel %vm415, %v874, 0.0
      %v923 = vadd.f32 %v921, %v922
      %v924 = vsel %vm415, %v875, 0.0
      %v925 = vadd.f32 %v923, %v924
      %v926 = vsel %vm415, %v876, 0.0
      %v927 = vadd.f32 %v925, %v926
      %v928 = vsel %vm415, %v877, 0.0
      %v929 = vadd.f32 %v927, %v928
      %v930 = vsel %vm415, %v878, 0.0
      %v931 = vadd.f32 %v929, %v930
      %v932 = vsel %vm415, %v879, 0.0
      %v933 = vadd.f32 %v931, %v932
      %v934 = vsel %vm415, %v880, 0.0
      %v935 = vadd.f32 %v933, %v934
      %v936 = vsel %vm415, %v881, 0.0
      %v937 = vadd.f32 %v935, %v936
      %v938 = vsel %vm415, %v882, 0.0
      %v939 = vadd.f32 %v937, %v938
      %v940 = vsel %vm415, %v883, 0.0
      %v941 = vadd.f32 %v939, %v940
      %v942 = vsel %vm415, %v884, 0.0
      %v943 = vadd.f32 %v941, %v942
      %v944 = vsel %vm415, %v885, 0.0
      %v945 = vadd.f32 %v943, %v944
      %v946 = vsel %vm415, %v886, 0.0
      %v947 = vadd.f32 %v945, %v946
      %v948 = vsel %vm415, %v887, 0.0
      %v949 = vadd.f32 %v947, %v948
      %v950 = vsel %vm415, %v888, 0.0
      %v951 = vadd.f32 %v949, %v950
      %v952 = vrot.slane %v951, 4
      %v953 = vadd.f32 %v951, %v952
      %v954 = vrot.slane %v953, 2
      %v955 = vadd.f32 %v953, %v954
      %v956 = vrot.slane %v955, 1
      %v957 = vadd.f32 %v955, %v956
      %958 = vst.msk [vmem:[%s211 + $0x1] sm:$0x1] %vm855, %v957
      %s959 = smul.u32 32, %s16
      %p960 = scmp.lt.s32.totalorder %s959, 63
      %s961 = scalar_select %p960, %s959, 63
      %s962 = smul.addr %s961, 4
      %s963 = scalar_lea.vmem %s3, %s962
      %p964 = scmp.lt.s32.totalorder %s16, 1
      %s965 = scalar_select %p964, %s16, 1
      %s966 = smul.addr %s965, 8
      %s967 = scalar_lea.vmem %s4, %s966
      // Predicated region
      $region33: #{resunet_forward.6} parent=31 // pred_check
        %p968 = pneg %p102
      $region34: #{resunet_forward.6} parent=31 // pred_check_branch
        %970 = sbr.rel (%p968) target = $region36
      $region35: #{resunet_forward.6} parent=31 // pred_region
        %s971 = smul.u32 32, %s16
      $region36: #{resunet_forward.6} parent=31 // pred_fallthru
        _
      // Predicated region
      $region37: #{resunet_forward.6} parent=31 // pred_check
        %p972 = pneg %p128
      $region38: #{resunet_forward.6} parent=31 // pred_check_branch
        %974 = sbr.rel (%p972) target = $region40
      $region39: #{resunet_forward.6} parent=31 // pred_region
        _
      $region40: #{resunet_forward.6} parent=31 // pred_fallthru
        _
    $region32: #{resunet_forward.6} parent=5 // pred_fallthru
      _
    %p975 = scmp.le.s32.totalorder 2, %s11
    // Predicated region
    $region41: #{resunet_forward.6} parent=5 // pred_check
      %p976 = pneg %p975
    $region42: #{resunet_forward.6} parent=5 // pred_check_branch
      %978 = sbr.rel (%p976) target = $region44
    $region43: #{resunet_forward.6} parent=5 // pred_region
      %s979 = ssub.s32 %s11, 2
      // Predicated region
      $region45: #{resunet_forward.6} parent=43 // pred_check
        %p980 = pneg %p108
      $region46: #{resunet_forward.6} parent=43 // pred_check_branch
        %982 = sbr.rel (%p980) target = $region48
      $region47: #{resunet_forward.6} parent=43 // pred_region
        %s983 = smul.u32 32, %s17
        %p984 = scmp.lt.s32.totalorder %s983, 63
        %s985 = scalar_select %p984, %s983, 63
        %s986 = smul.addr %s985, 4
        %s987 = scalar_lea.vmem %s3, %s986
      $region48: #{resunet_forward.6} parent=43 // pred_fallthru
        _
      // Predicated region
      $region49: #{resunet_forward.6} parent=43 // pred_check
        %p988 = pneg %p134
      $region50: #{resunet_forward.6} parent=43 // pred_check_branch
        %990 = sbr.rel (%p988) target = $region52
      $region51: #{resunet_forward.6} parent=43 // pred_region
        %p991 = scmp.lt.s32.totalorder %s17, 1
        %s992 = scalar_select %p991, %s17, 1
        %s993 = smul.addr %s992, 8
        %s994 = scalar_lea.vmem %s4, %s993
      $region52: #{resunet_forward.6} parent=43 // pred_fallthru
        _
    $region44: #{resunet_forward.6} parent=5 // pred_fallthru
      _
  $region6: #{resunet_forward.6} parent=0 // loop_footer
    %s15 = sadd.s32 1, %s11
  $region7: #{resunet_forward.6} parent=0 // loop_footer_branch
    %10 = sbr.rel target = $region3
  $region8: #{resunet_forward.6} parent=0 // loop_exit
    _

// kernel: resunet_forward.7
$region0: #{resunet_forward.7}
  #allocation0 [shape = 'u32[]', space=smem, size = 0x4, offset = 0x4, fixed_abs, tag = 'smem constant byte address 0x4 - core index']
  #allocation1 [shape = 'u32[144,128]{1,0:T(1,128)}', space=vmem, size = 0x12000, scoped, tag = 'internal scratch']
  %s0 = inlined_call_operand.vmem [shape: bf16[128,128], index: 0, kind: input, shape index: {}]
  %s1 = inlined_call_operand.vmem [shape: f32[8,128], index: 1, kind: input, shape index: {}]
  %s2 = inlined_call_operand.vmem [shape: bf16[128,128], index: 2, kind: input, shape index: {}]
  %s3 = inlined_call_operand.vmem [shape: f32[8,128], index: 3, kind: input, shape index: {}]
  %s4 = inlined_call_operand.vmem [shape: bf16[128,128], index: 4, kind: output, shape index: {}]
  %s5 = sld [smem:[#allocation0]]
  $region49: #{resunet_forward.7} parent=0
    _
  %s7 = ssub.s32 1, %s5
  %s8 = scalar_select 0, %s7, %s5
  loop: start=0, step=1, limit=4
  $region2: #{resunet_forward.7} parent=0 // loop_pre_header
    _
  $region3: #{resunet_forward.7} parent=0 // loop_header
    %s10 = sphi 0, %s14
    %p11 = scmp.ge.s32.totalorder %s10, 4
    %s20 = sphi 0, %s22
    %s23 = sphi 0, %s20
    %s24 = sphi 0, %s23
    %s40 = sphi 0, %s24
    %s44 = sphi 0, %s44
    %s46 = sphi 0, %s44
    %s47 = sphi 0, %s46
    %s61 = sphi 0, %s47
    %s67 = sphi 0, %s69
    %s70 = sphi 0, %s67
    %s71 = sphi 0, %s70
    %s87 = sphi 0, %s71
    %s91 = sphi 0, %s91
    %s93 = sphi 0, %s91
    %s94 = sphi 0, %s93
    %s108 = sphi 0, %s94
    %s114 = sphi 0, %s116
    %s117 = sphi 0, %s114
    %s118 = sphi 0, %s117
    %s134 = sphi 0, %s118
  $region4: #{resunet_forward.7} parent=0 // loop_header_branch
    %13 = sbr.rel (%p11) target = $region8
  $region5: #{resunet_forward.7} parent=0 // loop_body
    %s15 = ssub.s32 %s10, 1
    %s16 = ssub.s32 %s10, 2
    %s17 = sadd.s32 %s10, 1
    %s18 = ssub.s32 %s10, %s17
    %p19 = scmp.eq.s32.totalorder %s18, 0
    %s21 = sadd.s32 %s20, 1
    %s22 = scalar_select %p19, %s20, %s21
    %p25 = pneg %p19
    %p26 = scmp.eq.s32.totalorder %s10, 1
    %p27 = por %p25, %p26
    %p28 = scmp.ne.s32.totalorder %s20, %s23
    %p29 = scmp.eq.s32.totalorder %s10, 0
    %p30 = por %p28, %p29
    %p31 = scmp.ne.s32.totalorder %s20, %s23
    %p32 = scmp.eq.s32.totalorder %s15, 1
    %p33 = por %p31, %p32
    %p34 = scmp.ne.s32.totalorder %s23, %s24
    %p35 = scmp.eq.s32.totalorder %s15, 0
    %p36 = por %p34, %p35
    %p37 = scmp.ne.s32.totalorder %s23, %s24
    %p38 = scmp.eq.s32.totalorder %s16, 1
    %p39 = por %p37, %p38
    %p41 = scmp.ne.s32.totalorder %s24, %s40
    %p42 = scmp.eq.s32.totalorder %s16, 0
    %p43 = por %p41, %p42
    %s45 = sadd.s32 %s44, 1
    %p48 = scmp.eq.s32.totalorder %s10, 1
    %p49 = scmp.ne.s32.totalorder %s44, %s46
    %p50 = scmp.eq.s32.totalorder %s10, 0
    %p51 = por %p49, %p50
    %p52 = scmp.ne.s32.totalorder %s44, %s46
    %p53 = scmp.eq.s32.totalorder %s15, 1
    %p54 = por %p52, %p53
    %p55 = scmp.ne.s32.totalorder %s46, %s47
    %p56 = scmp.eq.s32.totalorder %s15, 0
    %p57 = por %p55, %p56
    %p58 = scmp.ne.s32.totalorder %s46, %s47
    %p59 = scmp.eq.s32.totalorder %s16, 1
    %p60 = por %p58, %p59
    %p62 = scmp.ne.s32.totalorder %s47, %s61
    %p63 = scmp.eq.s32.totalorder %s16, 0
    %p64 = por %p62, %p63
    %s65 = ssub.s32 %s10, %s17
    %p66 = scmp.eq.s32.totalorder %s65, 0
    %s68 = sadd.s32 %s67, 1
    %s69 = scalar_select %p66, %s67, %s68
    %p72 = pneg %p66
    %p73 = scmp.eq.s32.totalorder %s10, 1
    %p74 = por %p72, %p73
    %p75 = scmp.ne.s32.totalorder %s67, %s70
    %p76 = scmp.eq.s32.totalorder %s10, 0
    %p77 = por %p75, %p76
    %p78 = scmp.ne.s32.totalorder %s67, %s70
    %p79 = scmp.eq.s32.totalorder %s15, 1
    %p80 = por %p78, %p79
    %p81 = scmp.ne.s32.totalorder %s70, %s71
    %p82 = scmp.eq.s32.totalorder %s15, 0
    %p83 = por %p81, %p82
    %p84 = scmp.ne.s32.totalorder %s70, %s71
    %p85 = scmp.eq.s32.totalorder %s16, 1
    %p86 = por %p84, %p85
    %p88 = scmp.ne.s32.totalorder %s71, %s87
    %p89 = scmp.eq.s32.totalorder %s16, 0
    %p90 = por %p88, %p89
    %s92 = sadd.s32 %s91, 1
    %p95 = scmp.eq.s32.totalorder %s10, 1
    %p96 = scmp.ne.s32.totalorder %s91, %s93
    %p97 = scmp.eq.s32.totalorder %s10, 0
    %p98 = por %p96, %p97
    %p99 = scmp.ne.s32.totalorder %s91, %s93
    %p100 = scmp.eq.s32.totalorder %s15, 1
    %p101 = por %p99, %p100
    %p102 = scmp.ne.s32.totalorder %s93, %s94
    %p103 = scmp.eq.s32.totalorder %s15, 0
    %p104 = por %p102, %p103
    %p105 = scmp.ne.s32.totalorder %s93, %s94
    %p106 = scmp.eq.s32.totalorder %s16, 1
    %p107 = por %p105, %p106
    %p109 = scmp.ne.s32.totalorder %s94, %s108
    %p110 = scmp.eq.s32.totalorder %s16, 0
    %p111 = por %p109, %p110
    %s112 = ssub.s32 %s10, %s17
    %p113 = scmp.eq.s32.totalorder %s112, 0
    %s115 = sadd.s32 %s114, 1
    %s116 = scalar_select %p113, %s114, %s115
    %p119 = pneg %p113
    %p120 = scmp.eq.s32.totalorder %s10, 1
    %p121 = por %p119, %p120
    %p122 = scmp.ne.s32.totalorder %s114, %s117
    %p123 = scmp.eq.s32.totalorder %s10, 0
    %p124 = por %p122, %p123
    %p125 = scmp.ne.s32.totalorder %s114, %s117
    %p126 = scmp.eq.s32.totalorder %s15, 1
    %p127 = por %p125, %p126
    %p128 = scmp.ne.s32.totalorder %s117, %s118
    %p129 = scmp.eq.s32.totalorder %s15, 0
    %p130 = por %p128, %p129
    %p131 = scmp.ne.s32.totalorder %s117, %s118
    %p132 = scmp.eq.s32.totalorder %s16, 1
    %p133 = por %p131, %p132
    %p135 = scmp.ne.s32.totalorder %s118, %s134
    %p136 = scmp.eq.s32.totalorder %s16, 0
    %p137 = por %p135, %p136
    %p138 = scmp.le.s32.totalorder 1, %s10
    %p139 = scmp.lt.s32.totalorder %s10, 3
    %p140 = pnand %p138, %p139
    %p141 = pneg %p140
    // Predicated region
    $region9: #{resunet_forward.7} parent=5 // pred_check
      _
    $region10: #{resunet_forward.7} parent=5 // pred_check_branch
      %143 = sbr.rel (%p140) target = $region12
    $region11: #{resunet_forward.7} parent=5 // pred_region
      %s144 = ssub.s32 %s10, 1
      // Predicated region
      $region13: #{resunet_forward.7} parent=11 // pred_check
        %p145 = pneg %p57
      $region14: #{resunet_forward.7} parent=11 // pred_check_branch
        %147 = sbr.rel (%p145) target = $region16
      $region15: #{resunet_forward.7} parent=11 // pred_region
        _
      $region16: #{resunet_forward.7} parent=11 // pred_fallthru
        _
      // Predicated region
      $region17: #{resunet_forward.7} parent=11 // pred_check
        %p148 = pneg %p104
      $region18: #{resunet_forward.7} parent=11 // pred_check_branch
        %150 = sbr.rel (%p148) target = $region20
      $region19: #{resunet_forward.7} parent=11 // pred_region
        _
      $region20: #{resunet_forward.7} parent=11 // pred_fallthru
        _
    $region12: #{resunet_forward.7} parent=5 // pred_fallthru
      _
    %p151 = scmp.lt.s32.totalorder %s10, 2
    // Predicated region
    $region21: #{resunet_forward.7} parent=5 // pred_check
      %p152 = pneg %p151
    $region22: #{resunet_forward.7} parent=5 // pred_check_branch
      %154 = sbr.rel (%p152) target = $region24
    $region23: #{resunet_forward.7} parent=5 // pred_region
      // Predicated region
      $region25: #{resunet_forward.7} parent=23 // pred_check
        %p155 = pneg %p30
      $region26: #{resunet_forward.7} parent=23 // pred_check_branch
        %157 = sbr.rel (%p155) target = $region28
      $region27: #{resunet_forward.7} parent=23 // pred_region
        %s158 = smul.u32 8, %s10
        %p159 = scmp.lt.s32.totalorder %s158, 15
        %s160 = scalar_select %p159, %s158, 15
        %s161 = smul.addr %s160, 4
        %s162 = scalar_lea.vmem %s0, %s161
        %s163 = smul.u32 8, %s10
      $region28: #{resunet_forward.7} parent=23 // pred_fallthru
        _
      // Predicated region
      $region29: #{resunet_forward.7} parent=23 // pred_check
        %p164 = pneg %p77
      $region30: #{resunet_forward.7} parent=23 // pred_check_branch
        %166 = sbr.rel (%p164) target = $region32
      $region31: #{resunet_forward.7} parent=23 // pred_region
        %s167 = smul.u32 8, %s10
        %p168 = scmp.lt.s32.totalorder %s167, 15
        %s169 = scalar_select %p168, %s167, 15
        %s170 = smul.addr %s169, 4
        %s171 = scalar_lea.vmem %s2, %s170
        %s172 = smul.u32 8, %s10
      $region32: #{resunet_forward.7} parent=23 // pred_fallthru
        _
    $region24: #{resunet_forward.7} parent=5 // pred_fallthru
      _
    %p173 = scmp.le.s32.totalorder 1, %s10
    %p174 = scmp.lt.s32.totalorder %s10, 3
    %p175 = pnand %p173, %p174
    %p176 = pneg %p175
    // Predicated region
    $region33: #{resunet_forward.7} parent=5 // pred_check
      _
    $region34: #{resunet_forward.7} parent=5 // pred_check_branch
      %178 = sbr.rel (%p175) target = $region36
    $region35: #{resunet_forward.7} parent=5 // pred_region
      %s179 = ssub.s32 %s10, 1
      %s180 = smul.u32 8, %s15
      %p181 = scmp.lt.s32.totalorder %s180, 15
      %s182 = scalar_select %p181, %s180, 15
      %s183 = smul.addr %s182, 4
      %s184 = scalar_lea.vmem %s0, %s183
      %p185 = pneg %p36
      %p186 = pneg %p33
      %p187 = pneg %p57
      %p188 = pneg %p54
      %s189 = smul.u32 8, %s15
      %p190 = scmp.lt.s32.totalorder %s189, 15
      %s191 = scalar_select %p190, %s189, 15
      %s192 = smul.addr %s191, 4
      %s193 = scalar_lea.vmem %s2, %s192
      %p194 = pneg %p83
      %p195 = pneg %p80
      %p196 = pneg %p104
      %p197 = pneg %p101
      %p198 = pneg %p130
      %p199 = pneg %p127
      %s200 = smul.u32 4, %s15
      %p201 = scmp.lt.s32.totalorder %s200, 7
      %s202 = scalar_select %p201, %s200, 7
      %s203 = smul.addr %s202, 8
      %s204 = scalar_lea.vmem %s4, %s203
      %s205 = smul.u32 8, %s15
      %p206 = scmp.lt.s32.totalorder %s205, 15
      %s207 = scalar_select %p206, %s205, 15
      %s208 = smul.addr %s207, 4
      %s209 = scalar_lea.vmem %s0, %s208
      %s210 = smul.u32 8, %s15
      %s211 = smul.u32 8, %s15
      %p212 = scmp.lt.s32.totalorder %s211, 15
      %s213 = scalar_select %p212, %s211, 15
      %s214 = smul.addr %s213, 4
      %s215 = scalar_lea.vmem %s2, %s214
      %s216 = smul.u32 8, %s15
      %s217 = smul.u32 4, %s15
      %p218 = scmp.lt.s32.totalorder %s217, 7
      %s219 = scalar_select %p218, %s217, 7
      %s220 = smul.addr %s219, 8
      %s221 = scalar_lea.vmem %s4, %s220
      %s222 = smul.u32 4, %s15
      %v223 = vld [vmem:[%s209] sm:$0xf]
      %v224 = vld [vmem:[%s209 + $0x4] sm:$0xf]
      %v225 = vld [vmem:[%s209 + $0x8] sm:$0xf]
      %v226 = vld [vmem:[%s209 + $0xc] sm:$0xf]
      %v227 = vld [vmem:[%s209 + $0x10] sm:$0xf]
      %v228 = vld [vmem:[%s209 + $0x14] sm:$0xf]
      %v229 = vld [vmem:[%s209 + $0x18] sm:$0xf]
      %v230 = vld [vmem:[%s209 + $0x1c] sm:$0xf]
      %v231 = vunpack.c.l.bf16 %v223
      %v232 = vunpack.c.l.bf16 %v224
      %v233 = vunpack.c.l.bf16 %v225
      %v234 = vunpack.c.l.bf16 %v226
      %v235 = vunpack.c.l.bf16 %v227
      %v236 = vunpack.c.l.bf16 %v228
      %v237 = vunpack.c.l.bf16 %v229
      %v238 = vunpack.c.l.bf16 %v230
      %v239 = vld [vmem:[%s1] sm:$0x1]
      %v240 = vlaneseq
      %v241 = vshrl.u32 %v240, 7
      %v242 = vsub.s32 0, %v241
      %v243 = vrot.slane %v239, %v242
      %v244 = vmul.f32 %v231, %v243
      %v245 = vmul.f32 %v232, %v243
      %v246 = vmul.f32 %v233, %v243
      %v247 = vmul.f32 %v234, %v243
      %v248 = vmul.f32 %v235, %v243
      %v249 = vmul.f32 %v236, %v243
      %v250 = vmul.f32 %v237, %v243
      %v251 = vmul.f32 %v238, %v243
      %v252 = vld [vmem:[%s1 + $0x1] sm:$0x1]
      %v253 = vlaneseq
      %v254 = vshrl.u32 %v253, 7
      %v255 = vsub.s32 0, %v254
      %v256 = vrot.slane %v252, %v255
      %v257 = vadd.f32 %v244, %v256
      %v258 = vadd.f32 %v245, %v256
      %v259 = vadd.f32 %v246, %v256
      %v260 = vadd.f32 %v247, %v256
      %v261 = vadd.f32 %v248, %v256
      %v262 = vadd.f32 %v249, %v256
      %v263 = vadd.f32 %v250, %v256
      %v264 = vadd.f32 %v251, %v256
      %v265 = vmax.f32 %v257, 0.0
      %v266 = vmax.f32 %v258, 0.0
      %v267 = vmax.f32 %v259, 0.0
      %v268 = vmax.f32 %v260, 0.0
      %v269 = vmax.f32 %v261, 0.0
      %v270 = vmax.f32 %v262, 0.0
      %v271 = vmax.f32 %v263, 0.0
      %v272 = vmax.f32 %v264, 0.0
      %v273 = vld [vmem:[%s215] sm:$0xf]
      %v274 = vld [vmem:[%s215 + $0x4] sm:$0xf]
      %v275 = vld [vmem:[%s215 + $0x8] sm:$0xf]
      %v276 = vld [vmem:[%s215 + $0xc] sm:$0xf]
      %v277 = vld [vmem:[%s215 + $0x10] sm:$0xf]
      %v278 = vld [vmem:[%s215 + $0x14] sm:$0xf]
      %v279 = vld [vmem:[%s215 + $0x18] sm:$0xf]
      %v280 = vld [vmem:[%s215 + $0x1c] sm:$0xf]
      %v281 = vunpack.c.l.bf16 %v273
      %v282 = vunpack.c.l.bf16 %v274
      %v283 = vunpack.c.l.bf16 %v275
      %v284 = vunpack.c.l.bf16 %v276
      %v285 = vunpack.c.l.bf16 %v277
      %v286 = vunpack.c.l.bf16 %v278
      %v287 = vunpack.c.l.bf16 %v279
      %v288 = vunpack.c.l.bf16 %v280
      %v289 = vld [vmem:[%s3] sm:$0x1]
      %v290 = vlaneseq
      %v291 = vshrl.u32 %v290, 7
      %v292 = vsub.s32 0, %v291
      %v293 = vrot.slane %v289, %v292
      %v294 = vmul.f32 %v281, %v293
      %v295 = vmul.f32 %v282, %v293
      %v296 = vmul.f32 %v283, %v293
      %v297 = vmul.f32 %v284, %v293
      %v298 = vmul.f32 %v285, %v293
      %v299 = vmul.f32 %v286, %v293
      %v300 = vmul.f32 %v287, %v293
      %v301 = vmul.f32 %v288, %v293
      %v302 = vld [vmem:[%s3 + $0x1] sm:$0x1]
      %v303 = vlaneseq
      %v304 = vshrl.u32 %v303, 7
      %v305 = vsub.s32 0, %v304
      %v306 = vrot.slane %v302, %v305
      %v307 = vadd.f32 %v294, %v306
      %v308 = vadd.f32 %v295, %v306
      %v309 = vadd.f32 %v296, %v306
      %v310 = vadd.f32 %v297, %v306
      %v311 = vadd.f32 %v298, %v306
      %v312 = vadd.f32 %v299, %v306
      %v313 = vadd.f32 %v300, %v306
      %v314 = vadd.f32 %v301, %v306
      %v315 = vmax.f32 %v307, 0.0
      %v316 = vmax.f32 %v308, 0.0
      %v317 = vmax.f32 %v309, 0.0
      %v318 = vmax.f32 %v310, 0.0
      %v319 = vmax.f32 %v311, 0.0
      %v320 = vmax.f32 %v312, 0.0
      %v321 = vmax.f32 %v313, 0.0
      %v322 = vmax.f32 %v314, 0.0
      %v323 = vadd.f32 %v265, %v315
      %v324 = vadd.f32 %v266, %v316
      %v325 = vadd.f32 %v267, %v317
      %v326 = vadd.f32 %v268, %v318
      %v327 = vadd.f32 %v269, %v319
      %v328 = vadd.f32 %v270, %v320
      %v329 = vadd.f32 %v271, %v321
      %v330 = vadd.f32 %v272, %v322
      %v331 = vpack.c.bf16 %v324, %v323
      %v332 = vpack.c.bf16 %v326, %v325
      %v333 = vpack.c.bf16 %v328, %v327
      %v334 = vpack.c.bf16 %v330, %v329
      %335 = vst [vmem:[%s221] sm:$0xff] %v331
      %336 = vst [vmem:[%s221 + $0x8] sm:$0xff] %v332
      %337 = vst [vmem:[%s221 + $0x10] sm:$0xff] %v333
      %338 = vst [vmem:[%s221 + $0x18] sm:$0xff] %v334
      %s339 = smul.u32 4, %s15
      %p340 = scmp.lt.s32.totalorder %s339, 7
      %s341 = scalar_select %p340, %s339, 7
      %s342 = smul.addr %s341, 8
      %s343 = scalar_lea.vmem %s4, %s342
      // Predicated region
      $region37: #{resunet_forward.7} parent=35 // pred_check
        %p344 = pneg %p127
      $region38: #{resunet_forward.7} parent=35 // pred_check_branch
        %346 = sbr.rel (%p344) target = $region40
      $region39: #{resunet_forward.7} parent=35 // pred_region
        %s347 = smul.u32 4, %s15
      $region40: #{resunet_forward.7} parent=35 // pred_fallthru
        _
    $region36: #{resunet_forward.7} parent=5 // pred_fallthru
      _
    %p348 = scmp.le.s32.totalorder 2, %s10
    // Predicated region
    $region41: #{resunet_forward.7} parent=5 // pred_check
      %p349 = pneg %p348
    $region42: #{resunet_forward.7} parent=5 // pred_check_branch
      %351 = sbr.rel (%p349) target = $region44
    $region43: #{resunet_forward.7} parent=5 // pred_region
      %s352 = ssub.s32 %s10, 2
      // Predicated region
      $region45: #{resunet_forward.7} parent=43 // pred_check
        %p353 = pneg %p133
      $region46: #{resunet_forward.7} parent=43 // pred_check_branch
        %355 = sbr.rel (%p353) target = $region48
      $region47: #{resunet_forward.7} parent=43 // pred_region
        %s356 = smul.u32 4, %s16
        %p357 = scmp.lt.s32.totalorder %s356, 7
        %s358 = scalar_select %p357, %s356, 7
        %s359 = smul.addr %s358, 8
        %s360 = scalar_lea.vmem %s4, %s359
      $region48: #{resunet_forward.7} parent=43 // pred_fallthru
        _
    $region44: #{resunet_forward.7} parent=5 // pred_fallthru
      _
  $region6: #{resunet_forward.7} parent=0 // loop_footer
    %s14 = sadd.s32 1, %s10
  $region7: #{resunet_forward.7} parent=0 // loop_footer_branch
    %9 = sbr.rel target = $region3
  $region8: #{resunet_forward.7} parent=0 // loop_exit
    _

// kernel: resunet_forward.4
$region0: #{resunet_forward.4}
  #allocation0 [shape = 'u32[]', space=smem, size = 0x4, offset = 0x4, fixed_abs, tag = 'smem constant byte address 0x4 - core index']
  #allocation1 [shape = 'u32[144,128]{1,0:T(1,128)}', space=vmem, size = 0x12000, scoped, tag = 'internal scratch']
  %s0 = inlined_call_operand.vmem [shape: bf16[512,8], index: 0, kind: input, shape index: {}]
  %s1 = inlined_call_operand.vmem [shape: bf16[8,32], index: 1, kind: input, shape index: {}]
  %s2 = inlined_call_operand.vmem [shape: bf16[8,32], index: 2, kind: input, shape index: {}]
  %s3 = inlined_call_operand.vmem [shape: bf16[512,32], index: 3, kind: output, shape index: {0}]
  %s4 = inlined_call_operand.vmem [shape: bf16[512,32], index: 4, kind: output, shape index: {1}]
  %s5 = inlined_call_operand.vmem [shape: f32[16,32], index: 5, kind: output, shape index: {2}]
  %s6 = inlined_call_operand.vmem [shape: f32[16,32], index: 6, kind: output, shape index: {3}]
  %7 = xla_tuple %s3, %s4, %s5, %s6
  %s8 = sld [smem:[#allocation0]]
  $region69: #{resunet_forward.4} parent=0
    _
  %s10 = ssub.s32 1, %s8
  %s11 = scalar_select 0, %s10, %s8
  loop: start=0, step=1, limit=4
  $region2: #{resunet_forward.4} parent=0 // loop_pre_header
    _
  $region3: #{resunet_forward.4} parent=0 // loop_header
    %s13 = sphi 0, %s17
    %p14 = scmp.ge.s32.totalorder %s13, 4
    %s23 = sphi 0, %s25
    %s26 = sphi 0, %s23
    %s27 = sphi 0, %s26
    %s43 = sphi 0, %s27
    %s47 = sphi 0, %s47
    %s49 = sphi 0, %s47
    %s50 = sphi 0, %s49
    %s64 = sphi 0, %s50
    %s68 = sphi 0, %s68
    %s70 = sphi 0, %s68
    %s71 = sphi 0, %s70
    %s85 = sphi 0, %s71
    %s91 = sphi 0, %s93
    %s94 = sphi 0, %s91
    %s95 = sphi 0, %s94
    %s111 = sphi 0, %s95
    %s117 = sphi 0, %s119
    %s120 = sphi 0, %s117
    %s121 = sphi 0, %s120
    %s137 = sphi 0, %s121
    %s143 = sphi 0, %s145
    %s146 = sphi 0, %s143
    %s147 = sphi 0, %s146
    %s163 = sphi 0, %s147
    %s169 = sphi 0, %s171
    %s172 = sphi 0, %s169
    %s173 = sphi 0, %s172
    %s189 = sphi 0, %s173
  $region4: #{resunet_forward.4} parent=0 // loop_header_branch
    %16 = sbr.rel (%p14) target = $region8
  $region5: #{resunet_forward.4} parent=0 // loop_body
    %s18 = ssub.s32 %s13, 1
    %s19 = ssub.s32 %s13, 2
    %s20 = sadd.s32 %s13, 1
    %s21 = ssub.s32 %s13, %s20
    %p22 = scmp.eq.s32.totalorder %s21, 0
    %s24 = sadd.s32 %s23, 1
    %s25 = scalar_select %p22, %s23, %s24
    %p28 = pneg %p22
    %p29 = scmp.eq.s32.totalorder %s13, 1
    %p30 = por %p28, %p29
    %p31 = scmp.ne.s32.totalorder %s23, %s26
    %p32 = scmp.eq.s32.totalorder %s13, 0
    %p33 = por %p31, %p32
    %p34 = scmp.ne.s32.totalorder %s23, %s26
    %p35 = scmp.eq.s32.totalorder %s18, 1
    %p36 = por %p34, %p35
    %p37 = scmp.ne.s32.totalorder %s26, %s27
    %p38 = scmp.eq.s32.totalorder %s18, 0
    %p39 = por %p37, %p38
    %p40 = scmp.ne.s32.totalorder %s26, %s27
    %p41 = scmp.eq.s32.totalorder %s19, 1
    %p42 = por %p40, %p41
    %p44 = scmp.ne.s32.totalorder %s27, %s43
    %p45 = scmp.eq.s32.totalorder %s19, 0
    %p46 = por %p44, %p45
    %s48 = sadd.s32 %s47, 1
    %p51 = scmp.eq.s32.totalorder %s13, 1
    %p52 = scmp.ne.s32.totalorder %s47, %s49
    %p53 = scmp.eq.s32.totalorder %s13, 0
    %p54 = por %p52, %p53
    %p55 = scmp.ne.s32.totalorder %s47, %s49
    %p56 = scmp.eq.s32.totalorder %s18, 1
    %p57 = por %p55, %p56
    %p58 = scmp.ne.s32.totalorder %s49, %s50
    %p59 = scmp.eq.s32.totalorder %s18, 0
    %p60 = por %p58, %p59
    %p61 = scmp.ne.s32.totalorder %s49, %s50
    %p62 = scmp.eq.s32.totalorder %s19, 1
    %p63 = por %p61, %p62
    %p65 = scmp.ne.s32.totalorder %s50, %s64
    %p66 = scmp.eq.s32.totalorder %s19, 0
    %p67 = por %p65, %p66
    %s69 = sadd.s32 %s68, 1
    %p72 = scmp.eq.s32.totalorder %s13, 1
    %p73 = scmp.ne.s32.totalorder %s68, %s70
    %p74 = scmp.eq.s32.totalorder %s13, 0
    %p75 = por %p73, %p74
    %p76 = scmp.ne.s32.totalorder %s68, %s70
    %p77 = scmp.eq.s32.totalorder %s18, 1
    %p78 = por %p76, %p77
    %p79 = scmp.ne.s32.totalorder %s70, %s71
    %p80 = scmp.eq.s32.totalorder %s18, 0
    %p81 = por %p79, %p80
    %p82 = scmp.ne.s32.totalorder %s70, %s71
    %p83 = scmp.eq.s32.totalorder %s19, 1
    %p84 = por %p82, %p83
    %p86 = scmp.ne.s32.totalorder %s71, %s85
    %p87 = scmp.eq.s32.totalorder %s19, 0
    %p88 = por %p86, %p87
    %s89 = ssub.s32 %s13, %s20
    %p90 = scmp.eq.s32.totalorder %s89, 0
    %s92 = sadd.s32 %s91, 1
    %s93 = scalar_select %p90, %s91, %s92
    %p96 = pneg %p90
    %p97 = scmp.eq.s32.totalorder %s13, 1
    %p98 = por %p96, %p97
    %p99 = scmp.ne.s32.totalorder %s91, %s94
    %p100 = scmp.eq.s32.totalorder %s13, 0
    %p101 = por %p99, %p100
    %p102 = scmp.ne.s32.totalorder %s91, %s94
    %p103 = scmp.eq.s32.totalorder %s18, 1
    %p104 = por %p102, %p103
    %p105 = scmp.ne.s32.totalorder %s94, %s95
    %p106 = scmp.eq.s32.totalorder %s18, 0
    %p107 = por %p105, %p106
    %p108 = scmp.ne.s32.totalorder %s94, %s95
    %p109 = scmp.eq.s32.totalorder %s19, 1
    %p110 = por %p108, %p109
    %p112 = scmp.ne.s32.totalorder %s95, %s111
    %p113 = scmp.eq.s32.totalorder %s19, 0
    %p114 = por %p112, %p113
    %s115 = ssub.s32 %s13, %s20
    %p116 = scmp.eq.s32.totalorder %s115, 0
    %s118 = sadd.s32 %s117, 1
    %s119 = scalar_select %p116, %s117, %s118
    %p122 = pneg %p116
    %p123 = scmp.eq.s32.totalorder %s13, 1
    %p124 = por %p122, %p123
    %p125 = scmp.ne.s32.totalorder %s117, %s120
    %p126 = scmp.eq.s32.totalorder %s13, 0
    %p127 = por %p125, %p126
    %p128 = scmp.ne.s32.totalorder %s117, %s120
    %p129 = scmp.eq.s32.totalorder %s18, 1
    %p130 = por %p128, %p129
    %p131 = scmp.ne.s32.totalorder %s120, %s121
    %p132 = scmp.eq.s32.totalorder %s18, 0
    %p133 = por %p131, %p132
    %p134 = scmp.ne.s32.totalorder %s120, %s121
    %p135 = scmp.eq.s32.totalorder %s19, 1
    %p136 = por %p134, %p135
    %p138 = scmp.ne.s32.totalorder %s121, %s137
    %p139 = scmp.eq.s32.totalorder %s19, 0
    %p140 = por %p138, %p139
    %s141 = ssub.s32 %s13, %s20
    %p142 = scmp.eq.s32.totalorder %s141, 0
    %s144 = sadd.s32 %s143, 1
    %s145 = scalar_select %p142, %s143, %s144
    %p148 = pneg %p142
    %p149 = scmp.eq.s32.totalorder %s13, 1
    %p150 = por %p148, %p149
    %p151 = scmp.ne.s32.totalorder %s143, %s146
    %p152 = scmp.eq.s32.totalorder %s13, 0
    %p153 = por %p151, %p152
    %p154 = scmp.ne.s32.totalorder %s143, %s146
    %p155 = scmp.eq.s32.totalorder %s18, 1
    %p156 = por %p154, %p155
    %p157 = scmp.ne.s32.totalorder %s146, %s147
    %p158 = scmp.eq.s32.totalorder %s18, 0
    %p159 = por %p157, %p158
    %p160 = scmp.ne.s32.totalorder %s146, %s147
    %p161 = scmp.eq.s32.totalorder %s19, 1
    %p162 = por %p160, %p161
    %p164 = scmp.ne.s32.totalorder %s147, %s163
    %p165 = scmp.eq.s32.totalorder %s19, 0
    %p166 = por %p164, %p165
    %s167 = ssub.s32 %s13, %s20
    %p168 = scmp.eq.s32.totalorder %s167, 0
    %s170 = sadd.s32 %s169, 1
    %s171 = scalar_select %p168, %s169, %s170
    %p174 = pneg %p168
    %p175 = scmp.eq.s32.totalorder %s13, 1
    %p176 = por %p174, %p175
    %p177 = scmp.ne.s32.totalorder %s169, %s172
    %p178 = scmp.eq.s32.totalorder %s13, 0
    %p179 = por %p177, %p178
    %p180 = scmp.ne.s32.totalorder %s169, %s172
    %p181 = scmp.eq.s32.totalorder %s18, 1
    %p182 = por %p180, %p181
    %p183 = scmp.ne.s32.totalorder %s172, %s173
    %p184 = scmp.eq.s32.totalorder %s18, 0
    %p185 = por %p183, %p184
    %p186 = scmp.ne.s32.totalorder %s172, %s173
    %p187 = scmp.eq.s32.totalorder %s19, 1
    %p188 = por %p186, %p187
    %p190 = scmp.ne.s32.totalorder %s173, %s189
    %p191 = scmp.eq.s32.totalorder %s19, 0
    %p192 = por %p190, %p191
    %p193 = scmp.le.s32.totalorder 1, %s13
    %p194 = scmp.lt.s32.totalorder %s13, 3
    %p195 = pnand %p193, %p194
    %p196 = pneg %p195
    // Predicated region
    $region9: #{resunet_forward.4} parent=5 // pred_check
      _
    $region10: #{resunet_forward.4} parent=5 // pred_check_branch
      %198 = sbr.rel (%p195) target = $region12
    $region11: #{resunet_forward.4} parent=5 // pred_region
      %s199 = ssub.s32 %s13, 1
      // Predicated region
      $region13: #{resunet_forward.4} parent=11 // pred_check
        %p200 = pneg %p60
      $region14: #{resunet_forward.4} parent=11 // pred_check_branch
        %202 = sbr.rel (%p200) target = $region16
      $region15: #{resunet_forward.4} parent=11 // pred_region
        _
      $region16: #{resunet_forward.4} parent=11 // pred_fallthru
        _
      // Predicated region
      $region17: #{resunet_forward.4} parent=11 // pred_check
        %p203 = pneg %p81
      $region18: #{resunet_forward.4} parent=11 // pred_check_branch
        %205 = sbr.rel (%p203) target = $region20
      $region19: #{resunet_forward.4} parent=11 // pred_region
        _
      $region20: #{resunet_forward.4} parent=11 // pred_fallthru
        _
    $region12: #{resunet_forward.4} parent=5 // pred_fallthru
      _
    %p206 = scmp.lt.s32.totalorder %s13, 2
    // Predicated region
    $region21: #{resunet_forward.4} parent=5 // pred_check
      %p207 = pneg %p206
    $region22: #{resunet_forward.4} parent=5 // pred_check_branch
      %209 = sbr.rel (%p207) target = $region24
    $region23: #{resunet_forward.4} parent=5 // pred_region
      // Predicated region
      $region25: #{resunet_forward.4} parent=23 // pred_check
        %p210 = pneg %p33
      $region26: #{resunet_forward.4} parent=23 // pred_check_branch
        %212 = sbr.rel (%p210) target = $region28
      $region27: #{resunet_forward.4} parent=23 // pred_region
        %s213 = smul.u32 32, %s13
        %p214 = scmp.lt.s32.totalorder %s213, 63
        %s215 = scalar_select %p214, %s213, 63
        %s216 = smul.addr %s215, 4
        %s217 = scalar_lea.vmem %s0, %s216
        %s218 = smul.u32 32, %s13
      $region28: #{resunet_forward.4} parent=23 // pred_fallthru
        _
    $region24: #{resunet_forward.4} parent=5 // pred_fallthru
      _
    %p219 = scmp.le.s32.totalorder 1, %s13
    %p220 = scmp.lt.s32.totalorder %s13, 3
    %p221 = pnand %p219, %p220
    %p222 = pneg %p221
    // Predicated region
    $region29: #{resunet_forward.4} parent=5 // pred_check
      _
    $region30: #{resunet_forward.4} parent=5 // pred_check_branch
      %224 = sbr.rel (%p221) target = $region32
    $region31: #{resunet_forward.4} parent=5 // pred_region
      %s225 = ssub.s32 %s13, 1
      %s226 = smul.u32 32, %s18
      %p227 = scmp.lt.s32.totalorder %s226, 63
      %s228 = scalar_select %p227, %s226, 63
      %s229 = smul.addr %s228, 4
      %s230 = scalar_lea.vmem %s0, %s229
      %p231 = pneg %p39
      %p232 = pneg %p36
      %p233 = pneg %p60
      %p234 = pneg %p57
      %p235 = pneg %p81
      %p236 = pneg %p78
      %p237 = pneg %p107
      %p238 = pneg %p104
      %s239 = smul.u32 32, %s18
      %p240 = scmp.lt.s32.totalorder %s239, 63
      %s241 = scalar_select %p240, %s239, 63
      %s242 = smul.addr %s241, 4
      %s243 = scalar_lea.vmem %s3, %s242
      %p244 = pneg %p133
      %p245 = pneg %p130
      %s246 = smul.u32 32, %s18
      %p247 = scmp.lt.s32.totalorder %s246, 63
      %s248 = scalar_select %p247, %s246, 63
      %s249 = smul.addr %s248, 4
      %s250 = scalar_lea.vmem %s4, %s249
      %p251 = pneg %p159
      %p252 = pneg %p156
      %p253 = scmp.lt.s32.totalorder %s18, 1
      %s254 = scalar_select %p253, %s18, 1
      %s255 = smul.addr %s254, 8
      %s256 = scalar_lea.vmem %s5, %s255
      %p257 = pneg %p185
      %p258 = pneg %p182
      %p259 = scmp.lt.s32.totalorder %s18, 1
      %s260 = scalar_select %p259, %s18, 1
      %s261 = smul.addr %s260, 8
      %s262 = scalar_lea.vmem %s6, %s261
      %s263 = smul.u32 32, %s18
      %p264 = scmp.lt.s32.totalorder %s263, 63
      %s265 = scalar_select %p264, %s263, 63
      %s266 = smul.addr %s265, 4
      %s267 = scalar_lea.vmem %s0, %s266
      %s268 = smul.u32 32, %s18
      %s269 = smul.u32 32, %s18
      %p270 = scmp.lt.s32.totalorder %s269, 63
      %s271 = scalar_select %p270, %s269, 63
      %s272 = smul.addr %s271, 4
      %s273 = scalar_lea.vmem %s3, %s272
      %s274 = smul.u32 32, %s18
      %s275 = smul.u32 32, %s18
      %p276 = scmp.lt.s32.totalorder %s275, 63
      %s277 = scalar_select %p276, %s275, 63
      %s278 = smul.addr %s277, 4
      %s279 = scalar_lea.vmem %s4, %s278
      %s280 = smul.u32 32, %s18
      %p281 = scmp.lt.s32.totalorder %s18, 1
      %s282 = scalar_select %p281, %s18, 1
      %s283 = smul.addr %s282, 8
      %s284 = scalar_lea.vmem %s5, %s283
      %p285 = scmp.lt.s32.totalorder %s18, 1
      %s286 = scalar_select %p285, %s18, 1
      %s287 = smul.addr %s286, 8
      %s288 = scalar_lea.vmem %s6, %s287
      %v290 = vld [vmem:[%s267] sm:$0xf]
      %v291 = vld [vmem:[%s267 + $0x4] sm:$0xf]
      %v292 = vld [vmem:[%s267 + $0x8] sm:$0xf]
      %v293 = vld [vmem:[%s267 + $0xc] sm:$0xf]
      %v294 = vld [vmem:[%s267 + $0x10] sm:$0xf]
      %v295 = vld [vmem:[%s267 + $0x14] sm:$0xf]
      %v296 = vld [vmem:[%s267 + $0x18] sm:$0xf]
      %v297 = vld [vmem:[%s267 + $0x1c] sm:$0xf]
      %v298 = vld [vmem:[%s267 + $0x20] sm:$0xf]
      %v299 = vld [vmem:[%s267 + $0x24] sm:$0xf]
      %v300 = vld [vmem:[%s267 + $0x28] sm:$0xf]
      %v301 = vld [vmem:[%s267 + $0x2c] sm:$0xf]
      %v302 = vld [vmem:[%s267 + $0x30] sm:$0xf]
      %v303 = vld [vmem:[%s267 + $0x34] sm:$0xf]
      %v304 = vld [vmem:[%s267 + $0x38] sm:$0xf]
      %v305 = vld [vmem:[%s267 + $0x3c] sm:$0xf]
      %v306 = vld [vmem:[%s267 + $0x40] sm:$0xf]
      %v307 = vld [vmem:[%s267 + $0x44] sm:$0xf]
      %v308 = vld [vmem:[%s267 + $0x48] sm:$0xf]
      %v309 = vld [vmem:[%s267 + $0x4c] sm:$0xf]
      %v310 = vld [vmem:[%s267 + $0x50] sm:$0xf]
      %v311 = vld [vmem:[%s267 + $0x54] sm:$0xf]
      %v312 = vld [vmem:[%s267 + $0x58] sm:$0xf]
      %v313 = vld [vmem:[%s267 + $0x5c] sm:$0xf]
      %v314 = vld [vmem:[%s267 + $0x60] sm:$0xf]
      %v315 = vld [vmem:[%s267 + $0x64] sm:$0xf]
      %v316 = vld [vmem:[%s267 + $0x68] sm:$0xf]
      %v317 = vld [vmem:[%s267 + $0x6c] sm:$0xf]
      %v318 = vld [vmem:[%s267 + $0x70] sm:$0xf]
      %v319 = vld [vmem:[%s267 + $0x74] sm:$0xf]
      %v320 = vld [vmem:[%s267 + $0x78] sm:$0xf]
      %v321 = vld [vmem:[%s267 + $0x7c] sm:$0xf]
      %v322 = vld [vmem:[%s1] sm:$0xf]
      %v355 = vunpack.c.l.b16 %v290
      %v356 = vunpack.c.l.b16 %v291
      %v357 = vunpack.c.l.b16 %v292
      %v358 = vunpack.c.l.b16 %v293
      %v359 = vunpack.c.l.b16 %v294
      %v360 = vunpack.c.l.b16 %v295
      %v361 = vunpack.c.l.b16 %v296
      %v362 = vunpack.c.l.b16 %v297
      %v363 = vunpack.c.l.b16 %v298
      %v364 = vunpack.c.l.b16 %v299
      %v365 = vunpack.c.l.b16 %v300
      %v366 = vunpack.c.l.b16 %v301
      %v367 = vunpack.c.l.b16 %v302
      %v368 = vunpack.c.l.b16 %v303
      %v369 = vunpack.c.l.b16 %v304
      %v370 = vunpack.c.l.b16 %v305
      %v371 = vunpack.c.l.b16 %v306
      %v372 = vunpack.c.l.b16 %v307
      %v373 = vunpack.c.l.b16 %v308
      %v374 = vunpack.c.l.b16 %v309
      %v375 = vunpack.c.l.b16 %v310
      %v376 = vunpack.c.l.b16 %v311
      %v377 = vunpack.c.l.b16 %v312
      %v378 = vunpack.c.l.b16 %v313
      %v379 = vunpack.c.l.b16 %v314
      %v380 = vunpack.c.l.b16 %v315
      %v381 = vunpack.c.l.b16 %v316
      %v382 = vunpack.c.l.b16 %v317
      %v383 = vunpack.c.l.b16 %v318
      %v384 = vunpack.c.l.b16 %v319
      %v385 = vunpack.c.l.b16 %v320
      %v386 = vunpack.c.l.b16 %v321
      %v387 = vpack.c.b16 %v356, %v355
      %v388 = vpack.c.b16 %v358, %v357
      %v389 = vpack.c.b16 %v360, %v359
      %v390 = vpack.c.b16 %v362, %v361
      %v391 = vpack.c.b16 %v364, %v363
      %v392 = vpack.c.b16 %v366, %v365
      %v393 = vpack.c.b16 %v368, %v367
      %v394 = vpack.c.b16 %v370, %v369
      %v395 = vpack.c.b16 %v372, %v371
      %v396 = vpack.c.b16 %v374, %v373
      %v397 = vpack.c.b16 %v376, %v375
      %v398 = vpack.c.b16 %v378, %v377
      %v399 = vpack.c.b16 %v380, %v379
      %v400 = vpack.c.b16 %v382, %v381
      %v401 = vpack.c.b16 %v384, %v383
      %v402 = vpack.c.b16 %v386, %v385
      %vm403 = vcmask 64512
      %v405 = vsel %vm403, %v387, 0
      %v408 = vsel %vm403, %v388, 0
      %v411 = vsel %vm403, %v389, 0
      %v414 = vsel %vm403, %v390, 0
      %v417 = vsel %vm403, %v391, 0
      %v420 = vsel %vm403, %v392, 0
      %v423 = vsel %vm403, %v393, 0
      %v426 = vsel %vm403, %v394, 0
      %v429 = vsel %vm403, %v395, 0
      %v432 = vsel %vm403, %v396, 0
      %v435 = vsel %vm403, %v397, 0
      %v438 = vsel %vm403, %v398, 0
      %v441 = vsel %vm403, %v399, 0
      %v444 = vsel %vm403, %v400, 0
      %v447 = vsel %vm403, %v401, 0
      %v450 = vsel %vm403, %v402, 0
      %vm452 = vcmask 1043456
      %v454 = vsel %vm452, %v322, 0
      %456 = vmatprep.subr.bf16.mxu0 0
      %457 = vmatpush1.bf16.msra.mxu0 %v454
      %458 = vmatprep.subr.bf16.mxu0 0
      %459 = vmatpush1.bf16.msra.mxu0 0
      %460 = vmatprep.subr.bf16.mxu0 0
      %461 = vmatpush1.bf16.msra.mxu0 0
      %462 = vmatprep.subr.bf16.mxu0 0
      %463 = vmatpush1.bf16.msra.mxu0 0
      %464 = vmatprep.subr.bf16.mxu0 0
      %465 = vmatpush1.bf16.msra.mxu0 0
      %466 = vmatprep.subr.bf16.mxu0 0
      %467 = vmatpush1.bf16.msra.mxu0 0
      %468 = vmatprep.subr.bf16.mxu0 0
      %469 = vmatpush1.bf16.msra.mxu0 0
      %470 = vmatprep.subr.bf16.mxu0 0
      %471 = vmatpush1.bf16.msra.mxu0 0
      %472 = vmatprep.subr.bf16.mxu0 0
      %473 = vmatpush1.bf16.msra.mxu0 0
      %474 = vmatprep.subr.bf16.mxu0 0
      %475 = vmatpush1.bf16.msra.mxu0 0
      %476 = vmatprep.subr.bf16.mxu0 0
      %477 = vmatpush1.bf16.msra.mxu0 0
      %478 = vmatprep.subr.bf16.mxu0 0
      %479 = vmatpush1.bf16.msra.mxu0 0
      %480 = vmatprep.subr.bf16.mxu0 0
      %481 = vmatpush1.bf16.msra.mxu0 0
      %482 = vmatprep.subr.bf16.mxu0 0
      %483 = vmatpush1.bf16.msra.mxu0 0
      %484 = vmatprep.subr.bf16.mxu0 0
      %485 = vmatpush1.bf16.msra.mxu0 0
      %486 = vmatprep.subr.bf16.mxu0 0
      %487 = vmatpush1.bf16.msra.mxu0 0
      %488 = vmatprep.mubr.bf16.mxu0 0
      %489 = vmatmul.mubr.bf16.gmra.mrb[0].mxu0 %v405
      %v490 = vpop.f32.mrb[0].mxu0
      %v491 = vadd.f32 0.0, %v490
      %v492 = vpop.f32.mrb[0].mxu0
      %v493 = vpop.f32.mrb[0].mxu0
      %v494 = vadd.f32 0.0, %v493
      %v495 = vpop.f32.mrb[0].mxu0
      %496 = vmatprep.mubr.bf16.mxu0 0
      %497 = vmatmul.mubr.bf16.gmra.mrb[0].mxu0 %v408
      %v498 = vpop.f32.mrb[0].mxu0
      %v499 = vadd.f32 0.0, %v498
      %v500 = vpop.f32.mrb[0].mxu0
      %v501 = vpop.f32.mrb[0].mxu0
      %v502 = vadd.f32 0.0, %v501
      %v503 = vpop.f32.mrb[0].mxu0
      %504 = vmatprep.mubr.bf16.mxu0 0
      %505 = vmatmul.mubr.bf16.gmra.mrb[0].mxu0 %v411
      %v506 = vpop.f32.mrb[0].mxu0
      %v507 = vadd.f32 0.0, %v506
      %v508 = vpop.f32.mrb[0].mxu0
      %v509 = vpop.f32.mrb[0].mxu0
      %v510 = vadd.f32 0.0, %v509
      %v511 = vpop.f32.mrb[0].mxu0
      %512 = vmatprep.mubr.bf16.mxu0 0
      %513 = vmatmul.mubr.bf16.gmra.mrb[0].mxu0 %v414
      %v514 = vpop.f32.mrb[0].mxu0
      %v515 = vadd.f32 0.0, %v514
      %v516 = vpop.f32.mrb[0].mxu0
      %v517 = vpop.f32.mrb[0].mxu0
      %v518 = vadd.f32 0.0, %v517
      %v519 = vpop.f32.mrb[0].mxu0
      %520 = vmatprep.mubr.bf16.mxu0 0
      %521 = vmatmul.mubr.bf16.gmra.mrb[0].mxu0 %v417
      %v522 = vpop.f32.mrb[0].mxu0
      %v523 = vadd.f32 0.0, %v522
      %v524 = vpop.f32.mrb[0].mxu0
      %v525 = vpop.f32.mrb[0].mxu0
      %v526 = vadd.f32 0.0, %v525
      %v527 = vpop.f32.mrb[0].mxu0
      %528 = vmatprep.mubr.bf16.mxu0 0
      %529 = vmatmul.mubr.bf16.gmra.mrb[0].mxu0 %v420
      %v530 = vpop.f32.mrb[0].mxu0
      %v531 = vadd.f32 0.0, %v530
      %v532 = vpop.f32.mrb[0].mxu0
      %v533 = vpop.f32.mrb[0].mxu0
      %v534 = vadd.f32 0.0, %v533
      %v535 = vpop.f32.mrb[0].mxu0
      %536 = vmatprep.mubr.bf16.mxu0 0
      %537 = vmatmul.mubr.bf16.gmra.mrb[0].mxu0 %v423
      %v538 = vpop.f32.mrb[0].mxu0
      %v539 = vadd.f32 0.0, %v538
      %v540 = vpop.f32.mrb[0].mxu0
      %v541 = vpop.f32.mrb[0].mxu0
      %v542 = vadd.f32 0.0, %v541
      %v543 = vpop.f32.mrb[0].mxu0
      %544 = vmatprep.mubr.bf16.mxu0 0
      %545 = vmatmul.mubr.bf16.gmra.mrb[0].mxu0 %v426
      %v546 = vpop.f32.mrb[0].mxu0
      %v547 = vadd.f32 0.0, %v546
      %v548 = vpop.f32.mrb[0].mxu0
      %v549 = vpop.f32.mrb[0].mxu0
      %v550 = vadd.f32 0.0, %v549
      %v551 = vpop.f32.mrb[0].mxu0
      %552 = vmatprep.mubr.bf16.mxu0 0
      %553 = vmatmul.mubr.bf16.gmra.mrb[0].mxu0 %v429
      %v554 = vpop.f32.mrb[0].mxu0
      %v555 = vadd.f32 0.0, %v554
      %v556 = vpop.f32.mrb[0].mxu0
      %v557 = vpop.f32.mrb[0].mxu0
      %v558 = vadd.f32 0.0, %v557
      %v559 = vpop.f32.mrb[0].mxu0
      %560 = vmatprep.mubr.bf16.mxu0 0
      %561 = vmatmul.mubr.bf16.gmra.mrb[0].mxu0 %v432
      %v562 = vpop.f32.mrb[0].mxu0
      %v563 = vadd.f32 0.0, %v562
      %v564 = vpop.f32.mrb[0].mxu0
      %v565 = vpop.f32.mrb[0].mxu0
      %v566 = vadd.f32 0.0, %v565
      %v567 = vpop.f32.mrb[0].mxu0
      %568 = vmatprep.mubr.bf16.mxu0 0
      %569 = vmatmul.mubr.bf16.gmra.mrb[0].mxu0 %v435
      %v570 = vpop.f32.mrb[0].mxu0
      %v571 = vadd.f32 0.0, %v570
      %v572 = vpop.f32.mrb[0].mxu0
      %v573 = vpop.f32.mrb[0].mxu0
      %v574 = vadd.f32 0.0, %v573
      %v575 = vpop.f32.mrb[0].mxu0
      %576 = vmatprep.mubr.bf16.mxu0 0
      %577 = vmatmul.mubr.bf16.gmra.mrb[0].mxu0 %v438
      %v578 = vpop.f32.mrb[0].mxu0
      %v579 = vadd.f32 0.0, %v578
      %v580 = vpop.f32.mrb[0].mxu0
      %v581 = vpop.f32.mrb[0].mxu0
      %v582 = vadd.f32 0.0, %v581
      %v583 = vpop.f32.mrb[0].mxu0
      %584 = vmatprep.mubr.bf16.mxu0 0
      %585 = vmatmul.mubr.bf16.gmra.mrb[0].mxu0 %v441
      %v586 = vpop.f32.mrb[0].mxu0
      %v587 = vadd.f32 0.0, %v586
      %v588 = vpop.f32.mrb[0].mxu0
      %v589 = vpop.f32.mrb[0].mxu0
      %v590 = vadd.f32 0.0, %v589
      %v591 = vpop.f32.mrb[0].mxu0
      %592 = vmatprep.mubr.bf16.mxu0 0
      %593 = vmatmul.mubr.bf16.gmra.mrb[0].mxu0 %v444
      %v594 = vpop.f32.mrb[0].mxu0
      %v595 = vadd.f32 0.0, %v594
      %v596 = vpop.f32.mrb[0].mxu0
      %v597 = vpop.f32.mrb[0].mxu0
      %v598 = vadd.f32 0.0, %v597
      %v599 = vpop.f32.mrb[0].mxu0
      %600 = vmatprep.mubr.bf16.mxu0 0
      %601 = vmatmul.mubr.bf16.gmra.mrb[0].mxu0 %v447
      %v602 = vpop.f32.mrb[0].mxu0
      %v603 = vadd.f32 0.0, %v602
      %v604 = vpop.f32.mrb[0].mxu0
      %v605 = vpop.f32.mrb[0].mxu0
      %v606 = vadd.f32 0.0, %v605
      %v607 = vpop.f32.mrb[0].mxu0
      %608 = vmatprep.mubr.bf16.mxu0 0
      %609 = vmatmul.mubr.bf16.gmra.mrb[0].mxu0 %v450
      %v610 = vpop.f32.mrb[0].mxu0
      %v611 = vadd.f32 0.0, %v610
      %v612 = vpop.f32.mrb[0].mxu0
      %v613 = vpop.f32.mrb[0].mxu0
      %v614 = vadd.f32 0.0, %v613
      %v615 = vpop.f32.mrb[0].mxu0
      %616 = vdwg.mxu0
      %v617 = vld [vmem:[%s2] sm:$0xf]
      %v619 = vsel %vm452, %v617, 0
      %621 = vmatprep.subr.bf16.mxu0 0
      %622 = vmatpush1.bf16.msra.mxu0 %v619
      %623 = vmatprep.subr.bf16.mxu0 0
      %624 = vmatpush1.bf16.msra.mxu0 0
      %625 = vmatprep.subr.bf16.mxu0 0
      %626 = vmatpush1.bf16.msra.mxu0 0
      %627 = vmatprep.subr.bf16.mxu0 0
      %628 = vmatpush1.bf16.msra.mxu0 0
      %629 = vmatprep.subr.bf16.mxu0 0
      %630 = vmatpush1.bf16.msra.mxu0 0
      %631 = vmatprep.subr.bf16.mxu0 0
      %632 = vmatpush1.bf16.msra.mxu0 0
      %633 = vmatprep.subr.bf16.mxu0 0
      %634 = vmatpush1.bf16.msra.mxu0 0
      %635 = vmatprep.subr.bf16.mxu0 0
      %636 = vmatpush1.bf16.msra.mxu0 0
      %637 = vmatprep.subr.bf16.mxu0 0
      %638 = vmatpush1.bf16.msra.mxu0 0
      %639 = vmatprep.subr.bf16.mxu0 0
      %640 = vmatpush1.bf16.msra.mxu0 0
      %641 = vmatprep.subr.bf16.mxu0 0
      %642 = vmatpush1.bf16.msra.mxu0 0
      %643 = vmatprep.subr.bf16.mxu0 0
      %644 = vmatpush1.bf16.msra.mxu0 0
      %645 = vmatprep.subr.bf16.mxu0 0
      %646 = vmatpush1.bf16.msra.mxu0 0
      %647 = vmatprep.subr.bf16.mxu0 0
      %648 = vmatpush1.bf16.msra.mxu0 0
      %649 = vmatprep.subr.bf16.mxu0 0
      %650 = vmatpush1.bf16.msra.mxu0 0
      %651 = vmatprep.subr.bf16.mxu0 0
      %652 = vmatpush1.bf16.msra.mxu0 0
      %653 = vmatprep.mubr.bf16.mxu0 0
      %654 = vmatmul.mubr.bf16.gmra.mrb[0].mxu0 %v405
      %v655 = vpop.f32.mrb[0].mxu0
      %v656 = vadd.f32 0.0, %v655
      %v657 = vpop.f32.mrb[0].mxu0
      %v658 = vpop.f32.mrb[0].mxu0
      %v659 = vadd.f32 0.0, %v658
      %v660 = vpop.f32.mrb[0].mxu0
      %661 = vmatprep.mubr.bf16.mxu0 0
      %662 = vmatmul.mubr.bf16.gmra.mrb[0].mxu0 %v408
      %v663 = vpop.f32.mrb[0].mxu0
      %v664 = vadd.f32 0.0, %v663
      %v665 = vpop.f32.mrb[0].mxu0
      %v666 = vpop.f32.mrb[0].mxu0
      %v667 = vadd.f32 0.0, %v666
      %v668 = vpop.f32.mrb[0].mxu0
      %669 = vmatprep.mubr.bf16.mxu0 0
      %670 = vmatmul.mubr.bf16.gmra.mrb[0].mxu0 %v411
      %v671 = vpop.f32.mrb[0].mxu0
      %v672 = vadd.f32 0.0, %v671
      %v673 = vpop.f32.mrb[0].mxu0
      %v674 = vpop.f32.mrb[0].mxu0
      %v675 = vadd.f32 0.0, %v674
      %v676 = vpop.f32.mrb[0].mxu0
      %677 = vmatprep.mubr.bf16.mxu0 0
      %678 = vmatmul.mubr.bf16.gmra.mrb[0].mxu0 %v414
      %v679 = vpop.f32.mrb[0].mxu0
      %v680 = vadd.f32 0.0, %v679
      %v681 = vpop.f32.mrb[0].mxu0
      %v682 = vpop.f32.mrb[0].mxu0
      %v683 = vadd.f32 0.0, %v682
      %v684 = vpop.f32.mrb[0].mxu0
      %685 = vmatprep.mubr.bf16.mxu0 0
      %686 = vmatmul.mubr.bf16.gmra.mrb[0].mxu0 %v417
      %v687 = vpop.f32.mrb[0].mxu0
      %v688 = vadd.f32 0.0, %v687
      %v689 = vpop.f32.mrb[0].mxu0
      %v690 = vpop.f32.mrb[0].mxu0
      %v691 = vadd.f32 0.0, %v690
      %v692 = vpop.f32.mrb[0].mxu0
      %693 = vmatprep.mubr.bf16.mxu0 0
      %694 = vmatmul.mubr.bf16.gmra.mrb[0].mxu0 %v420
      %v695 = vpop.f32.mrb[0].mxu0
      %v696 = vadd.f32 0.0, %v695
      %v697 = vpop.f32.mrb[0].mxu0
      %v698 = vpop.f32.mrb[0].mxu0
      %v699 = vadd.f32 0.0, %v698
      %v700 = vpop.f32.mrb[0].mxu0
      %701 = vmatprep.mubr.bf16.mxu0 0
      %702 = vmatmul.mubr.bf16.gmra.mrb[0].mxu0 %v423
      %v703 = vpop.f32.mrb[0].mxu0
      %v704 = vadd.f32 0.0, %v703
      %v705 = vpop.f32.mrb[0].mxu0
      %v706 = vpop.f32.mrb[0].mxu0
      %v707 = vadd.f32 0.0, %v706
      %v708 = vpop.f32.mrb[0].mxu0
      %709 = vmatprep.mubr.bf16.mxu0 0
      %710 = vmatmul.mubr.bf16.gmra.mrb[0].mxu0 %v426
      %v711 = vpop.f32.mrb[0].mxu0
      %v712 = vadd.f32 0.0, %v711
      %v713 = vpop.f32.mrb[0].mxu0
      %v714 = vpop.f32.mrb[0].mxu0
      %v715 = vadd.f32 0.0, %v714
      %v716 = vpop.f32.mrb[0].mxu0
      %717 = vmatprep.mubr.bf16.mxu0 0
      %718 = vmatmul.mubr.bf16.gmra.mrb[0].mxu0 %v429
      %v719 = vpop.f32.mrb[0].mxu0
      %v720 = vadd.f32 0.0, %v719
      %v721 = vpop.f32.mrb[0].mxu0
      %v722 = vpop.f32.mrb[0].mxu0
      %v723 = vadd.f32 0.0, %v722
      %v724 = vpop.f32.mrb[0].mxu0
      %725 = vmatprep.mubr.bf16.mxu0 0
      %726 = vmatmul.mubr.bf16.gmra.mrb[0].mxu0 %v432
      %v727 = vpop.f32.mrb[0].mxu0
      %v728 = vadd.f32 0.0, %v727
      %v729 = vpop.f32.mrb[0].mxu0
      %v730 = vpop.f32.mrb[0].mxu0
      %v731 = vadd.f32 0.0, %v730
      %v732 = vpop.f32.mrb[0].mxu0
      %733 = vmatprep.mubr.bf16.mxu0 0
      %734 = vmatmul.mubr.bf16.gmra.mrb[0].mxu0 %v435
      %v735 = vpop.f32.mrb[0].mxu0
      %v736 = vadd.f32 0.0, %v735
      %v737 = vpop.f32.mrb[0].mxu0
      %v738 = vpop.f32.mrb[0].mxu0
      %v739 = vadd.f32 0.0, %v738
      %v740 = vpop.f32.mrb[0].mxu0
      %741 = vmatprep.mubr.bf16.mxu0 0
      %742 = vmatmul.mubr.bf16.gmra.mrb[0].mxu0 %v438
      %v743 = vpop.f32.mrb[0].mxu0
      %v744 = vadd.f32 0.0, %v743
      %v745 = vpop.f32.mrb[0].mxu0
      %v746 = vpop.f32.mrb[0].mxu0
      %v747 = vadd.f32 0.0, %v746
      %v748 = vpop.f32.mrb[0].mxu0
      %749 = vmatprep.mubr.bf16.mxu0 0
      %750 = vmatmul.mubr.bf16.gmra.mrb[0].mxu0 %v441
      %v751 = vpop.f32.mrb[0].mxu0
      %v752 = vadd.f32 0.0, %v751
      %v753 = vpop.f32.mrb[0].mxu0
      %v754 = vpop.f32.mrb[0].mxu0
      %v755 = vadd.f32 0.0, %v754
      %v756 = vpop.f32.mrb[0].mxu0
      %757 = vmatprep.mubr.bf16.mxu0 0
      %758 = vmatmul.mubr.bf16.gmra.mrb[0].mxu0 %v444
      %v759 = vpop.f32.mrb[0].mxu0
      %v760 = vadd.f32 0.0, %v759
      %v761 = vpop.f32.mrb[0].mxu0
      %v762 = vpop.f32.mrb[0].mxu0
      %v763 = vadd.f32 0.0, %v762
      %v764 = vpop.f32.mrb[0].mxu0
      %765 = vmatprep.mubr.bf16.mxu0 0
      %766 = vmatmul.mubr.bf16.gmra.mrb[0].mxu0 %v447
      %v767 = vpop.f32.mrb[0].mxu0
      %v768 = vadd.f32 0.0, %v767
      %v769 = vpop.f32.mrb[0].mxu0
      %v770 = vpop.f32.mrb[0].mxu0
      %v771 = vadd.f32 0.0, %v770
      %v772 = vpop.f32.mrb[0].mxu0
      %773 = vmatprep.mubr.bf16.mxu0 0
      %774 = vmatmul.mubr.bf16.gmra.mrb[0].mxu0 %v450
      %v775 = vpop.f32.mrb[0].mxu0
      %v776 = vadd.f32 0.0, %v775
      %v777 = vpop.f32.mrb[0].mxu0
      %v778 = vpop.f32.mrb[0].mxu0
      %v779 = vadd.f32 0.0, %v778
      %v780 = vpop.f32.mrb[0].mxu0
      %781 = vdwg.mxu0
      %v782 = vpack.c.bf16 %v494, %v491
      %v783 = vpack.c.bf16 %v502, %v499
      %v784 = vpack.c.bf16 %v510, %v507
      %v785 = vpack.c.bf16 %v518, %v515
      %v786 = vpack.c.bf16 %v526, %v523
      %v787 = vpack.c.bf16 %v534, %v531
      %v788 = vpack.c.bf16 %v542, %v539
      %v789 = vpack.c.bf16 %v550, %v547
      %v790 = vpack.c.bf16 %v558, %v555
      %v791 = vpack.c.bf16 %v566, %v563
      %v792 = vpack.c.bf16 %v574, %v571
      %v793 = vpack.c.bf16 %v582, %v579
      %v794 = vpack.c.bf16 %v590, %v587
      %v795 = vpack.c.bf16 %v598, %v595
      %v796 = vpack.c.bf16 %v606, %v603
      %v797 = vpack.c.bf16 %v614, %v611
      %v814 = vunpack.c.l.b16 %v782
      %v815 = vunpack.c.h.b16 %v782
      %v816 = vunpack.c.l.b16 %v783
      %v817 = vunpack.c.h.b16 %v783
      %v818 = vunpack.c.l.b16 %v784
      %v819 = vunpack.c.h.b16 %v784
      %v820 = vunpack.c.l.b16 %v785
      %v821 = vunpack.c.h.b16 %v785
      %v822 = vunpack.c.l.b16 %v786
      %v823 = vunpack.c.h.b16 %v786
      %v824 = vunpack.c.l.b16 %v787
      %v825 = vunpack.c.h.b16 %v787
      %v826 = vunpack.c.l.b16 %v788
      %v827 = vunpack.c.h.b16 %v788
      %v828 = vunpack.c.l.b16 %v789
      %v829 = vunpack.c.h.b16 %v789
      %v830 = vunpack.c.l.b16 %v790
      %v831 = vunpack.c.h.b16 %v790
      %v832 = vunpack.c.l.b16 %v791
      %v833 = vunpack.c.h.b16 %v791
      %v834 = vunpack.c.l.b16 %v792
      %v835 = vunpack.c.h.b16 %v792
      %v836 = vunpack.c.l.b16 %v793
      %v837 = vunpack.c.h.b16 %v793
      %v838 = vunpack.c.l.b16 %v794
      %v839 = vunpack.c.h.b16 %v794
      %v840 = vunpack.c.l.b16 %v795
      %v841 = vunpack.c.h.b16 %v795
      %v842 = vunpack.c.l.b16 %v796
      %v843 = vunpack.c.h.b16 %v796
      %v844 = vunpack.c.l.b16 %v797
      %v845 = vunpack.c.h.b16 %v797
      %v846 = vpack.c.b16 %v814, %v814
      %v847 = vpack.c.b16 %v815, %v815
      %v848 = vpack.c.b16 %v816, %v816
      %v849 = vpack.c.b16 %v817, %v817
      %v850 = vpack.c.b16 %v818, %v818
      %v851 = vpack.c.b16 %v819, %v819
      %v852 = vpack.c.b16 %v820, %v820
      %v853 = vpack.c.b16 %v821, %v821
      %v854 = vpack.c.b16 %v822, %v822
      %v855 = vpack.c.b16 %v823, %v823
      %v856 = vpack.c.b16 %v824, %v824
      %v857 = vpack.c.b16 %v825, %v825
      %v858 = vpack.c.b16 %v826, %v826
      %v859 = vpack.c.b16 %v827, %v827
      %v860 = vpack.c.b16 %v828, %v828
      %v861 = vpack.c.b16 %v829, %v829
      %v862 = vpack.c.b16 %v830, %v830
      %v863 = vpack.c.b16 %v831, %v831
      %v864 = vpack.c.b16 %v832, %v832
      %v865 = vpack.c.b16 %v833, %v833
      %v866 = vpack.c.b16 %v834, %v834
      %v867 = vpack.c.b16 %v835, %v835
      %v868 = vpack.c.b16 %v836, %v836
      %v869 = vpack.c.b16 %v837, %v837
      %v870 = vpack.c.b16 %v838, %v838
      %v871 = vpack.c.b16 %v839, %v839
      %v872 = vpack.c.b16 %v840, %v840
      %v873 = vpack.c.b16 %v841, %v841
      %v874 = vpack.c.b16 %v842, %v842
      %v875 = vpack.c.b16 %v843, %v843
      %v876 = vpack.c.b16 %v844, %v844
      %v877 = vpack.c.b16 %v845, %v845
      %vm910 = vcmask 257024
      %911 = vst.msk [vmem:[%s273] sm:$0xf] %vm910, %v846
      %912 = vst.msk [vmem:[%s273 + $0x4] sm:$0xf] %vm910, %v847
      %913 = vst.msk [vmem:[%s273 + $0x8] sm:$0xf] %vm910, %v848
      %914 = vst.msk [vmem:[%s273 + $0xc] sm:$0xf] %vm910, %v849
      %915 = vst.msk [vmem:[%s273 + $0x10] sm:$0xf] %vm910, %v850
      %916 = vst.msk [vmem:[%s273 + $0x14] sm:$0xf] %vm910, %v851
      %917 = vst.msk [vmem:[%s273 + $0x18] sm:$0xf] %vm910, %v852
      %918 = vst.msk [vmem:[%s273 + $0x1c] sm:$0xf] %vm910, %v853
      %919 = vst.msk [vmem:[%s273 + $0x20] sm:$0xf] %vm910, %v854
      %920 = vst.msk [vmem:[%s273 + $0x24] sm:$0xf] %vm910, %v855
      %921 = vst.msk [vmem:[%s273 + $0x28] sm:$0xf] %vm910, %v856
      %922 = vst.msk [vmem:[%s273 + $0x2c] sm:$0xf] %vm910, %v857
      %923 = vst.msk [vmem:[%s273 + $0x30] sm:$0xf] %vm910, %v858
      %924 = vst.msk [vmem:[%s273 + $0x34] sm:$0xf] %vm910, %v859
      %925 = vst.msk [vmem:[%s273 + $0x38] sm:$0xf] %vm910, %v860
      %926 = vst.msk [vmem:[%s273 + $0x3c] sm:$0xf] %vm910, %v861
      %927 = vst.msk [vmem:[%s273 + $0x40] sm:$0xf] %vm910, %v862
      %928 = vst.msk [vmem:[%s273 + $0x44] sm:$0xf] %vm910, %v863
      %929 = vst.msk [vmem:[%s273 + $0x48] sm:$0xf] %vm910, %v864
      %930 = vst.msk [vmem:[%s273 + $0x4c] sm:$0xf] %vm910, %v865
      %931 = vst.msk [vmem:[%s273 + $0x50] sm:$0xf] %vm910, %v866
      %932 = vst.msk [vmem:[%s273 + $0x54] sm:$0xf] %vm910, %v867
      %933 = vst.msk [vmem:[%s273 + $0x58] sm:$0xf] %vm910, %v868
      %934 = vst.msk [vmem:[%s273 + $0x5c] sm:$0xf] %vm910, %v869
      %935 = vst.msk [vmem:[%s273 + $0x60] sm:$0xf] %vm910, %v870
      %936 = vst.msk [vmem:[%s273 + $0x64] sm:$0xf] %vm910, %v871
      %937 = vst.msk [vmem:[%s273 + $0x68] sm:$0xf] %vm910, %v872
      %938 = vst.msk [vmem:[%s273 + $0x6c] sm:$0xf] %vm910, %v873
      %939 = vst.msk [vmem:[%s273 + $0x70] sm:$0xf] %vm910, %v874
      %940 = vst.msk [vmem:[%s273 + $0x74] sm:$0xf] %vm910, %v875
      %941 = vst.msk [vmem:[%s273 + $0x78] sm:$0xf] %vm910, %v876
      %942 = vst.msk [vmem:[%s273 + $0x7c] sm:$0xf] %vm910, %v877
      %v943 = vpack.c.bf16 %v659, %v656
      %v944 = vpack.c.bf16 %v667, %v664
      %v945 = vpack.c.bf16 %v675, %v672
      %v946 = vpack.c.bf16 %v683, %v680
      %v947 = vpack.c.bf16 %v691, %v688
      %v948 = vpack.c.bf16 %v699, %v696
      %v949 = vpack.c.bf16 %v707, %v704
      %v950 = vpack.c.bf16 %v715, %v712
      %v951 = vpack.c.bf16 %v723, %v720
      %v952 = vpack.c.bf16 %v731, %v728
      %v953 = vpack.c.bf16 %v739, %v736
      %v954 = vpack.c.bf16 %v747, %v744
      %v955 = vpack.c.bf16 %v755, %v752
      %v956 = vpack.c.bf16 %v763, %v760
      %v957 = vpack.c.bf16 %v771, %v768
      %v958 = vpack.c.bf16 %v779, %v776
      %v975 = vunpack.c.l.b16 %v943
      %v976 = vunpack.c.h.b16 %v943
      %v977 = vunpack.c.l.b16 %v944
      %v978 = vunpack.c.h.b16 %v944
      %v979 = vunpack.c.l.b16 %v945
      %v980 = vunpack.c.h.b16 %v945
      %v981 = vunpack.c.l.b16 %v946
      %v982 = vunpack.c.h.b16 %v946
      %v983 = vunpack.c.l.b16 %v947
      %v984 = vunpack.c.h.b16 %v947
      %v985 = vunpack.c.l.b16 %v948
      %v986 = vunpack.c.h.b16 %v948
      %v987 = vunpack.c.l.b16 %v949
      %v988 = vunpack.c.h.b16 %v949
      %v989 = vunpack.c.l.b16 %v950
      %v990 = vunpack.c.h.b16 %v950
      %v991 = vunpack.c.l.b16 %v951
      %v992 = vunpack.c.h.b16 %v951
      %v993 = vunpack.c.l.b16 %v952
      %v994 = vunpack.c.h.b16 %v952
      %v995 = vunpack.c.l.b16 %v953
      %v996 = vunpack.c.h.b16 %v953
      %v997 = vunpack.c.l.b16 %v954
      %v998 = vunpack.c.h.b16 %v954
      %v999 = vunpack.c.l.b16 %v955
      %v1000 = vunpack.c.h.b16 %v955
      %v1001 = vunpack.c.l.b16 %v956
      %v1002 = vunpack.c.h.b16 %v956
      %v1003 = vunpack.c.l.b16 %v957
      %v1004 = vunpack.c.h.b16 %v957
      %v1005 = vunpack.c.l.b16 %v958
      %v1006 = vunpack.c.h.b16 %v958
      %v1007 = vpack.c.b16 %v975, %v975
      %v1008 = vpack.c.b16 %v976, %v976
      %v1009 = vpack.c.b16 %v977, %v977
      %v1010 = vpack.c.b16 %v978, %v978
      %v1011 = vpack.c.b16 %v979, %v979
      %v1012 = vpack.c.b16 %v980, %v980
      %v1013 = vpack.c.b16 %v981, %v981
      %v1014 = vpack.c.b16 %v982, %v982
      %v1015 = vpack.c.b16 %v983, %v983
      %v1016 = vpack.c.b16 %v984, %v984
      %v1017 = vpack.c.b16 %v985, %v985
      %v1018 = vpack.c.b16 %v986, %v986
      %v1019 = vpack.c.b16 %v987, %v987
      %v1020 = vpack.c.b16 %v988, %v988
      %v1021 = vpack.c.b16 %v989, %v989
      %v1022 = vpack.c.b16 %v990, %v990
      %v1023 = vpack.c.b16 %v991, %v991
      %v1024 = vpack.c.b16 %v992, %v992
      %v1025 = vpack.c.b16 %v993, %v993
      %v1026 = vpack.c.b16 %v994, %v994
      %v1027 = vpack.c.b16 %v995, %v995
      %v1028 = vpack.c.b16 %v996, %v996
      %v1029 = vpack.c.b16 %v997, %v997
      %v1030 = vpack.c.b16 %v998, %v998
      %v1031 = vpack.c.b16 %v999, %v999
      %v1032 = vpack.c.b16 %v1000, %v1000
      %v1033 = vpack.c.b16 %v1001, %v1001
      %v1034 = vpack.c.b16 %v1002, %v1002
      %v1035 = vpack.c.b16 %v1003, %v1003
      %v1036 = vpack.c.b16 %v1004, %v1004
      %v1037 = vpack.c.b16 %v1005, %v1005
      %v1038 = vpack.c.b16 %v1006, %v1006
      %1071 = vst.msk [vmem:[%s279] sm:$0xf] %vm910, %v1007
      %1072 = vst.msk [vmem:[%s279 + $0x4] sm:$0xf] %vm910, %v1008
      %1073 = vst.msk [vmem:[%s279 + $0x8] sm:$0xf] %vm910, %v1009
      %1074 = vst.msk [vmem:[%s279 + $0xc] sm:$0xf] %vm910, %v1010
      %1075 = vst.msk [vmem:[%s279 + $0x10] sm:$0xf] %vm910, %v1011
      %1076 = vst.msk [vmem:[%s279 + $0x14] sm:$0xf] %vm910, %v1012
      %1077 = vst.msk [vmem:[%s279 + $0x18] sm:$0xf] %vm910, %v1013
      %1078 = vst.msk [vmem:[%s279 + $0x1c] sm:$0xf] %vm910, %v1014
      %1079 = vst.msk [vmem:[%s279 + $0x20] sm:$0xf] %vm910, %v1015
      %1080 = vst.msk [vmem:[%s279 + $0x24] sm:$0xf] %vm910, %v1016
      %1081 = vst.msk [vmem:[%s279 + $0x28] sm:$0xf] %vm910, %v1017
      %1082 = vst.msk [vmem:[%s279 + $0x2c] sm:$0xf] %vm910, %v1018
      %1083 = vst.msk [vmem:[%s279 + $0x30] sm:$0xf] %vm910, %v1019
      %1084 = vst.msk [vmem:[%s279 + $0x34] sm:$0xf] %vm910, %v1020
      %1085 = vst.msk [vmem:[%s279 + $0x38] sm:$0xf] %vm910, %v1021
      %1086 = vst.msk [vmem:[%s279 + $0x3c] sm:$0xf] %vm910, %v1022
      %1087 = vst.msk [vmem:[%s279 + $0x40] sm:$0xf] %vm910, %v1023
      %1088 = vst.msk [vmem:[%s279 + $0x44] sm:$0xf] %vm910, %v1024
      %1089 = vst.msk [vmem:[%s279 + $0x48] sm:$0xf] %vm910, %v1025
      %1090 = vst.msk [vmem:[%s279 + $0x4c] sm:$0xf] %vm910, %v1026
      %1091 = vst.msk [vmem:[%s279 + $0x50] sm:$0xf] %vm910, %v1027
      %1092 = vst.msk [vmem:[%s279 + $0x54] sm:$0xf] %vm910, %v1028
      %1093 = vst.msk [vmem:[%s279 + $0x58] sm:$0xf] %vm910, %v1029
      %1094 = vst.msk [vmem:[%s279 + $0x5c] sm:$0xf] %vm910, %v1030
      %1095 = vst.msk [vmem:[%s279 + $0x60] sm:$0xf] %vm910, %v1031
      %1096 = vst.msk [vmem:[%s279 + $0x64] sm:$0xf] %vm910, %v1032
      %1097 = vst.msk [vmem:[%s279 + $0x68] sm:$0xf] %vm910, %v1033
      %1098 = vst.msk [vmem:[%s279 + $0x6c] sm:$0xf] %vm910, %v1034
      %1099 = vst.msk [vmem:[%s279 + $0x70] sm:$0xf] %vm910, %v1035
      %1100 = vst.msk [vmem:[%s279 + $0x74] sm:$0xf] %vm910, %v1036
      %1101 = vst.msk [vmem:[%s279 + $0x78] sm:$0xf] %vm910, %v1037
      %1102 = vst.msk [vmem:[%s279 + $0x7c] sm:$0xf] %vm910, %v1038
      %vm1103 = vcmask 261120
      %v1104 = vsel %vm1103, %v491, 0.0
      %v1105 = vsel %vm1103, %v494, 0.0
      %v1106 = vadd.f32 %v1104, %v1105
      %v1107 = vsel %vm1103, %v499, 0.0
      %v1108 = vadd.f32 %v1106, %v1107
      %v1109 = vsel %vm1103, %v502, 0.0
      %v1110 = vadd.f32 %v1108, %v1109
      %v1111 = vsel %vm1103, %v507, 0.0
      %v1112 = vadd.f32 %v1110, %v1111
      %v1113 = vsel %vm1103, %v510, 0.0
      %v1114 = vadd.f32 %v1112, %v1113
      %v1115 = vsel %vm1103, %v515, 0.0
      %v1116 = vadd.f32 %v1114, %v1115
      %v1117 = vsel %vm1103, %v518, 0.0
      %v1118 = vadd.f32 %v1116, %v1117
      %v1119 = vsel %vm1103, %v523, 0.0
      %v1120 = vadd.f32 %v1118, %v1119
      %v1121 = vsel %vm1103, %v526, 0.0
      %v1122 = vadd.f32 %v1120, %v1121
      %v1123 = vsel %vm1103, %v531, 0.0
      %v1124 = vadd.f32 %v1122, %v1123
      %v1125 = vsel %vm1103, %v534, 0.0
      %v1126 = vadd.f32 %v1124, %v1125
      %v1127 = vsel %vm1103, %v539, 0.0
      %v1128 = vadd.f32 %v1126, %v1127
      %v1129 = vsel %vm1103, %v542, 0.0
      %v1130 = vadd.f32 %v1128, %v1129
      %v1131 = vsel %vm1103, %v547, 0.0
      %v1132 = vadd.f32 %v1130, %v1131
      %v1133 = vsel %vm1103, %v550, 0.0
      %v1134 = vadd.f32 %v1132, %v1133
      %v1135 = vsel %vm1103, %v555, 0.0
      %v1136 = vadd.f32 %v1134, %v1135
      %v1137 = vsel %vm1103, %v558, 0.0
      %v1138 = vadd.f32 %v1136, %v1137
      %v1139 = vsel %vm1103, %v563, 0.0
      %v1140 = vadd.f32 %v1138, %v1139
      %v1141 = vsel %vm1103, %v566, 0.0
      %v1142 = vadd.f32 %v1140, %v1141
      %v1143 = vsel %vm1103, %v571, 0.0
      %v1144 = vadd.f32 %v1142, %v1143
      %v1145 = vsel %vm1103, %v574, 0.0
      %v1146 = vadd.f32 %v1144, %v1145
      %v1147 = vsel %vm1103, %v579, 0.0
      %v1148 = vadd.f32 %v1146, %v1147
      %v1149 = vsel %vm1103, %v582, 0.0
      %v1150 = vadd.f32 %v1148, %v1149
      %v1151 = vsel %vm1103, %v587, 0.0
      %v1152 = vadd.f32 %v1150, %v1151
      %v1153 = vsel %vm1103, %v590, 0.0
      %v1154 = vadd.f32 %v1152, %v1153
      %v1155 = vsel %vm1103, %v595, 0.0
      %v1156 = vadd.f32 %v1154, %v1155
      %v1157 = vsel %vm1103, %v598, 0.0
      %v1158 = vadd.f32 %v1156, %v1157
      %v1159 = vsel %vm1103, %v603, 0.0
      %v1160 = vadd.f32 %v1158, %v1159
      %v1161 = vsel %vm1103, %v606, 0.0
      %v1162 = vadd.f32 %v1160, %v1161
      %v1163 = vsel %vm1103, %v611, 0.0
      %v1164 = vadd.f32 %v1162, %v1163
      %v1165 = vsel %vm1103, %v614, 0.0
      %v1166 = vadd.f32 %v1164, %v1165
      %v1167 = vrot.slane %v1166, 4
      %v1168 = vadd.f32 %v1166, %v1167
      %v1169 = vrot.slane %v1168, 2
      %v1170 = vadd.f32 %v1168, %v1169
      %v1171 = vrot.slane %v1170, 1
      %v1172 = vadd.f32 %v1170, %v1171
      %vm1173 = vcmask 253952
      %1174 = vst.msk [vmem:[%s284] sm:$0x1] %vm1173, %v1172
      %v1175 = vmul.f32 %v491, %v491
      %v1176 = vmul.f32 %v494, %v494
      %v1177 = vmul.f32 %v499, %v499
      %v1178 = vmul.f32 %v502, %v502
      %v1179 = vmul.f32 %v507, %v507
      %v1180 = vmul.f32 %v510, %v510
      %v1181 = vmul.f32 %v515, %v515
      %v1182 = vmul.f32 %v518, %v518
      %v1183 = vmul.f32 %v523, %v523
      %v1184 = vmul.f32 %v526, %v526
      %v1185 = vmul.f32 %v531, %v531
      %v1186 = vmul.f32 %v534, %v534
      %v1187 = vmul.f32 %v539, %v539
      %v1188 = vmul.f32 %v542, %v542
      %v1189 = vmul.f32 %v547, %v547
      %v1190 = vmul.f32 %v550, %v550
      %v1191 = vmul.f32 %v555, %v555
      %v1192 = vmul.f32 %v558, %v558
      %v1193 = vmul.f32 %v563, %v563
      %v1194 = vmul.f32 %v566, %v566
      %v1195 = vmul.f32 %v571, %v571
      %v1196 = vmul.f32 %v574, %v574
      %v1197 = vmul.f32 %v579, %v579
      %v1198 = vmul.f32 %v582, %v582
      %v1199 = vmul.f32 %v587, %v587
      %v1200 = vmul.f32 %v590, %v590
      %v1201 = vmul.f32 %v595, %v595
      %v1202 = vmul.f32 %v598, %v598
      %v1203 = vmul.f32 %v603, %v603
      %v1204 = vmul.f32 %v606, %v606
      %v1205 = vmul.f32 %v611, %v611
      %v1206 = vmul.f32 %v614, %v614
      %v1207 = vsel %vm1103, %v1175, 0.0
      %v1208 = vsel %vm1103, %v1176, 0.0
      %v1209 = vadd.f32 %v1207, %v1208
      %v1210 = vsel %vm1103, %v1177, 0.0
      %v1211 = vadd.f32 %v1209, %v1210
      %v1212 = vsel %vm1103, %v1178, 0.0
      %v1213 = vadd.f32 %v1211, %v1212
      %v1214 = vsel %vm1103, %v1179, 0.0
      %v1215 = vadd.f32 %v1213, %v1214
      %v1216 = vsel %vm1103, %v1180, 0.0
      %v1217 = vadd.f32 %v1215, %v1216
      %v1218 = vsel %vm1103, %v1181, 0.0
      %v1219 = vadd.f32 %v1217, %v1218
      %v1220 = vsel %vm1103, %v1182, 0.0
      %v1221 = vadd.f32 %v1219, %v1220
      %v1222 = vsel %vm1103, %v1183, 0.0
      %v1223 = vadd.f32 %v1221, %v1222
      %v1224 = vsel %vm1103, %v1184, 0.0
      %v1225 = vadd.f32 %v1223, %v1224
      %v1226 = vsel %vm1103, %v1185, 0.0
      %v1227 = vadd.f32 %v1225, %v1226
      %v1228 = vsel %vm1103, %v1186, 0.0
      %v1229 = vadd.f32 %v1227, %v1228
      %v1230 = vsel %vm1103, %v1187, 0.0
      %v1231 = vadd.f32 %v1229, %v1230
      %v1232 = vsel %vm1103, %v1188, 0.0
      %v1233 = vadd.f32 %v1231, %v1232
      %v1234 = vsel %vm1103, %v1189, 0.0
      %v1235 = vadd.f32 %v1233, %v1234
      %v1236 = vsel %vm1103, %v1190, 0.0
      %v1237 = vadd.f32 %v1235, %v1236
      %v1238 = vsel %vm1103, %v1191, 0.0
      %v1239 = vadd.f32 %v1237, %v1238
      %v1240 = vsel %vm1103, %v1192, 0.0
      %v1241 = vadd.f32 %v1239, %v1240
      %v1242 = vsel %vm1103, %v1193, 0.0
      %v1243 = vadd.f32 %v1241, %v1242
      %v1244 = vsel %vm1103, %v1194, 0.0
      %v1245 = vadd.f32 %v1243, %v1244
      %v1246 = vsel %vm1103, %v1195, 0.0
      %v1247 = vadd.f32 %v1245, %v1246
      %v1248 = vsel %vm1103, %v1196, 0.0
      %v1249 = vadd.f32 %v1247, %v1248
      %v1250 = vsel %vm1103, %v1197, 0.0
      %v1251 = vadd.f32 %v1249, %v1250
      %v1252 = vsel %vm1103, %v1198, 0.0
      %v1253 = vadd.f32 %v1251, %v1252
      %v1254 = vsel %vm1103, %v1199, 0.0
      %v1255 = vadd.f32 %v1253, %v1254
      %v1256 = vsel %vm1103, %v1200, 0.0
      %v1257 = vadd.f32 %v1255, %v1256
      %v1258 = vsel %vm1103, %v1201, 0.0
      %v1259 = vadd.f32 %v1257, %v1258
      %v1260 = vsel %vm1103, %v1202, 0.0
      %v1261 = vadd.f32 %v1259, %v1260
      %v1262 = vsel %vm1103, %v1203, 0.0
      %v1263 = vadd.f32 %v1261, %v1262
      %v1264 = vsel %vm1103, %v1204, 0.0
      %v1265 = vadd.f32 %v1263, %v1264
      %v1266 = vsel %vm1103, %v1205, 0.0
      %v1267 = vadd.f32 %v1265, %v1266
      %v1268 = vsel %vm1103, %v1206, 0.0
      %v1269 = vadd.f32 %v1267, %v1268
      %v1270 = vrot.slane %v1269, 4
      %v1271 = vadd.f32 %v1269, %v1270
      %v1272 = vrot.slane %v1271, 2
      %v1273 = vadd.f32 %v1271, %v1272
      %v1274 = vrot.slane %v1273, 1
      %v1275 = vadd.f32 %v1273, %v1274
      %1276 = vst.msk [vmem:[%s284 + $0x1] sm:$0x1] %vm1173, %v1275
      %v1277 = vsel %vm1103, %v656, 0.0
      %v1278 = vsel %vm1103, %v659, 0.0
      %v1279 = vadd.f32 %v1277, %v1278
      %v1280 = vsel %vm1103, %v664, 0.0
      %v1281 = vadd.f32 %v1279, %v1280
      %v1282 = vsel %vm1103, %v667, 0.0
      %v1283 = vadd.f32 %v1281, %v1282
      %v1284 = vsel %vm1103, %v672, 0.0
      %v1285 = vadd.f32 %v1283, %v1284
      %v1286 = vsel %vm1103, %v675, 0.0
      %v1287 = vadd.f32 %v1285, %v1286
      %v1288 = vsel %vm1103, %v680, 0.0
      %v1289 = vadd.f32 %v1287, %v1288
      %v1290 = vsel %vm1103, %v683, 0.0
      %v1291 = vadd.f32 %v1289, %v1290
      %v1292 = vsel %vm1103, %v688, 0.0
      %v1293 = vadd.f32 %v1291, %v1292
      %v1294 = vsel %vm1103, %v691, 0.0
      %v1295 = vadd.f32 %v1293, %v1294
      %v1296 = vsel %vm1103, %v696, 0.0
      %v1297 = vadd.f32 %v1295, %v1296
      %v1298 = vsel %vm1103, %v699, 0.0
      %v1299 = vadd.f32 %v1297, %v1298
      %v1300 = vsel %vm1103, %v704, 0.0
      %v1301 = vadd.f32 %v1299, %v1300
      %v1302 = vsel %vm1103, %v707, 0.0
      %v1303 = vadd.f32 %v1301, %v1302
      %v1304 = vsel %vm1103, %v712, 0.0
      %v1305 = vadd.f32 %v1303, %v1304
      %v1306 = vsel %vm1103, %v715, 0.0
      %v1307 = vadd.f32 %v1305, %v1306
      %v1308 = vsel %vm1103, %v720, 0.0
      %v1309 = vadd.f32 %v1307, %v1308
      %v1310 = vsel %vm1103, %v723, 0.0
      %v1311 = vadd.f32 %v1309, %v1310
      %v1312 = vsel %vm1103, %v728, 0.0
      %v1313 = vadd.f32 %v1311, %v1312
      %v1314 = vsel %vm1103, %v731, 0.0
      %v1315 = vadd.f32 %v1313, %v1314
      %v1316 = vsel %vm1103, %v736, 0.0
      %v1317 = vadd.f32 %v1315, %v1316
      %v1318 = vsel %vm1103, %v739, 0.0
      %v1319 = vadd.f32 %v1317, %v1318
      %v1320 = vsel %vm1103, %v744, 0.0
      %v1321 = vadd.f32 %v1319, %v1320
      %v1322 = vsel %vm1103, %v747, 0.0
      %v1323 = vadd.f32 %v1321, %v1322
      %v1324 = vsel %vm1103, %v752, 0.0
      %v1325 = vadd.f32 %v1323, %v1324
      %v1326 = vsel %vm1103, %v755, 0.0
      %v1327 = vadd.f32 %v1325, %v1326
      %v1328 = vsel %vm1103, %v760, 0.0
      %v1329 = vadd.f32 %v1327, %v1328
      %v1330 = vsel %vm1103, %v763, 0.0
      %v1331 = vadd.f32 %v1329, %v1330
      %v1332 = vsel %vm1103, %v768, 0.0
      %v1333 = vadd.f32 %v1331, %v1332
      %v1334 = vsel %vm1103, %v771, 0.0
      %v1335 = vadd.f32 %v1333, %v1334
      %v1336 = vsel %vm1103, %v776, 0.0
      %v1337 = vadd.f32 %v1335, %v1336
      %v1338 = vsel %vm1103, %v779, 0.0
      %v1339 = vadd.f32 %v1337, %v1338
      %v1340 = vrot.slane %v1339, 4
      %v1341 = vadd.f32 %v1339, %v1340
      %v1342 = vrot.slane %v1341, 2
      %v1343 = vadd.f32 %v1341, %v1342
      %v1344 = vrot.slane %v1343, 1
      %v1345 = vadd.f32 %v1343, %v1344
      %1346 = vst.msk [vmem:[%s288] sm:$0x1] %vm1173, %v1345
      %v1347 = vmul.f32 %v656, %v656
      %v1348 = vmul.f32 %v659, %v659
      %v1349 = vmul.f32 %v664, %v664
      %v1350 = vmul.f32 %v667, %v667
      %v1351 = vmul.f32 %v672, %v672
      %v1352 = vmul.f32 %v675, %v675
      %v1353 = vmul.f32 %v680, %v680
      %v1354 = vmul.f32 %v683, %v683
      %v1355 = vmul.f32 %v688, %v688
      %v1356 = vmul.f32 %v691, %v691
      %v1357 = vmul.f32 %v696, %v696
      %v1358 = vmul.f32 %v699, %v699
      %v1359 = vmul.f32 %v704, %v704
      %v1360 = vmul.f32 %v707, %v707
      %v1361 = vmul.f32 %v712, %v712
      %v1362 = vmul.f32 %v715, %v715
      %v1363 = vmul.f32 %v720, %v720
      %v1364 = vmul.f32 %v723, %v723
      %v1365 = vmul.f32 %v728, %v728
      %v1366 = vmul.f32 %v731, %v731
      %v1367 = vmul.f32 %v736, %v736
      %v1368 = vmul.f32 %v739, %v739
      %v1369 = vmul.f32 %v744, %v744
      %v1370 = vmul.f32 %v747, %v747
      %v1371 = vmul.f32 %v752, %v752
      %v1372 = vmul.f32 %v755, %v755
      %v1373 = vmul.f32 %v760, %v760
      %v1374 = vmul.f32 %v763, %v763
      %v1375 = vmul.f32 %v768, %v768
      %v1376 = vmul.f32 %v771, %v771
      %v1377 = vmul.f32 %v776, %v776
      %v1378 = vmul.f32 %v779, %v779
      %v1379 = vsel %vm1103, %v1347, 0.0
      %v1380 = vsel %vm1103, %v1348, 0.0
      %v1381 = vadd.f32 %v1379, %v1380
      %v1382 = vsel %vm1103, %v1349, 0.0
      %v1383 = vadd.f32 %v1381, %v1382
      %v1384 = vsel %vm1103, %v1350, 0.0
      %v1385 = vadd.f32 %v1383, %v1384
      %v1386 = vsel %vm1103, %v1351, 0.0
      %v1387 = vadd.f32 %v1385, %v1386
      %v1388 = vsel %vm1103, %v1352, 0.0
      %v1389 = vadd.f32 %v1387, %v1388
      %v1390 = vsel %vm1103, %v1353, 0.0
      %v1391 = vadd.f32 %v1389, %v1390
      %v1392 = vsel %vm1103, %v1354, 0.0
      %v1393 = vadd.f32 %v1391, %v1392
      %v1394 = vsel %vm1103, %v1355, 0.0
      %v1395 = vadd.f32 %v1393, %v1394
      %v1396 = vsel %vm1103, %v1356, 0.0
      %v1397 = vadd.f32 %v1395, %v1396
      %v1398 = vsel %vm1103, %v1357, 0.0
      %v1399 = vadd.f32 %v1397, %v1398
      %v1400 = vsel %vm1103, %v1358, 0.0
      %v1401 = vadd.f32 %v1399, %v1400
      %v1402 = vsel %vm1103, %v1359, 0.0
      %v1403 = vadd.f32 %v1401, %v1402
      %v1404 = vsel %vm1103, %v1360, 0.0
      %v1405 = vadd.f32 %v1403, %v1404
      %v1406 = vsel %vm1103, %v1361, 0.0
      %v1407 = vadd.f32 %v1405, %v1406
      %v1408 = vsel %vm1103, %v1362, 0.0
      %v1409 = vadd.f32 %v1407, %v1408
      %v1410 = vsel %vm1103, %v1363, 0.0
      %v1411 = vadd.f32 %v1409, %v1410
      %v1412 = vsel %vm1103, %v1364, 0.0
      %v1413 = vadd.f32 %v1411, %v1412
      %v1414 = vsel %vm1103, %v1365, 0.0
      %v1415 = vadd.f32 %v1413, %v1414
      %v1416 = vsel %vm1103, %v1366, 0.0
      %v1417 = vadd.f32 %v1415, %v1416
      %v1418 = vsel %vm1103, %v1367, 0.0
      %v1419 = vadd.f32 %v1417, %v1418
      %v1420 = vsel %vm1103, %v1368, 0.0
      %v1421 = vadd.f32 %v1419, %v1420
      %v1422 = vsel %vm1103, %v1369, 0.0
      %v1423 = vadd.f32 %v1421, %v1422
      %v1424 = vsel %vm1103, %v1370, 0.0
      %v1425 = vadd.f32 %v1423, %v1424
      %v1426 = vsel %vm1103, %v1371, 0.0
      %v1427 = vadd.f32 %v1425, %v1426
      %v1428 = vsel %vm1103, %v1372, 0.0
      %v1429 = vadd.f32 %v1427, %v1428
      %v1430 = vsel %vm1103, %v1373, 0.0
      %v1431 = vadd.f32 %v1429, %v1430
      %v1432 = vsel %vm1103, %v1374, 0.0
      %v1433 = vadd.f32 %v1431, %v1432
      %v1434 = vsel %vm1103, %v1375, 0.0
      %v1435 = vadd.f32 %v1433, %v1434
      %v1436 = vsel %vm1103, %v1376, 0.0
      %v1437 = vadd.f32 %v1435, %v1436
      %v1438 = vsel %vm1103, %v1377, 0.0
      %v1439 = vadd.f32 %v1437, %v1438
      %v1440 = vsel %vm1103, %v1378, 0.0
      %v1441 = vadd.f32 %v1439, %v1440
      %v1442 = vrot.slane %v1441, 4
      %v1443 = vadd.f32 %v1441, %v1442
      %v1444 = vrot.slane %v1443, 2
      %v1445 = vadd.f32 %v1443, %v1444
      %v1446 = vrot.slane %v1445, 1
      %v1447 = vadd.f32 %v1445, %v1446
      %1448 = vst.msk [vmem:[%s288 + $0x1] sm:$0x1] %vm1173, %v1447
      %s1449 = smul.u32 32, %s18
      %p1450 = scmp.lt.s32.totalorder %s1449, 63
      %s1451 = scalar_select %p1450, %s1449, 63
      %s1452 = smul.addr %s1451, 4
      %s1453 = scalar_lea.vmem %s3, %s1452
      %s1454 = smul.u32 32, %s18
      %p1455 = scmp.lt.s32.totalorder %s1454, 63
      %s1456 = scalar_select %p1455, %s1454, 63
      %s1457 = smul.addr %s1456, 4
      %s1458 = scalar_lea.vmem %s4, %s1457
      %p1459 = scmp.lt.s32.totalorder %s18, 1
      %s1460 = scalar_select %p1459, %s18, 1
      %s1461 = smul.addr %s1460, 8
      %s1462 = scalar_lea.vmem %s5, %s1461
      %p1463 = scmp.lt.s32.totalorder %s18, 1
      %s1464 = scalar_select %p1463, %s18, 1
      %s1465 = smul.addr %s1464, 8
      %s1466 = scalar_lea.vmem %s6, %s1465
      // Predicated region
      $region33: #{resunet_forward.4} parent=31 // pred_check
        %p1467 = pneg %p104
      $region34: #{resunet_forward.4} parent=31 // pred_check_branch
        %1469 = sbr.rel (%p1467) target = $region36
      $region35: #{resunet_forward.4} parent=31 // pred_region
        %s1470 = smul.u32 32, %s18
      $region36: #{resunet_forward.4} parent=31 // pred_fallthru
        _
      // Predicated region
      $region37: #{resunet_forward.4} parent=31 // pred_check
        %p1471 = pneg %p130
      $region38: #{resunet_forward.4} parent=31 // pred_check_branch
        %1473 = sbr.rel (%p1471) target = $region40
      $region39: #{resunet_forward.4} parent=31 // pred_region
        %s1474 = smul.u32 32, %s18
      $region40: #{resunet_forward.4} parent=31 // pred_fallthru
        _
      // Predicated region
      $region41: #{resunet_forward.4} parent=31 // pred_check
        %p1475 = pneg %p156
      $region42: #{resunet_forward.4} parent=31 // pred_check_branch
        %1477 = sbr.rel (%p1475) target = $region44
      $region43: #{resunet_forward.4} parent=31 // pred_region
        _
      $region44: #{resunet_forward.4} parent=31 // pred_fallthru
        _
      // Predicated region
      $region45: #{resunet_forward.4} parent=31 // pred_check
        %p1478 = pneg %p182
      $region46: #{resunet_forward.4} parent=31 // pred_check_branch
        %1480 = sbr.rel (%p1478) target = $region48
      $region47: #{resunet_forward.4} parent=31 // pred_region
        _
      $region48: #{resunet_forward.4} parent=31 // pred_fallthru
        _
    $region32: #{resunet_forward.4} parent=5 // pred_fallthru
      _
    %p1481 = scmp.le.s32.totalorder 2, %s13
    // Predicated region
    $region49: #{resunet_forward.4} parent=5 // pred_check
      %p1482 = pneg %p1481
    $region50: #{resunet_forward.4} parent=5 // pred_check_branch
      %1484 = sbr.rel (%p1482) target = $region52
    $region51: #{resunet_forward.4} parent=5 // pred_region
      %s1485 = ssub.s32 %s13, 2
      // Predicated region
      $region53: #{resunet_forward.4} parent=51 // pred_check
        %p1486 = pneg %p110
      $region54: #{resunet_forward.4} parent=51 // pred_check_branch
        %1488 = sbr.rel (%p1486) target = $region56
      $region55: #{resunet_forward.4} parent=51 // pred_region
        %s1489 = smul.u32 32, %s19
        %p1490 = scmp.lt.s32.totalorder %s1489, 63
        %s1491 = scalar_select %p1490, %s1489, 63
        %s1492 = smul.addr %s1491, 4
        %s1493 = scalar_lea.vmem %s3, %s1492
      $region56: #{resunet_forward.4} parent=51 // pred_fallthru
        _
      // Predicated region
      $region57: #{resunet_forward.4} parent=51 // pred_check
        %p1494 = pneg %p136
      $region58: #{resunet_forward.4} parent=51 // pred_check_branch
        %1496 = sbr.rel (%p1494) target = $region60
      $region59: #{resunet_forward.4} parent=51 // pred_region
        %s1497 = smul.u32 32, %s19
        %p1498 = scmp.lt.s32.totalorder %s1497, 63
        %s1499 = scalar_select %p1498, %s1497, 63
        %s1500 = smul.addr %s1499, 4
        %s1501 = scalar_lea.vmem %s4, %s1500
      $region60: #{resunet_forward.4} parent=51 // pred_fallthru
        _
      // Predicated region
      $region61: #{resunet_forward.4} parent=51 // pred_check
        %p1502 = pneg %p162
      $region62: #{resunet_forward.4} parent=51 // pred_check_branch
        %1504 = sbr.rel (%p1502) target = $region64
      $region63: #{resunet_forward.4} parent=51 // pred_region
        %p1505 = scmp.lt.s32.totalorder %s19, 1
        %s1506 = scalar_select %p1505, %s19, 1
        %s1507 = smul.addr %s1506, 8
        %s1508 = scalar_lea.vmem %s5, %s1507
      $region64: #{resunet_forward.4} parent=51 // pred_fallthru
        _
      // Predicated region
      $region65: #{resunet_forward.4} parent=51 // pred_check
        %p1509 = pneg %p188
      $region66: #{resunet_forward.4} parent=51 // pred_check_branch
        %1511 = sbr.rel (%p1509) target = $region68
      $region67: #{resunet_forward.4} parent=51 // pred_region
        %p1512 = scmp.lt.s32.totalorder %s19, 1
        %s1513 = scalar_select %p1512, %s19, 1
        %s1514 = smul.addr %s1513, 8
        %s1515 = scalar_lea.vmem %s6, %s1514
      $region68: #{resunet_forward.4} parent=51 // pred_fallthru
        _
    $region52: #{resunet_forward.4} parent=5 // pred_fallthru
      _
  $region6: #{resunet_forward.4} parent=0 // loop_footer
    %s17 = sadd.s32 1, %s13
  $region7: #{resunet_forward.4} parent=0 // loop_footer_branch
    %12 = sbr.rel target = $region3
  $region8: #{resunet_forward.4} parent=0 // loop_exit
    _

// kernel: resunet_forward.5
$region0: #{resunet_forward.5}
  #allocation0 [shape = 'u32[]', space=smem, size = 0x4, offset = 0x4, fixed_abs, tag = 'smem constant byte address 0x4 - core index']
  #allocation1 [shape = 'u32[144,128]{1,0:T(1,128)}', space=vmem, size = 0x12000, scoped, tag = 'internal scratch']
  %s0 = inlined_call_operand.vmem [shape: bf16[2,456,32], index: 0, kind: input, shape index: {}]
  %s1 = inlined_call_operand.vmem [shape: f32[8,32], index: 1, kind: input, shape index: {}]
  %s2 = inlined_call_operand.vmem [shape: bf16[9,32,32], index: 2, kind: input, shape index: {}]
  %s3 = inlined_call_operand.vmem [shape: bf16[2,384,32], index: 3, kind: output, shape index: {0}]
  %s4 = inlined_call_operand.vmem [shape: f32[16,32], index: 4, kind: output, shape index: {1}]
  %5 = xla_tuple %s3, %s4
  %s6 = sld [smem:[#allocation0]]
  $region53: #{resunet_forward.5} parent=0
    _
  %s8 = ssub.s32 1, %s6
  %s9 = scalar_select 0, %s8, %s6
  loop: start=0, step=1, limit=4
  $region2: #{resunet_forward.5} parent=0 // loop_pre_header
    _
  $region3: #{resunet_forward.5} parent=0 // loop_header
    %s11 = sphi 0, %s15
    %p12 = scmp.ge.s32.totalorder %s11, 4
    %s21 = sphi 0, %s23
    %s24 = sphi 0, %s21
    %s25 = sphi 0, %s24
    %s41 = sphi 0, %s25
    %s45 = sphi 0, %s45
    %s47 = sphi 0, %s45
    %s48 = sphi 0, %s47
    %s62 = sphi 0, %s48
    %s66 = sphi 0, %s66
    %s68 = sphi 0, %s66
    %s69 = sphi 0, %s68
    %s83 = sphi 0, %s69
    %s89 = sphi 0, %s91
    %s92 = sphi 0, %s89
    %s93 = sphi 0, %s92
    %s109 = sphi 0, %s93
    %s115 = sphi 0, %s117
    %s118 = sphi 0, %s115
    %s119 = sphi 0, %s118
    %s135 = sphi 0, %s119
  $region4: #{resunet_forward.5} parent=0 // loop_header_branch
    %14 = sbr.rel (%p12) target = $region8
  $region5: #{resunet_forward.5} parent=0 // loop_body
    %s16 = ssub.s32 %s11, 1
    %s17 = ssub.s32 %s11, 2
    %s18 = sadd.s32 %s11, 1
    %s19 = ssub.s32 %s11, %s18
    %p20 = scmp.eq.s32.totalorder %s19, 0
    %s22 = sadd.s32 %s21, 1
    %s23 = scalar_select %p20, %s21, %s22
    %p26 = pneg %p20
    %p27 = scmp.eq.s32.totalorder %s11, 1
    %p28 = por %p26, %p27
    %p29 = scmp.ne.s32.totalorder %s21, %s24
    %p30 = scmp.eq.s32.totalorder %s11, 0
    %p31 = por %p29, %p30
    %p32 = scmp.ne.s32.totalorder %s21, %s24
    %p33 = scmp.eq.s32.totalorder %s16, 1
    %p34 = por %p32, %p33
    %p35 = scmp.ne.s32.totalorder %s24, %s25
    %p36 = scmp.eq.s32.totalorder %s16, 0
    %p37 = por %p35, %p36
    %p38 = scmp.ne.s32.totalorder %s24, %s25
    %p39 = scmp.eq.s32.totalorder %s17, 1
    %p40 = por %p38, %p39
    %p42 = scmp.ne.s32.totalorder %s25, %s41
    %p43 = scmp.eq.s32.totalorder %s17, 0
    %p44 = por %p42, %p43
    %s46 = sadd.s32 %s45, 1
    %p49 = scmp.eq.s32.totalorder %s11, 1
    %p50 = scmp.ne.s32.totalorder %s45, %s47
    %p51 = scmp.eq.s32.totalorder %s11, 0
    %p52 = por %p50, %p51
    %p53 = scmp.ne.s32.totalorder %s45, %s47
    %p54 = scmp.eq.s32.totalorder %s16, 1
    %p55 = por %p53, %p54
    %p56 = scmp.ne.s32.totalorder %s47, %s48
    %p57 = scmp.eq.s32.totalorder %s16, 0
    %p58 = por %p56, %p57
    %p59 = scmp.ne.s32.totalorder %s47, %s48
    %p60 = scmp.eq.s32.totalorder %s17, 1
    %p61 = por %p59, %p60
    %p63 = scmp.ne.s32.totalorder %s48, %s62
    %p64 = scmp.eq.s32.totalorder %s17, 0
    %p65 = por %p63, %p64
    %s67 = sadd.s32 %s66, 1
    %p70 = scmp.eq.s32.totalorder %s11, 1
    %p71 = scmp.ne.s32.totalorder %s66, %s68
    %p72 = scmp.eq.s32.totalorder %s11, 0
    %p73 = por %p71, %p72
    %p74 = scmp.ne.s32.totalorder %s66, %s68
    %p75 = scmp.eq.s32.totalorder %s16, 1
    %p76 = por %p74, %p75
    %p77 = scmp.ne.s32.totalorder %s68, %s69
    %p78 = scmp.eq.s32.totalorder %s16, 0
    %p79 = por %p77, %p78
    %p80 = scmp.ne.s32.totalorder %s68, %s69
    %p81 = scmp.eq.s32.totalorder %s17, 1
    %p82 = por %p80, %p81
    %p84 = scmp.ne.s32.totalorder %s69, %s83
    %p85 = scmp.eq.s32.totalorder %s17, 0
    %p86 = por %p84, %p85
    %s87 = ssub.s32 %s11, %s18
    %p88 = scmp.eq.s32.totalorder %s87, 0
    %s90 = sadd.s32 %s89, 1
    %s91 = scalar_select %p88, %s89, %s90
    %p94 = pneg %p88
    %p95 = scmp.eq.s32.totalorder %s11, 1
    %p96 = por %p94, %p95
    %p97 = scmp.ne.s32.totalorder %s89, %s92
    %p98 = scmp.eq.s32.totalorder %s11, 0
    %p99 = por %p97, %p98
    %p100 = scmp.ne.s32.totalorder %s89, %s92
    %p101 = scmp.eq.s32.totalorder %s16, 1
    %p102 = por %p100, %p101
    %p103 = scmp.ne.s32.totalorder %s92, %s93
    %p104 = scmp.eq.s32.totalorder %s16, 0
    %p105 = por %p103, %p104
    %p106 = scmp.ne.s32.totalorder %s92, %s93
    %p107 = scmp.eq.s32.totalorder %s17, 1
    %p108 = por %p106, %p107
    %p110 = scmp.ne.s32.totalorder %s93, %s109
    %p111 = scmp.eq.s32.totalorder %s17, 0
    %p112 = por %p110, %p111
    %s113 = ssub.s32 %s11, %s18
    %p114 = scmp.eq.s32.totalorder %s113, 0
    %s116 = sadd.s32 %s115, 1
    %s117 = scalar_select %p114, %s115, %s116
    %p120 = pneg %p114
    %p121 = scmp.eq.s32.totalorder %s11, 1
    %p122 = por %p120, %p121
    %p123 = scmp.ne.s32.totalorder %s115, %s118
    %p124 = scmp.eq.s32.totalorder %s11, 0
    %p125 = por %p123, %p124
    %p126 = scmp.ne.s32.totalorder %s115, %s118
    %p127 = scmp.eq.s32.totalorder %s16, 1
    %p128 = por %p126, %p127
    %p129 = scmp.ne.s32.totalorder %s118, %s119
    %p130 = scmp.eq.s32.totalorder %s16, 0
    %p131 = por %p129, %p130
    %p132 = scmp.ne.s32.totalorder %s118, %s119
    %p133 = scmp.eq.s32.totalorder %s17, 1
    %p134 = por %p132, %p133
    %p136 = scmp.ne.s32.totalorder %s119, %s135
    %p137 = scmp.eq.s32.totalorder %s17, 0
    %p138 = por %p136, %p137
    %p139 = scmp.le.s32.totalorder 1, %s11
    %p140 = scmp.lt.s32.totalorder %s11, 3
    %p141 = pnand %p139, %p140
    %p142 = pneg %p141
    // Predicated region
    $region9: #{resunet_forward.5} parent=5 // pred_check
      _
    $region10: #{resunet_forward.5} parent=5 // pred_check_branch
      %144 = sbr.rel (%p141) target = $region12
    $region11: #{resunet_forward.5} parent=5 // pred_region
      %s145 = ssub.s32 %s11, 1
      // Predicated region
      $region13: #{resunet_forward.5} parent=11 // pred_check
        %p146 = pneg %p58
      $region14: #{resunet_forward.5} parent=11 // pred_check_branch
        %148 = sbr.rel (%p146) target = $region16
      $region15: #{resunet_forward.5} parent=11 // pred_region
        _
      $region16: #{resunet_forward.5} parent=11 // pred_fallthru
        _
      // Predicated region
      $region17: #{resunet_forward.5} parent=11 // pred_check
        %p149 = pneg %p79
      $region18: #{resunet_forward.5} parent=11 // pred_check_branch
        %151 = sbr.rel (%p149) target = $region20
      $region19: #{resunet_forward.5} parent=11 // pred_region
        _
      $region20: #{resunet_forward.5} parent=11 // pred_fallthru
        _
    $region12: #{resunet_forward.5} parent=5 // pred_fallthru
      _
    %p152 = scmp.lt.s32.totalorder %s11, 2
    // Predicated region
    $region21: #{resunet_forward.5} parent=5 // pred_check
      %p153 = pneg %p152
    $region22: #{resunet_forward.5} parent=5 // pred_check_branch
      %155 = sbr.rel (%p153) target = $region24
    $region23: #{resunet_forward.5} parent=5 // pred_region
      // Predicated region
      $region25: #{resunet_forward.5} parent=23 // pred_check
        %p156 = pneg %p31
      $region26: #{resunet_forward.5} parent=23 // pred_check_branch
        %158 = sbr.rel (%p156) target = $region28
      $region27: #{resunet_forward.5} parent=23 // pred_region
        %p159 = scmp.lt.s32.totalorder %s11, 1
        %s160 = scalar_select %p159, %s11, 1
        %s161 = smul.addr %s160, 57
        %s162 = smul.addr %s161, 4
        %s163 = scalar_lea.vmem %s0, %s162
      $region28: #{resunet_forward.5} parent=23 // pred_fallthru
        _
    $region24: #{resunet_forward.5} parent=5 // pred_fallthru
      _
    %p164 = scmp.le.s32.totalorder 1, %s11
    %p165 = scmp.lt.s32.totalorder %s11, 3
    %p166 = pnand %p164, %p165
    %p167 = pneg %p166
    // Predicated region
    $region29: #{resunet_forward.5} parent=5 // pred_check
      _
    $region30: #{resunet_forward.5} parent=5 // pred_check_branch
      %169 = sbr.rel (%p166) target = $region32
    $region31: #{resunet_forward.5} parent=5 // pred_region
      %s170 = ssub.s32 %s11, 1
      %p171 = scmp.lt.s32.totalorder %s16, 1
      %s172 = scalar_select %p171, %s16, 1
      %s173 = smul.addr %s172, 57
      %s174 = smul.addr %s173, 4
      %s175 = scalar_lea.vmem %s0, %s174
      %p176 = pneg %p37
      %p177 = pneg %p34
      %p178 = pneg %p58
      %p179 = pneg %p55
      %p180 = pneg %p79
      %p181 = pneg %p76
      %p182 = pneg %p105
      %p183 = pneg %p102
      %p184 = scmp.lt.s32.totalorder %s16, 1
      %s185 = scalar_select %p184, %s16, 1
      %s186 = smul.addr %s185, 48
      %s187 = smul.addr %s186, 4
      %s188 = scalar_lea.vmem %s3, %s187
      %p189 = pneg %p131
      %p190 = pneg %p128
      %p191 = scmp.lt.s32.totalorder %s16, 1
      %s192 = scalar_select %p191, %s16, 1
      %s193 = smul.addr %s192, 8
      %s194 = scalar_lea.vmem %s4, %s193
      %p195 = scmp.lt.s32.totalorder %s16, 1
      %s196 = scalar_select %p195, %s16, 1
      %s197 = smul.addr %s196, 57
      %s198 = smul.addr %s197, 4
      %s199 = scalar_lea.vmem %s0, %s198
      %p200 = scmp.lt.s32.totalorder %s16, 1
      %s201 = scalar_select %p200, %s16, 1
      %s202 = smul.addr %s201, 48
      %s203 = smul.addr %s202, 4
      %s204 = scalar_lea.vmem %s3, %s203
      %p205 = scmp.lt.s32.totalorder %s16, 1
      %s206 = scalar_select %p205, %s16, 1
      %s207 = smul.addr %s206, 8
      %s208 = scalar_lea.vmem %s4, %s207
      %v210 = vld [vmem:[%s199] sm:$0xf]
      %v211 = vld [vmem:[%s199 + $0x4] sm:$0xf]
      %v212 = vld [vmem:[%s199 + $0x8] sm:$0xf]
      %v213 = vld [vmem:[%s199 + $0xc] sm:$0xf]
      %v214 = vld [vmem:[%s199 + $0x10] sm:$0xf]
      %v215 = vld [vmem:[%s199 + $0x14] sm:$0xf]
      %v216 = vld [vmem:[%s199 + $0x18] sm:$0xf]
      %v217 = vld [vmem:[%s199 + $0x1c] sm:$0xf]
      %v218 = vld [vmem:[%s199 + $0x20] sm:$0xf]
      %v219 = vld [vmem:[%s199 + $0x24] sm:$0xf]
      %v220 = vld [vmem:[%s199 + $0x28] sm:$0xf]
      %v221 = vld [vmem:[%s199 + $0x2c] sm:$0xf]
      %v222 = vld [vmem:[%s199 + $0x30] sm:$0xf]
      %v223 = vld [vmem:[%s199 + $0x34] sm:$0xf]
      %v224 = vld [vmem:[%s199 + $0x38] sm:$0xf]
      %v225 = vld [vmem:[%s199 + $0x3c] sm:$0xf]
      %v226 = vld [vmem:[%s199 + $0x40] sm:$0xf]
      %v227 = vld [vmem:[%s199 + $0x44] sm:$0xf]
      %v228 = vld [vmem:[%s199 + $0x48] sm:$0xf]
      %v229 = vld [vmem:[%s199 + $0x4c] sm:$0xf]
      %v230 = vld [vmem:[%s199 + $0x50] sm:$0xf]
      %v231 = vld [vmem:[%s199 + $0x54] sm:$0xf]
      %v232 = vld [vmem:[%s199 + $0x58] sm:$0xf]
      %v233 = vld [vmem:[%s199 + $0x5c] sm:$0xf]
      %v234 = vld [vmem:[%s199 + $0x60] sm:$0xf]
      %v235 = vld [vmem:[%s199 + $0x64] sm:$0xf]
      %v236 = vld [vmem:[%s199 + $0x68] sm:$0xf]
      %v237 = vld [vmem:[%s199 + $0x6c] sm:$0xf]
      %v238 = vld [vmem:[%s199 + $0x70] sm:$0xf]
      %v239 = vld [vmem:[%s199 + $0x74] sm:$0xf]
      %v240 = vld [vmem:[%s199 + $0x78] sm:$0xf]
      %v241 = vld [vmem:[%s199 + $0x7c] sm:$0xf]
      %v242 = vld [vmem:[%s199 + $0x80] sm:$0xf]
      %v243 = vld [vmem:[%s199 + $0x84] sm:$0xf]
      %v244 = vld [vmem:[%s199 + $0x88] sm:$0xf]
      %v245 = vld [vmem:[%s199 + $0x8c] sm:$0xf]
      %v246 = vld [vmem:[%s199 + $0x90] sm:$0xf]
      %v247 = vld [vmem:[%s199 + $0x94] sm:$0xf]
      %v248 = vld [vmem:[%s199 + $0x98] sm:$0xf]
      %v249 = vld [vmem:[%s199 + $0x9c] sm:$0xf]
      %v250 = vld [vmem:[%s199 + $0xa0] sm:$0xf]
      %v251 = vld [vmem:[%s199 + $0xa4] sm:$0xf]
      %v252 = vld [vmem:[%s199 + $0xa8] sm:$0xf]
      %v253 = vld [vmem:[%s199 + $0xac] sm:$0xf]
      %v254 = vld [vmem:[%s199 + $0xb0] sm:$0xf]
      %v255 = vld [vmem:[%s199 + $0xb4] sm:$0xf]
      %v256 = vld [vmem:[%s199 + $0xb8] sm:$0xf]
      %v257 = vld [vmem:[%s199 + $0xbc] sm:$0xf]
      %v258 = vld [vmem:[%s199 + $0xc0] sm:$0xf]
      %v259 = vld [vmem:[%s199 + $0xc4] sm:$0xf]
      %v260 = vld [vmem:[%s199 + $0xc8] sm:$0xf]
      %v261 = vld [vmem:[%s199 + $0xcc] sm:$0xf]
      %v262 = vld [vmem:[%s199 + $0xd0] sm:$0xf]
      %v263 = vld [vmem:[%s199 + $0xd4] sm:$0xf]
      %v264 = vld [vmem:[%s199 + $0xd8] sm:$0xf]
      %v265 = vunpack.c.l.bf16 %v210
      %v266 = vunpack.c.l.bf16 %v211
      %v267 = vunpack.c.l.bf16 %v212
      %v268 = vunpack.c.l.bf16 %v213
      %v269 = vunpack.c.l.bf16 %v214
      %v270 = vunpack.c.l.bf16 %v215
      %v271 = vunpack.c.l.bf16 %v216
      %v272 = vunpack.c.l.bf16 %v217
      %v273 = vunpack.c.l.bf16 %v218
      %v274 = vunpack.c.l.bf16 %v219
      %v275 = vunpack.c.l.bf16 %v220
      %v276 = vunpack.c.l.bf16 %v221
      %v277 = vunpack.c.l.bf16 %v222
      %v278 = vunpack.c.l.bf16 %v223
      %v279 = vunpack.c.l.bf16 %v224
      %v280 = vunpack.c.l.bf16 %v225
      %v281 = vunpack.c.l.bf16 %v226
      %v282 = vunpack.c.l.bf16 %v227
      %v283 = vunpack.c.l.bf16 %v228
      %v284 = vunpack.c.l.bf16 %v229
      %v285 = vunpack.c.l.bf16 %v230
      %v286 = vunpack.c.l.bf16 %v231
      %v287 = vunpack.c.l.bf16 %v232
      %v288 = vunpack.c.l.bf16 %v233
      %v289 = vunpack.c.l.bf16 %v234
      %v290 = vunpack.c.l.bf16 %v235
      %v291 = vunpack.c.l.bf16 %v236
      %v292 = vunpack.c.l.bf16 %v237
      %v293 = vunpack.c.l.bf16 %v238
      %v294 = vunpack.c.l.bf16 %v239
      %v295 = vunpack.c.l.bf16 %v240
      %v296 = vunpack.c.l.bf16 %v241
      %v297 = vunpack.c.l.bf16 %v242
      %v298 = vunpack.c.l.bf16 %v243
      %v299 = vunpack.c.l.bf16 %v244
      %v300 = vunpack.c.l.bf16 %v245
      %v301 = vunpack.c.l.bf16 %v246
      %v302 = vunpack.c.l.bf16 %v247
      %v303 = vunpack.c.l.bf16 %v248
      %v304 = vunpack.c.l.bf16 %v249
      %v305 = vunpack.c.l.bf16 %v250
      %v306 = vunpack.c.l.bf16 %v251
      %v307 = vunpack.c.l.bf16 %v252
      %v308 = vunpack.c.l.bf16 %v253
      %v309 = vunpack.c.l.bf16 %v254
      %v310 = vunpack.c.l.bf16 %v255
      %v311 = vunpack.c.l.bf16 %v256
      %v312 = vunpack.c.l.bf16 %v257
      %v313 = vunpack.c.l.bf16 %v258
      %v314 = vunpack.c.l.bf16 %v259
      %v315 = vunpack.c.l.bf16 %v260
      %v316 = vunpack.c.l.bf16 %v261
      %v317 = vunpack.c.l.bf16 %v262
      %v318 = vunpack.c.l.bf16 %v263
      %v319 = vunpack.c.l.bf16 %v264
      %v320 = vld [vmem:[%s1] sm:$0x1]
      %v321 = vlaneseq
      %v322 = vshrl.u32 %v321, 7
      %v323 = vsub.s32 0, %v322
      %v324 = vrot.slane %v320, %v323
      %v325 = vmul.f32 %v265, %v324
      %v326 = vmul.f32 %v266, %v324
      %v327 = vmul.f32 %v267, %v324
      %v328 = vmul.f32 %v268, %v324
      %v329 = vmul.f32 %v269, %v324
      %v330 = vmul.f32 %v270, %v324
      %v331 = vmul.f32 %v271, %v324
      %v332 = vmul.f32 %v272, %v324
      %v333 = vmul.f32 %v273, %v324
      %v334 = vmul.f32 %v274, %v324
      %v335 = vmul.f32 %v275, %v324
      %v336 = vmul.f32 %v276, %v324
      %v337 = vmul.f32 %v277, %v324
      %v338 = vmul.f32 %v278, %v324
      %v339 = vmul.f32 %v279, %v324
      %v340 = vmul.f32 %v280, %v324
      %v341 = vmul.f32 %v281, %v324
      %v342 = vmul.f32 %v282, %v324
      %v343 = vmul.f32 %v283, %v324
      %v344 = vmul.f32 %v284, %v324
      %v345 = vmul.f32 %v285, %v324
      %v346 = vmul.f32 %v286, %v324
      %v347 = vmul.f32 %v287, %v324
      %v348 = vmul.f32 %v288, %v324
      %v349 = vmul.f32 %v289, %v324
      %v350 = vmul.f32 %v290, %v324
      %v351 = vmul.f32 %v291, %v324
      %v352 = vmul.f32 %v292, %v324
      %v353 = vmul.f32 %v293, %v324
      %v354 = vmul.f32 %v294, %v324
      %v355 = vmul.f32 %v295, %v324
      %v356 = vmul.f32 %v296, %v324
      %v357 = vmul.f32 %v297, %v324
      %v358 = vmul.f32 %v298, %v324
      %v359 = vmul.f32 %v299, %v324
      %v360 = vmul.f32 %v300, %v324
      %v361 = vmul.f32 %v301, %v324
      %v362 = vmul.f32 %v302, %v324
      %v363 = vmul.f32 %v303, %v324
      %v364 = vmul.f32 %v304, %v324
      %v365 = vmul.f32 %v305, %v324
      %v366 = vmul.f32 %v306, %v324
      %v367 = vmul.f32 %v307, %v324
      %v368 = vmul.f32 %v308, %v324
      %v369 = vmul.f32 %v309, %v324
      %v370 = vmul.f32 %v310, %v324
      %v371 = vmul.f32 %v311, %v324
      %v372 = vmul.f32 %v312, %v324
      %v373 = vmul.f32 %v313, %v324
      %v374 = vmul.f32 %v314, %v324
      %v375 = vmul.f32 %v315, %v324
      %v376 = vmul.f32 %v316, %v324
      %v377 = vmul.f32 %v317, %v324
      %v378 = vmul.f32 %v318, %v324
      %v379 = vmul.f32 %v319, %v324
      %v380 = vld [vmem:[%s1 + $0x1] sm:$0x1]
      %v381 = vlaneseq
      %v382 = vshrl.u32 %v381, 7
      %v383 = vsub.s32 0, %v382
      %v384 = vrot.slane %v380, %v383
      %v385 = vadd.f32 %v325, %v384
      %v386 = vadd.f32 %v326, %v384
      %v387 = vadd.f32 %v327, %v384
      %v388 = vadd.f32 %v328, %v384
      %v389 = vadd.f32 %v329, %v384
      %v390 = vadd.f32 %v330, %v384
      %v391 = vadd.f32 %v331, %v384
      %v392 = vadd.f32 %v332, %v384
      %v393 = vadd.f32 %v333, %v384
      %v394 = vadd.f32 %v334, %v384
      %v395 = vadd.f32 %v335, %v384
      %v396 = vadd.f32 %v336, %v384
      %v397 = vadd.f32 %v337, %v384
      %v398 = vadd.f32 %v338, %v384
      %v399 = vadd.f32 %v339, %v384
      %v400 = vadd.f32 %v340, %v384
      %v401 = vadd.f32 %v341, %v384
      %v402 = vadd.f32 %v342, %v384
      %v403 = vadd.f32 %v343, %v384
      %v404 = vadd.f32 %v344, %v384
      %v405 = vadd.f32 %v345, %v384
      %v406 = vadd.f32 %v346, %v384
      %v407 = vadd.f32 %v347, %v384
      %v408 = vadd.f32 %v348, %v384
      %v409 = vadd.f32 %v349, %v384
      %v410 = vadd.f32 %v350, %v384
      %v411 = vadd.f32 %v351, %v384
      %v412 = vadd.f32 %v352, %v384
      %v413 = vadd.f32 %v353, %v384
      %v414 = vadd.f32 %v354, %v384
      %v415 = vadd.f32 %v355, %v384
      %v416 = vadd.f32 %v356, %v384
      %v417 = vadd.f32 %v357, %v384
      %v418 = vadd.f32 %v358, %v384
      %v419 = vadd.f32 %v359, %v384
      %v420 = vadd.f32 %v360, %v384
      %v421 = vadd.f32 %v361, %v384
      %v422 = vadd.f32 %v362, %v384
      %v423 = vadd.f32 %v363, %v384
      %v424 = vadd.f32 %v364, %v384
      %v425 = vadd.f32 %v365, %v384
      %v426 = vadd.f32 %v366, %v384
      %v427 = vadd.f32 %v367, %v384
      %v428 = vadd.f32 %v368, %v384
      %v429 = vadd.f32 %v369, %v384
      %v430 = vadd.f32 %v370, %v384
      %v431 = vadd.f32 %v371, %v384
      %v432 = vadd.f32 %v372, %v384
      %v433 = vadd.f32 %v373, %v384
      %v434 = vadd.f32 %v374, %v384
      %v435 = vadd.f32 %v375, %v384
      %v436 = vadd.f32 %v376, %v384
      %v437 = vadd.f32 %v377, %v384
      %v438 = vadd.f32 %v378, %v384
      %v439 = vadd.f32 %v379, %v384
      %v440 = vmax.f32 %v385, 0.0
      %v441 = vmax.f32 %v386, 0.0
      %v442 = vmax.f32 %v387, 0.0
      %v443 = vmax.f32 %v388, 0.0
      %v444 = vmax.f32 %v389, 0.0
      %v445 = vmax.f32 %v390, 0.0
      %v446 = vmax.f32 %v391, 0.0
      %v447 = vmax.f32 %v392, 0.0
      %v448 = vmax.f32 %v393, 0.0
      %v449 = vmax.f32 %v394, 0.0
      %v450 = vmax.f32 %v395, 0.0
      %v451 = vmax.f32 %v396, 0.0
      %v452 = vmax.f32 %v397, 0.0
      %v453 = vmax.f32 %v398, 0.0
      %v454 = vmax.f32 %v399, 0.0
      %v455 = vmax.f32 %v400, 0.0
      %v456 = vmax.f32 %v401, 0.0
      %v457 = vmax.f32 %v402, 0.0
      %v458 = vmax.f32 %v403, 0.0
      %v459 = vmax.f32 %v404, 0.0
      %v460 = vmax.f32 %v405, 0.0
      %v461 = vmax.f32 %v406, 0.0
      %v462 = vmax.f32 %v407, 0.0
      %v463 = vmax.f32 %v408, 0.0
      %v464 = vmax.f32 %v409, 0.0
      %v465 = vmax.f32 %v410, 0.0
      %v466 = vmax.f32 %v411, 0.0
      %v467 = vmax.f32 %v412, 0.0
      %v468 = vmax.f32 %v413, 0.0
      %v469 = vmax.f32 %v414, 0.0
      %v470 = vmax.f32 %v415, 0.0
      %v471 = vmax.f32 %v416, 0.0
      %v472 = vmax.f32 %v417, 0.0
      %v473 = vmax.f32 %v418, 0.0
      %v474 = vmax.f32 %v419, 0.0
      %v475 = vmax.f32 %v420, 0.0
      %v476 = vmax.f32 %v421, 0.0
      %v477 = vmax.f32 %v422, 0.0
      %v478 = vmax.f32 %v423, 0.0
      %v479 = vmax.f32 %v424, 0.0
      %v480 = vmax.f32 %v425, 0.0
      %v481 = vmax.f32 %v426, 0.0
      %v482 = vmax.f32 %v427, 0.0
      %v483 = vmax.f32 %v428, 0.0
      %v484 = vmax.f32 %v429, 0.0
      %v485 = vmax.f32 %v430, 0.0
      %v486 = vmax.f32 %v431, 0.0
      %v487 = vmax.f32 %v432, 0.0
      %v488 = vmax.f32 %v433, 0.0
      %v489 = vmax.f32 %v434, 0.0
      %v490 = vmax.f32 %v435, 0.0
      %v491 = vmax.f32 %v436, 0.0
      %v492 = vmax.f32 %v437, 0.0
      %v493 = vmax.f32 %v438, 0.0
      %v494 = vmax.f32 %v439, 0.0
      %v495 = vpack.c.bf16 %v441, %v440
      %v496 = vpack.c.bf16 %v443, %v442
      %v497 = vpack.c.bf16 %v445, %v444
      %v498 = vpack.c.bf16 %v447, %v446
      %v499 = vpack.c.bf16 %v449, %v448
      %v500 = vpack.c.bf16 %v451, %v450
      %v501 = vpack.c.bf16 %v453, %v452
      %v502 = vpack.c.bf16 %v455, %v454
      %v503 = vpack.c.bf16 %v457, %v456
      %v504 = vpack.c.bf16 %v459, %v458
      %v505 = vpack.c.bf16 %v461, %v460
      %v506 = vpack.c.bf16 %v463, %v462
      %v507 = vpack.c.bf16 %v465, %v464
      %v508 = vpack.c.bf16 %v467, %v466
      %v509 = vpack.c.bf16 %v469, %v468
      %v510 = vpack.c.bf16 %v471, %v470
      %v511 = vpack.c.bf16 %v473, %v472
      %v512 = vpack.c.bf16 %v475, %v474
      %v513 = vpack.c.bf16 %v477, %v476
      %v514 = vpack.c.bf16 %v479, %v478
      %v515 = vpack.c.bf16 %v481, %v480
      %v516 = vpack.c.bf16 %v483, %v482
      %v517 = vpack.c.bf16 %v485, %v484
      %v518 = vpack.c.bf16 %v487, %v486
      %v519 = vpack.c.bf16 %v489, %v488
      %v520 = vpack.c.bf16 %v491, %v490
      %v521 = vpack.c.bf16 %v493, %v492
      %v522 = vld [vmem:[%s2] sm:$0xf]
      %v523 = vld [vmem:[%s2 + $0x4] sm:$0xf]
      %v524 = vld [vmem:[%s2 + $0x8] sm:$0xf]
      %v525 = vld [vmem:[%s2 + $0xc] sm:$0xf]
      %s526 = scalar_lea.vmem %s2, 48
      %v527 = vld [vmem:[%s526] sm:$0xf]
      %v528 = vld [vmem:[%s526 + $0x4] sm:$0xf]
      %v529 = vld [vmem:[%s526 + $0x8] sm:$0xf]
      %v530 = vld [vmem:[%s526 + $0xc] sm:$0xf]
      %vm556 = vcmask 1043456
      %v557 = vrot.slane %v496, 4
      %v558 = vrot.slane %v497, 4
      %v559 = vsel %vm556, %v557, %v558
      %v560 = vrot.slane %v498, 4
      %v561 = vsel %vm556, %v558, %v560
      %v562 = vrot.slane %v499, 4
      %v563 = vsel %vm556, %v560, %v562
      %v564 = vrot.slane %v500, 4
      %v565 = vsel %vm556, %v562, %v564
      %v566 = vrot.slane %v501, 4
      %v567 = vsel %vm556, %v564, %v566
      %v568 = vrot.slane %v502, 4
      %v569 = vsel %vm556, %v566, %v568
      %v570 = vrot.slane %v503, 4
      %v571 = vsel %vm556, %v568, %v570
      %v572 = vrot.slane %v504, 4
      %v573 = vsel %vm556, %v570, %v572
      %v574 = vrot.slane %v505, 4
      %v575 = vsel %vm556, %v572, %v574
      %v576 = vrot.slane %v506, 4
      %v577 = vsel %vm556, %v574, %v576
      %v578 = vrot.slane %v507, 4
      %v579 = vsel %vm556, %v576, %v578
      %v580 = vrot.slane %v508, 4
      %v581 = vsel %vm556, %v578, %v580
      %v582 = vrot.slane %v509, 4
      %v583 = vsel %vm556, %v580, %v582
      %v584 = vrot.slane %v510, 4
      %v585 = vsel %vm556, %v582, %v584
      %v586 = vrot.slane %v511, 4
      %v587 = vsel %vm556, %v584, %v586
      %v588 = vrot.slane %v512, 4
      %v589 = vsel %vm556, %v586, %v588
      %v590 = vrot.slane %v513, 4
      %v591 = vsel %vm556, %v588, %v590
      %v592 = vrot.slane %v514, 4
      %v593 = vsel %vm556, %v590, %v592
      %v594 = vrot.slane %v515, 4
      %v595 = vsel %vm556, %v592, %v594
      %v596 = vrot.slane %v516, 4
      %v597 = vsel %vm556, %v594, %v596
      %v598 = vrot.slane %v517, 4
      %v599 = vsel %vm556, %v596, %v598
      %v600 = vrot.slane %v518, 4
      %v601 = vsel %vm556, %v598, %v600
      %v602 = vrot.slane %v519, 4
      %v603 = vsel %vm556, %v600, %v602
      %v604 = vrot.slane %v520, 4
      %v605 = vsel %vm556, %v602, %v604
      %v610 = vunpack.c.l.b16 %v527
      %v611 = vunpack.c.l.b16 %v528
      %v612 = vunpack.c.l.b16 %v529
      %v613 = vunpack.c.l.b16 %v530
      %v614 = vpack.c.b16 %v611, %v610
      %v615 = vpack.c.b16 %v613, %v612
      %vm618 = vcmask 261120
      %v620 = vsel %vm618, %v559, 0
      %v623 = vsel %vm618, %v561, 0
      %v626 = vsel %vm618, %v563, 0
      %v629 = vsel %vm618, %v565, 0
      %v632 = vsel %vm618, %v567, 0
      %v635 = vsel %vm618, %v569, 0
      %v638 = vsel %vm618, %v571, 0
      %v641 = vsel %vm618, %v573, 0
      %v644 = vsel %vm618, %v575, 0
      %v647 = vsel %vm618, %v577, 0
      %v650 = vsel %vm618, %v579, 0
      %v653 = vsel %vm618, %v581, 0
      %v656 = vsel %vm618, %v583, 0
      %v659 = vsel %vm618, %v585, 0
      %v662 = vsel %vm618, %v587, 0
      %v665 = vsel %vm618, %v589, 0
      %v668 = vsel %vm618, %v591, 0
      %v671 = vsel %vm618, %v593, 0
      %v674 = vsel %vm618, %v595, 0
      %v677 = vsel %vm618, %v597, 0
      %v680 = vsel %vm618, %v599, 0
      %v683 = vsel %vm618, %v601, 0
      %v686 = vsel %vm618, %v603, 0
      %v689 = vsel %vm618, %v605, 0
      %691 = vmatprep.subr.bf16.mxu0 0
      %692 = vmatpush1.bf16.msra.mxu0 %v614
      %693 = vmatprep.subr.bf16.mxu0 0
      %694 = vmatpush1.bf16.msra.mxu0 %v615
      %695 = vmatprep.subr.bf16.mxu0 0
      %696 = vmatpush1.bf16.msra.mxu0 0
      %697 = vmatprep.subr.bf16.mxu0 0
      %698 = vmatpush1.bf16.msra.mxu0 0
      %699 = vmatprep.subr.bf16.mxu0 0
      %700 = vmatpush1.bf16.msra.mxu0 0
      %701 = vmatprep.subr.bf16.mxu0 0
      %702 = vmatpush1.bf16.msra.mxu0 0
      %703 = vmatprep.subr.bf16.mxu0 0
      %704 = vmatpush1.bf16.msra.mxu0 0
      %705 = vmatprep.subr.bf16.mxu0 0
      %706 = vmatpush1.bf16.msra.mxu0 0
      %707 = vmatprep.subr.bf16.mxu0 0
      %708 = vmatpush1.bf16.msra.mxu0 0
      %709 = vmatprep.subr.bf16.mxu0 0
      %710 = vmatpush1.bf16.msra.mxu0 0
      %711 = vmatprep.subr.bf16.mxu0 0
      %712 = vmatpush1.bf16.msra.mxu0 0
      %713 = vmatprep.subr.bf16.mxu0 0
      %714 = vmatpush1.bf16.msra.mxu0 0
      %715 = vmatprep.subr.bf16.mxu0 0
      %716 = vmatpush1.bf16.msra.mxu0 0
      %717 = vmatprep.subr.bf16.mxu0 0
      %718 = vmatpush1.bf16.msra.mxu0 0
      %719 = vmatprep.subr.bf16.mxu0 0
      %720 = vmatpush1.bf16.msra.mxu0 0
      %721 = vmatprep.subr.bf16.mxu0 0
      %722 = vmatpush1.bf16.msra.mxu0 0
      %723 = vmatprep.mubr.bf16.mxu0 0
      %724 = vmatmul.mubr.bf16.gmra.mrb[0].mxu0 %v620
      %v725 = vpop.f32.mrb[0].mxu0
      %v726 = vadd.f32 0.0, %v725
      %v727 = vpop.f32.mrb[0].mxu0
      %v728 = vpop.f32.mrb[0].mxu0
      %v729 = vadd.f32 0.0, %v728
      %v730 = vpop.f32.mrb[0].mxu0
      %731 = vmatprep.mubr.bf16.mxu0 0
      %732 = vmatmul.mubr.bf16.gmra.mrb[0].mxu0 %v623
      %v733 = vpop.f32.mrb[0].mxu0
      %v734 = vadd.f32 0.0, %v733
      %v735 = vpop.f32.mrb[0].mxu0
      %v736 = vpop.f32.mrb[0].mxu0
      %v737 = vadd.f32 0.0, %v736
      %v738 = vpop.f32.mrb[0].mxu0
      %739 = vmatprep.mubr.bf16.mxu0 0
      %740 = vmatmul.mubr.bf16.gmra.mrb[0].mxu0 %v626
      %v741 = vpop.f32.mrb[0].mxu0
      %v742 = vadd.f32 0.0, %v741
      %v743 = vpop.f32.mrb[0].mxu0
      %v744 = vpop.f32.mrb[0].mxu0
      %v745 = vadd.f32 0.0, %v744
      %v746 = vpop.f32.mrb[0].mxu0
      %747 = vmatprep.mubr.bf16.mxu0 0
      %748 = vmatmul.mubr.bf16.gmra.mrb[0].mxu0 %v629
      %v749 = vpop.f32.mrb[0].mxu0
      %v750 = vadd.f32 0.0, %v749
      %v751 = vpop.f32.mrb[0].mxu0
      %v752 = vpop.f32.mrb[0].mxu0
      %v753 = vadd.f32 0.0, %v752
      %v754 = vpop.f32.mrb[0].mxu0
      %755 = vmatprep.mubr.bf16.mxu0 0
      %756 = vmatmul.mubr.bf16.gmra.mrb[0].mxu0 %v632
      %v757 = vpop.f32.mrb[0].mxu0
      %v758 = vadd.f32 0.0, %v757
      %v759 = vpop.f32.mrb[0].mxu0
      %v760 = vpop.f32.mrb[0].mxu0
      %v761 = vadd.f32 0.0, %v760
      %v762 = vpop.f32.mrb[0].mxu0
      %763 = vmatprep.mubr.bf16.mxu0 0
      %764 = vmatmul.mubr.bf16.gmra.mrb[0].mxu0 %v635
      %v765 = vpop.f32.mrb[0].mxu0
      %v766 = vadd.f32 0.0, %v765
      %v767 = vpop.f32.mrb[0].mxu0
      %v768 = vpop.f32.mrb[0].mxu0
      %v769 = vadd.f32 0.0, %v768
      %v770 = vpop.f32.mrb[0].mxu0
      %771 = vmatprep.mubr.bf16.mxu0 0
      %772 = vmatmul.mubr.bf16.gmra.mrb[0].mxu0 %v638
      %v773 = vpop.f32.mrb[0].mxu0
      %v774 = vadd.f32 0.0, %v773
      %v775 = vpop.f32.mrb[0].mxu0
      %v776 = vpop.f32.mrb[0].mxu0
      %v777 = vadd.f32 0.0, %v776
      %v778 = vpop.f32.mrb[0].mxu0
      %779 = vmatprep.mubr.bf16.mxu0 0
      %780 = vmatmul.mubr.bf16.gmra.mrb[0].mxu0 %v641
      %v781 = vpop.f32.mrb[0].mxu0
      %v782 = vadd.f32 0.0, %v781
      %v783 = vpop.f32.mrb[0].mxu0
      %v784 = vpop.f32.mrb[0].mxu0
      %v785 = vadd.f32 0.0, %v784
      %v786 = vpop.f32.mrb[0].mxu0
      %787 = vmatprep.mubr.bf16.mxu0 0
      %788 = vmatmul.mubr.bf16.gmra.mrb[0].mxu0 %v644
      %v789 = vpop.f32.mrb[0].mxu0
      %v790 = vadd.f32 0.0, %v789
      %v791 = vpop.f32.mrb[0].mxu0
      %v792 = vpop.f32.mrb[0].mxu0
      %v793 = vadd.f32 0.0, %v792
      %v794 = vpop.f32.mrb[0].mxu0
      %795 = vmatprep.mubr.bf16.mxu0 0
      %796 = vmatmul.mubr.bf16.gmra.mrb[0].mxu0 %v647
      %v797 = vpop.f32.mrb[0].mxu0
      %v798 = vadd.f32 0.0, %v797
      %v799 = vpop.f32.mrb[0].mxu0
      %v800 = vpop.f32.mrb[0].mxu0
      %v801 = vadd.f32 0.0, %v800
      %v802 = vpop.f32.mrb[0].mxu0
      %803 = vmatprep.mubr.bf16.mxu0 0
      %804 = vmatmul.mubr.bf16.gmra.mrb[0].mxu0 %v650
      %v805 = vpop.f32.mrb[0].mxu0
      %v806 = vadd.f32 0.0, %v805
      %v807 = vpop.f32.mrb[0].mxu0
      %v808 = vpop.f32.mrb[0].mxu0
      %v809 = vadd.f32 0.0, %v808
      %v810 = vpop.f32.mrb[0].mxu0
      %811 = vmatprep.mubr.bf16.mxu0 0
      %812 = vmatmul.mubr.bf16.gmra.mrb[0].mxu0 %v653
      %v813 = vpop.f32.mrb[0].mxu0
      %v814 = vadd.f32 0.0, %v813
      %v815 = vpop.f32.mrb[0].mxu0
      %v816 = vpop.f32.mrb[0].mxu0
      %v817 = vadd.f32 0.0, %v816
      %v818 = vpop.f32.mrb[0].mxu0
      %819 = vmatprep.mubr.bf16.mxu0 0
      %820 = vmatmul.mubr.bf16.gmra.mrb[0].mxu0 %v656
      %v821 = vpop.f32.mrb[0].mxu0
      %v822 = vadd.f32 0.0, %v821
      %v823 = vpop.f32.mrb[0].mxu0
      %v824 = vpop.f32.mrb[0].mxu0
      %v825 = vadd.f32 0.0, %v824
      %v826 = vpop.f32.mrb[0].mxu0
      %827 = vmatprep.mubr.bf16.mxu0 0
      %828 = vmatmul.mubr.bf16.gmra.mrb[0].mxu0 %v659
      %v829 = vpop.f32.mrb[0].mxu0
      %v830 = vadd.f32 0.0, %v829
      %v831 = vpop.f32.mrb[0].mxu0
      %v832 = vpop.f32.mrb[0].mxu0
      %v833 = vadd.f32 0.0, %v832
      %v834 = vpop.f32.mrb[0].mxu0
      %835 = vmatprep.mubr.bf16.mxu0 0
      %836 = vmatmul.mubr.bf16.gmra.mrb[0].mxu0 %v662
      %v837 = vpop.f32.mrb[0].mxu0
      %v838 = vadd.f32 0.0, %v837
      %v839 = vpop.f32.mrb[0].mxu0
      %v840 = vpop.f32.mrb[0].mxu0
      %v841 = vadd.f32 0.0, %v840
      %v842 = vpop.f32.mrb[0].mxu0
      %843 = vmatprep.mubr.bf16.mxu0 0
      %844 = vmatmul.mubr.bf16.gmra.mrb[0].mxu0 %v665
      %v845 = vpop.f32.mrb[0].mxu0
      %v846 = vadd.f32 0.0, %v845
      %v847 = vpop.f32.mrb[0].mxu0
      %v848 = vpop.f32.mrb[0].mxu0
      %v849 = vadd.f32 0.0, %v848
      %v850 = vpop.f32.mrb[0].mxu0
      %851 = vmatprep.mubr.bf16.mxu0 0
      %852 = vmatmul.mubr.bf16.gmra.mrb[0].mxu0 %v668
      %v853 = vpop.f32.mrb[0].mxu0
      %v854 = vadd.f32 0.0, %v853
      %v855 = vpop.f32.mrb[0].mxu0
      %v856 = vpop.f32.mrb[0].mxu0
      %v857 = vadd.f32 0.0, %v856
      %v858 = vpop.f32.mrb[0].mxu0
      %859 = vmatprep.mubr.bf16.mxu0 0
      %860 = vmatmul.mubr.bf16.gmra.mrb[0].mxu0 %v671
      %v861 = vpop.f32.mrb[0].mxu0
      %v862 = vadd.f32 0.0, %v861
      %v863 = vpop.f32.mrb[0].mxu0
      %v864 = vpop.f32.mrb[0].mxu0
      %v865 = vadd.f32 0.0, %v864
      %v866 = vpop.f32.mrb[0].mxu0
      %867 = vmatprep.mubr.bf16.mxu0 0
      %868 = vmatmul.mubr.bf16.gmra.mrb[0].mxu0 %v674
      %v869 = vpop.f32.mrb[0].mxu0
      %v870 = vadd.f32 0.0, %v869
      %v871 = vpop.f32.mrb[0].mxu0
      %v872 = vpop.f32.mrb[0].mxu0
      %v873 = vadd.f32 0.0, %v872
      %v874 = vpop.f32.mrb[0].mxu0
      %875 = vmatprep.mubr.bf16.mxu0 0
      %876 = vmatmul.mubr.bf16.gmra.mrb[0].mxu0 %v677
      %v877 = vpop.f32.mrb[0].mxu0
      %v878 = vadd.f32 0.0, %v877
      %v879 = vpop.f32.mrb[0].mxu0
      %v880 = vpop.f32.mrb[0].mxu0
      %v881 = vadd.f32 0.0, %v880
      %v882 = vpop.f32.mrb[0].mxu0
      %883 = vmatprep.mubr.bf16.mxu0 0
      %884 = vmatmul.mubr.bf16.gmra.mrb[0].mxu0 %v680
      %v885 = vpop.f32.mrb[0].mxu0
      %v886 = vadd.f32 0.0, %v885
      %v887 = vpop.f32.mrb[0].mxu0
      %v888 = vpop.f32.mrb[0].mxu0
      %v889 = vadd.f32 0.0, %v888
      %v890 = vpop.f32.mrb[0].mxu0
      %891 = vmatprep.mubr.bf16.mxu0 0
      %892 = vmatmul.mubr.bf16.gmra.mrb[0].mxu0 %v683
      %v893 = vpop.f32.mrb[0].mxu0
      %v894 = vadd.f32 0.0, %v893
      %v895 = vpop.f32.mrb[0].mxu0
      %v896 = vpop.f32.mrb[0].mxu0
      %v897 = vadd.f32 0.0, %v896
      %v898 = vpop.f32.mrb[0].mxu0
      %899 = vmatprep.mubr.bf16.mxu0 0
      %900 = vmatmul.mubr.bf16.gmra.mrb[0].mxu0 %v686
      %v901 = vpop.f32.mrb[0].mxu0
      %v902 = vadd.f32 0.0, %v901
      %v903 = vpop.f32.mrb[0].mxu0
      %v904 = vpop.f32.mrb[0].mxu0
      %v905 = vadd.f32 0.0, %v904
      %v906 = vpop.f32.mrb[0].mxu0
      %907 = vmatprep.mubr.bf16.mxu0 0
      %908 = vmatmul.mubr.bf16.gmra.mrb[0].mxu0 %v689
      %v909 = vpop.f32.mrb[0].mxu0
      %v910 = vadd.f32 0.0, %v909
      %v911 = vpop.f32.mrb[0].mxu0
      %v912 = vpop.f32.mrb[0].mxu0
      %v913 = vadd.f32 0.0, %v912
      %v914 = vpop.f32.mrb[0].mxu0
      %915 = vdwg.mxu0
      %v920 = vunpack.c.l.b16 %v522
      %v921 = vunpack.c.l.b16 %v523
      %v922 = vunpack.c.l.b16 %v524
      %v923 = vunpack.c.l.b16 %v525
      %v924 = vpack.c.b16 %v921, %v920
      %v925 = vpack.c.b16 %v923, %v922
      %v929 = vsel %vm618, %v495, 0
      %v932 = vsel %vm618, %v496, 0
      %v935 = vsel %vm618, %v497, 0
      %v938 = vsel %vm618, %v498, 0
      %v941 = vsel %vm618, %v499, 0
      %v944 = vsel %vm618, %v500, 0
      %v947 = vsel %vm618, %v501, 0
      %v950 = vsel %vm618, %v502, 0
      %v953 = vsel %vm618, %v503, 0
      %v956 = vsel %vm618, %v504, 0
      %v959 = vsel %vm618, %v505, 0
      %v962 = vsel %vm618, %v506, 0
      %v965 = vsel %vm618, %v507, 0
      %v968 = vsel %vm618, %v508, 0
      %v971 = vsel %vm618, %v509, 0
      %v974 = vsel %vm618, %v510, 0
      %v977 = vsel %vm618, %v511, 0
      %v980 = vsel %vm618, %v512, 0
      %v983 = vsel %vm618, %v513, 0
      %v986 = vsel %vm618, %v514, 0
      %v989 = vsel %vm618, %v515, 0
      %v992 = vsel %vm618, %v516, 0
      %v995 = vsel %vm618, %v517, 0
      %v998 = vsel %vm618, %v518, 0
      %1000 = vmatprep.subr.bf16.mxu0 0
      %1001 = vmatpush1.bf16.msra.mxu0 %v924
      %1002 = vmatprep.subr.bf16.mxu0 0
      %1003 = vmatpush1.bf16.msra.mxu0 %v925
      %1004 = vmatprep.subr.bf16.mxu0 0
      %1005 = vmatpush1.bf16.msra.mxu0 0
      %1006 = vmatprep.subr.bf16.mxu0 0
      %1007 = vmatpush1.bf16.msra.mxu0 0
      %1008 = vmatprep.subr.bf16.mxu0 0
      %1009 = vmatpush1.bf16.msra.mxu0 0
      %1010 = vmatprep.subr.bf16.mxu0 0
      %1011 = vmatpush1.bf16.msra.mxu0 0
      %1012 = vmatprep.subr.bf16.mxu0 0
      %1013 = vmatpush1.bf16.msra.mxu0 0
      %1014 = vmatprep.subr.bf16.mxu0 0
      %1015 = vmatpush1.bf16.msra.mxu0 0
      %1016 = vmatprep.subr.bf16.mxu0 0
      %1017 = vmatpush1.bf16.msra.mxu0 0
      %1018 = vmatprep.subr.bf16.mxu0 0
      %1019 = vmatpush1.bf16.msra.mxu0 0
      %1020 = vmatprep.subr.bf16.mxu0 0
      %1021 = vmatpush1.bf16.msra.mxu0 0
      %1022 = vmatprep.subr.bf16.mxu0 0
      %1023 = vmatpush1.bf16.msra.mxu0 0
      %1024 = vmatprep.subr.bf16.mxu0 0
      %1025 = vmatpush1.bf16.msra.mxu0 0
      %1026 = vmatprep.subr.bf16.mxu0 0
      %1027 = vmatpush1.bf16.msra.mxu0 0
      %1028 = vmatprep.subr.bf16.mxu0 0
      %1029 = vmatpush1.bf16.msra.mxu0 0
      %1030 = vmatprep.subr.bf16.mxu0 0
      %1031 = vmatpush1.bf16.msra.mxu0 0
      %1032 = vmatprep.mubr.bf16.mxu0 0
      %1033 = vmatmul.mubr.bf16.gmra.mrb[0].mxu0 %v929
      %v1034 = vpop.f32.mrb[0].mxu0
      %v1035 = vadd.f32 %v726, %v1034
      %v1036 = vpop.f32.mrb[0].mxu0
      %v1037 = vpop.f32.mrb[0].mxu0
      %v1038 = vadd.f32 %v729, %v1037
      %v1039 = vpop.f32.mrb[0].mxu0
      %1040 = vmatprep.mubr.bf16.mxu0 0
      %1041 = vmatmul.mubr.bf16.gmra.mrb[0].mxu0 %v932
      %v1042 = vpop.f32.mrb[0].mxu0
      %v1043 = vadd.f32 %v734, %v1042
      %v1044 = vpop.f32.mrb[0].mxu0
      %v1045 = vpop.f32.mrb[0].mxu0
      %v1046 = vadd.f32 %v737, %v1045
      %v1047 = vpop.f32.mrb[0].mxu0
      %1048 = vmatprep.mubr.bf16.mxu0 0
      %1049 = vmatmul.mubr.bf16.gmra.mrb[0].mxu0 %v935
      %v1050 = vpop.f32.mrb[0].mxu0
      %v1051 = vadd.f32 %v742, %v1050
      %v1052 = vpop.f32.mrb[0].mxu0
      %v1053 = vpop.f32.mrb[0].mxu0
      %v1054 = vadd.f32 %v745, %v1053
      %v1055 = vpop.f32.mrb[0].mxu0
      %1056 = vmatprep.mubr.bf16.mxu0 0
      %1057 = vmatmul.mubr.bf16.gmra.mrb[0].mxu0 %v938
      %v1058 = vpop.f32.mrb[0].mxu0
      %v1059 = vadd.f32 %v750, %v1058
      %v1060 = vpop.f32.mrb[0].mxu0
      %v1061 = vpop.f32.mrb[0].mxu0
      %v1062 = vadd.f32 %v753, %v1061
      %v1063 = vpop.f32.mrb[0].mxu0
      %1064 = vmatprep.mubr.bf16.mxu0 0
      %1065 = vmatmul.mubr.bf16.gmra.mrb[0].mxu0 %v941
      %v1066 = vpop.f32.mrb[0].mxu0
      %v1067 = vadd.f32 %v758, %v1066
      %v1068 = vpop.f32.mrb[0].mxu0
      %v1069 = vpop.f32.mrb[0].mxu0
      %v1070 = vadd.f32 %v761, %v1069
      %v1071 = vpop.f32.mrb[0].mxu0
      %1072 = vmatprep.mubr.bf16.mxu0 0
      %1073 = vmatmul.mubr.bf16.gmra.mrb[0].mxu0 %v944
      %v1074 = vpop.f32.mrb[0].mxu0
      %v1075 = vadd.f32 %v766, %v1074
      %v1076 = vpop.f32.mrb[0].mxu0
      %v1077 = vpop.f32.mrb[0].mxu0
      %v1078 = vadd.f32 %v769, %v1077
      %v1079 = vpop.f32.mrb[0].mxu0
      %1080 = vmatprep.mubr.bf16.mxu0 0
      %1081 = vmatmul.mubr.bf16.gmra.mrb[0].mxu0 %v947
      %v1082 = vpop.f32.mrb[0].mxu0
      %v1083 = vadd.f32 %v774, %v1082
      %v1084 = vpop.f32.mrb[0].mxu0
      %v1085 = vpop.f32.mrb[0].mxu0
      %v1086 = vadd.f32 %v777, %v1085
      %v1087 = vpop.f32.mrb[0].mxu0
      %1088 = vmatprep.mubr.bf16.mxu0 0
      %1089 = vmatmul.mubr.bf16.gmra.mrb[0].mxu0 %v950
      %v1090 = vpop.f32.mrb[0].mxu0
      %v1091 = vadd.f32 %v782, %v1090
      %v1092 = vpop.f32.mrb[0].mxu0
      %v1093 = vpop.f32.mrb[0].mxu0
      %v1094 = vadd.f32 %v785, %v1093
      %v1095 = vpop.f32.mrb[0].mxu0
      %1096 = vmatprep.mubr.bf16.mxu0 0
      %1097 = vmatmul.mubr.bf16.gmra.mrb[0].mxu0 %v953
      %v1098 = vpop.f32.mrb[0].mxu0
      %v1099 = vadd.f32 %v790, %v1098
      %v1100 = vpop.f32.mrb[0].mxu0
      %v1101 = vpop.f32.mrb[0].mxu0
      %v1102 = vadd.f32 %v793, %v1101
      %v1103 = vpop.f32.mrb[0].mxu0
      %1104 = vmatprep.mubr.bf16.mxu0 0
      %1105 = vmatmul.mubr.bf16.gmra.mrb[0].mxu0 %v956
      %v1106 = vpop.f32.mrb[0].mxu0
      %v1107 = vadd.f32 %v798, %v1106
      %v1108 = vpop.f32.mrb[0].mxu0
      %v1109 = vpop.f32.mrb[0].mxu0
      %v1110 = vadd.f32 %v801, %v1109
      %v1111 = vpop.f32.mrb[0].mxu0
      %1112 = vmatprep.mubr.bf16.mxu0 0
      %1113 = vmatmul.mubr.bf16.gmra.mrb[0].mxu0 %v959
      %v1114 = vpop.f32.mrb[0].mxu0
      %v1115 = vadd.f32 %v806, %v1114
      %v1116 = vpop.f32.mrb[0].mxu0
      %v1117 = vpop.f32.mrb[0].mxu0
      %v1118 = vadd.f32 %v809, %v1117
      %v1119 = vpop.f32.mrb[0].mxu0
      %1120 = vmatprep.mubr.bf16.mxu0 0
      %1121 = vmatmul.mubr.bf16.gmra.mrb[0].mxu0 %v962
      %v1122 = vpop.f32.mrb[0].mxu0
      %v1123 = vadd.f32 %v814, %v1122
      %v1124 = vpop.f32.mrb[0].mxu0
      %v1125 = vpop.f32.mrb[0].mxu0
      %v1126 = vadd.f32 %v817, %v1125
      %v1127 = vpop.f32.mrb[0].mxu0
      %1128 = vmatprep.mubr.bf16.mxu0 0
      %1129 = vmatmul.mubr.bf16.gmra.mrb[0].mxu0 %v965
      %v1130 = vpop.f32.mrb[0].mxu0
      %v1131 = vadd.f32 %v822, %v1130
      %v1132 = vpop.f32.mrb[0].mxu0
      %v1133 = vpop.f32.mrb[0].mxu0
      %v1134 = vadd.f32 %v825, %v1133
      %v1135 = vpop.f32.mrb[0].mxu0
      %1136 = vmatprep.mubr.bf16.mxu0 0
      %1137 = vmatmul.mubr.bf16.gmra.mrb[0].mxu0 %v968
      %v1138 = vpop.f32.mrb[0].mxu0
      %v1139 = vadd.f32 %v830, %v1138
      %v1140 = vpop.f32.mrb[0].mxu0
      %v1141 = vpop.f32.mrb[0].mxu0
      %v1142 = vadd.f32 %v833, %v1141
      %v1143 = vpop.f32.mrb[0].mxu0
      %1144 = vmatprep.mubr.bf16.mxu0 0
      %1145 = vmatmul.mubr.bf16.gmra.mrb[0].mxu0 %v971
      %v1146 = vpop.f32.mrb[0].mxu0
      %v1147 = vadd.f32 %v838, %v1146
      %v1148 = vpop.f32.mrb[0].mxu0
      %v1149 = vpop.f32.mrb[0].mxu0
      %v1150 = vadd.f32 %v841, %v1149
      %v1151 = vpop.f32.mrb[0].mxu0
      %1152 = vmatprep.mubr.bf16.mxu0 0
      %1153 = vmatmul.mubr.bf16.gmra.mrb[0].mxu0 %v974
      %v1154 = vpop.f32.mrb[0].mxu0
      %v1155 = vadd.f32 %v846, %v1154
      %v1156 = vpop.f32.mrb[0].mxu0
      %v1157 = vpop.f32.mrb[0].mxu0
      %v1158 = vadd.f32 %v849, %v1157
      %v1159 = vpop.f32.mrb[0].mxu0
      %1160 = vmatprep.mubr.bf16.mxu0 0
      %1161 = vmatmul.mubr.bf16.gmra.mrb[0].mxu0 %v977
      %v1162 = vpop.f32.mrb[0].mxu0
      %v1163 = vadd.f32 %v854, %v1162
      %v1164 = vpop.f32.mrb[0].mxu0
      %v1165 = vpop.f32.mrb[0].mxu0
      %v1166 = vadd.f32 %v857, %v1165
      %v1167 = vpop.f32.mrb[0].mxu0
      %1168 = vmatprep.mubr.bf16.mxu0 0
      %1169 = vmatmul.mubr.bf16.gmra.mrb[0].mxu0 %v980
      %v1170 = vpop.f32.mrb[0].mxu0
      %v1171 = vadd.f32 %v862, %v1170
      %v1172 = vpop.f32.mrb[0].mxu0
      %v1173 = vpop.f32.mrb[0].mxu0
      %v1174 = vadd.f32 %v865, %v1173
      %v1175 = vpop.f32.mrb[0].mxu0
      %1176 = vmatprep.mubr.bf16.mxu0 0
      %1177 = vmatmul.mubr.bf16.gmra.mrb[0].mxu0 %v983
      %v1178 = vpop.f32.mrb[0].mxu0
      %v1179 = vadd.f32 %v870, %v1178
      %v1180 = vpop.f32.mrb[0].mxu0
      %v1181 = vpop.f32.mrb[0].mxu0
      %v1182 = vadd.f32 %v873, %v1181
      %v1183 = vpop.f32.mrb[0].mxu0
      %1184 = vmatprep.mubr.bf16.mxu0 0
      %1185 = vmatmul.mubr.bf16.gmra.mrb[0].mxu0 %v986
      %v1186 = vpop.f32.mrb[0].mxu0
      %v1187 = vadd.f32 %v878, %v1186
      %v1188 = vpop.f32.mrb[0].mxu0
      %v1189 = vpop.f32.mrb[0].mxu0
      %v1190 = vadd.f32 %v881, %v1189
      %v1191 = vpop.f32.mrb[0].mxu0
      %1192 = vmatprep.mubr.bf16.mxu0 0
      %1193 = vmatmul.mubr.bf16.gmra.mrb[0].mxu0 %v989
      %v1194 = vpop.f32.mrb[0].mxu0
      %v1195 = vadd.f32 %v886, %v1194
      %v1196 = vpop.f32.mrb[0].mxu0
      %v1197 = vpop.f32.mrb[0].mxu0
      %v1198 = vadd.f32 %v889, %v1197
      %v1199 = vpop.f32.mrb[0].mxu0
      %1200 = vmatprep.mubr.bf16.mxu0 0
      %1201 = vmatmul.mubr.bf16.gmra.mrb[0].mxu0 %v992
      %v1202 = vpop.f32.mrb[0].mxu0
      %v1203 = vadd.f32 %v894, %v1202
      %v1204 = vpop.f32.mrb[0].mxu0
      %v1205 = vpop.f32.mrb[0].mxu0
      %v1206 = vadd.f32 %v897, %v1205
      %v1207 = vpop.f32.mrb[0].mxu0
      %1208 = vmatprep.mubr.bf16.mxu0 0
      %1209 = vmatmul.mubr.bf16.gmra.mrb[0].mxu0 %v995
      %v1210 = vpop.f32.mrb[0].mxu0
      %v1211 = vadd.f32 %v902, %v1210
      %v1212 = vpop.f32.mrb[0].mxu0
      %v1213 = vpop.f32.mrb[0].mxu0
      %v1214 = vadd.f32 %v905, %v1213
      %v1215 = vpop.f32.mrb[0].mxu0
      %1216 = vmatprep.mubr.bf16.mxu0 0
      %1217 = vmatmul.mubr.bf16.gmra.mrb[0].mxu0 %v998
      %v1218 = vpop.f32.mrb[0].mxu0
      %v1219 = vadd.f32 %v910, %v1218
      %v1220 = vpop.f32.mrb[0].mxu0
      %v1221 = vpop.f32.mrb[0].mxu0
      %v1222 = vadd.f32 %v913, %v1221
      %v1223 = vpop.f32.mrb[0].mxu0
      %1224 = vdwg.mxu0
      %s1225 = scalar_lea.vmem %s2, 96
      %v1226 = vld [vmem:[%s1225] sm:$0xf]
      %v1227 = vld [vmem:[%s1225 + $0x4] sm:$0xf]
      %v1228 = vld [vmem:[%s1225 + $0x8] sm:$0xf]
      %v1229 = vld [vmem:[%s1225 + $0xc] sm:$0xf]
      %v1234 = vunpack.c.l.b16 %v1226
      %v1235 = vunpack.c.l.b16 %v1227
      %v1236 = vunpack.c.l.b16 %v1228
      %v1237 = vunpack.c.l.b16 %v1229
      %v1238 = vpack.c.b16 %v1235, %v1234
      %v1239 = vpack.c.b16 %v1237, %v1236
      %v1243 = vsel %vm618, %v519, 0
      %v1246 = vsel %vm618, %v520, 0
      %v1249 = vsel %vm618, %v521, 0
      %1251 = vmatprep.subr.bf16.mxu0 0
      %1252 = vmatpush1.bf16.msra.mxu0 %v1238
      %1253 = vmatprep.subr.bf16.mxu0 0
      %1254 = vmatpush1.bf16.msra.mxu0 %v1239
      %1255 = vmatprep.subr.bf16.mxu0 0
      %1256 = vmatpush1.bf16.msra.mxu0 0
      %1257 = vmatprep.subr.bf16.mxu0 0
      %1258 = vmatpush1.bf16.msra.mxu0 0
      %1259 = vmatprep.subr.bf16.mxu0 0
      %1260 = vmatpush1.bf16.msra.mxu0 0
      %1261 = vmatprep.subr.bf16.mxu0 0
      %1262 = vmatpush1.bf16.msra.mxu0 0
      %1263 = vmatprep.subr.bf16.mxu0 0
      %1264 = vmatpush1.bf16.msra.mxu0 0
      %1265 = vmatprep.subr.bf16.mxu0 0
      %1266 = vmatpush1.bf16.msra.mxu0 0
      %1267 = vmatprep.subr.bf16.mxu0 0
      %1268 = vmatpush1.bf16.msra.mxu0 0
      %1269 = vmatprep.subr.bf16.mxu0 0
      %1270 = vmatpush1.bf16.msra.mxu0 0
      %1271 = vmatprep.subr.bf16.mxu0 0
      %1272 = vmatpush1.bf16.msra.mxu0 0
      %1273 = vmatprep.subr.bf16.mxu0 0
      %1274 = vmatpush1.bf16.msra.mxu0 0
      %1275 = vmatprep.subr.bf16.mxu0 0
      %1276 = vmatpush1.bf16.msra.mxu0 0
      %1277 = vmatprep.subr.bf16.mxu0 0
      %1278 = vmatpush1.bf16.msra.mxu0 0
      %1279 = vmatprep.subr.bf16.mxu0 0
      %1280 = vmatpush1.bf16.msra.mxu0 0
      %1281 = vmatprep.subr.bf16.mxu0 0
      %1282 = vmatpush1.bf16.msra.mxu0 0
      %1283 = vmatprep.mubr.bf16.mxu0 0
      %1284 = vmatmul.mubr.bf16.gmra.mrb[0].mxu0 %v938
      %v1285 = vpop.f32.mrb[0].mxu0
      %v1286 = vadd.f32 0.0, %v1285
      %v1287 = vpop.f32.mrb[0].mxu0
      %v1288 = vpop.f32.mrb[0].mxu0
      %v1289 = vadd.f32 0.0, %v1288
      %v1290 = vpop.f32.mrb[0].mxu0
      %1291 = vmatprep.mubr.bf16.mxu0 0
      %1292 = vmatmul.mubr.bf16.gmra.mrb[0].mxu0 %v941
      %v1293 = vpop.f32.mrb[0].mxu0
      %v1294 = vadd.f32 0.0, %v1293
      %v1295 = vpop.f32.mrb[0].mxu0
      %v1296 = vpop.f32.mrb[0].mxu0
      %v1297 = vadd.f32 0.0, %v1296
      %v1298 = vpop.f32.mrb[0].mxu0
      %1299 = vmatprep.mubr.bf16.mxu0 0
      %1300 = vmatmul.mubr.bf16.gmra.mrb[0].mxu0 %v944
      %v1301 = vpop.f32.mrb[0].mxu0
      %v1302 = vadd.f32 0.0, %v1301
      %v1303 = vpop.f32.mrb[0].mxu0
      %v1304 = vpop.f32.mrb[0].mxu0
      %v1305 = vadd.f32 0.0, %v1304
      %v1306 = vpop.f32.mrb[0].mxu0
      %1307 = vmatprep.mubr.bf16.mxu0 0
      %1308 = vmatmul.mubr.bf16.gmra.mrb[0].mxu0 %v947
      %v1309 = vpop.f32.mrb[0].mxu0
      %v1310 = vadd.f32 0.0, %v1309
      %v1311 = vpop.f32.mrb[0].mxu0
      %v1312 = vpop.f32.mrb[0].mxu0
      %v1313 = vadd.f32 0.0, %v1312
      %v1314 = vpop.f32.mrb[0].mxu0
      %1315 = vmatprep.mubr.bf16.mxu0 0
      %1316 = vmatmul.mubr.bf16.gmra.mrb[0].mxu0 %v950
      %v1317 = vpop.f32.mrb[0].mxu0
      %v1318 = vadd.f32 0.0, %v1317
      %v1319 = vpop.f32.mrb[0].mxu0
      %v1320 = vpop.f32.mrb[0].mxu0
      %v1321 = vadd.f32 0.0, %v1320
      %v1322 = vpop.f32.mrb[0].mxu0
      %1323 = vmatprep.mubr.bf16.mxu0 0
      %1324 = vmatmul.mubr.bf16.gmra.mrb[0].mxu0 %v953
      %v1325 = vpop.f32.mrb[0].mxu0
      %v1326 = vadd.f32 0.0, %v1325
      %v1327 = vpop.f32.mrb[0].mxu0
      %v1328 = vpop.f32.mrb[0].mxu0
      %v1329 = vadd.f32 0.0, %v1328
      %v1330 = vpop.f32.mrb[0].mxu0
      %1331 = vmatprep.mubr.bf16.mxu0 0
      %1332 = vmatmul.mubr.bf16.gmra.mrb[0].mxu0 %v956
      %v1333 = vpop.f32.mrb[0].mxu0
      %v1334 = vadd.f32 0.0, %v1333
      %v1335 = vpop.f32.mrb[0].mxu0
      %v1336 = vpop.f32.mrb[0].mxu0
      %v1337 = vadd.f32 0.0, %v1336
      %v1338 = vpop.f32.mrb[0].mxu0
      %1339 = vmatprep.mubr.bf16.mxu0 0
      %1340 = vmatmul.mubr.bf16.gmra.mrb[0].mxu0 %v959
      %v1341 = vpop.f32.mrb[0].mxu0
      %v1342 = vadd.f32 0.0, %v1341
      %v1343 = vpop.f32.mrb[0].mxu0
      %v1344 = vpop.f32.mrb[0].mxu0
      %v1345 = vadd.f32 0.0, %v1344
      %v1346 = vpop.f32.mrb[0].mxu0
      %1347 = vmatprep.mubr.bf16.mxu0 0
      %1348 = vmatmul.mubr.bf16.gmra.mrb[0].mxu0 %v962
      %v1349 = vpop.f32.mrb[0].mxu0
      %v1350 = vadd.f32 0.0, %v1349
      %v1351 = vpop.f32.mrb[0].mxu0
      %v1352 = vpop.f32.mrb[0].mxu0
      %v1353 = vadd.f32 0.0, %v1352
      %v1354 = vpop.f32.mrb[0].mxu0
      %1355 = vmatprep.mubr.bf16.mxu0 0
      %1356 = vmatmul.mubr.bf16.gmra.mrb[0].mxu0 %v965
      %v1357 = vpop.f32.mrb[0].mxu0
      %v1358 = vadd.f32 0.0, %v1357
      %v1359 = vpop.f32.mrb[0].mxu0
      %v1360 = vpop.f32.mrb[0].mxu0
      %v1361 = vadd.f32 0.0, %v1360
      %v1362 = vpop.f32.mrb[0].mxu0
      %1363 = vmatprep.mubr.bf16.mxu0 0
      %1364 = vmatmul.mubr.bf16.gmra.mrb[0].mxu0 %v968
      %v1365 = vpop.f32.mrb[0].mxu0
      %v1366 = vadd.f32 0.0, %v1365
      %v1367 = vpop.f32.mrb[0].mxu0
      %v1368 = vpop.f32.mrb[0].mxu0
      %v1369 = vadd.f32 0.0, %v1368
      %v1370 = vpop.f32.mrb[0].mxu0
      %1371 = vmatprep.mubr.bf16.mxu0 0
      %1372 = vmatmul.mubr.bf16.gmra.mrb[0].mxu0 %v971
      %v1373 = vpop.f32.mrb[0].mxu0
      %v1374 = vadd.f32 0.0, %v1373
      %v1375 = vpop.f32.mrb[0].mxu0
      %v1376 = vpop.f32.mrb[0].mxu0
      %v1377 = vadd.f32 0.0, %v1376
      %v1378 = vpop.f32.mrb[0].mxu0
      %1379 = vmatprep.mubr.bf16.mxu0 0
      %1380 = vmatmul.mubr.bf16.gmra.mrb[0].mxu0 %v974
      %v1381 = vpop.f32.mrb[0].mxu0
      %v1382 = vadd.f32 0.0, %v1381
      %v1383 = vpop.f32.mrb[0].mxu0
      %v1384 = vpop.f32.mrb[0].mxu0
      %v1385 = vadd.f32 0.0, %v1384
      %v1386 = vpop.f32.mrb[0].mxu0
      %1387 = vmatprep.mubr.bf16.mxu0 0
      %1388 = vmatmul.mubr.bf16.gmra.mrb[0].mxu0 %v977
      %v1389 = vpop.f32.mrb[0].mxu0
      %v1390 = vadd.f32 0.0, %v1389
      %v1391 = vpop.f32.mrb[0].mxu0
      %v1392 = vpop.f32.mrb[0].mxu0
      %v1393 = vadd.f32 0.0, %v1392
      %v1394 = vpop.f32.mrb[0].mxu0
      %1395 = vmatprep.mubr.bf16.mxu0 0
      %1396 = vmatmul.mubr.bf16.gmra.mrb[0].mxu0 %v980
      %v1397 = vpop.f32.mrb[0].mxu0
      %v1398 = vadd.f32 0.0, %v1397
      %v1399 = vpop.f32.mrb[0].mxu0
      %v1400 = vpop.f32.mrb[0].mxu0
      %v1401 = vadd.f32 0.0, %v1400
      %v1402 = vpop.f32.mrb[0].mxu0
      %1403 = vmatprep.mubr.bf16.mxu0 0
      %1404 = vmatmul.mubr.bf16.gmra.mrb[0].mxu0 %v983
      %v1405 = vpop.f32.mrb[0].mxu0
      %v1406 = vadd.f32 0.0, %v1405
      %v1407 = vpop.f32.mrb[0].mxu0
      %v1408 = vpop.f32.mrb[0].mxu0
      %v1409 = vadd.f32 0.0, %v1408
      %v1410 = vpop.f32.mrb[0].mxu0
      %1411 = vmatprep.mubr.bf16.mxu0 0
      %1412 = vmatmul.mubr.bf16.gmra.mrb[0].mxu0 %v986
      %v1413 = vpop.f32.mrb[0].mxu0
      %v1414 = vadd.f32 0.0, %v1413
      %v1415 = vpop.f32.mrb[0].mxu0
      %v1416 = vpop.f32.mrb[0].mxu0
      %v1417 = vadd.f32 0.0, %v1416
      %v1418 = vpop.f32.mrb[0].mxu0
      %1419 = vmatprep.mubr.bf16.mxu0 0
      %1420 = vmatmul.mubr.bf16.gmra.mrb[0].mxu0 %v989
      %v1421 = vpop.f32.mrb[0].mxu0
      %v1422 = vadd.f32 0.0, %v1421
      %v1423 = vpop.f32.mrb[0].mxu0
      %v1424 = vpop.f32.mrb[0].mxu0
      %v1425 = vadd.f32 0.0, %v1424
      %v1426 = vpop.f32.mrb[0].mxu0
      %1427 = vmatprep.mubr.bf16.mxu0 0
      %1428 = vmatmul.mubr.bf16.gmra.mrb[0].mxu0 %v992
      %v1429 = vpop.f32.mrb[0].mxu0
      %v1430 = vadd.f32 0.0, %v1429
      %v1431 = vpop.f32.mrb[0].mxu0
      %v1432 = vpop.f32.mrb[0].mxu0
      %v1433 = vadd.f32 0.0, %v1432
      %v1434 = vpop.f32.mrb[0].mxu0
      %1435 = vmatprep.mubr.bf16.mxu0 0
      %1436 = vmatmul.mubr.bf16.gmra.mrb[0].mxu0 %v995
      %v1437 = vpop.f32.mrb[0].mxu0
      %v1438 = vadd.f32 0.0, %v1437
      %v1439 = vpop.f32.mrb[0].mxu0
      %v1440 = vpop.f32.mrb[0].mxu0
      %v1441 = vadd.f32 0.0, %v1440
      %v1442 = vpop.f32.mrb[0].mxu0
      %1443 = vmatprep.mubr.bf16.mxu0 0
      %1444 = vmatmul.mubr.bf16.gmra.mrb[0].mxu0 %v998
      %v1445 = vpop.f32.mrb[0].mxu0
      %v1446 = vadd.f32 0.0, %v1445
      %v1447 = vpop.f32.mrb[0].mxu0
      %v1448 = vpop.f32.mrb[0].mxu0
      %v1449 = vadd.f32 0.0, %v1448
      %v1450 = vpop.f32.mrb[0].mxu0
      %1451 = vmatprep.mubr.bf16.mxu0 0
      %1452 = vmatmul.mubr.bf16.gmra.mrb[0].mxu0 %v1243
      %v1453 = vpop.f32.mrb[0].mxu0
      %v1454 = vadd.f32 0.0, %v1453
      %v1455 = vpop.f32.mrb[0].mxu0
      %v1456 = vpop.f32.mrb[0].mxu0
      %v1457 = vadd.f32 0.0, %v1456
      %v1458 = vpop.f32.mrb[0].mxu0
      %1459 = vmatprep.mubr.bf16.mxu0 0
      %1460 = vmatmul.mubr.bf16.gmra.mrb[0].mxu0 %v1246
      %v1461 = vpop.f32.mrb[0].mxu0
      %v1462 = vadd.f32 0.0, %v1461
      %v1463 = vpop.f32.mrb[0].mxu0
      %v1464 = vpop.f32.mrb[0].mxu0
      %v1465 = vadd.f32 0.0, %v1464
      %v1466 = vpop.f32.mrb[0].mxu0
      %1467 = vmatprep.mubr.bf16.mxu0 0
      %1468 = vmatmul.mubr.bf16.gmra.mrb[0].mxu0 %v1249
      %v1469 = vpop.f32.mrb[0].mxu0
      %v1470 = vadd.f32 0.0, %v1469
      %v1471 = vpop.f32.mrb[0].mxu0
      %v1472 = vpop.f32.mrb[0].mxu0
      %v1473 = vadd.f32 0.0, %v1472
      %v1474 = vpop.f32.mrb[0].mxu0
      %1475 = vdwg.mxu0
      %v1476 = vadd.f32 %v1035, %v1286
      %v1477 = vadd.f32 %v1038, %v1289
      %v1478 = vadd.f32 %v1043, %v1294
      %v1479 = vadd.f32 %v1046, %v1297
      %v1480 = vadd.f32 %v1051, %v1302
      %v1481 = vadd.f32 %v1054, %v1305
      %v1482 = vadd.f32 %v1059, %v1310
      %v1483 = vadd.f32 %v1062, %v1313
      %v1484 = vadd.f32 %v1067, %v1318
      %v1485 = vadd.f32 %v1070, %v1321
      %v1486 = vadd.f32 %v1075, %v1326
      %v1487 = vadd.f32 %v1078, %v1329
      %v1488 = vadd.f32 %v1083, %v1334
      %v1489 = vadd.f32 %v1086, %v1337
      %v1490 = vadd.f32 %v1091, %v1342
      %v1491 = vadd.f32 %v1094, %v1345
      %v1492 = vadd.f32 %v1099, %v1350
      %v1493 = vadd.f32 %v1102, %v1353
      %v1494 = vadd.f32 %v1107, %v1358
      %v1495 = vadd.f32 %v1110, %v1361
      %v1496 = vadd.f32 %v1115, %v1366
      %v1497 = vadd.f32 %v1118, %v1369
      %v1498 = vadd.f32 %v1123, %v1374
      %v1499 = vadd.f32 %v1126, %v1377
      %v1500 = vadd.f32 %v1131, %v1382
      %v1501 = vadd.f32 %v1134, %v1385
      %v1502 = vadd.f32 %v1139, %v1390
      %v1503 = vadd.f32 %v1142, %v1393
      %v1504 = vadd.f32 %v1147, %v1398
      %v1505 = vadd.f32 %v1150, %v1401
      %v1506 = vadd.f32 %v1155, %v1406
      %v1507 = vadd.f32 %v1158, %v1409
      %v1508 = vadd.f32 %v1163, %v1414
      %v1509 = vadd.f32 %v1166, %v1417
      %v1510 = vadd.f32 %v1171, %v1422
      %v1511 = vadd.f32 %v1174, %v1425
      %v1512 = vadd.f32 %v1179, %v1430
      %v1513 = vadd.f32 %v1182, %v1433
      %v1514 = vadd.f32 %v1187, %v1438
      %v1515 = vadd.f32 %v1190, %v1441
      %v1516 = vadd.f32 %v1195, %v1446
      %v1517 = vadd.f32 %v1198, %v1449
      %v1518 = vadd.f32 %v1203, %v1454
      %v1519 = vadd.f32 %v1206, %v1457
      %v1520 = vadd.f32 %v1211, %v1462
      %v1521 = vadd.f32 %v1214, %v1465
      %v1522 = vadd.f32 %v1219, %v1470
      %v1523 = vadd.f32 %v1222, %v1473
      %v1524 = vpack.c.bf16 %v494, %v494
      %s1525 = scalar_lea.vmem %s2, 16
      %v1526 = vld [vmem:[%s1525] sm:$0xf]
      %v1527 = vld [vmem:[%s1525 + $0x4] sm:$0xf]
      %v1528 = vld [vmem:[%s1525 + $0x8] sm:$0xf]
      %v1529 = vld [vmem:[%s1525 + $0xc] sm:$0xf]
      %vm1530 = vsmask.f32 7424
      %v1531 = vshrl.u32 %v495, 16
      %v1533 = vshll.u32 %v495, 16
      %v1535 = vrot.slane %v1533, 1
      %v1536 = vor.u32 %v1531, %v1535
      %v1537 = vshll.u32 %v496, 16
      %v1539 = vrot.slane %v1537, 1
      %v1540 = vsel %vm1530, %v1536, %v1539
      %v1541 = vshrl.u32 %v496, 16
      %v1543 = vor.u32 %v1541, %v1539
      %v1544 = vshll.u32 %v497, 16
      %v1546 = vrot.slane %v1544, 1
      %v1547 = vsel %vm1530, %v1543, %v1546
      %v1548 = vshrl.u32 %v497, 16
      %v1550 = vor.u32 %v1548, %v1546
      %v1551 = vshll.u32 %v498, 16
      %v1553 = vrot.slane %v1551, 1
      %v1554 = vsel %vm1530, %v1550, %v1553
      %v1555 = vshrl.u32 %v498, 16
      %v1557 = vor.u32 %v1555, %v1553
      %v1558 = vshll.u32 %v499, 16
      %v1560 = vrot.slane %v1558, 1
      %v1561 = vsel %vm1530, %v1557, %v1560
      %v1562 = vshrl.u32 %v499, 16
      %v1564 = vor.u32 %v1562, %v1560
      %v1565 = vshll.u32 %v500, 16
      %v1567 = vrot.slane %v1565, 1
      %v1568 = vsel %vm1530, %v1564, %v1567
      %v1569 = vshrl.u32 %v500, 16
      %v1571 = vor.u32 %v1569, %v1567
      %v1572 = vshll.u32 %v501, 16
      %v1574 = vrot.slane %v1572, 1
      %v1575 = vsel %vm1530, %v1571, %v1574
      %v1576 = vshrl.u32 %v501, 16
      %v1578 = vor.u32 %v1576, %v1574
      %v1579 = vshll.u32 %v502, 16
      %v1581 = vrot.slane %v1579, 1
      %v1582 = vsel %vm1530, %v1578, %v1581
      %v1583 = vshrl.u32 %v502, 16
      %v1585 = vor.u32 %v1583, %v1581
      %v1586 = vshll.u32 %v503, 16
      %v1588 = vrot.slane %v1586, 1
      %v1589 = vsel %vm1530, %v1585, %v1588
      %v1590 = vshrl.u32 %v503, 16
      %v1592 = vor.u32 %v1590, %v1588
      %v1593 = vshll.u32 %v504, 16
      %v1595 = vrot.slane %v1593, 1
      %v1596 = vsel %vm1530, %v1592, %v1595
      %v1597 = vshrl.u32 %v504, 16
      %v1599 = vor.u32 %v1597, %v1595
      %v1600 = vshll.u32 %v505, 16
      %v1602 = vrot.slane %v1600, 1
      %v1603 = vsel %vm1530, %v1599, %v1602
      %v1604 = vshrl.u32 %v505, 16
      %v1606 = vor.u32 %v1604, %v1602
      %v1607 = vshll.u32 %v506, 16
      %v1609 = vrot.slane %v1607, 1
      %v1610 = vsel %vm1530, %v1606, %v1609
      %v1611 = vshrl.u32 %v506, 16
      %v1613 = vor.u32 %v1611, %v1609
      %v1614 = vshll.u32 %v507, 16
      %v1616 = vrot.slane %v1614, 1
      %v1617 = vsel %vm1530, %v1613, %v1616
      %v1618 = vshrl.u32 %v507, 16
      %v1620 = vor.u32 %v1618, %v1616
      %v1621 = vshll.u32 %v508, 16
      %v1623 = vrot.slane %v1621, 1
      %v1624 = vsel %vm1530, %v1620, %v1623
      %v1625 = vshrl.u32 %v508, 16
      %v1627 = vor.u32 %v1625, %v1623
      %v1628 = vshll.u32 %v509, 16
      %v1630 = vrot.slane %v1628, 1
      %v1631 = vsel %vm1530, %v1627, %v1630
      %v1632 = vshrl.u32 %v509, 16
      %v1634 = vor.u32 %v1632, %v1630
      %v1635 = vshll.u32 %v510, 16
      %v1637 = vrot.slane %v1635, 1
      %v1638 = vsel %vm1530, %v1634, %v1637
      %v1639 = vshrl.u32 %v510, 16
      %v1641 = vor.u32 %v1639, %v1637
      %v1642 = vshll.u32 %v511, 16
      %v1644 = vrot.slane %v1642, 1
      %v1645 = vsel %vm1530, %v1641, %v1644
      %v1646 = vshrl.u32 %v511, 16
      %v1648 = vor.u32 %v1646, %v1644
      %v1649 = vshll.u32 %v512, 16
      %v1651 = vrot.slane %v1649, 1
      %v1652 = vsel %vm1530, %v1648, %v1651
      %v1653 = vshrl.u32 %v512, 16
      %v1655 = vor.u32 %v1653, %v1651
      %v1656 = vshll.u32 %v513, 16
      %v1658 = vrot.slane %v1656, 1
      %v1659 = vsel %vm1530, %v1655, %v1658
      %v1660 = vshrl.u32 %v513, 16
      %v1662 = vor.u32 %v1660, %v1658
      %v1663 = vshll.u32 %v514, 16
      %v1665 = vrot.slane %v1663, 1
      %v1666 = vsel %vm1530, %v1662, %v1665
      %v1667 = vshrl.u32 %v514, 16
      %v1669 = vor.u32 %v1667, %v1665
      %v1670 = vshll.u32 %v515, 16
      %v1672 = vrot.slane %v1670, 1
      %v1673 = vsel %vm1530, %v1669, %v1672
      %v1674 = vshrl.u32 %v515, 16
      %v1676 = vor.u32 %v1674, %v1672
      %v1677 = vshll.u32 %v516, 16
      %v1679 = vrot.slane %v1677, 1
      %v1680 = vsel %vm1530, %v1676, %v1679
      %v1681 = vshrl.u32 %v516, 16
      %v1683 = vor.u32 %v1681, %v1679
      %v1684 = vshll.u32 %v517, 16
      %v1686 = vrot.slane %v1684, 1
      %v1687 = vsel %vm1530, %v1683, %v1686
      %v1688 = vshrl.u32 %v517, 16
      %v1690 = vor.u32 %v1688, %v1686
      %v1691 = vshll.u32 %v518, 16
      %v1693 = vrot.slane %v1691, 1
      %v1694 = vsel %vm1530, %v1690, %v1693
      %v1695 = vshrl.u32 %v518, 16
      %v1697 = vor.u32 %v1695, %v1693
      %v1698 = vshll.u32 %v519, 16
      %v1700 = vrot.slane %v1698, 1
      %v1701 = vsel %vm1530, %v1697, %v1700
      %v1706 = vunpack.c.l.b16 %v1526
      %v1707 = vunpack.c.l.b16 %v1527
      %v1708 = vunpack.c.l.b16 %v1528
      %v1709 = vunpack.c.l.b16 %v1529
      %v1710 = vpack.c.b16 %v1707, %v1706
      %v1711 = vpack.c.b16 %v1709, %v1708
      %v1715 = vsel %vm618, %v1540, 0
      %v1718 = vsel %vm618, %v1547, 0
      %v1721 = vsel %vm618, %v1554, 0
      %v1724 = vsel %vm618, %v1561, 0
      %v1727 = vsel %vm618, %v1568, 0
      %v1730 = vsel %vm618, %v1575, 0
      %v1733 = vsel %vm618, %v1582, 0
      %v1736 = vsel %vm618, %v1589, 0
      %v1739 = vsel %vm618, %v1596, 0
      %v1742 = vsel %vm618, %v1603, 0
      %v1745 = vsel %vm618, %v1610, 0
      %v1748 = vsel %vm618, %v1617, 0
      %v1751 = vsel %vm618, %v1624, 0
      %v1754 = vsel %vm618, %v1631, 0
      %v1757 = vsel %vm618, %v1638, 0
      %v1760 = vsel %vm618, %v1645, 0
      %v1763 = vsel %vm618, %v1652, 0
      %v1766 = vsel %vm618, %v1659, 0
      %v1769 = vsel %vm618, %v1666, 0
      %v1772 = vsel %vm618, %v1673, 0
      %v1775 = vsel %vm618, %v1680, 0
      %v1778 = vsel %vm618, %v1687, 0
      %v1781 = vsel %vm618, %v1694, 0
      %v1784 = vsel %vm618, %v1701, 0
      %1786 = vmatprep.subr.bf16.mxu0 0
      %1787 = vmatpush1.bf16.msra.mxu0 %v1710
      %1788 = vmatprep.subr.bf16.mxu0 0
      %1789 = vmatpush1.bf16.msra.mxu0 %v1711
      %1790 = vmatprep.subr.bf16.mxu0 0
      %1791 = vmatpush1.bf16.msra.mxu0 0
      %1792 = vmatprep.subr.bf16.mxu0 0
      %1793 = vmatpush1.bf16.msra.mxu0 0
      %1794 = vmatprep.subr.bf16.mxu0 0
      %1795 = vmatpush1.bf16.msra.mxu0 0
      %1796 = vmatprep.subr.bf16.mxu0 0
      %1797 = vmatpush1.bf16.msra.mxu0 0
      %1798 = vmatprep.subr.bf16.mxu0 0
      %1799 = vmatpush1.bf16.msra.mxu0 0
      %1800 = vmatprep.subr.bf16.mxu0 0
      %1801 = vmatpush1.bf16.msra.mxu0 0
      %1802 = vmatprep.subr.bf16.mxu0 0
      %1803 = vmatpush1.bf16.msra.mxu0 0
      %1804 = vmatprep.subr.bf16.mxu0 0
      %1805 = vmatpush1.bf16.msra.mxu0 0
      %1806 = vmatprep.subr.bf16.mxu0 0
      %1807 = vmatpush1.bf16.msra.mxu0 0
      %1808 = vmatprep.subr.bf16.mxu0 0
      %1809 = vmatpush1.bf16.msra.mxu0 0
      %1810 = vmatprep.subr.bf16.mxu0 0
      %1811 = vmatpush1.bf16.msra.mxu0 0
      %1812 = vmatprep.subr.bf16.mxu0 0
      %1813 = vmatpush1.bf16.msra.mxu0 0
      %1814 = vmatprep.subr.bf16.mxu0 0
      %1815 = vmatpush1.bf16.msra.mxu0 0
      %1816 = vmatprep.subr.bf16.mxu0 0
      %1817 = vmatpush1.bf16.msra.mxu0 0
      %1818 = vmatprep.mubr.bf16.mxu0 0
      %1819 = vmatmul.mubr.bf16.gmra.mrb[0].mxu0 %v1715
      %v1820 = vpop.f32.mrb[0].mxu0
      %v1821 = vadd.f32 0.0, %v1820
      %v1822 = vpop.f32.mrb[0].mxu0
      %v1823 = vpop.f32.mrb[0].mxu0
      %v1824 = vadd.f32 0.0, %v1823
      %v1825 = vpop.f32.mrb[0].mxu0
      %1826 = vmatprep.mubr.bf16.mxu0 0
      %1827 = vmatmul.mubr.bf16.gmra.mrb[0].mxu0 %v1718
      %v1828 = vpop.f32.mrb[0].mxu0
      %v1829 = vadd.f32 0.0, %v1828
      %v1830 = vpop.f32.mrb[0].mxu0
      %v1831 = vpop.f32.mrb[0].mxu0
      %v1832 = vadd.f32 0.0, %v1831
      %v1833 = vpop.f32.mrb[0].mxu0
      %1834 = vmatprep.mubr.bf16.mxu0 0
      %1835 = vmatmul.mubr.bf16.gmra.mrb[0].mxu0 %v1721
      %v1836 = vpop.f32.mrb[0].mxu0
      %v1837 = vadd.f32 0.0, %v1836
      %v1838 = vpop.f32.mrb[0].mxu0
      %v1839 = vpop.f32.mrb[0].mxu0
      %v1840 = vadd.f32 0.0, %v1839
      %v1841 = vpop.f32.mrb[0].mxu0
      %1842 = vmatprep.mubr.bf16.mxu0 0
      %1843 = vmatmul.mubr.bf16.gmra.mrb[0].mxu0 %v1724
      %v1844 = vpop.f32.mrb[0].mxu0
      %v1845 = vadd.f32 0.0, %v1844
      %v1846 = vpop.f32.mrb[0].mxu0
      %v1847 = vpop.f32.mrb[0].mxu0
      %v1848 = vadd.f32 0.0, %v1847
      %v1849 = vpop.f32.mrb[0].mxu0
      %1850 = vmatprep.mubr.bf16.mxu0 0
      %1851 = vmatmul.mubr.bf16.gmra.mrb[0].mxu0 %v1727
      %v1852 = vpop.f32.mrb[0].mxu0
      %v1853 = vadd.f32 0.0, %v1852
      %v1854 = vpop.f32.mrb[0].mxu0
      %v1855 = vpop.f32.mrb[0].mxu0
      %v1856 = vadd.f32 0.0, %v1855
      %v1857 = vpop.f32.mrb[0].mxu0
      %1858 = vmatprep.mubr.bf16.mxu0 0
      %1859 = vmatmul.mubr.bf16.gmra.mrb[0].mxu0 %v1730
      %v1860 = vpop.f32.mrb[0].mxu0
      %v1861 = vadd.f32 0.0, %v1860
      %v1862 = vpop.f32.mrb[0].mxu0
      %v1863 = vpop.f32.mrb[0].mxu0
      %v1864 = vadd.f32 0.0, %v1863
      %v1865 = vpop.f32.mrb[0].mxu0
      %1866 = vmatprep.mubr.bf16.mxu0 0
      %1867 = vmatmul.mubr.bf16.gmra.mrb[0].mxu0 %v1733
      %v1868 = vpop.f32.mrb[0].mxu0
      %v1869 = vadd.f32 0.0, %v1868
      %v1870 = vpop.f32.mrb[0].mxu0
      %v1871 = vpop.f32.mrb[0].mxu0
      %v1872 = vadd.f32 0.0, %v1871
      %v1873 = vpop.f32.mrb[0].mxu0
      %1874 = vmatprep.mubr.bf16.mxu0 0
      %1875 = vmatmul.mubr.bf16.gmra.mrb[0].mxu0 %v1736
      %v1876 = vpop.f32.mrb[0].mxu0
      %v1877 = vadd.f32 0.0, %v1876
      %v1878 = vpop.f32.mrb[0].mxu0
      %v1879 = vpop.f32.mrb[0].mxu0
      %v1880 = vadd.f32 0.0, %v1879
      %v1881 = vpop.f32.mrb[0].mxu0
      %1882 = vmatprep.mubr.bf16.mxu0 0
      %1883 = vmatmul.mubr.bf16.gmra.mrb[0].mxu0 %v1739
      %v1884 = vpop.f32.mrb[0].mxu0
      %v1885 = vadd.f32 0.0, %v1884
      %v1886 = vpop.f32.mrb[0].mxu0
      %v1887 = vpop.f32.mrb[0].mxu0
      %v1888 = vadd.f32 0.0, %v1887
      %v1889 = vpop.f32.mrb[0].mxu0
      %1890 = vmatprep.mubr.bf16.mxu0 0
      %1891 = vmatmul.mubr.bf16.gmra.mrb[0].mxu0 %v1742
      %v1892 = vpop.f32.mrb[0].mxu0
      %v1893 = vadd.f32 0.0, %v1892
      %v1894 = vpop.f32.mrb[0].mxu0
      %v1895 = vpop.f32.mrb[0].mxu0
      %v1896 = vadd.f32 0.0, %v1895
      %v1897 = vpop.f32.mrb[0].mxu0
      %1898 = vmatprep.mubr.bf16.mxu0 0
      %1899 = vmatmul.mubr.bf16.gmra.mrb[0].mxu0 %v1745
      %v1900 = vpop.f32.mrb[0].mxu0
      %v1901 = vadd.f32 0.0, %v1900
      %v1902 = vpop.f32.mrb[0].mxu0
      %v1903 = vpop.f32.mrb[0].mxu0
      %v1904 = vadd.f32 0.0, %v1903
      %v1905 = vpop.f32.mrb[0].mxu0
      %1906 = vmatprep.mubr.bf16.mxu0 0
      %1907 = vmatmul.mubr.bf16.gmra.mrb[0].mxu0 %v1748
      %v1908 = vpop.f32.mrb[0].mxu0
      %v1909 = vadd.f32 0.0, %v1908
      %v1910 = vpop.f32.mrb[0].mxu0
      %v1911 = vpop.f32.mrb[0].mxu0
      %v1912 = vadd.f32 0.0, %v1911
      %v1913 = vpop.f32.mrb[0].mxu0
      %1914 = vmatprep.mubr.bf16.mxu0 0
      %1915 = vmatmul.mubr.bf16.gmra.mrb[0].mxu0 %v1751
      %v1916 = vpop.f32.mrb[0].mxu0
      %v1917 = vadd.f32 0.0, %v1916
      %v1918 = vpop.f32.mrb[0].mxu0
      %v1919 = vpop.f32.mrb[0].mxu0
      %v1920 = vadd.f32 0.0, %v1919
      %v1921 = vpop.f32.mrb[0].mxu0
      %1922 = vmatprep.mubr.bf16.mxu0 0
      %1923 = vmatmul.mubr.bf16.gmra.mrb[0].mxu0 %v1754
      %v1924 = vpop.f32.mrb[0].mxu0
      %v1925 = vadd.f32 0.0, %v1924
      %v1926 = vpop.f32.mrb[0].mxu0
      %v1927 = vpop.f32.mrb[0].mxu0
      %v1928 = vadd.f32 0.0, %v1927
      %v1929 = vpop.f32.mrb[0].mxu0
      %1930 = vmatprep.mubr.bf16.mxu0 0
      %1931 = vmatmul.mubr.bf16.gmra.mrb[0].mxu0 %v1757
      %v1932 = vpop.f32.mrb[0].mxu0
      %v1933 = vadd.f32 0.0, %v1932
      %v1934 = vpop.f32.mrb[0].mxu0
      %v1935 = vpop.f32.mrb[0].mxu0
      %v1936 = vadd.f32 0.0, %v1935
      %v1937 = vpop.f32.mrb[0].mxu0
      %1938 = vmatprep.mubr.bf16.mxu0 0
      %1939 = vmatmul.mubr.bf16.gmra.mrb[0].mxu0 %v1760
      %v1940 = vpop.f32.mrb[0].mxu0
      %v1941 = vadd.f32 0.0, %v1940
      %v1942 = vpop.f32.mrb[0].mxu0
      %v1943 = vpop.f32.mrb[0].mxu0
      %v1944 = vadd.f32 0.0, %v1943
      %v1945 = vpop.f32.mrb[0].mxu0
      %1946 = vmatprep.mubr.bf16.mxu0 0
      %1947 = vmatmul.mubr.bf16.gmra.mrb[0].mxu0 %v1763
      %v1948 = vpop.f32.mrb[0].mxu0
      %v1949 = vadd.f32 0.0, %v1948
      %v1950 = vpop.f32.mrb[0].mxu0
      %v1951 = vpop.f32.mrb[0].mxu0
      %v1952 = vadd.f32 0.0, %v1951
      %v1953 = vpop.f32.mrb[0].mxu0
      %1954 = vmatprep.mubr.bf16.mxu0 0
      %1955 = vmatmul.mubr.bf16.gmra.mrb[0].mxu0 %v1766
      %v1956 = vpop.f32.mrb[0].mxu0
      %v1957 = vadd.f32 0.0, %v1956
      %v1958 = vpop.f32.mrb[0].mxu0
      %v1959 = vpop.f32.mrb[0].mxu0
      %v1960 = vadd.f32 0.0, %v1959
      %v1961 = vpop.f32.mrb[0].mxu0
      %1962 = vmatprep.mubr.bf16.mxu0 0
      %1963 = vmatmul.mubr.bf16.gmra.mrb[0].mxu0 %v1769
      %v1964 = vpop.f32.mrb[0].mxu0
      %v1965 = vadd.f32 0.0, %v1964
      %v1966 = vpop.f32.mrb[0].mxu0
      %v1967 = vpop.f32.mrb[0].mxu0
      %v1968 = vadd.f32 0.0, %v1967
      %v1969 = vpop.f32.mrb[0].mxu0
      %1970 = vmatprep.mubr.bf16.mxu0 0
      %1971 = vmatmul.mubr.bf16.gmra.mrb[0].mxu0 %v1772
      %v1972 = vpop.f32.mrb[0].mxu0
      %v1973 = vadd.f32 0.0, %v1972
      %v1974 = vpop.f32.mrb[0].mxu0
      %v1975 = vpop.f32.mrb[0].mxu0
      %v1976 = vadd.f32 0.0, %v1975
      %v1977 = vpop.f32.mrb[0].mxu0
      %1978 = vmatprep.mubr.bf16.mxu0 0
      %1979 = vmatmul.mubr.bf16.gmra.mrb[0].mxu0 %v1775
      %v1980 = vpop.f32.mrb[0].mxu0
      %v1981 = vadd.f32 0.0, %v1980
      %v1982 = vpop.f32.mrb[0].mxu0
      %v1983 = vpop.f32.mrb[0].mxu0
      %v1984 = vadd.f32 0.0, %v1983
      %v1985 = vpop.f32.mrb[0].mxu0
      %1986 = vmatprep.mubr.bf16.mxu0 0
      %1987 = vmatmul.mubr.bf16.gmra.mrb[0].mxu0 %v1778
      %v1988 = vpop.f32.mrb[0].mxu0
      %v1989 = vadd.f32 0.0, %v1988
      %v1990 = vpop.f32.mrb[0].mxu0
      %v1991 = vpop.f32.mrb[0].mxu0
      %v1992 = vadd.f32 0.0, %v1991
      %v1993 = vpop.f32.mrb[0].mxu0
      %1994 = vmatprep.mubr.bf16.mxu0 0
      %1995 = vmatmul.mubr.bf16.gmra.mrb[0].mxu0 %v1781
      %v1996 = vpop.f32.mrb[0].mxu0
      %v1997 = vadd.f32 0.0, %v1996
      %v1998 = vpop.f32.mrb[0].mxu0
      %v1999 = vpop.f32.mrb[0].mxu0
      %v2000 = vadd.f32 0.0, %v1999
      %v2001 = vpop.f32.mrb[0].mxu0
      %2002 = vmatprep.mubr.bf16.mxu0 0
      %2003 = vmatmul.mubr.bf16.gmra.mrb[0].mxu0 %v1784
      %v2004 = vpop.f32.mrb[0].mxu0
      %v2005 = vadd.f32 0.0, %v2004
      %v2006 = vpop.f32.mrb[0].mxu0
      %v2007 = vpop.f32.mrb[0].mxu0
      %v2008 = vadd.f32 0.0, %v2007
      %v2009 = vpop.f32.mrb[0].mxu0
      %2010 = vdwg.mxu0
      %v2011 = vadd.f32 %v1476, %v1821
      %v2012 = vadd.f32 %v1477, %v1824
      %v2013 = vadd.f32 %v1478, %v1829
      %v2014 = vadd.f32 %v1479, %v1832
      %v2015 = vadd.f32 %v1480, %v1837
      %v2016 = vadd.f32 %v1481, %v1840
      %v2017 = vadd.f32 %v1482, %v1845
      %v2018 = vadd.f32 %v1483, %v1848
      %v2019 = vadd.f32 %v1484, %v1853
      %v2020 = vadd.f32 %v1485, %v1856
      %v2021 = vadd.f32 %v1486, %v1861
      %v2022 = vadd.f32 %v1487, %v1864
      %v2023 = vadd.f32 %v1488, %v1869
      %v2024 = vadd.f32 %v1489, %v1872
      %v2025 = vadd.f32 %v1490, %v1877
      %v2026 = vadd.f32 %v1491, %v1880
      %v2027 = vadd.f32 %v1492, %v1885
      %v2028 = vadd.f32 %v1493, %v1888
      %v2029 = vadd.f32 %v1494, %v1893
      %v2030 = vadd.f32 %v1495, %v1896
      %v2031 = vadd.f32 %v1496, %v1901
      %v2032 = vadd.f32 %v1497, %v1904
      %v2033 = vadd.f32 %v1498, %v1909
      %v2034 = vadd.f32 %v1499, %v1912
      %v2035 = vadd.f32 %v1500, %v1917
      %v2036 = vadd.f32 %v1501, %v1920
      %v2037 = vadd.f32 %v1502, %v1925
      %v2038 = vadd.f32 %v1503, %v1928
      %v2039 = vadd.f32 %v1504, %v1933
      %v2040 = vadd.f32 %v1505, %v1936
      %v2041 = vadd.f32 %v1506, %v1941
      %v2042 = vadd.f32 %v1507, %v1944
      %v2043 = vadd.f32 %v1508, %v1949
      %v2044 = vadd.f32 %v1509, %v1952
      %v2045 = vadd.f32 %v1510, %v1957
      %v2046 = vadd.f32 %v1511, %v1960
      %v2047 = vadd.f32 %v1512, %v1965
      %v2048 = vadd.f32 %v1513, %v1968
      %v2049 = vadd.f32 %v1514, %v1973
      %v2050 = vadd.f32 %v1515, %v1976
      %v2051 = vadd.f32 %v1516, %v1981
      %v2052 = vadd.f32 %v1517, %v1984
      %v2053 = vadd.f32 %v1518, %v1989
      %v2054 = vadd.f32 %v1519, %v1992
      %v2055 = vadd.f32 %v1520, %v1997
      %v2056 = vadd.f32 %v1521, %v2000
      %v2057 = vadd.f32 %v1522, %v2005
      %v2058 = vadd.f32 %v1523, %v2008
      %s2059 = scalar_lea.vmem %s2, 64
      %v2060 = vld [vmem:[%s2059] sm:$0xf]
      %v2061 = vld [vmem:[%s2059 + $0x4] sm:$0xf]
      %v2062 = vld [vmem:[%s2059 + $0x8] sm:$0xf]
      %v2063 = vld [vmem:[%s2059 + $0xc] sm:$0xf]
      %vm2064 = vsmask.f32 3328
      %v2065 = vrot.slane %v1541, 4
      %v2066 = vrot.slane %v1537, 5
      %v2067 = vor.u32 %v2065, %v2066
      %v2068 = vrot.slane %v1548, 4
      %v2069 = vrot.slane %v1544, 5
      %v2070 = vor.u32 %v2068, %v2069
      %v2071 = vsel %vm2064, %v2067, %v2070
      %v2072 = vrot.slane %v1555, 4
      %v2073 = vrot.slane %v1551, 5
      %v2074 = vor.u32 %v2072, %v2073
      %v2075 = vsel %vm2064, %v2070, %v2074
      %v2076 = vrot.slane %v1562, 4
      %v2077 = vrot.slane %v1558, 5
      %v2078 = vor.u32 %v2076, %v2077
      %v2079 = vsel %vm2064, %v2074, %v2078
      %v2080 = vrot.slane %v1569, 4
      %v2081 = vrot.slane %v1565, 5
      %v2082 = vor.u32 %v2080, %v2081
      %v2083 = vsel %vm2064, %v2078, %v2082
      %v2084 = vrot.slane %v1576, 4
      %v2085 = vrot.slane %v1572, 5
      %v2086 = vor.u32 %v2084, %v2085
      %v2087 = vsel %vm2064, %v2082, %v2086
      %v2088 = vrot.slane %v1583, 4
      %v2089 = vrot.slane %v1579, 5
      %v2090 = vor.u32 %v2088, %v2089
      %v2091 = vsel %vm2064, %v2086, %v2090
      %v2092 = vrot.slane %v1590, 4
      %v2093 = vrot.slane %v1586, 5
      %v2094 = vor.u32 %v2092, %v2093
      %v2095 = vsel %vm2064, %v2090, %v2094
      %v2096 = vrot.slane %v1597, 4
      %v2097 = vrot.slane %v1593, 5
      %v2098 = vor.u32 %v2096, %v2097
      %v2099 = vsel %vm2064, %v2094, %v2098
      %v2100 = vrot.slane %v1604, 4
      %v2101 = vrot.slane %v1600, 5
      %v2102 = vor.u32 %v2100, %v2101
      %v2103 = vsel %vm2064, %v2098, %v2102
      %v2104 = vrot.slane %v1611, 4
      %v2105 = vrot.slane %v1607, 5
      %v2106 = vor.u32 %v2104, %v2105
      %v2107 = vsel %vm2064, %v2102, %v2106
      %v2108 = vrot.slane %v1618, 4
      %v2109 = vrot.slane %v1614, 5
      %v2110 = vor.u32 %v2108, %v2109
      %v2111 = vsel %vm2064, %v2106, %v2110
      %v2112 = vrot.slane %v1625, 4
      %v2113 = vrot.slane %v1621, 5
      %v2114 = vor.u32 %v2112, %v2113
      %v2115 = vsel %vm2064, %v2110, %v2114
      %v2116 = vrot.slane %v1632, 4
      %v2117 = vrot.slane %v1628, 5
      %v2118 = vor.u32 %v2116, %v2117
      %v2119 = vsel %vm2064, %v2114, %v2118
      %v2120 = vrot.slane %v1639, 4
      %v2121 = vrot.slane %v1635, 5
      %v2122 = vor.u32 %v2120, %v2121
      %v2123 = vsel %vm2064, %v2118, %v2122
      %v2124 = vrot.slane %v1646, 4
      %v2125 = vrot.slane %v1642, 5
      %v2126 = vor.u32 %v2124, %v2125
      %v2127 = vsel %vm2064, %v2122, %v2126
      %v2128 = vrot.slane %v1653, 4
      %v2129 = vrot.slane %v1649, 5
      %v2130 = vor.u32 %v2128, %v2129
      %v2131 = vsel %vm2064, %v2126, %v2130
      %v2132 = vrot.slane %v1660, 4
      %v2133 = vrot.slane %v1656, 5
      %v2134 = vor.u32 %v2132, %v2133
      %v2135 = vsel %vm2064, %v2130, %v2134
      %v2136 = vrot.slane %v1667, 4
      %v2137 = vrot.slane %v1663, 5
      %v2138 = vor.u32 %v2136, %v2137
      %v2139 = vsel %vm2064, %v2134, %v2138
      %v2140 = vrot.slane %v1674, 4
      %v2141 = vrot.slane %v1670, 5
      %v2142 = vor.u32 %v2140, %v2141
      %v2143 = vsel %vm2064, %v2138, %v2142
      %v2144 = vrot.slane %v1681, 4
      %v2145 = vrot.slane %v1677, 5
      %v2146 = vor.u32 %v2144, %v2145
      %v2147 = vsel %vm2064, %v2142, %v2146
      %v2148 = vrot.slane %v1688, 4
      %v2149 = vrot.slane %v1684, 5
      %v2150 = vor.u32 %v2148, %v2149
      %v2151 = vsel %vm2064, %v2146, %v2150
      %v2152 = vrot.slane %v1695, 4
      %v2153 = vrot.slane %v1691, 5
      %v2154 = vor.u32 %v2152, %v2153
      %v2155 = vsel %vm2064, %v2150, %v2154
      %v2156 = vshrl.u32 %v519, 16
      %v2158 = vrot.slane %v2156, 4
      %v2159 = vrot.slane %v1698, 5
      %v2160 = vor.u32 %v2158, %v2159
      %v2161 = vsel %vm2064, %v2154, %v2160
      %v2162 = vshrl.u32 %v520, 16
      %v2164 = vrot.slane %v2162, 4
      %v2165 = vshll.u32 %v520, 16
      %v2167 = vrot.slane %v2165, 5
      %v2168 = vor.u32 %v2164, %v2167
      %v2169 = vsel %vm2064, %v2160, %v2168
      %v2174 = vunpack.c.l.b16 %v2060
      %v2175 = vunpack.c.l.b16 %v2061
      %v2176 = vunpack.c.l.b16 %v2062
      %v2177 = vunpack.c.l.b16 %v2063
      %v2178 = vpack.c.b16 %v2175, %v2174
      %v2179 = vpack.c.b16 %v2177, %v2176
      %v2183 = vsel %vm618, %v2071, 0
      %v2186 = vsel %vm618, %v2075, 0
      %v2189 = vsel %vm618, %v2079, 0
      %v2192 = vsel %vm618, %v2083, 0
      %v2195 = vsel %vm618, %v2087, 0
      %v2198 = vsel %vm618, %v2091, 0
      %v2201 = vsel %vm618, %v2095, 0
      %v2204 = vsel %vm618, %v2099, 0
      %v2207 = vsel %vm618, %v2103, 0
      %v2210 = vsel %vm618, %v2107, 0
      %v2213 = vsel %vm618, %v2111, 0
      %v2216 = vsel %vm618, %v2115, 0
      %v2219 = vsel %vm618, %v2119, 0
      %v2222 = vsel %vm618, %v2123, 0
      %v2225 = vsel %vm618, %v2127, 0
      %v2228 = vsel %vm618, %v2131, 0
      %v2231 = vsel %vm618, %v2135, 0
      %v2234 = vsel %vm618, %v2139, 0
      %v2237 = vsel %vm618, %v2143, 0
      %v2240 = vsel %vm618, %v2147, 0
      %v2243 = vsel %vm618, %v2151, 0
      %v2246 = vsel %vm618, %v2155, 0
      %v2249 = vsel %vm618, %v2161, 0
      %v2252 = vsel %vm618, %v2169, 0
      %2254 = vmatprep.subr.bf16.mxu0 0
      %2255 = vmatpush1.bf16.msra.mxu0 %v2178
      %2256 = vmatprep.subr.bf16.mxu0 0
      %2257 = vmatpush1.bf16.msra.mxu0 %v2179
      %2258 = vmatprep.subr.bf16.mxu0 0
      %2259 = vmatpush1.bf16.msra.mxu0 0
      %2260 = vmatprep.subr.bf16.mxu0 0
      %2261 = vmatpush1.bf16.msra.mxu0 0
      %2262 = vmatprep.subr.bf16.mxu0 0
      %2263 = vmatpush1.bf16.msra.mxu0 0
      %2264 = vmatprep.subr.bf16.mxu0 0
      %2265 = vmatpush1.bf16.msra.mxu0 0
      %2266 = vmatprep.subr.bf16.mxu0 0
      %2267 = vmatpush1.bf16.msra.mxu0 0
      %2268 = vmatprep.subr.bf16.mxu0 0
      %2269 = vmatpush1.bf16.msra.mxu0 0
      %2270 = vmatprep.subr.bf16.mxu0 0
      %2271 = vmatpush1.bf16.msra.mxu0 0
      %2272 = vmatprep.subr.bf16.mxu0 0
      %2273 = vmatpush1.bf16.msra.mxu0 0
      %2274 = vmatprep.subr.bf16.mxu0 0
      %2275 = vmatpush1.bf16.msra.mxu0 0
      %2276 = vmatprep.subr.bf16.mxu0 0
      %2277 = vmatpush1.bf16.msra.mxu0 0
      %2278 = vmatprep.subr.bf16.mxu0 0
      %2279 = vmatpush1.bf16.msra.mxu0 0
      %2280 = vmatprep.subr.bf16.mxu0 0
      %2281 = vmatpush1.bf16.msra.mxu0 0
      %2282 = vmatprep.subr.bf16.mxu0 0
      %2283 = vmatpush1.bf16.msra.mxu0 0
      %2284 = vmatprep.subr.bf16.mxu0 0
      %2285 = vmatpush1.bf16.msra.mxu0 0
      %2286 = vmatprep.mubr.bf16.mxu0 0
      %2287 = vmatmul.mubr.bf16.gmra.mrb[0].mxu0 %v2183
      %v2288 = vpop.f32.mrb[0].mxu0
      %v2289 = vadd.f32 0.0, %v2288
      %v2290 = vpop.f32.mrb[0].mxu0
      %v2291 = vpop.f32.mrb[0].mxu0
      %v2292 = vadd.f32 0.0, %v2291
      %v2293 = vpop.f32.mrb[0].mxu0
      %2294 = vmatprep.mubr.bf16.mxu0 0
      %2295 = vmatmul.mubr.bf16.gmra.mrb[0].mxu0 %v2186
      %v2296 = vpop.f32.mrb[0].mxu0
      %v2297 = vadd.f32 0.0, %v2296
      %v2298 = vpop.f32.mrb[0].mxu0
      %v2299 = vpop.f32.mrb[0].mxu0
      %v2300 = vadd.f32 0.0, %v2299
      %v2301 = vpop.f32.mrb[0].mxu0
      %2302 = vmatprep.mubr.bf16.mxu0 0
      %2303 = vmatmul.mubr.bf16.gmra.mrb[0].mxu0 %v2189
      %v2304 = vpop.f32.mrb[0].mxu0
      %v2305 = vadd.f32 0.0, %v2304
      %v2306 = vpop.f32.mrb[0].mxu0
      %v2307 = vpop.f32.mrb[0].mxu0
      %v2308 = vadd.f32 0.0, %v2307
      %v2309 = vpop.f32.mrb[0].mxu0
      %2310 = vmatprep.mubr.bf16.mxu0 0
      %2311 = vmatmul.mubr.bf16.gmra.mrb[0].mxu0 %v2192
      %v2312 = vpop.f32.mrb[0].mxu0
      %v2313 = vadd.f32 0.0, %v2312
      %v2314 = vpop.f32.mrb[0].mxu0
      %v2315 = vpop.f32.mrb[0].mxu0
      %v2316 = vadd.f32 0.0, %v2315
      %v2317 = vpop.f32.mrb[0].mxu0
      %2318 = vmatprep.mubr.bf16.mxu0 0
      %2319 = vmatmul.mubr.bf16.gmra.mrb[0].mxu0 %v2195
      %v2320 = vpop.f32.mrb[0].mxu0
      %v2321 = vadd.f32 0.0, %v2320
      %v2322 = vpop.f32.mrb[0].mxu0
      %v2323 = vpop.f32.mrb[0].mxu0
      %v2324 = vadd.f32 0.0, %v2323
      %v2325 = vpop.f32.mrb[0].mxu0
      %2326 = vmatprep.mubr.bf16.mxu0 0
      %2327 = vmatmul.mubr.bf16.gmra.mrb[0].mxu0 %v2198
      %v2328 = vpop.f32.mrb[0].mxu0
      %v2329 = vadd.f32 0.0, %v2328
      %v2330 = vpop.f32.mrb[0].mxu0
      %v2331 = vpop.f32.mrb[0].mxu0
      %v2332 = vadd.f32 0.0, %v2331
      %v2333 = vpop.f32.mrb[0].mxu0
      %2334 = vmatprep.mubr.bf16.mxu0 0
      %2335 = vmatmul.mubr.bf16.gmra.mrb[0].mxu0 %v2201
      %v2336 = vpop.f32.mrb[0].mxu0
      %v2337 = vadd.f32 0.0, %v2336
      %v2338 = vpop.f32.mrb[0].mxu0
      %v2339 = vpop.f32.mrb[0].mxu0
      %v2340 = vadd.f32 0.0, %v2339
      %v2341 = vpop.f32.mrb[0].mxu0
      %2342 = vmatprep.mubr.bf16.mxu0 0
      %2343 = vmatmul.mubr.bf16.gmra.mrb[0].mxu0 %v2204
      %v2344 = vpop.f32.mrb[0].mxu0
      %v2345 = vadd.f32 0.0, %v2344
      %v2346 = vpop.f32.mrb[0].mxu0
      %v2347 = vpop.f32.mrb[0].mxu0
      %v2348 = vadd.f32 0.0, %v2347
      %v2349 = vpop.f32.mrb[0].mxu0
      %2350 = vmatprep.mubr.bf16.mxu0 0
      %2351 = vmatmul.mubr.bf16.gmra.mrb[0].mxu0 %v2207
      %v2352 = vpop.f32.mrb[0].mxu0
      %v2353 = vadd.f32 0.0, %v2352
      %v2354 = vpop.f32.mrb[0].mxu0
      %v2355 = vpop.f32.mrb[0].mxu0
      %v2356 = vadd.f32 0.0, %v2355
      %v2357 = vpop.f32.mrb[0].mxu0
      %2358 = vmatprep.mubr.bf16.mxu0 0
      %2359 = vmatmul.mubr.bf16.gmra.mrb[0].mxu0 %v2210
      %v2360 = vpop.f32.mrb[0].mxu0
      %v2361 = vadd.f32 0.0, %v2360
      %v2362 = vpop.f32.mrb[0].mxu0
      %v2363 = vpop.f32.mrb[0].mxu0
      %v2364 = vadd.f32 0.0, %v2363
      %v2365 = vpop.f32.mrb[0].mxu0
      %2366 = vmatprep.mubr.bf16.mxu0 0
      %2367 = vmatmul.mubr.bf16.gmra.mrb[0].mxu0 %v2213
      %v2368 = vpop.f32.mrb[0].mxu0
      %v2369 = vadd.f32 0.0, %v2368
      %v2370 = vpop.f32.mrb[0].mxu0
      %v2371 = vpop.f32.mrb[0].mxu0
      %v2372 = vadd.f32 0.0, %v2371
      %v2373 = vpop.f32.mrb[0].mxu0
      %2374 = vmatprep.mubr.bf16.mxu0 0
      %2375 = vmatmul.mubr.bf16.gmra.mrb[0].mxu0 %v2216
      %v2376 = vpop.f32.mrb[0].mxu0
      %v2377 = vadd.f32 0.0, %v2376
      %v2378 = vpop.f32.mrb[0].mxu0
      %v2379 = vpop.f32.mrb[0].mxu0
      %v2380 = vadd.f32 0.0, %v2379
      %v2381 = vpop.f32.mrb[0].mxu0
      %2382 = vmatprep.mubr.bf16.mxu0 0
      %2383 = vmatmul.mubr.bf16.gmra.mrb[0].mxu0 %v2219
      %v2384 = vpop.f32.mrb[0].mxu0
      %v2385 = vadd.f32 0.0, %v2384
      %v2386 = vpop.f32.mrb[0].mxu0
      %v2387 = vpop.f32.mrb[0].mxu0
      %v2388 = vadd.f32 0.0, %v2387
      %v2389 = vpop.f32.mrb[0].mxu0
      %2390 = vmatprep.mubr.bf16.mxu0 0
      %2391 = vmatmul.mubr.bf16.gmra.mrb[0].mxu0 %v2222
      %v2392 = vpop.f32.mrb[0].mxu0
      %v2393 = vadd.f32 0.0, %v2392
      %v2394 = vpop.f32.mrb[0].mxu0
      %v2395 = vpop.f32.mrb[0].mxu0
      %v2396 = vadd.f32 0.0, %v2395
      %v2397 = vpop.f32.mrb[0].mxu0
      %2398 = vmatprep.mubr.bf16.mxu0 0
      %2399 = vmatmul.mubr.bf16.gmra.mrb[0].mxu0 %v2225
      %v2400 = vpop.f32.mrb[0].mxu0
      %v2401 = vadd.f32 0.0, %v2400
      %v2402 = vpop.f32.mrb[0].mxu0
      %v2403 = vpop.f32.mrb[0].mxu0
      %v2404 = vadd.f32 0.0, %v2403
      %v2405 = vpop.f32.mrb[0].mxu0
      %2406 = vmatprep.mubr.bf16.mxu0 0
      %2407 = vmatmul.mubr.bf16.gmra.mrb[0].mxu0 %v2228
      %v2408 = vpop.f32.mrb[0].mxu0
      %v2409 = vadd.f32 0.0, %v2408
      %v2410 = vpop.f32.mrb[0].mxu0
      %v2411 = vpop.f32.mrb[0].mxu0
      %v2412 = vadd.f32 0.0, %v2411
      %v2413 = vpop.f32.mrb[0].mxu0
      %2414 = vmatprep.mubr.bf16.mxu0 0
      %2415 = vmatmul.mubr.bf16.gmra.mrb[0].mxu0 %v2231
      %v2416 = vpop.f32.mrb[0].mxu0
      %v2417 = vadd.f32 0.0, %v2416
      %v2418 = vpop.f32.mrb[0].mxu0
      %v2419 = vpop.f32.mrb[0].mxu0
      %v2420 = vadd.f32 0.0, %v2419
      %v2421 = vpop.f32.mrb[0].mxu0
      %2422 = vmatprep.mubr.bf16.mxu0 0
      %2423 = vmatmul.mubr.bf16.gmra.mrb[0].mxu0 %v2234
      %v2424 = vpop.f32.mrb[0].mxu0
      %v2425 = vadd.f32 0.0, %v2424
      %v2426 = vpop.f32.mrb[0].mxu0
      %v2427 = vpop.f32.mrb[0].mxu0
      %v2428 = vadd.f32 0.0, %v2427
      %v2429 = vpop.f32.mrb[0].mxu0
      %2430 = vmatprep.mubr.bf16.mxu0 0
      %2431 = vmatmul.mubr.bf16.gmra.mrb[0].mxu0 %v2237
      %v2432 = vpop.f32.mrb[0].mxu0
      %v2433 = vadd.f32 0.0, %v2432
      %v2434 = vpop.f32.mrb[0].mxu0
      %v2435 = vpop.f32.mrb[0].mxu0
      %v2436 = vadd.f32 0.0, %v2435
      %v2437 = vpop.f32.mrb[0].mxu0
      %2438 = vmatprep.mubr.bf16.mxu0 0
      %2439 = vmatmul.mubr.bf16.gmra.mrb[0].mxu0 %v2240
      %v2440 = vpop.f32.mrb[0].mxu0
      %v2441 = vadd.f32 0.0, %v2440
      %v2442 = vpop.f32.mrb[0].mxu0
      %v2443 = vpop.f32.mrb[0].mxu0
      %v2444 = vadd.f32 0.0, %v2443
      %v2445 = vpop.f32.mrb[0].mxu0
      %2446 = vmatprep.mubr.bf16.mxu0 0
      %2447 = vmatmul.mubr.bf16.gmra.mrb[0].mxu0 %v2243
      %v2448 = vpop.f32.mrb[0].mxu0
      %v2449 = vadd.f32 0.0, %v2448
      %v2450 = vpop.f32.mrb[0].mxu0
      %v2451 = vpop.f32.mrb[0].mxu0
      %v2452 = vadd.f32 0.0, %v2451
      %v2453 = vpop.f32.mrb[0].mxu0
      %2454 = vmatprep.mubr.bf16.mxu0 0
      %2455 = vmatmul.mubr.bf16.gmra.mrb[0].mxu0 %v2246
      %v2456 = vpop.f32.mrb[0].mxu0
      %v2457 = vadd.f32 0.0, %v2456
      %v2458 = vpop.f32.mrb[0].mxu0
      %v2459 = vpop.f32.mrb[0].mxu0
      %v2460 = vadd.f32 0.0, %v2459
      %v2461 = vpop.f32.mrb[0].mxu0
      %2462 = vmatprep.mubr.bf16.mxu0 0
      %2463 = vmatmul.mubr.bf16.gmra.mrb[0].mxu0 %v2249
      %v2464 = vpop.f32.mrb[0].mxu0
      %v2465 = vadd.f32 0.0, %v2464
      %v2466 = vpop.f32.mrb[0].mxu0
      %v2467 = vpop.f32.mrb[0].mxu0
      %v2468 = vadd.f32 0.0, %v2467
      %v2469 = vpop.f32.mrb[0].mxu0
      %2470 = vmatprep.mubr.bf16.mxu0 0
      %2471 = vmatmul.mubr.bf16.gmra.mrb[0].mxu0 %v2252
      %v2472 = vpop.f32.mrb[0].mxu0
      %v2473 = vadd.f32 0.0, %v2472
      %v2474 = vpop.f32.mrb[0].mxu0
      %v2475 = vpop.f32.mrb[0].mxu0
      %v2476 = vadd.f32 0.0, %v2475
      %v2477 = vpop.f32.mrb[0].mxu0
      %2478 = vdwg.mxu0
      %v2479 = vadd.f32 %v2011, %v2289
      %v2480 = vadd.f32 %v2012, %v2292
      %v2481 = vadd.f32 %v2013, %v2297
      %v2482 = vadd.f32 %v2014, %v2300
      %v2483 = vadd.f32 %v2015, %v2305
      %v2484 = vadd.f32 %v2016, %v2308
      %v2485 = vadd.f32 %v2017, %v2313
      %v2486 = vadd.f32 %v2018, %v2316
      %v2487 = vadd.f32 %v2019, %v2321
      %v2488 = vadd.f32 %v2020, %v2324
      %v2489 = vadd.f32 %v2021, %v2329
      %v2490 = vadd.f32 %v2022, %v2332
      %v2491 = vadd.f32 %v2023, %v2337
      %v2492 = vadd.f32 %v2024, %v2340
      %v2493 = vadd.f32 %v2025, %v2345
      %v2494 = vadd.f32 %v2026, %v2348
      %v2495 = vadd.f32 %v2027, %v2353
      %v2496 = vadd.f32 %v2028, %v2356
      %v2497 = vadd.f32 %v2029, %v2361
      %v2498 = vadd.f32 %v2030, %v2364
      %v2499 = vadd.f32 %v2031, %v2369
      %v2500 = vadd.f32 %v2032, %v2372
      %v2501 = vadd.f32 %v2033, %v2377
      %v2502 = vadd.f32 %v2034, %v2380
      %v2503 = vadd.f32 %v2035, %v2385
      %v2504 = vadd.f32 %v2036, %v2388
      %v2505 = vadd.f32 %v2037, %v2393
      %v2506 = vadd.f32 %v2038, %v2396
      %v2507 = vadd.f32 %v2039, %v2401
      %v2508 = vadd.f32 %v2040, %v2404
      %v2509 = vadd.f32 %v2041, %v2409
      %v2510 = vadd.f32 %v2042, %v2412
      %v2511 = vadd.f32 %v2043, %v2417
      %v2512 = vadd.f32 %v2044, %v2420
      %v2513 = vadd.f32 %v2045, %v2425
      %v2514 = vadd.f32 %v2046, %v2428
      %v2515 = vadd.f32 %v2047, %v2433
      %v2516 = vadd.f32 %v2048, %v2436
      %v2517 = vadd.f32 %v2049, %v2441
      %v2518 = vadd.f32 %v2050, %v2444
      %v2519 = vadd.f32 %v2051, %v2449
      %v2520 = vadd.f32 %v2052, %v2452
      %v2521 = vadd.f32 %v2053, %v2457
      %v2522 = vadd.f32 %v2054, %v2460
      %v2523 = vadd.f32 %v2055, %v2465
      %v2524 = vadd.f32 %v2056, %v2468
      %v2525 = vadd.f32 %v2057, %v2473
      %v2526 = vadd.f32 %v2058, %v2476
      %s2527 = scalar_lea.vmem %s2, 112
      %v2528 = vld [vmem:[%s2527] sm:$0xf]
      %v2529 = vld [vmem:[%s2527 + $0x4] sm:$0xf]
      %v2530 = vld [vmem:[%s2527 + $0x8] sm:$0xf]
      %v2531 = vld [vmem:[%s2527 + $0xc] sm:$0xf]
      %v2532 = vor.u32 %v2156, %v1700
      %v2533 = vrot.slane %v2165, 1
      %v2534 = vsel %vm1530, %v2532, %v2533
      %v2535 = vor.u32 %v2162, %v2533
      %v2536 = vshll.u32 %v521, 16
      %v2538 = vrot.slane %v2536, 1
      %v2539 = vsel %vm1530, %v2535, %v2538
      %v2540 = vshrl.u32 %v521, 16
      %v2542 = vor.u32 %v2540, %v2538
      %v2544 = vshll.u32 %v1524, 16
      %v2546 = vrot.slane %v2544, 1
      %v2547 = vsel %vm1530, %v2542, %v2546
      %v2552 = vunpack.c.l.b16 %v2528
      %v2553 = vunpack.c.l.b16 %v2529
      %v2554 = vunpack.c.l.b16 %v2530
      %v2555 = vunpack.c.l.b16 %v2531
      %v2556 = vpack.c.b16 %v2553, %v2552
      %v2557 = vpack.c.b16 %v2555, %v2554
      %v2561 = vsel %vm618, %v2534, 0
      %v2564 = vsel %vm618, %v2539, 0
      %v2567 = vsel %vm618, %v2547, 0
      %2569 = vmatprep.subr.bf16.mxu0 0
      %2570 = vmatpush1.bf16.msra.mxu0 %v2556
      %2571 = vmatprep.subr.bf16.mxu0 0
      %2572 = vmatpush1.bf16.msra.mxu0 %v2557
      %2573 = vmatprep.subr.bf16.mxu0 0
      %2574 = vmatpush1.bf16.msra.mxu0 0
      %2575 = vmatprep.subr.bf16.mxu0 0
      %2576 = vmatpush1.bf16.msra.mxu0 0
      %2577 = vmatprep.subr.bf16.mxu0 0
      %2578 = vmatpush1.bf16.msra.mxu0 0
      %2579 = vmatprep.subr.bf16.mxu0 0
      %2580 = vmatpush1.bf16.msra.mxu0 0
      %2581 = vmatprep.subr.bf16.mxu0 0
      %2582 = vmatpush1.bf16.msra.mxu0 0
      %2583 = vmatprep.subr.bf16.mxu0 0
      %2584 = vmatpush1.bf16.msra.mxu0 0
      %2585 = vmatprep.subr.bf16.mxu0 0
      %2586 = vmatpush1.bf16.msra.mxu0 0
      %2587 = vmatprep.subr.bf16.mxu0 0
      %2588 = vmatpush1.bf16.msra.mxu0 0
      %2589 = vmatprep.subr.bf16.mxu0 0
      %2590 = vmatpush1.bf16.msra.mxu0 0
      %2591 = vmatprep.subr.bf16.mxu0 0
      %2592 = vmatpush1.bf16.msra.mxu0 0
      %2593 = vmatprep.subr.bf16.mxu0 0
      %2594 = vmatpush1.bf16.msra.mxu0 0
      %2595 = vmatprep.subr.bf16.mxu0 0
      %2596 = vmatpush1.bf16.msra.mxu0 0
      %2597 = vmatprep.subr.bf16.mxu0 0
      %2598 = vmatpush1.bf16.msra.mxu0 0
      %2599 = vmatprep.subr.bf16.mxu0 0
      %2600 = vmatpush1.bf16.msra.mxu0 0
      %2601 = vmatprep.mubr.bf16.mxu0 0
      %2602 = vmatmul.mubr.bf16.gmra.mrb[0].mxu0 %v1724
      %v2603 = vpop.f32.mrb[0].mxu0
      %v2604 = vadd.f32 0.0, %v2603
      %v2605 = vpop.f32.mrb[0].mxu0
      %v2606 = vpop.f32.mrb[0].mxu0
      %v2607 = vadd.f32 0.0, %v2606
      %v2608 = vpop.f32.mrb[0].mxu0
      %2609 = vmatprep.mubr.bf16.mxu0 0
      %2610 = vmatmul.mubr.bf16.gmra.mrb[0].mxu0 %v1727
      %v2611 = vpop.f32.mrb[0].mxu0
      %v2612 = vadd.f32 0.0, %v2611
      %v2613 = vpop.f32.mrb[0].mxu0
      %v2614 = vpop.f32.mrb[0].mxu0
      %v2615 = vadd.f32 0.0, %v2614
      %v2616 = vpop.f32.mrb[0].mxu0
      %2617 = vmatprep.mubr.bf16.mxu0 0
      %2618 = vmatmul.mubr.bf16.gmra.mrb[0].mxu0 %v1730
      %v2619 = vpop.f32.mrb[0].mxu0
      %v2620 = vadd.f32 0.0, %v2619
      %v2621 = vpop.f32.mrb[0].mxu0
      %v2622 = vpop.f32.mrb[0].mxu0
      %v2623 = vadd.f32 0.0, %v2622
      %v2624 = vpop.f32.mrb[0].mxu0
      %2625 = vmatprep.mubr.bf16.mxu0 0
      %2626 = vmatmul.mubr.bf16.gmra.mrb[0].mxu0 %v1733
      %v2627 = vpop.f32.mrb[0].mxu0
      %v2628 = vadd.f32 0.0, %v2627
      %v2629 = vpop.f32.mrb[0].mxu0
      %v2630 = vpop.f32.mrb[0].mxu0
      %v2631 = vadd.f32 0.0, %v2630
      %v2632 = vpop.f32.mrb[0].mxu0
      %2633 = vmatprep.mubr.bf16.mxu0 0
      %2634 = vmatmul.mubr.bf16.gmra.mrb[0].mxu0 %v1736
      %v2635 = vpop.f32.mrb[0].mxu0
      %v2636 = vadd.f32 0.0, %v2635
      %v2637 = vpop.f32.mrb[0].mxu0
      %v2638 = vpop.f32.mrb[0].mxu0
      %v2639 = vadd.f32 0.0, %v2638
      %v2640 = vpop.f32.mrb[0].mxu0
      %2641 = vmatprep.mubr.bf16.mxu0 0
      %2642 = vmatmul.mubr.bf16.gmra.mrb[0].mxu0 %v1739
      %v2643 = vpop.f32.mrb[0].mxu0
      %v2644 = vadd.f32 0.0, %v2643
      %v2645 = vpop.f32.mrb[0].mxu0
      %v2646 = vpop.f32.mrb[0].mxu0
      %v2647 = vadd.f32 0.0, %v2646
      %v2648 = vpop.f32.mrb[0].mxu0
      %2649 = vmatprep.mubr.bf16.mxu0 0
      %2650 = vmatmul.mubr.bf16.gmra.mrb[0].mxu0 %v1742
      %v2651 = vpop.f32.mrb[0].mxu0
      %v2652 = vadd.f32 0.0, %v2651
      %v2653 = vpop.f32.mrb[0].mxu0
      %v2654 = vpop.f32.mrb[0].mxu0
      %v2655 = vadd.f32 0.0, %v2654
      %v2656 = vpop.f32.mrb[0].mxu0
      %2657 = vmatprep.mubr.bf16.mxu0 0
      %2658 = vmatmul.mubr.bf16.gmra.mrb[0].mxu0 %v1745
      %v2659 = vpop.f32.mrb[0].mxu0
      %v2660 = vadd.f32 0.0, %v2659
      %v2661 = vpop.f32.mrb[0].mxu0
      %v2662 = vpop.f32.mrb[0].mxu0
      %v2663 = vadd.f32 0.0, %v2662
      %v2664 = vpop.f32.mrb[0].mxu0
      %2665 = vmatprep.mubr.bf16.mxu0 0
      %2666 = vmatmul.mubr.bf16.gmra.mrb[0].mxu0 %v1748
      %v2667 = vpop.f32.mrb[0].mxu0
      %v2668 = vadd.f32 0.0, %v2667
      %v2669 = vpop.f32.mrb[0].mxu0
      %v2670 = vpop.f32.mrb[0].mxu0
      %v2671 = vadd.f32 0.0, %v2670
      %v2672 = vpop.f32.mrb[0].mxu0
      %2673 = vmatprep.mubr.bf16.mxu0 0
      %2674 = vmatmul.mubr.bf16.gmra.mrb[0].mxu0 %v1751
      %v2675 = vpop.f32.mrb[0].mxu0
      %v2676 = vadd.f32 0.0, %v2675
      %v2677 = vpop.f32.mrb[0].mxu0
      %v2678 = vpop.f32.mrb[0].mxu0
      %v2679 = vadd.f32 0.0, %v2678
      %v2680 = vpop.f32.mrb[0].mxu0
      %2681 = vmatprep.mubr.bf16.mxu0 0
      %2682 = vmatmul.mubr.bf16.gmra.mrb[0].mxu0 %v1754
      %v2683 = vpop.f32.mrb[0].mxu0
      %v2684 = vadd.f32 0.0, %v2683
      %v2685 = vpop.f32.mrb[0].mxu0
      %v2686 = vpop.f32.mrb[0].mxu0
      %v2687 = vadd.f32 0.0, %v2686
      %v2688 = vpop.f32.mrb[0].mxu0
      %2689 = vmatprep.mubr.bf16.mxu0 0
      %2690 = vmatmul.mubr.bf16.gmra.mrb[0].mxu0 %v1757
      %v2691 = vpop.f32.mrb[0].mxu0
      %v2692 = vadd.f32 0.0, %v2691
      %v2693 = vpop.f32.mrb[0].mxu0
      %v2694 = vpop.f32.mrb[0].mxu0
      %v2695 = vadd.f32 0.0, %v2694
      %v2696 = vpop.f32.mrb[0].mxu0
      %2697 = vmatprep.mubr.bf16.mxu0 0
      %2698 = vmatmul.mubr.bf16.gmra.mrb[0].mxu0 %v1760
      %v2699 = vpop.f32.mrb[0].mxu0
      %v2700 = vadd.f32 0.0, %v2699
      %v2701 = vpop.f32.mrb[0].mxu0
      %v2702 = vpop.f32.mrb[0].mxu0
      %v2703 = vadd.f32 0.0, %v2702
      %v2704 = vpop.f32.mrb[0].mxu0
      %2705 = vmatprep.mubr.bf16.mxu0 0
      %2706 = vmatmul.mubr.bf16.gmra.mrb[0].mxu0 %v1763
      %v2707 = vpop.f32.mrb[0].mxu0
      %v2708 = vadd.f32 0.0, %v2707
      %v2709 = vpop.f32.mrb[0].mxu0
      %v2710 = vpop.f32.mrb[0].mxu0
      %v2711 = vadd.f32 0.0, %v2710
      %v2712 = vpop.f32.mrb[0].mxu0
      %2713 = vmatprep.mubr.bf16.mxu0 0
      %2714 = vmatmul.mubr.bf16.gmra.mrb[0].mxu0 %v1766
      %v2715 = vpop.f32.mrb[0].mxu0
      %v2716 = vadd.f32 0.0, %v2715
      %v2717 = vpop.f32.mrb[0].mxu0
      %v2718 = vpop.f32.mrb[0].mxu0
      %v2719 = vadd.f32 0.0, %v2718
      %v2720 = vpop.f32.mrb[0].mxu0
      %2721 = vmatprep.mubr.bf16.mxu0 0
      %2722 = vmatmul.mubr.bf16.gmra.mrb[0].mxu0 %v1769
      %v2723 = vpop.f32.mrb[0].mxu0
      %v2724 = vadd.f32 0.0, %v2723
      %v2725 = vpop.f32.mrb[0].mxu0
      %v2726 = vpop.f32.mrb[0].mxu0
      %v2727 = vadd.f32 0.0, %v2726
      %v2728 = vpop.f32.mrb[0].mxu0
      %2729 = vmatprep.mubr.bf16.mxu0 0
      %2730 = vmatmul.mubr.bf16.gmra.mrb[0].mxu0 %v1772
      %v2731 = vpop.f32.mrb[0].mxu0
      %v2732 = vadd.f32 0.0, %v2731
      %v2733 = vpop.f32.mrb[0].mxu0
      %v2734 = vpop.f32.mrb[0].mxu0
      %v2735 = vadd.f32 0.0, %v2734
      %v2736 = vpop.f32.mrb[0].mxu0
      %2737 = vmatprep.mubr.bf16.mxu0 0
      %2738 = vmatmul.mubr.bf16.gmra.mrb[0].mxu0 %v1775
      %v2739 = vpop.f32.mrb[0].mxu0
      %v2740 = vadd.f32 0.0, %v2739
      %v2741 = vpop.f32.mrb[0].mxu0
      %v2742 = vpop.f32.mrb[0].mxu0
      %v2743 = vadd.f32 0.0, %v2742
      %v2744 = vpop.f32.mrb[0].mxu0
      %2745 = vmatprep.mubr.bf16.mxu0 0
      %2746 = vmatmul.mubr.bf16.gmra.mrb[0].mxu0 %v1778
      %v2747 = vpop.f32.mrb[0].mxu0
      %v2748 = vadd.f32 0.0, %v2747
      %v2749 = vpop.f32.mrb[0].mxu0
      %v2750 = vpop.f32.mrb[0].mxu0
      %v2751 = vadd.f32 0.0, %v2750
      %v2752 = vpop.f32.mrb[0].mxu0
      %2753 = vmatprep.mubr.bf16.mxu0 0
      %2754 = vmatmul.mubr.bf16.gmra.mrb[0].mxu0 %v1781
      %v2755 = vpop.f32.mrb[0].mxu0
      %v2756 = vadd.f32 0.0, %v2755
      %v2757 = vpop.f32.mrb[0].mxu0
      %v2758 = vpop.f32.mrb[0].mxu0
      %v2759 = vadd.f32 0.0, %v2758
      %v2760 = vpop.f32.mrb[0].mxu0
      %2761 = vmatprep.mubr.bf16.mxu0 0
      %2762 = vmatmul.mubr.bf16.gmra.mrb[0].mxu0 %v1784
      %v2763 = vpop.f32.mrb[0].mxu0
      %v2764 = vadd.f32 0.0, %v2763
      %v2765 = vpop.f32.mrb[0].mxu0
      %v2766 = vpop.f32.mrb[0].mxu0
      %v2767 = vadd.f32 0.0, %v2766
      %v2768 = vpop.f32.mrb[0].mxu0
      %2769 = vmatprep.mubr.bf16.mxu0 0
      %2770 = vmatmul.mubr.bf16.gmra.mrb[0].mxu0 %v2561
      %v2771 = vpop.f32.mrb[0].mxu0
      %v2772 = vadd.f32 0.0, %v2771
      %v2773 = vpop.f32.mrb[0].mxu0
      %v2774 = vpop.f32.mrb[0].mxu0
      %v2775 = vadd.f32 0.0, %v2774
      %v2776 = vpop.f32.mrb[0].mxu0
      %2777 = vmatprep.mubr.bf16.mxu0 0
      %2778 = vmatmul.mubr.bf16.gmra.mrb[0].mxu0 %v2564
      %v2779 = vpop.f32.mrb[0].mxu0
      %v2780 = vadd.f32 0.0, %v2779
      %v2781 = vpop.f32.mrb[0].mxu0
      %v2782 = vpop.f32.mrb[0].mxu0
      %v2783 = vadd.f32 0.0, %v2782
      %v2784 = vpop.f32.mrb[0].mxu0
      %2785 = vmatprep.mubr.bf16.mxu0 0
      %2786 = vmatmul.mubr.bf16.gmra.mrb[0].mxu0 %v2567
      %v2787 = vpop.f32.mrb[0].mxu0
      %v2788 = vadd.f32 0.0, %v2787
      %v2789 = vpop.f32.mrb[0].mxu0
      %v2790 = vpop.f32.mrb[0].mxu0
      %v2791 = vadd.f32 0.0, %v2790
      %v2792 = vpop.f32.mrb[0].mxu0
      %2793 = vdwg.mxu0
      %v2794 = vadd.f32 %v2479, %v2604
      %v2795 = vadd.f32 %v2480, %v2607
      %v2796 = vadd.f32 %v2481, %v2612
      %v2797 = vadd.f32 %v2482, %v2615
      %v2798 = vadd.f32 %v2483, %v2620
      %v2799 = vadd.f32 %v2484, %v2623
      %v2800 = vadd.f32 %v2485, %v2628
      %v2801 = vadd.f32 %v2486, %v2631
      %v2802 = vadd.f32 %v2487, %v2636
      %v2803 = vadd.f32 %v2488, %v2639
      %v2804 = vadd.f32 %v2489, %v2644
      %v2805 = vadd.f32 %v2490, %v2647
      %v2806 = vadd.f32 %v2491, %v2652
      %v2807 = vadd.f32 %v2492, %v2655
      %v2808 = vadd.f32 %v2493, %v2660
      %v2809 = vadd.f32 %v2494, %v2663
      %v2810 = vadd.f32 %v2495, %v2668
      %v2811 = vadd.f32 %v2496, %v2671
      %v2812 = vadd.f32 %v2497, %v2676
      %v2813 = vadd.f32 %v2498, %v2679
      %v2814 = vadd.f32 %v2499, %v2684
      %v2815 = vadd.f32 %v2500, %v2687
      %v2816 = vadd.f32 %v2501, %v2692
      %v2817 = vadd.f32 %v2502, %v2695
      %v2818 = vadd.f32 %v2503, %v2700
      %v2819 = vadd.f32 %v2504, %v2703
      %v2820 = vadd.f32 %v2505, %v2708
      %v2821 = vadd.f32 %v2506, %v2711
      %v2822 = vadd.f32 %v2507, %v2716
      %v2823 = vadd.f32 %v2508, %v2719
      %v2824 = vadd.f32 %v2509, %v2724
      %v2825 = vadd.f32 %v2510, %v2727
      %v2826 = vadd.f32 %v2511, %v2732
      %v2827 = vadd.f32 %v2512, %v2735
      %v2828 = vadd.f32 %v2513, %v2740
      %v2829 = vadd.f32 %v2514, %v2743
      %v2830 = vadd.f32 %v2515, %v2748
      %v2831 = vadd.f32 %v2516, %v2751
      %v2832 = vadd.f32 %v2517, %v2756
      %v2833 = vadd.f32 %v2518, %v2759
      %v2834 = vadd.f32 %v2519, %v2764
      %v2835 = vadd.f32 %v2520, %v2767
      %v2836 = vadd.f32 %v2521, %v2772
      %v2837 = vadd.f32 %v2522, %v2775
      %v2838 = vadd.f32 %v2523, %v2780
      %v2839 = vadd.f32 %v2524, %v2783
      %v2840 = vadd.f32 %v2525, %v2788
      %v2841 = vadd.f32 %v2526, %v2791
      %s2842 = scalar_lea.vmem %s2, 32
      %v2843 = vld [vmem:[%s2842] sm:$0xf]
      %v2844 = vld [vmem:[%s2842 + $0x4] sm:$0xf]
      %v2845 = vld [vmem:[%s2842 + $0x8] sm:$0xf]
      %v2846 = vld [vmem:[%s2842 + $0xc] sm:$0xf]
      %vm2848 = vcmask 1046528
      %v2849 = vrot.slane %v495, 1
      %v2850 = vrot.slane %v496, 1
      %v2851 = vsel %vm2848, %v2849, %v2850
      %v2852 = vrot.slane %v497, 1
      %v2853 = vsel %vm2848, %v2850, %v2852
      %v2854 = vrot.slane %v498, 1
      %v2855 = vsel %vm2848, %v2852, %v2854
      %v2856 = vrot.slane %v499, 1
      %v2857 = vsel %vm2848, %v2854, %v2856
      %v2858 = vrot.slane %v500, 1
      %v2859 = vsel %vm2848, %v2856, %v2858
      %v2860 = vrot.slane %v501, 1
      %v2861 = vsel %vm2848, %v2858, %v2860
      %v2862 = vrot.slane %v502, 1
      %v2863 = vsel %vm2848, %v2860, %v2862
      %v2864 = vrot.slane %v503, 1
      %v2865 = vsel %vm2848, %v2862, %v2864
      %v2866 = vrot.slane %v504, 1
      %v2867 = vsel %vm2848, %v2864, %v2866
      %v2868 = vrot.slane %v505, 1
      %v2869 = vsel %vm2848, %v2866, %v2868
      %v2870 = vrot.slane %v506, 1
      %v2871 = vsel %vm2848, %v2868, %v2870
      %v2872 = vrot.slane %v507, 1
      %v2873 = vsel %vm2848, %v2870, %v2872
      %v2874 = vrot.slane %v508, 1
      %v2875 = vsel %vm2848, %v2872, %v2874
      %v2876 = vrot.slane %v509, 1
      %v2877 = vsel %vm2848, %v2874, %v2876
      %v2878 = vrot.slane %v510, 1
      %v2879 = vsel %vm2848, %v2876, %v2878
      %v2880 = vrot.slane %v511, 1
      %v2881 = vsel %vm2848, %v2878, %v2880
      %v2882 = vrot.slane %v512, 1
      %v2883 = vsel %vm2848, %v2880, %v2882
      %v2884 = vrot.slane %v513, 1
      %v2885 = vsel %vm2848, %v2882, %v2884
      %v2886 = vrot.slane %v514, 1
      %v2887 = vsel %vm2848, %v2884, %v2886
      %v2888 = vrot.slane %v515, 1
      %v2889 = vsel %vm2848, %v2886, %v2888
      %v2890 = vrot.slane %v516, 1
      %v2891 = vsel %vm2848, %v2888, %v2890
      %v2892 = vrot.slane %v517, 1
      %v2893 = vsel %vm2848, %v2890, %v2892
      %v2894 = vrot.slane %v518, 1
      %v2895 = vsel %vm2848, %v2892, %v2894
      %v2896 = vrot.slane %v519, 1
      %v2897 = vsel %vm2848, %v2894, %v2896
      %v2902 = vunpack.c.l.b16 %v2843
      %v2903 = vunpack.c.l.b16 %v2844
      %v2904 = vunpack.c.l.b16 %v2845
      %v2905 = vunpack.c.l.b16 %v2846
      %v2906 = vpack.c.b16 %v2903, %v2902
      %v2907 = vpack.c.b16 %v2905, %v2904
      %v2911 = vsel %vm618, %v2851, 0
      %v2914 = vsel %vm618, %v2853, 0
      %v2917 = vsel %vm618, %v2855, 0
      %v2920 = vsel %vm618, %v2857, 0
      %v2923 = vsel %vm618, %v2859, 0
      %v2926 = vsel %vm618, %v2861, 0
      %v2929 = vsel %vm618, %v2863, 0
      %v2932 = vsel %vm618, %v2865, 0
      %v2935 = vsel %vm618, %v2867, 0
      %v2938 = vsel %vm618, %v2869, 0
      %v2941 = vsel %vm618, %v2871, 0
      %v2944 = vsel %vm618, %v2873, 0
      %v2947 = vsel %vm618, %v2875, 0
      %v2950 = vsel %vm618, %v2877, 0
      %v2953 = vsel %vm618, %v2879, 0
      %v2956 = vsel %vm618, %v2881, 0
      %v2959 = vsel %vm618, %v2883, 0
      %v2962 = vsel %vm618, %v2885, 0
      %v2965 = vsel %vm618, %v2887, 0
      %v2968 = vsel %vm618, %v2889, 0
      %v2971 = vsel %vm618, %v2891, 0
      %v2974 = vsel %vm618, %v2893, 0
      %v2977 = vsel %vm618, %v2895, 0
      %v2980 = vsel %vm618, %v2897, 0
      %2982 = vmatprep.subr.bf16.mxu0 0
      %2983 = vmatpush1.bf16.msra.mxu0 %v2906
      %2984 = vmatprep.subr.bf16.mxu0 0
      %2985 = vmatpush1.bf16.msra.mxu0 %v2907
      %2986 = vmatprep.subr.bf16.mxu0 0
      %2987 = vmatpush1.bf16.msra.mxu0 0
      %2988 = vmatprep.subr.bf16.mxu0 0
      %2989 = vmatpush1.bf16.msra.mxu0 0
      %2990 = vmatprep.subr.bf16.mxu0 0
      %2991 = vmatpush1.bf16.msra.mxu0 0
      %2992 = vmatprep.subr.bf16.mxu0 0
      %2993 = vmatpush1.bf16.msra.mxu0 0
      %2994 = vmatprep.subr.bf16.mxu0 0
      %2995 = vmatpush1.bf16.msra.mxu0 0
      %2996 = vmatprep.subr.bf16.mxu0 0
      %2997 = vmatpush1.bf16.msra.mxu0 0
      %2998 = vmatprep.subr.bf16.mxu0 0
      %2999 = vmatpush1.bf16.msra.mxu0 0
      %3000 = vmatprep.subr.bf16.mxu0 0
      %3001 = vmatpush1.bf16.msra.mxu0 0
      %3002 = vmatprep.subr.bf16.mxu0 0
      %3003 = vmatpush1.bf16.msra.mxu0 0
      %3004 = vmatprep.subr.bf16.mxu0 0
      %3005 = vmatpush1.bf16.msra.mxu0 0
      %3006 = vmatprep.subr.bf16.mxu0 0
      %3007 = vmatpush1.bf16.msra.mxu0 0
      %3008 = vmatprep.subr.bf16.mxu0 0
      %3009 = vmatpush1.bf16.msra.mxu0 0
      %3010 = vmatprep.subr.bf16.mxu0 0
      %3011 = vmatpush1.bf16.msra.mxu0 0
      %3012 = vmatprep.subr.bf16.mxu0 0
      %3013 = vmatpush1.bf16.msra.mxu0 0
      %3014 = vmatprep.mubr.bf16.mxu0 0
      %3015 = vmatmul.mubr.bf16.gmra.mrb[0].mxu0 %v2911
      %v3016 = vpop.f32.mrb[0].mxu0
      %v3017 = vadd.f32 0.0, %v3016
      %v3018 = vpop.f32.mrb[0].mxu0
      %v3019 = vpop.f32.mrb[0].mxu0
      %v3020 = vadd.f32 0.0, %v3019
      %v3021 = vpop.f32.mrb[0].mxu0
      %3022 = vmatprep.mubr.bf16.mxu0 0
      %3023 = vmatmul.mubr.bf16.gmra.mrb[0].mxu0 %v2914
      %v3024 = vpop.f32.mrb[0].mxu0
      %v3025 = vadd.f32 0.0, %v3024
      %v3026 = vpop.f32.mrb[0].mxu0
      %v3027 = vpop.f32.mrb[0].mxu0
      %v3028 = vadd.f32 0.0, %v3027
      %v3029 = vpop.f32.mrb[0].mxu0
      %3030 = vmatprep.mubr.bf16.mxu0 0
      %3031 = vmatmul.mubr.bf16.gmra.mrb[0].mxu0 %v2917
      %v3032 = vpop.f32.mrb[0].mxu0
      %v3033 = vadd.f32 0.0, %v3032
      %v3034 = vpop.f32.mrb[0].mxu0
      %v3035 = vpop.f32.mrb[0].mxu0
      %v3036 = vadd.f32 0.0, %v3035
      %v3037 = vpop.f32.mrb[0].mxu0
      %3038 = vmatprep.mubr.bf16.mxu0 0
      %3039 = vmatmul.mubr.bf16.gmra.mrb[0].mxu0 %v2920
      %v3040 = vpop.f32.mrb[0].mxu0
      %v3041 = vadd.f32 0.0, %v3040
      %v3042 = vpop.f32.mrb[0].mxu0
      %v3043 = vpop.f32.mrb[0].mxu0
      %v3044 = vadd.f32 0.0, %v3043
      %v3045 = vpop.f32.mrb[0].mxu0
      %3046 = vmatprep.mubr.bf16.mxu0 0
      %3047 = vmatmul.mubr.bf16.gmra.mrb[0].mxu0 %v2923
      %v3048 = vpop.f32.mrb[0].mxu0
      %v3049 = vadd.f32 0.0, %v3048
      %v3050 = vpop.f32.mrb[0].mxu0
      %v3051 = vpop.f32.mrb[0].mxu0
      %v3052 = vadd.f32 0.0, %v3051
      %v3053 = vpop.f32.mrb[0].mxu0
      %3054 = vmatprep.mubr.bf16.mxu0 0
      %3055 = vmatmul.mubr.bf16.gmra.mrb[0].mxu0 %v2926
      %v3056 = vpop.f32.mrb[0].mxu0
      %v3057 = vadd.f32 0.0, %v3056
      %v3058 = vpop.f32.mrb[0].mxu0
      %v3059 = vpop.f32.mrb[0].mxu0
      %v3060 = vadd.f32 0.0, %v3059
      %v3061 = vpop.f32.mrb[0].mxu0
      %3062 = vmatprep.mubr.bf16.mxu0 0
      %3063 = vmatmul.mubr.bf16.gmra.mrb[0].mxu0 %v2929
      %v3064 = vpop.f32.mrb[0].mxu0
      %v3065 = vadd.f32 0.0, %v3064
      %v3066 = vpop.f32.mrb[0].mxu0
      %v3067 = vpop.f32.mrb[0].mxu0
      %v3068 = vadd.f32 0.0, %v3067
      %v3069 = vpop.f32.mrb[0].mxu0
      %3070 = vmatprep.mubr.bf16.mxu0 0
      %3071 = vmatmul.mubr.bf16.gmra.mrb[0].mxu0 %v2932
      %v3072 = vpop.f32.mrb[0].mxu0
      %v3073 = vadd.f32 0.0, %v3072
      %v3074 = vpop.f32.mrb[0].mxu0
      %v3075 = vpop.f32.mrb[0].mxu0
      %v3076 = vadd.f32 0.0, %v3075
      %v3077 = vpop.f32.mrb[0].mxu0
      %3078 = vmatprep.mubr.bf16.mxu0 0
      %3079 = vmatmul.mubr.bf16.gmra.mrb[0].mxu0 %v2935
      %v3080 = vpop.f32.mrb[0].mxu0
      %v3081 = vadd.f32 0.0, %v3080
      %v3082 = vpop.f32.mrb[0].mxu0
      %v3083 = vpop.f32.mrb[0].mxu0
      %v3084 = vadd.f32 0.0, %v3083
      %v3085 = vpop.f32.mrb[0].mxu0
      %3086 = vmatprep.mubr.bf16.mxu0 0
      %3087 = vmatmul.mubr.bf16.gmra.mrb[0].mxu0 %v2938
      %v3088 = vpop.f32.mrb[0].mxu0
      %v3089 = vadd.f32 0.0, %v3088
      %v3090 = vpop.f32.mrb[0].mxu0
      %v3091 = vpop.f32.mrb[0].mxu0
      %v3092 = vadd.f32 0.0, %v3091
      %v3093 = vpop.f32.mrb[0].mxu0
      %3094 = vmatprep.mubr.bf16.mxu0 0
      %3095 = vmatmul.mubr.bf16.gmra.mrb[0].mxu0 %v2941
      %v3096 = vpop.f32.mrb[0].mxu0
      %v3097 = vadd.f32 0.0, %v3096
      %v3098 = vpop.f32.mrb[0].mxu0
      %v3099 = vpop.f32.mrb[0].mxu0
      %v3100 = vadd.f32 0.0, %v3099
      %v3101 = vpop.f32.mrb[0].mxu0
      %3102 = vmatprep.mubr.bf16.mxu0 0
      %3103 = vmatmul.mubr.bf16.gmra.mrb[0].mxu0 %v2944
      %v3104 = vpop.f32.mrb[0].mxu0
      %v3105 = vadd.f32 0.0, %v3104
      %v3106 = vpop.f32.mrb[0].mxu0
      %v3107 = vpop.f32.mrb[0].mxu0
      %v3108 = vadd.f32 0.0, %v3107
      %v3109 = vpop.f32.mrb[0].mxu0
      %3110 = vmatprep.mubr.bf16.mxu0 0
      %3111 = vmatmul.mubr.bf16.gmra.mrb[0].mxu0 %v2947
      %v3112 = vpop.f32.mrb[0].mxu0
      %v3113 = vadd.f32 0.0, %v3112
      %v3114 = vpop.f32.mrb[0].mxu0
      %v3115 = vpop.f32.mrb[0].mxu0
      %v3116 = vadd.f32 0.0, %v3115
      %v3117 = vpop.f32.mrb[0].mxu0
      %3118 = vmatprep.mubr.bf16.mxu0 0
      %3119 = vmatmul.mubr.bf16.gmra.mrb[0].mxu0 %v2950
      %v3120 = vpop.f32.mrb[0].mxu0
      %v3121 = vadd.f32 0.0, %v3120
      %v3122 = vpop.f32.mrb[0].mxu0
      %v3123 = vpop.f32.mrb[0].mxu0
      %v3124 = vadd.f32 0.0, %v3123
      %v3125 = vpop.f32.mrb[0].mxu0
      %3126 = vmatprep.mubr.bf16.mxu0 0
      %3127 = vmatmul.mubr.bf16.gmra.mrb[0].mxu0 %v2953
      %v3128 = vpop.f32.mrb[0].mxu0
      %v3129 = vadd.f32 0.0, %v3128
      %v3130 = vpop.f32.mrb[0].mxu0
      %v3131 = vpop.f32.mrb[0].mxu0
      %v3132 = vadd.f32 0.0, %v3131
      %v3133 = vpop.f32.mrb[0].mxu0
      %3134 = vmatprep.mubr.bf16.mxu0 0
      %3135 = vmatmul.mubr.bf16.gmra.mrb[0].mxu0 %v2956
      %v3136 = vpop.f32.mrb[0].mxu0
      %v3137 = vadd.f32 0.0, %v3136
      %v3138 = vpop.f32.mrb[0].mxu0
      %v3139 = vpop.f32.mrb[0].mxu0
      %v3140 = vadd.f32 0.0, %v3139
      %v3141 = vpop.f32.mrb[0].mxu0
      %3142 = vmatprep.mubr.bf16.mxu0 0
      %3143 = vmatmul.mubr.bf16.gmra.mrb[0].mxu0 %v2959
      %v3144 = vpop.f32.mrb[0].mxu0
      %v3145 = vadd.f32 0.0, %v3144
      %v3146 = vpop.f32.mrb[0].mxu0
      %v3147 = vpop.f32.mrb[0].mxu0
      %v3148 = vadd.f32 0.0, %v3147
      %v3149 = vpop.f32.mrb[0].mxu0
      %3150 = vmatprep.mubr.bf16.mxu0 0
      %3151 = vmatmul.mubr.bf16.gmra.mrb[0].mxu0 %v2962
      %v3152 = vpop.f32.mrb[0].mxu0
      %v3153 = vadd.f32 0.0, %v3152
      %v3154 = vpop.f32.mrb[0].mxu0
      %v3155 = vpop.f32.mrb[0].mxu0
      %v3156 = vadd.f32 0.0, %v3155
      %v3157 = vpop.f32.mrb[0].mxu0
      %3158 = vmatprep.mubr.bf16.mxu0 0
      %3159 = vmatmul.mubr.bf16.gmra.mrb[0].mxu0 %v2965
      %v3160 = vpop.f32.mrb[0].mxu0
      %v3161 = vadd.f32 0.0, %v3160
      %v3162 = vpop.f32.mrb[0].mxu0
      %v3163 = vpop.f32.mrb[0].mxu0
      %v3164 = vadd.f32 0.0, %v3163
      %v3165 = vpop.f32.mrb[0].mxu0
      %3166 = vmatprep.mubr.bf16.mxu0 0
      %3167 = vmatmul.mubr.bf16.gmra.mrb[0].mxu0 %v2968
      %v3168 = vpop.f32.mrb[0].mxu0
      %v3169 = vadd.f32 0.0, %v3168
      %v3170 = vpop.f32.mrb[0].mxu0
      %v3171 = vpop.f32.mrb[0].mxu0
      %v3172 = vadd.f32 0.0, %v3171
      %v3173 = vpop.f32.mrb[0].mxu0
      %3174 = vmatprep.mubr.bf16.mxu0 0
      %3175 = vmatmul.mubr.bf16.gmra.mrb[0].mxu0 %v2971
      %v3176 = vpop.f32.mrb[0].mxu0
      %v3177 = vadd.f32 0.0, %v3176
      %v3178 = vpop.f32.mrb[0].mxu0
      %v3179 = vpop.f32.mrb[0].mxu0
      %v3180 = vadd.f32 0.0, %v3179
      %v3181 = vpop.f32.mrb[0].mxu0
      %3182 = vmatprep.mubr.bf16.mxu0 0
      %3183 = vmatmul.mubr.bf16.gmra.mrb[0].mxu0 %v2974
      %v3184 = vpop.f32.mrb[0].mxu0
      %v3185 = vadd.f32 0.0, %v3184
      %v3186 = vpop.f32.mrb[0].mxu0
      %v3187 = vpop.f32.mrb[0].mxu0
      %v3188 = vadd.f32 0.0, %v3187
      %v3189 = vpop.f32.mrb[0].mxu0
      %3190 = vmatprep.mubr.bf16.mxu0 0
      %3191 = vmatmul.mubr.bf16.gmra.mrb[0].mxu0 %v2977
      %v3192 = vpop.f32.mrb[0].mxu0
      %v3193 = vadd.f32 0.0, %v3192
      %v3194 = vpop.f32.mrb[0].mxu0
      %v3195 = vpop.f32.mrb[0].mxu0
      %v3196 = vadd.f32 0.0, %v3195
      %v3197 = vpop.f32.mrb[0].mxu0
      %3198 = vmatprep.mubr.bf16.mxu0 0
      %3199 = vmatmul.mubr.bf16.gmra.mrb[0].mxu0 %v2980
      %v3200 = vpop.f32.mrb[0].mxu0
      %v3201 = vadd.f32 0.0, %v3200
      %v3202 = vpop.f32.mrb[0].mxu0
      %v3203 = vpop.f32.mrb[0].mxu0
      %v3204 = vadd.f32 0.0, %v3203
      %v3205 = vpop.f32.mrb[0].mxu0
      %3206 = vdwg.mxu0
      %v3207 = vadd.f32 %v2794, %v3017
      %v3208 = vadd.f32 %v2795, %v3020
      %v3209 = vadd.f32 %v2796, %v3025
      %v3210 = vadd.f32 %v2797, %v3028
      %v3211 = vadd.f32 %v2798, %v3033
      %v3212 = vadd.f32 %v2799, %v3036
      %v3213 = vadd.f32 %v2800, %v3041
      %v3214 = vadd.f32 %v2801, %v3044
      %v3215 = vadd.f32 %v2802, %v3049
      %v3216 = vadd.f32 %v2803, %v3052
      %v3217 = vadd.f32 %v2804, %v3057
      %v3218 = vadd.f32 %v2805, %v3060
      %v3219 = vadd.f32 %v2806, %v3065
      %v3220 = vadd.f32 %v2807, %v3068
      %v3221 = vadd.f32 %v2808, %v3073
      %v3222 = vadd.f32 %v2809, %v3076
      %v3223 = vadd.f32 %v2810, %v3081
      %v3224 = vadd.f32 %v2811, %v3084
      %v3225 = vadd.f32 %v2812, %v3089
      %v3226 = vadd.f32 %v2813, %v3092
      %v3227 = vadd.f32 %v2814, %v3097
      %v3228 = vadd.f32 %v2815, %v3100
      %v3229 = vadd.f32 %v2816, %v3105
      %v3230 = vadd.f32 %v2817, %v3108
      %v3231 = vadd.f32 %v2818, %v3113
      %v3232 = vadd.f32 %v2819, %v3116
      %v3233 = vadd.f32 %v2820, %v3121
      %v3234 = vadd.f32 %v2821, %v3124
      %v3235 = vadd.f32 %v2822, %v3129
      %v3236 = vadd.f32 %v2823, %v3132
      %v3237 = vadd.f32 %v2824, %v3137
      %v3238 = vadd.f32 %v2825, %v3140
      %v3239 = vadd.f32 %v2826, %v3145
      %v3240 = vadd.f32 %v2827, %v3148
      %v3241 = vadd.f32 %v2828, %v3153
      %v3242 = vadd.f32 %v2829, %v3156
      %v3243 = vadd.f32 %v2830, %v3161
      %v3244 = vadd.f32 %v2831, %v3164
      %v3245 = vadd.f32 %v2832, %v3169
      %v3246 = vadd.f32 %v2833, %v3172
      %v3247 = vadd.f32 %v2834, %v3177
      %v3248 = vadd.f32 %v2835, %v3180
      %v3249 = vadd.f32 %v2836, %v3185
      %v3250 = vadd.f32 %v2837, %v3188
      %v3251 = vadd.f32 %v2838, %v3193
      %v3252 = vadd.f32 %v2839, %v3196
      %v3253 = vadd.f32 %v2840, %v3201
      %v3254 = vadd.f32 %v2841, %v3204
      %s3255 = scalar_lea.vmem %s2, 80
      %v3256 = vld [vmem:[%s3255] sm:$0xf]
      %v3257 = vld [vmem:[%s3255 + $0x4] sm:$0xf]
      %v3258 = vld [vmem:[%s3255 + $0x8] sm:$0xf]
      %v3259 = vld [vmem:[%s3255 + $0xc] sm:$0xf]
      %vm3260 = vcmask 1042432
      %v3261 = vrot.slane %v496, 5
      %v3262 = vrot.slane %v497, 5
      %v3263 = vsel %vm3260, %v3261, %v3262
      %v3264 = vrot.slane %v498, 5
      %v3265 = vsel %vm3260, %v3262, %v3264
      %v3266 = vrot.slane %v499, 5
      %v3267 = vsel %vm3260, %v3264, %v3266
      %v3268 = vrot.slane %v500, 5
      %v3269 = vsel %vm3260, %v3266, %v3268
      %v3270 = vrot.slane %v501, 5
      %v3271 = vsel %vm3260, %v3268, %v3270
      %v3272 = vrot.slane %v502, 5
      %v3273 = vsel %vm3260, %v3270, %v3272
      %v3274 = vrot.slane %v503, 5
      %v3275 = vsel %vm3260, %v3272, %v3274
      %v3276 = vrot.slane %v504, 5
      %v3277 = vsel %vm3260, %v3274, %v3276
      %v3278 = vrot.slane %v505, 5
      %v3279 = vsel %vm3260, %v3276, %v3278
      %v3280 = vrot.slane %v506, 5
      %v3281 = vsel %vm3260, %v3278, %v3280
      %v3282 = vrot.slane %v507, 5
      %v3283 = vsel %vm3260, %v3280, %v3282
      %v3284 = vrot.slane %v508, 5
      %v3285 = vsel %vm3260, %v3282, %v3284
      %v3286 = vrot.slane %v509, 5
      %v3287 = vsel %vm3260, %v3284, %v3286
      %v3288 = vrot.slane %v510, 5
      %v3289 = vsel %vm3260, %v3286, %v3288
      %v3290 = vrot.slane %v511, 5
      %v3291 = vsel %vm3260, %v3288, %v3290
      %v3292 = vrot.slane %v512, 5
      %v3293 = vsel %vm3260, %v3290, %v3292
      %v3294 = vrot.slane %v513, 5
      %v3295 = vsel %vm3260, %v3292, %v3294
      %v3296 = vrot.slane %v514, 5
      %v3297 = vsel %vm3260, %v3294, %v3296
      %v3298 = vrot.slane %v515, 5
      %v3299 = vsel %vm3260, %v3296, %v3298
      %v3300 = vrot.slane %v516, 5
      %v3301 = vsel %vm3260, %v3298, %v3300
      %v3302 = vrot.slane %v517, 5
      %v3303 = vsel %vm3260, %v3300, %v3302
      %v3304 = vrot.slane %v518, 5
      %v3305 = vsel %vm3260, %v3302, %v3304
      %v3306 = vrot.slane %v519, 5
      %v3307 = vsel %vm3260, %v3304, %v3306
      %v3308 = vrot.slane %v520, 5
      %v3309 = vsel %vm3260, %v3306, %v3308
      %v3314 = vunpack.c.l.b16 %v3256
      %v3315 = vunpack.c.l.b16 %v3257
      %v3316 = vunpack.c.l.b16 %v3258
      %v3317 = vunpack.c.l.b16 %v3259
      %v3318 = vpack.c.b16 %v3315, %v3314
      %v3319 = vpack.c.b16 %v3317, %v3316
      %v3323 = vsel %vm618, %v3263, 0
      %v3326 = vsel %vm618, %v3265, 0
      %v3329 = vsel %vm618, %v3267, 0
      %v3332 = vsel %vm618, %v3269, 0
      %v3335 = vsel %vm618, %v3271, 0
      %v3338 = vsel %vm618, %v3273, 0
      %v3341 = vsel %vm618, %v3275, 0
      %v3344 = vsel %vm618, %v3277, 0
      %v3347 = vsel %vm618, %v3279, 0
      %v3350 = vsel %vm618, %v3281, 0
      %v3353 = vsel %vm618, %v3283, 0
      %v3356 = vsel %vm618, %v3285, 0
      %v3359 = vsel %vm618, %v3287, 0
      %v3362 = vsel %vm618, %v3289, 0
      %v3365 = vsel %vm618, %v3291, 0
      %v3368 = vsel %vm618, %v3293, 0
      %v3371 = vsel %vm618, %v3295, 0
      %v3374 = vsel %vm618, %v3297, 0
      %v3377 = vsel %vm618, %v3299, 0
      %v3380 = vsel %vm618, %v3301, 0
      %v3383 = vsel %vm618, %v3303, 0
      %v3386 = vsel %vm618, %v3305, 0
      %v3389 = vsel %vm618, %v3307, 0
      %v3392 = vsel %vm618, %v3309, 0
      %3394 = vmatprep.subr.bf16.mxu0 0
      %3395 = vmatpush1.bf16.msra.mxu0 %v3318
      %3396 = vmatprep.subr.bf16.mxu0 0
      %3397 = vmatpush1.bf16.msra.mxu0 %v3319
      %3398 = vmatprep.subr.bf16.mxu0 0
      %3399 = vmatpush1.bf16.msra.mxu0 0
      %3400 = vmatprep.subr.bf16.mxu0 0
      %3401 = vmatpush1.bf16.msra.mxu0 0
      %3402 = vmatprep.subr.bf16.mxu0 0
      %3403 = vmatpush1.bf16.msra.mxu0 0
      %3404 = vmatprep.subr.bf16.mxu0 0
      %3405 = vmatpush1.bf16.msra.mxu0 0
      %3406 = vmatprep.subr.bf16.mxu0 0
      %3407 = vmatpush1.bf16.msra.mxu0 0
      %3408 = vmatprep.subr.bf16.mxu0 0
      %3409 = vmatpush1.bf16.msra.mxu0 0
      %3410 = vmatprep.subr.bf16.mxu0 0
      %3411 = vmatpush1.bf16.msra.mxu0 0
      %3412 = vmatprep.subr.bf16.mxu0 0
      %3413 = vmatpush1.bf16.msra.mxu0 0
      %3414 = vmatprep.subr.bf16.mxu0 0
      %3415 = vmatpush1.bf16.msra.mxu0 0
      %3416 = vmatprep.subr.bf16.mxu0 0
      %3417 = vmatpush1.bf16.msra.mxu0 0
      %3418 = vmatprep.subr.bf16.mxu0 0
      %3419 = vmatpush1.bf16.msra.mxu0 0
      %3420 = vmatprep.subr.bf16.mxu0 0
      %3421 = vmatpush1.bf16.msra.mxu0 0
      %3422 = vmatprep.subr.bf16.mxu0 0
      %3423 = vmatpush1.bf16.msra.mxu0 0
      %3424 = vmatprep.subr.bf16.mxu0 0
      %3425 = vmatpush1.bf16.msra.mxu0 0
      %3426 = vmatprep.mubr.bf16.mxu0 0
      %3427 = vmatmul.mubr.bf16.gmra.mrb[0].mxu0 %v3323
      %v3428 = vpop.f32.mrb[0].mxu0
      %v3429 = vadd.f32 0.0, %v3428
      %v3430 = vpop.f32.mrb[0].mxu0
      %v3431 = vpop.f32.mrb[0].mxu0
      %v3432 = vadd.f32 0.0, %v3431
      %v3433 = vpop.f32.mrb[0].mxu0
      %3434 = vmatprep.mubr.bf16.mxu0 0
      %3435 = vmatmul.mubr.bf16.gmra.mrb[0].mxu0 %v3326
      %v3436 = vpop.f32.mrb[0].mxu0
      %v3437 = vadd.f32 0.0, %v3436
      %v3438 = vpop.f32.mrb[0].mxu0
      %v3439 = vpop.f32.mrb[0].mxu0
      %v3440 = vadd.f32 0.0, %v3439
      %v3441 = vpop.f32.mrb[0].mxu0
      %3442 = vmatprep.mubr.bf16.mxu0 0
      %3443 = vmatmul.mubr.bf16.gmra.mrb[0].mxu0 %v3329
      %v3444 = vpop.f32.mrb[0].mxu0
      %v3445 = vadd.f32 0.0, %v3444
      %v3446 = vpop.f32.mrb[0].mxu0
      %v3447 = vpop.f32.mrb[0].mxu0
      %v3448 = vadd.f32 0.0, %v3447
      %v3449 = vpop.f32.mrb[0].mxu0
      %3450 = vmatprep.mubr.bf16.mxu0 0
      %3451 = vmatmul.mubr.bf16.gmra.mrb[0].mxu0 %v3332
      %v3452 = vpop.f32.mrb[0].mxu0
      %v3453 = vadd.f32 0.0, %v3452
      %v3454 = vpop.f32.mrb[0].mxu0
      %v3455 = vpop.f32.mrb[0].mxu0
      %v3456 = vadd.f32 0.0, %v3455
      %v3457 = vpop.f32.mrb[0].mxu0
      %3458 = vmatprep.mubr.bf16.mxu0 0
      %3459 = vmatmul.mubr.bf16.gmra.mrb[0].mxu0 %v3335
      %v3460 = vpop.f32.mrb[0].mxu0
      %v3461 = vadd.f32 0.0, %v3460
      %v3462 = vpop.f32.mrb[0].mxu0
      %v3463 = vpop.f32.mrb[0].mxu0
      %v3464 = vadd.f32 0.0, %v3463
      %v3465 = vpop.f32.mrb[0].mxu0
      %3466 = vmatprep.mubr.bf16.mxu0 0
      %3467 = vmatmul.mubr.bf16.gmra.mrb[0].mxu0 %v3338
      %v3468 = vpop.f32.mrb[0].mxu0
      %v3469 = vadd.f32 0.0, %v3468
      %v3470 = vpop.f32.mrb[0].mxu0
      %v3471 = vpop.f32.mrb[0].mxu0
      %v3472 = vadd.f32 0.0, %v3471
      %v3473 = vpop.f32.mrb[0].mxu0
      %3474 = vmatprep.mubr.bf16.mxu0 0
      %3475 = vmatmul.mubr.bf16.gmra.mrb[0].mxu0 %v3341
      %v3476 = vpop.f32.mrb[0].mxu0
      %v3477 = vadd.f32 0.0, %v3476
      %v3478 = vpop.f32.mrb[0].mxu0
      %v3479 = vpop.f32.mrb[0].mxu0
      %v3480 = vadd.f32 0.0, %v3479
      %v3481 = vpop.f32.mrb[0].mxu0
      %3482 = vmatprep.mubr.bf16.mxu0 0
      %3483 = vmatmul.mubr.bf16.gmra.mrb[0].mxu0 %v3344
      %v3484 = vpop.f32.mrb[0].mxu0
      %v3485 = vadd.f32 0.0, %v3484
      %v3486 = vpop.f32.mrb[0].mxu0
      %v3487 = vpop.f32.mrb[0].mxu0
      %v3488 = vadd.f32 0.0, %v3487
      %v3489 = vpop.f32.mrb[0].mxu0
      %3490 = vmatprep.mubr.bf16.mxu0 0
      %3491 = vmatmul.mubr.bf16.gmra.mrb[0].mxu0 %v3347
      %v3492 = vpop.f32.mrb[0].mxu0
      %v3493 = vadd.f32 0.0, %v3492
      %v3494 = vpop.f32.mrb[0].mxu0
      %v3495 = vpop.f32.mrb[0].mxu0
      %v3496 = vadd.f32 0.0, %v3495
      %v3497 = vpop.f32.mrb[0].mxu0
      %3498 = vmatprep.mubr.bf16.mxu0 0
      %3499 = vmatmul.mubr.bf16.gmra.mrb[0].mxu0 %v3350
      %v3500 = vpop.f32.mrb[0].mxu0
      %v3501 = vadd.f32 0.0, %v3500
      %v3502 = vpop.f32.mrb[0].mxu0
      %v3503 = vpop.f32.mrb[0].mxu0
      %v3504 = vadd.f32 0.0, %v3503
      %v3505 = vpop.f32.mrb[0].mxu0
      %3506 = vmatprep.mubr.bf16.mxu0 0
      %3507 = vmatmul.mubr.bf16.gmra.mrb[0].mxu0 %v3353
      %v3508 = vpop.f32.mrb[0].mxu0
      %v3509 = vadd.f32 0.0, %v3508
      %v3510 = vpop.f32.mrb[0].mxu0
      %v3511 = vpop.f32.mrb[0].mxu0
      %v3512 = vadd.f32 0.0, %v3511
      %v3513 = vpop.f32.mrb[0].mxu0
      %3514 = vmatprep.mubr.bf16.mxu0 0
      %3515 = vmatmul.mubr.bf16.gmra.mrb[0].mxu0 %v3356
      %v3516 = vpop.f32.mrb[0].mxu0
      %v3517 = vadd.f32 0.0, %v3516
      %v3518 = vpop.f32.mrb[0].mxu0
      %v3519 = vpop.f32.mrb[0].mxu0
      %v3520 = vadd.f32 0.0, %v3519
      %v3521 = vpop.f32.mrb[0].mxu0
      %3522 = vmatprep.mubr.bf16.mxu0 0
      %3523 = vmatmul.mubr.bf16.gmra.mrb[0].mxu0 %v3359
      %v3524 = vpop.f32.mrb[0].mxu0
      %v3525 = vadd.f32 0.0, %v3524
      %v3526 = vpop.f32.mrb[0].mxu0
      %v3527 = vpop.f32.mrb[0].mxu0
      %v3528 = vadd.f32 0.0, %v3527
      %v3529 = vpop.f32.mrb[0].mxu0
      %3530 = vmatprep.mubr.bf16.mxu0 0
      %3531 = vmatmul.mubr.bf16.gmra.mrb[0].mxu0 %v3362
      %v3532 = vpop.f32.mrb[0].mxu0
      %v3533 = vadd.f32 0.0, %v3532
      %v3534 = vpop.f32.mrb[0].mxu0
      %v3535 = vpop.f32.mrb[0].mxu0
      %v3536 = vadd.f32 0.0, %v3535
      %v3537 = vpop.f32.mrb[0].mxu0
      %3538 = vmatprep.mubr.bf16.mxu0 0
      %3539 = vmatmul.mubr.bf16.gmra.mrb[0].mxu0 %v3365
      %v3540 = vpop.f32.mrb[0].mxu0
      %v3541 = vadd.f32 0.0, %v3540
      %v3542 = vpop.f32.mrb[0].mxu0
      %v3543 = vpop.f32.mrb[0].mxu0
      %v3544 = vadd.f32 0.0, %v3543
      %v3545 = vpop.f32.mrb[0].mxu0
      %3546 = vmatprep.mubr.bf16.mxu0 0
      %3547 = vmatmul.mubr.bf16.gmra.mrb[0].mxu0 %v3368
      %v3548 = vpop.f32.mrb[0].mxu0
      %v3549 = vadd.f32 0.0, %v3548
      %v3550 = vpop.f32.mrb[0].mxu0
      %v3551 = vpop.f32.mrb[0].mxu0
      %v3552 = vadd.f32 0.0, %v3551
      %v3553 = vpop.f32.mrb[0].mxu0
      %3554 = vmatprep.mubr.bf16.mxu0 0
      %3555 = vmatmul.mubr.bf16.gmra.mrb[0].mxu0 %v3371
      %v3556 = vpop.f32.mrb[0].mxu0
      %v3557 = vadd.f32 0.0, %v3556
      %v3558 = vpop.f32.mrb[0].mxu0
      %v3559 = vpop.f32.mrb[0].mxu0
      %v3560 = vadd.f32 0.0, %v3559
      %v3561 = vpop.f32.mrb[0].mxu0
      %3562 = vmatprep.mubr.bf16.mxu0 0
      %3563 = vmatmul.mubr.bf16.gmra.mrb[0].mxu0 %v3374
      %v3564 = vpop.f32.mrb[0].mxu0
      %v3565 = vadd.f32 0.0, %v3564
      %v3566 = vpop.f32.mrb[0].mxu0
      %v3567 = vpop.f32.mrb[0].mxu0
      %v3568 = vadd.f32 0.0, %v3567
      %v3569 = vpop.f32.mrb[0].mxu0
      %3570 = vmatprep.mubr.bf16.mxu0 0
      %3571 = vmatmul.mubr.bf16.gmra.mrb[0].mxu0 %v3377
      %v3572 = vpop.f32.mrb[0].mxu0
      %v3573 = vadd.f32 0.0, %v3572
      %v3574 = vpop.f32.mrb[0].mxu0
      %v3575 = vpop.f32.mrb[0].mxu0
      %v3576 = vadd.f32 0.0, %v3575
      %v3577 = vpop.f32.mrb[0].mxu0
      %3578 = vmatprep.mubr.bf16.mxu0 0
      %3579 = vmatmul.mubr.bf16.gmra.mrb[0].mxu0 %v3380
      %v3580 = vpop.f32.mrb[0].mxu0
      %v3581 = vadd.f32 0.0, %v3580
      %v3582 = vpop.f32.mrb[0].mxu0
      %v3583 = vpop.f32.mrb[0].mxu0
      %v3584 = vadd.f32 0.0, %v3583
      %v3585 = vpop.f32.mrb[0].mxu0
      %3586 = vmatprep.mubr.bf16.mxu0 0
      %3587 = vmatmul.mubr.bf16.gmra.mrb[0].mxu0 %v3383
      %v3588 = vpop.f32.mrb[0].mxu0
      %v3589 = vadd.f32 0.0, %v3588
      %v3590 = vpop.f32.mrb[0].mxu0
      %v3591 = vpop.f32.mrb[0].mxu0
      %v3592 = vadd.f32 0.0, %v3591
      %v3593 = vpop.f32.mrb[0].mxu0
      %3594 = vmatprep.mubr.bf16.mxu0 0
      %3595 = vmatmul.mubr.bf16.gmra.mrb[0].mxu0 %v3386
      %v3596 = vpop.f32.mrb[0].mxu0
      %v3597 = vadd.f32 0.0, %v3596
      %v3598 = vpop.f32.mrb[0].mxu0
      %v3599 = vpop.f32.mrb[0].mxu0
      %v3600 = vadd.f32 0.0, %v3599
      %v3601 = vpop.f32.mrb[0].mxu0
      %3602 = vmatprep.mubr.bf16.mxu0 0
      %3603 = vmatmul.mubr.bf16.gmra.mrb[0].mxu0 %v3389
      %v3604 = vpop.f32.mrb[0].mxu0
      %v3605 = vadd.f32 0.0, %v3604
      %v3606 = vpop.f32.mrb[0].mxu0
      %v3607 = vpop.f32.mrb[0].mxu0
      %v3608 = vadd.f32 0.0, %v3607
      %v3609 = vpop.f32.mrb[0].mxu0
      %3610 = vmatprep.mubr.bf16.mxu0 0
      %3611 = vmatmul.mubr.bf16.gmra.mrb[0].mxu0 %v3392
      %v3612 = vpop.f32.mrb[0].mxu0
      %v3613 = vadd.f32 0.0, %v3612
      %v3614 = vpop.f32.mrb[0].mxu0
      %v3615 = vpop.f32.mrb[0].mxu0
      %v3616 = vadd.f32 0.0, %v3615
      %v3617 = vpop.f32.mrb[0].mxu0
      %3618 = vdwg.mxu0
      %v3619 = vadd.f32 %v3207, %v3429
      %v3620 = vadd.f32 %v3208, %v3432
      %v3621 = vadd.f32 %v3209, %v3437
      %v3622 = vadd.f32 %v3210, %v3440
      %v3623 = vadd.f32 %v3211, %v3445
      %v3624 = vadd.f32 %v3212, %v3448
      %v3625 = vadd.f32 %v3213, %v3453
      %v3626 = vadd.f32 %v3214, %v3456
      %v3627 = vadd.f32 %v3215, %v3461
      %v3628 = vadd.f32 %v3216, %v3464
      %v3629 = vadd.f32 %v3217, %v3469
      %v3630 = vadd.f32 %v3218, %v3472
      %v3631 = vadd.f32 %v3219, %v3477
      %v3632 = vadd.f32 %v3220, %v3480
      %v3633 = vadd.f32 %v3221, %v3485
      %v3634 = vadd.f32 %v3222, %v3488
      %v3635 = vadd.f32 %v3223, %v3493
      %v3636 = vadd.f32 %v3224, %v3496
      %v3637 = vadd.f32 %v3225, %v3501
      %v3638 = vadd.f32 %v3226, %v3504
      %v3639 = vadd.f32 %v3227, %v3509
      %v3640 = vadd.f32 %v3228, %v3512
      %v3641 = vadd.f32 %v3229, %v3517
      %v3642 = vadd.f32 %v3230, %v3520
      %v3643 = vadd.f32 %v3231, %v3525
      %v3644 = vadd.f32 %v3232, %v3528
      %v3645 = vadd.f32 %v3233, %v3533
      %v3646 = vadd.f32 %v3234, %v3536
      %v3647 = vadd.f32 %v3235, %v3541
      %v3648 = vadd.f32 %v3236, %v3544
      %v3649 = vadd.f32 %v3237, %v3549
      %v3650 = vadd.f32 %v3238, %v3552
      %v3651 = vadd.f32 %v3239, %v3557
      %v3652 = vadd.f32 %v3240, %v3560
      %v3653 = vadd.f32 %v3241, %v3565
      %v3654 = vadd.f32 %v3242, %v3568
      %v3655 = vadd.f32 %v3243, %v3573
      %v3656 = vadd.f32 %v3244, %v3576
      %v3657 = vadd.f32 %v3245, %v3581
      %v3658 = vadd.f32 %v3246, %v3584
      %v3659 = vadd.f32 %v3247, %v3589
      %v3660 = vadd.f32 %v3248, %v3592
      %v3661 = vadd.f32 %v3249, %v3597
      %v3662 = vadd.f32 %v3250, %v3600
      %v3663 = vadd.f32 %v3251, %v3605
      %v3664 = vadd.f32 %v3252, %v3608
      %v3665 = vadd.f32 %v3253, %v3613
      %v3666 = vadd.f32 %v3254, %v3616
      %s3667 = scalar_lea.vmem %s2, 128
      %v3668 = vld [vmem:[%s3667] sm:$0xf]
      %v3669 = vld [vmem:[%s3667 + $0x4] sm:$0xf]
      %v3670 = vld [vmem:[%s3667 + $0x8] sm:$0xf]
      %v3671 = vld [vmem:[%s3667 + $0xc] sm:$0xf]
      %v3674 = vrot.slane %v520, 1
      %v3675 = vsel %vm2848, %v2896, %v3674
      %v3676 = vrot.slane %v521, 1
      %v3677 = vsel %vm2848, %v3674, %v3676
      %v3678 = vrot.slane %v1524, 1
      %v3679 = vsel %vm2848, %v3676, %v3678
      %v3684 = vunpack.c.l.b16 %v3668
      %v3685 = vunpack.c.l.b16 %v3669
      %v3686 = vunpack.c.l.b16 %v3670
      %v3687 = vunpack.c.l.b16 %v3671
      %v3688 = vpack.c.b16 %v3685, %v3684
      %v3689 = vpack.c.b16 %v3687, %v3686
      %v3693 = vsel %vm618, %v3675, 0
      %v3696 = vsel %vm618, %v3677, 0
      %v3699 = vsel %vm618, %v3679, 0
      %3701 = vmatprep.subr.bf16.mxu0 0
      %3702 = vmatpush1.bf16.msra.mxu0 %v3688
      %3703 = vmatprep.subr.bf16.mxu0 0
      %3704 = vmatpush1.bf16.msra.mxu0 %v3689
      %3705 = vmatprep.subr.bf16.mxu0 0
      %3706 = vmatpush1.bf16.msra.mxu0 0
      %3707 = vmatprep.subr.bf16.mxu0 0
      %3708 = vmatpush1.bf16.msra.mxu0 0
      %3709 = vmatprep.subr.bf16.mxu0 0
      %3710 = vmatpush1.bf16.msra.mxu0 0
      %3711 = vmatprep.subr.bf16.mxu0 0
      %3712 = vmatpush1.bf16.msra.mxu0 0
      %3713 = vmatprep.subr.bf16.mxu0 0
      %3714 = vmatpush1.bf16.msra.mxu0 0
      %3715 = vmatprep.subr.bf16.mxu0 0
      %3716 = vmatpush1.bf16.msra.mxu0 0
      %3717 = vmatprep.subr.bf16.mxu0 0
      %3718 = vmatpush1.bf16.msra.mxu0 0
      %3719 = vmatprep.subr.bf16.mxu0 0
      %3720 = vmatpush1.bf16.msra.mxu0 0
      %3721 = vmatprep.subr.bf16.mxu0 0
      %3722 = vmatpush1.bf16.msra.mxu0 0
      %3723 = vmatprep.subr.bf16.mxu0 0
      %3724 = vmatpush1.bf16.msra.mxu0 0
      %3725 = vmatprep.subr.bf16.mxu0 0
      %3726 = vmatpush1.bf16.msra.mxu0 0
      %3727 = vmatprep.subr.bf16.mxu0 0
      %3728 = vmatpush1.bf16.msra.mxu0 0
      %3729 = vmatprep.subr.bf16.mxu0 0
      %3730 = vmatpush1.bf16.msra.mxu0 0
      %3731 = vmatprep.subr.bf16.mxu0 0
      %3732 = vmatpush1.bf16.msra.mxu0 0
      %3733 = vmatprep.mubr.bf16.mxu0 0
      %3734 = vmatmul.mubr.bf16.gmra.mrb[0].mxu0 %v2920
      %v3735 = vpop.f32.mrb[0].mxu0
      %v3736 = vadd.f32 0.0, %v3735
      %v3737 = vpop.f32.mrb[0].mxu0
      %v3738 = vpop.f32.mrb[0].mxu0
      %v3739 = vadd.f32 0.0, %v3738
      %v3740 = vpop.f32.mrb[0].mxu0
      %3741 = vmatprep.mubr.bf16.mxu0 0
      %3742 = vmatmul.mubr.bf16.gmra.mrb[0].mxu0 %v2923
      %v3743 = vpop.f32.mrb[0].mxu0
      %v3744 = vadd.f32 0.0, %v3743
      %v3745 = vpop.f32.mrb[0].mxu0
      %v3746 = vpop.f32.mrb[0].mxu0
      %v3747 = vadd.f32 0.0, %v3746
      %v3748 = vpop.f32.mrb[0].mxu0
      %3749 = vmatprep.mubr.bf16.mxu0 0
      %3750 = vmatmul.mubr.bf16.gmra.mrb[0].mxu0 %v2926
      %v3751 = vpop.f32.mrb[0].mxu0
      %v3752 = vadd.f32 0.0, %v3751
      %v3753 = vpop.f32.mrb[0].mxu0
      %v3754 = vpop.f32.mrb[0].mxu0
      %v3755 = vadd.f32 0.0, %v3754
      %v3756 = vpop.f32.mrb[0].mxu0
      %3757 = vmatprep.mubr.bf16.mxu0 0
      %3758 = vmatmul.mubr.bf16.gmra.mrb[0].mxu0 %v2929
      %v3759 = vpop.f32.mrb[0].mxu0
      %v3760 = vadd.f32 0.0, %v3759
      %v3761 = vpop.f32.mrb[0].mxu0
      %v3762 = vpop.f32.mrb[0].mxu0
      %v3763 = vadd.f32 0.0, %v3762
      %v3764 = vpop.f32.mrb[0].mxu0
      %3765 = vmatprep.mubr.bf16.mxu0 0
      %3766 = vmatmul.mubr.bf16.gmra.mrb[0].mxu0 %v2932
      %v3767 = vpop.f32.mrb[0].mxu0
      %v3768 = vadd.f32 0.0, %v3767
      %v3769 = vpop.f32.mrb[0].mxu0
      %v3770 = vpop.f32.mrb[0].mxu0
      %v3771 = vadd.f32 0.0, %v3770
      %v3772 = vpop.f32.mrb[0].mxu0
      %3773 = vmatprep.mubr.bf16.mxu0 0
      %3774 = vmatmul.mubr.bf16.gmra.mrb[0].mxu0 %v2935
      %v3775 = vpop.f32.mrb[0].mxu0
      %v3776 = vadd.f32 0.0, %v3775
      %v3777 = vpop.f32.mrb[0].mxu0
      %v3778 = vpop.f32.mrb[0].mxu0
      %v3779 = vadd.f32 0.0, %v3778
      %v3780 = vpop.f32.mrb[0].mxu0
      %3781 = vmatprep.mubr.bf16.mxu0 0
      %3782 = vmatmul.mubr.bf16.gmra.mrb[0].mxu0 %v2938
      %v3783 = vpop.f32.mrb[0].mxu0
      %v3784 = vadd.f32 0.0, %v3783
      %v3785 = vpop.f32.mrb[0].mxu0
      %v3786 = vpop.f32.mrb[0].mxu0
      %v3787 = vadd.f32 0.0, %v3786
      %v3788 = vpop.f32.mrb[0].mxu0
      %3789 = vmatprep.mubr.bf16.mxu0 0
      %3790 = vmatmul.mubr.bf16.gmra.mrb[0].mxu0 %v2941
      %v3791 = vpop.f32.mrb[0].mxu0
      %v3792 = vadd.f32 0.0, %v3791
      %v3793 = vpop.f32.mrb[0].mxu0
      %v3794 = vpop.f32.mrb[0].mxu0
      %v3795 = vadd.f32 0.0, %v3794
      %v3796 = vpop.f32.mrb[0].mxu0
      %3797 = vmatprep.mubr.bf16.mxu0 0
      %3798 = vmatmul.mubr.bf16.gmra.mrb[0].mxu0 %v2944
      %v3799 = vpop.f32.mrb[0].mxu0
      %v3800 = vadd.f32 0.0, %v3799
      %v3801 = vpop.f32.mrb[0].mxu0
      %v3802 = vpop.f32.mrb[0].mxu0
      %v3803 = vadd.f32 0.0, %v3802
      %v3804 = vpop.f32.mrb[0].mxu0
      %3805 = vmatprep.mubr.bf16.mxu0 0
      %3806 = vmatmul.mubr.bf16.gmra.mrb[0].mxu0 %v2947
      %v3807 = vpop.f32.mrb[0].mxu0
      %v3808 = vadd.f32 0.0, %v3807
      %v3809 = vpop.f32.mrb[0].mxu0
      %v3810 = vpop.f32.mrb[0].mxu0
      %v3811 = vadd.f32 0.0, %v3810
      %v3812 = vpop.f32.mrb[0].mxu0
      %3813 = vmatprep.mubr.bf16.mxu0 0
      %3814 = vmatmul.mubr.bf16.gmra.mrb[0].mxu0 %v2950
      %v3815 = vpop.f32.mrb[0].mxu0
      %v3816 = vadd.f32 0.0, %v3815
      %v3817 = vpop.f32.mrb[0].mxu0
      %v3818 = vpop.f32.mrb[0].mxu0
      %v3819 = vadd.f32 0.0, %v3818
      %v3820 = vpop.f32.mrb[0].mxu0
      %3821 = vmatprep.mubr.bf16.mxu0 0
      %3822 = vmatmul.mubr.bf16.gmra.mrb[0].mxu0 %v2953
      %v3823 = vpop.f32.mrb[0].mxu0
      %v3824 = vadd.f32 0.0, %v3823
      %v3825 = vpop.f32.mrb[0].mxu0
      %v3826 = vpop.f32.mrb[0].mxu0
      %v3827 = vadd.f32 0.0, %v3826
      %v3828 = vpop.f32.mrb[0].mxu0
      %3829 = vmatprep.mubr.bf16.mxu0 0
      %3830 = vmatmul.mubr.bf16.gmra.mrb[0].mxu0 %v2956
      %v3831 = vpop.f32.mrb[0].mxu0
      %v3832 = vadd.f32 0.0, %v3831
      %v3833 = vpop.f32.mrb[0].mxu0
      %v3834 = vpop.f32.mrb[0].mxu0
      %v3835 = vadd.f32 0.0, %v3834
      %v3836 = vpop.f32.mrb[0].mxu0
      %3837 = vmatprep.mubr.bf16.mxu0 0
      %3838 = vmatmul.mubr.bf16.gmra.mrb[0].mxu0 %v2959
      %v3839 = vpop.f32.mrb[0].mxu0
      %v3840 = vadd.f32 0.0, %v3839
      %v3841 = vpop.f32.mrb[0].mxu0
      %v3842 = vpop.f32.mrb[0].mxu0
      %v3843 = vadd.f32 0.0, %v3842
      %v3844 = vpop.f32.mrb[0].mxu0
      %3845 = vmatprep.mubr.bf16.mxu0 0
      %3846 = vmatmul.mubr.bf16.gmra.mrb[0].mxu0 %v2962
      %v3847 = vpop.f32.mrb[0].mxu0
      %v3848 = vadd.f32 0.0, %v3847
      %v3849 = vpop.f32.mrb[0].mxu0
      %v3850 = vpop.f32.mrb[0].mxu0
      %v3851 = vadd.f32 0.0, %v3850
      %v3852 = vpop.f32.mrb[0].mxu0
      %3853 = vmatprep.mubr.bf16.mxu0 0
      %3854 = vmatmul.mubr.bf16.gmra.mrb[0].mxu0 %v2965
      %v3855 = vpop.f32.mrb[0].mxu0
      %v3856 = vadd.f32 0.0, %v3855
      %v3857 = vpop.f32.mrb[0].mxu0
      %v3858 = vpop.f32.mrb[0].mxu0
      %v3859 = vadd.f32 0.0, %v3858
      %v3860 = vpop.f32.mrb[0].mxu0
      %3861 = vmatprep.mubr.bf16.mxu0 0
      %3862 = vmatmul.mubr.bf16.gmra.mrb[0].mxu0 %v2968
      %v3863 = vpop.f32.mrb[0].mxu0
      %v3864 = vadd.f32 0.0, %v3863
      %v3865 = vpop.f32.mrb[0].mxu0
      %v3866 = vpop.f32.mrb[0].mxu0
      %v3867 = vadd.f32 0.0, %v3866
      %v3868 = vpop.f32.mrb[0].mxu0
      %3869 = vmatprep.mubr.bf16.mxu0 0
      %3870 = vmatmul.mubr.bf16.gmra.mrb[0].mxu0 %v2971
      %v3871 = vpop.f32.mrb[0].mxu0
      %v3872 = vadd.f32 0.0, %v3871
      %v3873 = vpop.f32.mrb[0].mxu0
      %v3874 = vpop.f32.mrb[0].mxu0
      %v3875 = vadd.f32 0.0, %v3874
      %v3876 = vpop.f32.mrb[0].mxu0
      %3877 = vmatprep.mubr.bf16.mxu0 0
      %3878 = vmatmul.mubr.bf16.gmra.mrb[0].mxu0 %v2974
      %v3879 = vpop.f32.mrb[0].mxu0
      %v3880 = vadd.f32 0.0, %v3879
      %v3881 = vpop.f32.mrb[0].mxu0
      %v3882 = vpop.f32.mrb[0].mxu0
      %v3883 = vadd.f32 0.0, %v3882
      %v3884 = vpop.f32.mrb[0].mxu0
      %3885 = vmatprep.mubr.bf16.mxu0 0
      %3886 = vmatmul.mubr.bf16.gmra.mrb[0].mxu0 %v2977
      %v3887 = vpop.f32.mrb[0].mxu0
      %v3888 = vadd.f32 0.0, %v3887
      %v3889 = vpop.f32.mrb[0].mxu0
      %v3890 = vpop.f32.mrb[0].mxu0
      %v3891 = vadd.f32 0.0, %v3890
      %v3892 = vpop.f32.mrb[0].mxu0
      %3893 = vmatprep.mubr.bf16.mxu0 0
      %3894 = vmatmul.mubr.bf16.gmra.mrb[0].mxu0 %v2980
      %v3895 = vpop.f32.mrb[0].mxu0
      %v3896 = vadd.f32 0.0, %v3895
      %v3897 = vpop.f32.mrb[0].mxu0
      %v3898 = vpop.f32.mrb[0].mxu0
      %v3899 = vadd.f32 0.0, %v3898
      %v3900 = vpop.f32.mrb[0].mxu0
      %3901 = vmatprep.mubr.bf16.mxu0 0
      %3902 = vmatmul.mubr.bf16.gmra.mrb[0].mxu0 %v3693
      %v3903 = vpop.f32.mrb[0].mxu0
      %v3904 = vadd.f32 0.0, %v3903
      %v3905 = vpop.f32.mrb[0].mxu0
      %v3906 = vpop.f32.mrb[0].mxu0
      %v3907 = vadd.f32 0.0, %v3906
      %v3908 = vpop.f32.mrb[0].mxu0
      %3909 = vmatprep.mubr.bf16.mxu0 0
      %3910 = vmatmul.mubr.bf16.gmra.mrb[0].mxu0 %v3696
      %v3911 = vpop.f32.mrb[0].mxu0
      %v3912 = vadd.f32 0.0, %v3911
      %v3913 = vpop.f32.mrb[0].mxu0
      %v3914 = vpop.f32.mrb[0].mxu0
      %v3915 = vadd.f32 0.0, %v3914
      %v3916 = vpop.f32.mrb[0].mxu0
      %3917 = vmatprep.mubr.bf16.mxu0 0
      %3918 = vmatmul.mubr.bf16.gmra.mrb[0].mxu0 %v3699
      %v3919 = vpop.f32.mrb[0].mxu0
      %v3920 = vadd.f32 0.0, %v3919
      %v3921 = vpop.f32.mrb[0].mxu0
      %v3922 = vpop.f32.mrb[0].mxu0
      %v3923 = vadd.f32 0.0, %v3922
      %v3924 = vpop.f32.mrb[0].mxu0
      %3925 = vdwg.mxu0
      %v3926 = vadd.f32 %v3619, %v3736
      %v3927 = vadd.f32 %v3620, %v3739
      %v3928 = vadd.f32 %v3621, %v3744
      %v3929 = vadd.f32 %v3622, %v3747
      %v3930 = vadd.f32 %v3623, %v3752
      %v3931 = vadd.f32 %v3624, %v3755
      %v3932 = vadd.f32 %v3625, %v3760
      %v3933 = vadd.f32 %v3626, %v3763
      %v3934 = vadd.f32 %v3627, %v3768
      %v3935 = vadd.f32 %v3628, %v3771
      %v3936 = vadd.f32 %v3629, %v3776
      %v3937 = vadd.f32 %v3630, %v3779
      %v3938 = vadd.f32 %v3631, %v3784
      %v3939 = vadd.f32 %v3632, %v3787
      %v3940 = vadd.f32 %v3633, %v3792
      %v3941 = vadd.f32 %v3634, %v3795
      %v3942 = vadd.f32 %v3635, %v3800
      %v3943 = vadd.f32 %v3636, %v3803
      %v3944 = vadd.f32 %v3637, %v3808
      %v3945 = vadd.f32 %v3638, %v3811
      %v3946 = vadd.f32 %v3639, %v3816
      %v3947 = vadd.f32 %v3640, %v3819
      %v3948 = vadd.f32 %v3641, %v3824
      %v3949 = vadd.f32 %v3642, %v3827
      %v3950 = vadd.f32 %v3643, %v3832
      %v3951 = vadd.f32 %v3644, %v3835
      %v3952 = vadd.f32 %v3645, %v3840
      %v3953 = vadd.f32 %v3646, %v3843
      %v3954 = vadd.f32 %v3647, %v3848
      %v3955 = vadd.f32 %v3648, %v3851
      %v3956 = vadd.f32 %v3649, %v3856
      %v3957 = vadd.f32 %v3650, %v3859
      %v3958 = vadd.f32 %v3651, %v3864
      %v3959 = vadd.f32 %v3652, %v3867
      %v3960 = vadd.f32 %v3653, %v3872
      %v3961 = vadd.f32 %v3654, %v3875
      %v3962 = vadd.f32 %v3655, %v3880
      %v3963 = vadd.f32 %v3656, %v3883
      %v3964 = vadd.f32 %v3657, %v3888
      %v3965 = vadd.f32 %v3658, %v3891
      %v3966 = vadd.f32 %v3659, %v3896
      %v3967 = vadd.f32 %v3660, %v3899
      %v3968 = vadd.f32 %v3661, %v3904
      %v3969 = vadd.f32 %v3662, %v3907
      %v3970 = vadd.f32 %v3663, %v3912
      %v3971 = vadd.f32 %v3664, %v3915
      %v3972 = vadd.f32 %v3665, %v3920
      %v3973 = vadd.f32 %v3666, %v3923
      %v3974 = vpack.c.bf16 %v3927, %v3926
      %v3975 = vpack.c.bf16 %v3929, %v3928
      %v3976 = vpack.c.bf16 %v3931, %v3930
      %v3977 = vpack.c.bf16 %v3933, %v3932
      %v3978 = vpack.c.bf16 %v3935, %v3934
      %v3979 = vpack.c.bf16 %v3937, %v3936
      %v3980 = vpack.c.bf16 %v3939, %v3938
      %v3981 = vpack.c.bf16 %v3941, %v3940
      %v3982 = vpack.c.bf16 %v3943, %v3942
      %v3983 = vpack.c.bf16 %v3945, %v3944
      %v3984 = vpack.c.bf16 %v3947, %v3946
      %v3985 = vpack.c.bf16 %v3949, %v3948
      %v3986 = vpack.c.bf16 %v3951, %v3950
      %v3987 = vpack.c.bf16 %v3953, %v3952
      %v3988 = vpack.c.bf16 %v3955, %v3954
      %v3989 = vpack.c.bf16 %v3957, %v3956
      %v3990 = vpack.c.bf16 %v3959, %v3958
      %v3991 = vpack.c.bf16 %v3961, %v3960
      %v3992 = vpack.c.bf16 %v3963, %v3962
      %v3993 = vpack.c.bf16 %v3965, %v3964
      %v3994 = vpack.c.bf16 %v3967, %v3966
      %v3995 = vpack.c.bf16 %v3969, %v3968
      %v3996 = vpack.c.bf16 %v3971, %v3970
      %v3997 = vpack.c.bf16 %v3973, %v3972
      %v4022 = vunpack.c.l.b16 %v3974
      %v4023 = vunpack.c.h.b16 %v3974
      %v4024 = vunpack.c.l.b16 %v3975
      %v4025 = vunpack.c.h.b16 %v3975
      %v4026 = vunpack.c.l.b16 %v3976
      %v4027 = vunpack.c.h.b16 %v3976
      %v4028 = vunpack.c.l.b16 %v3977
      %v4029 = vunpack.c.h.b16 %v3977
      %v4030 = vunpack.c.l.b16 %v3978
      %v4031 = vunpack.c.h.b16 %v3978
      %v4032 = vunpack.c.l.b16 %v3979
      %v4033 = vunpack.c.h.b16 %v3979
      %v4034 = vunpack.c.l.b16 %v3980
      %v4035 = vunpack.c.h.b16 %v3980
      %v4036 = vunpack.c.l.b16 %v3981
      %v4037 = vunpack.c.h.b16 %v3981
      %v4038 = vunpack.c.l.b16 %v3982
      %v4039 = vunpack.c.h.b16 %v3982
      %v4040 = vunpack.c.l.b16 %v3983
      %v4041 = vunpack.c.h.b16 %v3983
      %v4042 = vunpack.c.l.b16 %v3984
      %v4043 = vunpack.c.h.b16 %v3984
      %v4044 = vunpack.c.l.b16 %v3985
      %v4045 = vunpack.c.h.b16 %v3985
      %v4046 = vunpack.c.l.b16 %v3986
      %v4047 = vunpack.c.h.b16 %v3986
      %v4048 = vunpack.c.l.b16 %v3987
      %v4049 = vunpack.c.h.b16 %v3987
      %v4050 = vunpack.c.l.b16 %v3988
      %v4051 = vunpack.c.h.b16 %v3988
      %v4052 = vunpack.c.l.b16 %v3989
      %v4053 = vunpack.c.h.b16 %v3989
      %v4054 = vunpack.c.l.b16 %v3990
      %v4055 = vunpack.c.h.b16 %v3990
      %v4056 = vunpack.c.l.b16 %v3991
      %v4057 = vunpack.c.h.b16 %v3991
      %v4058 = vunpack.c.l.b16 %v3992
      %v4059 = vunpack.c.h.b16 %v3992
      %v4060 = vunpack.c.l.b16 %v3993
      %v4061 = vunpack.c.h.b16 %v3993
      %v4062 = vunpack.c.l.b16 %v3994
      %v4063 = vunpack.c.h.b16 %v3994
      %v4064 = vunpack.c.l.b16 %v3995
      %v4065 = vunpack.c.h.b16 %v3995
      %v4066 = vunpack.c.l.b16 %v3996
      %v4067 = vunpack.c.h.b16 %v3996
      %v4068 = vunpack.c.l.b16 %v3997
      %v4069 = vunpack.c.h.b16 %v3997
      %v4070 = vpack.c.b16 %v4022, %v4022
      %v4071 = vpack.c.b16 %v4023, %v4023
      %v4072 = vpack.c.b16 %v4024, %v4024
      %v4073 = vpack.c.b16 %v4025, %v4025
      %v4074 = vpack.c.b16 %v4026, %v4026
      %v4075 = vpack.c.b16 %v4027, %v4027
      %v4076 = vpack.c.b16 %v4028, %v4028
      %v4077 = vpack.c.b16 %v4029, %v4029
      %v4078 = vpack.c.b16 %v4030, %v4030
      %v4079 = vpack.c.b16 %v4031, %v4031
      %v4080 = vpack.c.b16 %v4032, %v4032
      %v4081 = vpack.c.b16 %v4033, %v4033
      %v4082 = vpack.c.b16 %v4034, %v4034
      %v4083 = vpack.c.b16 %v4035, %v4035
      %v4084 = vpack.c.b16 %v4036, %v4036
      %v4085 = vpack.c.b16 %v4037, %v4037
      %v4086 = vpack.c.b16 %v4038, %v4038
      %v4087 = vpack.c.b16 %v4039, %v4039
      %v4088 = vpack.c.b16 %v4040, %v4040
      %v4089 = vpack.c.b16 %v4041, %v4041
      %v4090 = vpack.c.b16 %v4042, %v4042
      %v4091 = vpack.c.b16 %v4043, %v4043
      %v4092 = vpack.c.b16 %v4044, %v4044
      %v4093 = vpack.c.b16 %v4045, %v4045
      %v4094 = vpack.c.b16 %v4046, %v4046
      %v4095 = vpack.c.b16 %v4047, %v4047
      %v4096 = vpack.c.b16 %v4048, %v4048
      %v4097 = vpack.c.b16 %v4049, %v4049
      %v4098 = vpack.c.b16 %v4050, %v4050
      %v4099 = vpack.c.b16 %v4051, %v4051
      %v4100 = vpack.c.b16 %v4052, %v4052
      %v4101 = vpack.c.b16 %v4053, %v4053
      %v4102 = vpack.c.b16 %v4054, %v4054
      %v4103 = vpack.c.b16 %v4055, %v4055
      %v4104 = vpack.c.b16 %v4056, %v4056
      %v4105 = vpack.c.b16 %v4057, %v4057
      %v4106 = vpack.c.b16 %v4058, %v4058
      %v4107 = vpack.c.b16 %v4059, %v4059
      %v4108 = vpack.c.b16 %v4060, %v4060
      %v4109 = vpack.c.b16 %v4061, %v4061
      %v4110 = vpack.c.b16 %v4062, %v4062
      %v4111 = vpack.c.b16 %v4063, %v4063
      %v4112 = vpack.c.b16 %v4064, %v4064
      %v4113 = vpack.c.b16 %v4065, %v4065
      %v4114 = vpack.c.b16 %v4066, %v4066
      %v4115 = vpack.c.b16 %v4067, %v4067
      %v4116 = vpack.c.b16 %v4068, %v4068
      %v4117 = vpack.c.b16 %v4069, %v4069
      %vm4166 = vcmask 257024
      %4167 = vst.msk [vmem:[%s204] sm:$0xf] %vm4166, %v4070
      %4168 = vst.msk [vmem:[%s204 + $0x4] sm:$0xf] %vm4166, %v4071
      %4169 = vst.msk [vmem:[%s204 + $0x8] sm:$0xf] %vm4166, %v4072
      %4170 = vst.msk [vmem:[%s204 + $0xc] sm:$0xf] %vm4166, %v4073
      %4171 = vst.msk [vmem:[%s204 + $0x10] sm:$0xf] %vm4166, %v4074
      %4172 = vst.msk [vmem:[%s204 + $0x14] sm:$0xf] %vm4166, %v4075
      %4173 = vst.msk [vmem:[%s204 + $0x18] sm:$0xf] %vm4166, %v4076
      %4174 = vst.msk [vmem:[%s204 + $0x1c] sm:$0xf] %vm4166, %v4077
      %4175 = vst.msk [vmem:[%s204 + $0x20] sm:$0xf] %vm4166, %v4078
      %4176 = vst.msk [vmem:[%s204 + $0x24] sm:$0xf] %vm4166, %v4079
      %4177 = vst.msk [vmem:[%s204 + $0x28] sm:$0xf] %vm4166, %v4080
      %4178 = vst.msk [vmem:[%s204 + $0x2c] sm:$0xf] %vm4166, %v4081
      %4179 = vst.msk [vmem:[%s204 + $0x30] sm:$0xf] %vm4166, %v4082
      %4180 = vst.msk [vmem:[%s204 + $0x34] sm:$0xf] %vm4166, %v4083
      %4181 = vst.msk [vmem:[%s204 + $0x38] sm:$0xf] %vm4166, %v4084
      %4182 = vst.msk [vmem:[%s204 + $0x3c] sm:$0xf] %vm4166, %v4085
      %4183 = vst.msk [vmem:[%s204 + $0x40] sm:$0xf] %vm4166, %v4086
      %4184 = vst.msk [vmem:[%s204 + $0x44] sm:$0xf] %vm4166, %v4087
      %4185 = vst.msk [vmem:[%s204 + $0x48] sm:$0xf] %vm4166, %v4088
      %4186 = vst.msk [vmem:[%s204 + $0x4c] sm:$0xf] %vm4166, %v4089
      %4187 = vst.msk [vmem:[%s204 + $0x50] sm:$0xf] %vm4166, %v4090
      %4188 = vst.msk [vmem:[%s204 + $0x54] sm:$0xf] %vm4166, %v4091
      %4189 = vst.msk [vmem:[%s204 + $0x58] sm:$0xf] %vm4166, %v4092
      %4190 = vst.msk [vmem:[%s204 + $0x5c] sm:$0xf] %vm4166, %v4093
      %4191 = vst.msk [vmem:[%s204 + $0x60] sm:$0xf] %vm4166, %v4094
      %4192 = vst.msk [vmem:[%s204 + $0x64] sm:$0xf] %vm4166, %v4095
      %4193 = vst.msk [vmem:[%s204 + $0x68] sm:$0xf] %vm4166, %v4096
      %4194 = vst.msk [vmem:[%s204 + $0x6c] sm:$0xf] %vm4166, %v4097
      %4195 = vst.msk [vmem:[%s204 + $0x70] sm:$0xf] %vm4166, %v4098
      %4196 = vst.msk [vmem:[%s204 + $0x74] sm:$0xf] %vm4166, %v4099
      %4197 = vst.msk [vmem:[%s204 + $0x78] sm:$0xf] %vm4166, %v4100
      %4198 = vst.msk [vmem:[%s204 + $0x7c] sm:$0xf] %vm4166, %v4101
      %4199 = vst.msk [vmem:[%s204 + $0x80] sm:$0xf] %vm4166, %v4102
      %4200 = vst.msk [vmem:[%s204 + $0x84] sm:$0xf] %vm4166, %v4103
      %4201 = vst.msk [vmem:[%s204 + $0x88] sm:$0xf] %vm4166, %v4104
      %4202 = vst.msk [vmem:[%s204 + $0x8c] sm:$0xf] %vm4166, %v4105
      %4203 = vst.msk [vmem:[%s204 + $0x90] sm:$0xf] %vm4166, %v4106
      %4204 = vst.msk [vmem:[%s204 + $0x94] sm:$0xf] %vm4166, %v4107
      %4205 = vst.msk [vmem:[%s204 + $0x98] sm:$0xf] %vm4166, %v4108
      %4206 = vst.msk [vmem:[%s204 + $0x9c] sm:$0xf] %vm4166, %v4109
      %4207 = vst.msk [vmem:[%s204 + $0xa0] sm:$0xf] %vm4166, %v4110
      %4208 = vst.msk [vmem:[%s204 + $0xa4] sm:$0xf] %vm4166, %v4111
      %4209 = vst.msk [vmem:[%s204 + $0xa8] sm:$0xf] %vm4166, %v4112
      %4210 = vst.msk [vmem:[%s204 + $0xac] sm:$0xf] %vm4166, %v4113
      %4211 = vst.msk [vmem:[%s204 + $0xb0] sm:$0xf] %vm4166, %v4114
      %4212 = vst.msk [vmem:[%s204 + $0xb4] sm:$0xf] %vm4166, %v4115
      %4213 = vst.msk [vmem:[%s204 + $0xb8] sm:$0xf] %vm4166, %v4116
      %4214 = vst.msk [vmem:[%s204 + $0xbc] sm:$0xf] %vm4166, %v4117
      %v4215 = vlaneseq
      %v4216 = vshrl.u32 %v4215, 7
      %v4217 = vadd.s32 %v4216, 8
      %v4218 = vadd.s32 %v4216, 16
      %v4219 = vadd.s32 %v4216, 24
      %v4220 = vadd.s32 %v4216, 32
      %v4221 = vadd.s32 %v4216, 40
      %v4222 = vadd.s32 %v4216, 48
      %v4223 = vadd.s32 %v4216, 56
      %v4224 = vadd.s32 %v4216, 64
      %v4225 = vadd.s32 %v4216, 72
      %v4226 = vadd.s32 %v4216, 80
      %v4227 = vadd.s32 %v4216, 88
      %v4228 = vadd.s32 %v4216, 96
      %v4229 = vadd.s32 %v4216, 104
      %v4230 = vadd.s32 %v4216, 112
      %v4231 = vadd.s32 %v4216, 120
      %v4232 = vadd.s32 %v4216, 128
      %v4233 = vadd.s32 %v4216, 136
      %v4234 = vadd.s32 %v4216, 144
      %v4235 = vadd.s32 %v4216, 152
      %v4236 = vadd.s32 %v4216, 160
      %v4237 = vadd.s32 %v4216, 168
      %v4238 = vadd.s32 %v4216, 176
      %v4239 = vadd.s32 %v4216, 184
      %v4240 = vadd.s32 %v4216, 192
      %v4241 = vadd.s32 %v4216, 200
      %v4242 = vadd.s32 %v4216, 208
      %v4243 = vadd.s32 %v4216, 216
      %v4244 = vadd.s32 %v4216, 224
      %v4245 = vadd.s32 %v4216, 232
      %v4246 = vadd.s32 %v4216, 240
      %v4247 = vadd.s32 %v4216, 248
      %v4248 = vadd.s32 %v4216, 256
      %v4249 = vadd.s32 %v4216, 264
      %v4250 = vadd.s32 %v4216, 272
      %v4251 = vadd.s32 %v4216, 280
      %v4252 = vadd.s32 %v4216, 288
      %v4253 = vadd.s32 %v4216, 296
      %v4254 = vadd.s32 %v4216, 304
      %v4255 = vadd.s32 %v4216, 312
      %v4256 = vadd.s32 %v4216, 320
      %v4257 = vadd.s32 %v4216, 328
      %v4258 = vadd.s32 %v4216, 336
      %v4259 = vadd.s32 %v4216, 344
      %v4260 = vadd.s32 %v4216, 352
      %v4261 = vadd.s32 %v4216, 360
      %v4262 = vadd.s32 %v4216, 368
      %v4263 = vadd.s32 %v4216, 376
      %vm4264 = vcmp.lt.s32.totalorder %v4216, 0
      %v4265 = vsub.s32 0, %v4216
      %v4266 = vsel %vm4264, %v4265, %v4216
      %v4267 = vmul.u32.u64.compose %v4266, 2863311531
      %v4268 = vextract.low.u32 %v4267
      %v4269 = vextract.high.u32 %v4267
      %v4270 = vshrl.u32 %v4269, 4
      %v4271 = vmul.u32 %v4270, 24
      %v4272 = vsub.s32 %v4266, %v4271
      %v4273 = vsub.s32 0, %v4272
      %v4274 = vsel %vm4264, %v4273, %v4272
      %vm4275 = vcmp.lt.s32.totalorder %v4217, 0
      %v4276 = vsub.s32 0, %v4217
      %v4277 = vsel %vm4275, %v4276, %v4217
      %v4278 = vmul.u32.u64.compose %v4277, 2863311531
      %v4279 = vextract.low.u32 %v4278
      %v4280 = vextract.high.u32 %v4278
      %v4281 = vshrl.u32 %v4280, 4
      %v4282 = vmul.u32 %v4281, 24
      %v4283 = vsub.s32 %v4277, %v4282
      %v4284 = vsub.s32 0, %v4283
      %v4285 = vsel %vm4275, %v4284, %v4283
      %vm4286 = vcmp.lt.s32.totalorder %v4218, 0
      %v4287 = vsub.s32 0, %v4218
      %v4288 = vsel %vm4286, %v4287, %v4218
      %v4289 = vmul.u32.u64.compose %v4288, 2863311531
      %v4290 = vextract.low.u32 %v4289
      %v4291 = vextract.high.u32 %v4289
      %v4292 = vshrl.u32 %v4291, 4
      %v4293 = vmul.u32 %v4292, 24
      %v4294 = vsub.s32 %v4288, %v4293
      %v4295 = vsub.s32 0, %v4294
      %v4296 = vsel %vm4286, %v4295, %v4294
      %vm4297 = vcmp.lt.s32.totalorder %v4219, 0
      %v4298 = vsub.s32 0, %v4219
      %v4299 = vsel %vm4297, %v4298, %v4219
      %v4300 = vmul.u32.u64.compose %v4299, 2863311531
      %v4301 = vextract.low.u32 %v4300
      %v4302 = vextract.high.u32 %v4300
      %v4303 = vshrl.u32 %v4302, 4
      %v4304 = vmul.u32 %v4303, 24
      %v4305 = vsub.s32 %v4299, %v4304
      %v4306 = vsub.s32 0, %v4305
      %v4307 = vsel %vm4297, %v4306, %v4305
      %vm4308 = vcmp.lt.s32.totalorder %v4220, 0
      %v4309 = vsub.s32 0, %v4220
      %v4310 = vsel %vm4308, %v4309, %v4220
      %v4311 = vmul.u32.u64.compose %v4310, 2863311531
      %v4312 = vextract.low.u32 %v4311
      %v4313 = vextract.high.u32 %v4311
      %v4314 = vshrl.u32 %v4313, 4
      %v4315 = vmul.u32 %v4314, 24
      %v4316 = vsub.s32 %v4310, %v4315
      %v4317 = vsub.s32 0, %v4316
      %v4318 = vsel %vm4308, %v4317, %v4316
      %vm4319 = vcmp.lt.s32.totalorder %v4221, 0
      %v4320 = vsub.s32 0, %v4221
      %v4321 = vsel %vm4319, %v4320, %v4221
      %v4322 = vmul.u32.u64.compose %v4321, 2863311531
      %v4323 = vextract.low.u32 %v4322
      %v4324 = vextract.high.u32 %v4322
      %v4325 = vshrl.u32 %v4324, 4
      %v4326 = vmul.u32 %v4325, 24
      %v4327 = vsub.s32 %v4321, %v4326
      %v4328 = vsub.s32 0, %v4327
      %v4329 = vsel %vm4319, %v4328, %v4327
      %vm4330 = vcmp.lt.s32.totalorder %v4222, 0
      %v4331 = vsub.s32 0, %v4222
      %v4332 = vsel %vm4330, %v4331, %v4222
      %v4333 = vmul.u32.u64.compose %v4332, 2863311531
      %v4334 = vextract.low.u32 %v4333
      %v4335 = vextract.high.u32 %v4333
      %v4336 = vshrl.u32 %v4335, 4
      %v4337 = vmul.u32 %v4336, 24
      %v4338 = vsub.s32 %v4332, %v4337
      %v4339 = vsub.s32 0, %v4338
      %v4340 = vsel %vm4330, %v4339, %v4338
      %vm4341 = vcmp.lt.s32.totalorder %v4223, 0
      %v4342 = vsub.s32 0, %v4223
      %v4343 = vsel %vm4341, %v4342, %v4223
      %v4344 = vmul.u32.u64.compose %v4343, 2863311531
      %v4345 = vextract.low.u32 %v4344
      %v4346 = vextract.high.u32 %v4344
      %v4347 = vshrl.u32 %v4346, 4
      %v4348 = vmul.u32 %v4347, 24
      %v4349 = vsub.s32 %v4343, %v4348
      %v4350 = vsub.s32 0, %v4349
      %v4351 = vsel %vm4341, %v4350, %v4349
      %vm4352 = vcmp.lt.s32.totalorder %v4224, 0
      %v4353 = vsub.s32 0, %v4224
      %v4354 = vsel %vm4352, %v4353, %v4224
      %v4355 = vmul.u32.u64.compose %v4354, 2863311531
      %v4356 = vextract.low.u32 %v4355
      %v4357 = vextract.high.u32 %v4355
      %v4358 = vshrl.u32 %v4357, 4
      %v4359 = vmul.u32 %v4358, 24
      %v4360 = vsub.s32 %v4354, %v4359
      %v4361 = vsub.s32 0, %v4360
      %v4362 = vsel %vm4352, %v4361, %v4360
      %vm4363 = vcmp.lt.s32.totalorder %v4225, 0
      %v4364 = vsub.s32 0, %v4225
      %v4365 = vsel %vm4363, %v4364, %v4225
      %v4366 = vmul.u32.u64.compose %v4365, 2863311531
      %v4367 = vextract.low.u32 %v4366
      %v4368 = vextract.high.u32 %v4366
      %v4369 = vshrl.u32 %v4368, 4
      %v4370 = vmul.u32 %v4369, 24
      %v4371 = vsub.s32 %v4365, %v4370
      %v4372 = vsub.s32 0, %v4371
      %v4373 = vsel %vm4363, %v4372, %v4371
      %vm4374 = vcmp.lt.s32.totalorder %v4226, 0
      %v4375 = vsub.s32 0, %v4226
      %v4376 = vsel %vm4374, %v4375, %v4226
      %v4377 = vmul.u32.u64.compose %v4376, 2863311531
      %v4378 = vextract.low.u32 %v4377
      %v4379 = vextract.high.u32 %v4377
      %v4380 = vshrl.u32 %v4379, 4
      %v4381 = vmul.u32 %v4380, 24
      %v4382 = vsub.s32 %v4376, %v4381
      %v4383 = vsub.s32 0, %v4382
      %v4384 = vsel %vm4374, %v4383, %v4382
      %vm4385 = vcmp.lt.s32.totalorder %v4227, 0
      %v4386 = vsub.s32 0, %v4227
      %v4387 = vsel %vm4385, %v4386, %v4227
      %v4388 = vmul.u32.u64.compose %v4387, 2863311531
      %v4389 = vextract.low.u32 %v4388
      %v4390 = vextract.high.u32 %v4388
      %v4391 = vshrl.u32 %v4390, 4
      %v4392 = vmul.u32 %v4391, 24
      %v4393 = vsub.s32 %v4387, %v4392
      %v4394 = vsub.s32 0, %v4393
      %v4395 = vsel %vm4385, %v4394, %v4393
      %vm4396 = vcmp.lt.s32.totalorder %v4228, 0
      %v4397 = vsub.s32 0, %v4228
      %v4398 = vsel %vm4396, %v4397, %v4228
      %v4399 = vmul.u32.u64.compose %v4398, 2863311531
      %v4400 = vextract.low.u32 %v4399
      %v4401 = vextract.high.u32 %v4399
      %v4402 = vshrl.u32 %v4401, 4
      %v4403 = vmul.u32 %v4402, 24
      %v4404 = vsub.s32 %v4398, %v4403
      %v4405 = vsub.s32 0, %v4404
      %v4406 = vsel %vm4396, %v4405, %v4404
      %vm4407 = vcmp.lt.s32.totalorder %v4229, 0
      %v4408 = vsub.s32 0, %v4229
      %v4409 = vsel %vm4407, %v4408, %v4229
      %v4410 = vmul.u32.u64.compose %v4409, 2863311531
      %v4411 = vextract.low.u32 %v4410
      %v4412 = vextract.high.u32 %v4410
      %v4413 = vshrl.u32 %v4412, 4
      %v4414 = vmul.u32 %v4413, 24
      %v4415 = vsub.s32 %v4409, %v4414
      %v4416 = vsub.s32 0, %v4415
      %v4417 = vsel %vm4407, %v4416, %v4415
      %vm4418 = vcmp.lt.s32.totalorder %v4230, 0
      %v4419 = vsub.s32 0, %v4230
      %v4420 = vsel %vm4418, %v4419, %v4230
      %v4421 = vmul.u32.u64.compose %v4420, 2863311531
      %v4422 = vextract.low.u32 %v4421
      %v4423 = vextract.high.u32 %v4421
      %v4424 = vshrl.u32 %v4423, 4
      %v4425 = vmul.u32 %v4424, 24
      %v4426 = vsub.s32 %v4420, %v4425
      %v4427 = vsub.s32 0, %v4426
      %v4428 = vsel %vm4418, %v4427, %v4426
      %vm4429 = vcmp.lt.s32.totalorder %v4231, 0
      %v4430 = vsub.s32 0, %v4231
      %v4431 = vsel %vm4429, %v4430, %v4231
      %v4432 = vmul.u32.u64.compose %v4431, 2863311531
      %v4433 = vextract.low.u32 %v4432
      %v4434 = vextract.high.u32 %v4432
      %v4435 = vshrl.u32 %v4434, 4
      %v4436 = vmul.u32 %v4435, 24
      %v4437 = vsub.s32 %v4431, %v4436
      %v4438 = vsub.s32 0, %v4437
      %v4439 = vsel %vm4429, %v4438, %v4437
      %vm4440 = vcmp.lt.s32.totalorder %v4232, 0
      %v4441 = vsub.s32 0, %v4232
      %v4442 = vsel %vm4440, %v4441, %v4232
      %v4443 = vmul.u32.u64.compose %v4442, 2863311531
      %v4444 = vextract.low.u32 %v4443
      %v4445 = vextract.high.u32 %v4443
      %v4446 = vshrl.u32 %v4445, 4
      %v4447 = vmul.u32 %v4446, 24
      %v4448 = vsub.s32 %v4442, %v4447
      %v4449 = vsub.s32 0, %v4448
      %v4450 = vsel %vm4440, %v4449, %v4448
      %vm4451 = vcmp.lt.s32.totalorder %v4233, 0
      %v4452 = vsub.s32 0, %v4233
      %v4453 = vsel %vm4451, %v4452, %v4233
      %v4454 = vmul.u32.u64.compose %v4453, 2863311531
      %v4455 = vextract.low.u32 %v4454
      %v4456 = vextract.high.u32 %v4454
      %v4457 = vshrl.u32 %v4456, 4
      %v4458 = vmul.u32 %v4457, 24
      %v4459 = vsub.s32 %v4453, %v4458
      %v4460 = vsub.s32 0, %v4459
      %v4461 = vsel %vm4451, %v4460, %v4459
      %vm4462 = vcmp.lt.s32.totalorder %v4234, 0
      %v4463 = vsub.s32 0, %v4234
      %v4464 = vsel %vm4462, %v4463, %v4234
      %v4465 = vmul.u32.u64.compose %v4464, 2863311531
      %v4466 = vextract.low.u32 %v4465
      %v4467 = vextract.high.u32 %v4465
      %v4468 = vshrl.u32 %v4467, 4
      %v4469 = vmul.u32 %v4468, 24
      %v4470 = vsub.s32 %v4464, %v4469
      %v4471 = vsub.s32 0, %v4470
      %v4472 = vsel %vm4462, %v4471, %v4470
      %vm4473 = vcmp.lt.s32.totalorder %v4235, 0
      %v4474 = vsub.s32 0, %v4235
      %v4475 = vsel %vm4473, %v4474, %v4235
      %v4476 = vmul.u32.u64.compose %v4475, 2863311531
      %v4477 = vextract.low.u32 %v4476
      %v4478 = vextract.high.u32 %v4476
      %v4479 = vshrl.u32 %v4478, 4
      %v4480 = vmul.u32 %v4479, 24
      %v4481 = vsub.s32 %v4475, %v4480
      %v4482 = vsub.s32 0, %v4481
      %v4483 = vsel %vm4473, %v4482, %v4481
      %vm4484 = vcmp.lt.s32.totalorder %v4236, 0
      %v4485 = vsub.s32 0, %v4236
      %v4486 = vsel %vm4484, %v4485, %v4236
      %v4487 = vmul.u32.u64.compose %v4486, 2863311531
      %v4488 = vextract.low.u32 %v4487
      %v4489 = vextract.high.u32 %v4487
      %v4490 = vshrl.u32 %v4489, 4
      %v4491 = vmul.u32 %v4490, 24
      %v4492 = vsub.s32 %v4486, %v4491
      %v4493 = vsub.s32 0, %v4492
      %v4494 = vsel %vm4484, %v4493, %v4492
      %vm4495 = vcmp.lt.s32.totalorder %v4237, 0
      %v4496 = vsub.s32 0, %v4237
      %v4497 = vsel %vm4495, %v4496, %v4237
      %v4498 = vmul.u32.u64.compose %v4497, 2863311531
      %v4499 = vextract.low.u32 %v4498
      %v4500 = vextract.high.u32 %v4498
      %v4501 = vshrl.u32 %v4500, 4
      %v4502 = vmul.u32 %v4501, 24
      %v4503 = vsub.s32 %v4497, %v4502
      %v4504 = vsub.s32 0, %v4503
      %v4505 = vsel %vm4495, %v4504, %v4503
      %vm4506 = vcmp.lt.s32.totalorder %v4238, 0
      %v4507 = vsub.s32 0, %v4238
      %v4508 = vsel %vm4506, %v4507, %v4238
      %v4509 = vmul.u32.u64.compose %v4508, 2863311531
      %v4510 = vextract.low.u32 %v4509
      %v4511 = vextract.high.u32 %v4509
      %v4512 = vshrl.u32 %v4511, 4
      %v4513 = vmul.u32 %v4512, 24
      %v4514 = vsub.s32 %v4508, %v4513
      %v4515 = vsub.s32 0, %v4514
      %v4516 = vsel %vm4506, %v4515, %v4514
      %vm4517 = vcmp.lt.s32.totalorder %v4239, 0
      %v4518 = vsub.s32 0, %v4239
      %v4519 = vsel %vm4517, %v4518, %v4239
      %v4520 = vmul.u32.u64.compose %v4519, 2863311531
      %v4521 = vextract.low.u32 %v4520
      %v4522 = vextract.high.u32 %v4520
      %v4523 = vshrl.u32 %v4522, 4
      %v4524 = vmul.u32 %v4523, 24
      %v4525 = vsub.s32 %v4519, %v4524
      %v4526 = vsub.s32 0, %v4525
      %v4527 = vsel %vm4517, %v4526, %v4525
      %vm4528 = vcmp.lt.s32.totalorder %v4240, 0
      %v4529 = vsub.s32 0, %v4240
      %v4530 = vsel %vm4528, %v4529, %v4240
      %v4531 = vmul.u32.u64.compose %v4530, 2863311531
      %v4532 = vextract.low.u32 %v4531
      %v4533 = vextract.high.u32 %v4531
      %v4534 = vshrl.u32 %v4533, 4
      %v4535 = vmul.u32 %v4534, 24
      %v4536 = vsub.s32 %v4530, %v4535
      %v4537 = vsub.s32 0, %v4536
      %v4538 = vsel %vm4528, %v4537, %v4536
      %vm4539 = vcmp.lt.s32.totalorder %v4241, 0
      %v4540 = vsub.s32 0, %v4241
      %v4541 = vsel %vm4539, %v4540, %v4241
      %v4542 = vmul.u32.u64.compose %v4541, 2863311531
      %v4543 = vextract.low.u32 %v4542
      %v4544 = vextract.high.u32 %v4542
      %v4545 = vshrl.u32 %v4544, 4
      %v4546 = vmul.u32 %v4545, 24
      %v4547 = vsub.s32 %v4541, %v4546
      %v4548 = vsub.s32 0, %v4547
      %v4549 = vsel %vm4539, %v4548, %v4547
      %vm4550 = vcmp.lt.s32.totalorder %v4242, 0
      %v4551 = vsub.s32 0, %v4242
      %v4552 = vsel %vm4550, %v4551, %v4242
      %v4553 = vmul.u32.u64.compose %v4552, 2863311531
      %v4554 = vextract.low.u32 %v4553
      %v4555 = vextract.high.u32 %v4553
      %v4556 = vshrl.u32 %v4555, 4
      %v4557 = vmul.u32 %v4556, 24
      %v4558 = vsub.s32 %v4552, %v4557
      %v4559 = vsub.s32 0, %v4558
      %v4560 = vsel %vm4550, %v4559, %v4558
      %vm4561 = vcmp.lt.s32.totalorder %v4243, 0
      %v4562 = vsub.s32 0, %v4243
      %v4563 = vsel %vm4561, %v4562, %v4243
      %v4564 = vmul.u32.u64.compose %v4563, 2863311531
      %v4565 = vextract.low.u32 %v4564
      %v4566 = vextract.high.u32 %v4564
      %v4567 = vshrl.u32 %v4566, 4
      %v4568 = vmul.u32 %v4567, 24
      %v4569 = vsub.s32 %v4563, %v4568
      %v4570 = vsub.s32 0, %v4569
      %v4571 = vsel %vm4561, %v4570, %v4569
      %vm4572 = vcmp.lt.s32.totalorder %v4244, 0
      %v4573 = vsub.s32 0, %v4244
      %v4574 = vsel %vm4572, %v4573, %v4244
      %v4575 = vmul.u32.u64.compose %v4574, 2863311531
      %v4576 = vextract.low.u32 %v4575
      %v4577 = vextract.high.u32 %v4575
      %v4578 = vshrl.u32 %v4577, 4
      %v4579 = vmul.u32 %v4578, 24
      %v4580 = vsub.s32 %v4574, %v4579
      %v4581 = vsub.s32 0, %v4580
      %v4582 = vsel %vm4572, %v4581, %v4580
      %vm4583 = vcmp.lt.s32.totalorder %v4245, 0
      %v4584 = vsub.s32 0, %v4245
      %v4585 = vsel %vm4583, %v4584, %v4245
      %v4586 = vmul.u32.u64.compose %v4585, 2863311531
      %v4587 = vextract.low.u32 %v4586
      %v4588 = vextract.high.u32 %v4586
      %v4589 = vshrl.u32 %v4588, 4
      %v4590 = vmul.u32 %v4589, 24
      %v4591 = vsub.s32 %v4585, %v4590
      %v4592 = vsub.s32 0, %v4591
      %v4593 = vsel %vm4583, %v4592, %v4591
      %vm4594 = vcmp.lt.s32.totalorder %v4246, 0
      %v4595 = vsub.s32 0, %v4246
      %v4596 = vsel %vm4594, %v4595, %v4246
      %v4597 = vmul.u32.u64.compose %v4596, 2863311531
      %v4598 = vextract.low.u32 %v4597
      %v4599 = vextract.high.u32 %v4597
      %v4600 = vshrl.u32 %v4599, 4
      %v4601 = vmul.u32 %v4600, 24
      %v4602 = vsub.s32 %v4596, %v4601
      %v4603 = vsub.s32 0, %v4602
      %v4604 = vsel %vm4594, %v4603, %v4602
      %vm4605 = vcmp.lt.s32.totalorder %v4247, 0
      %v4606 = vsub.s32 0, %v4247
      %v4607 = vsel %vm4605, %v4606, %v4247
      %v4608 = vmul.u32.u64.compose %v4607, 2863311531
      %v4609 = vextract.low.u32 %v4608
      %v4610 = vextract.high.u32 %v4608
      %v4611 = vshrl.u32 %v4610, 4
      %v4612 = vmul.u32 %v4611, 24
      %v4613 = vsub.s32 %v4607, %v4612
      %v4614 = vsub.s32 0, %v4613
      %v4615 = vsel %vm4605, %v4614, %v4613
      %vm4616 = vcmp.lt.s32.totalorder %v4248, 0
      %v4617 = vsub.s32 0, %v4248
      %v4618 = vsel %vm4616, %v4617, %v4248
      %v4619 = vmul.u32.u64.compose %v4618, 2863311531
      %v4620 = vextract.low.u32 %v4619
      %v4621 = vextract.high.u32 %v4619
      %v4622 = vshrl.u32 %v4621, 4
      %v4623 = vmul.u32 %v4622, 24
      %v4624 = vsub.s32 %v4618, %v4623
      %v4625 = vsub.s32 0, %v4624
      %v4626 = vsel %vm4616, %v4625, %v4624
      %vm4627 = vcmp.lt.s32.totalorder %v4249, 0
      %v4628 = vsub.s32 0, %v4249
      %v4629 = vsel %vm4627, %v4628, %v4249
      %v4630 = vmul.u32.u64.compose %v4629, 2863311531
      %v4631 = vextract.low.u32 %v4630
      %v4632 = vextract.high.u32 %v4630
      %v4633 = vshrl.u32 %v4632, 4
      %v4634 = vmul.u32 %v4633, 24
      %v4635 = vsub.s32 %v4629, %v4634
      %v4636 = vsub.s32 0, %v4635
      %v4637 = vsel %vm4627, %v4636, %v4635
      %vm4638 = vcmp.lt.s32.totalorder %v4250, 0
      %v4639 = vsub.s32 0, %v4250
      %v4640 = vsel %vm4638, %v4639, %v4250
      %v4641 = vmul.u32.u64.compose %v4640, 2863311531
      %v4642 = vextract.low.u32 %v4641
      %v4643 = vextract.high.u32 %v4641
      %v4644 = vshrl.u32 %v4643, 4
      %v4645 = vmul.u32 %v4644, 24
      %v4646 = vsub.s32 %v4640, %v4645
      %v4647 = vsub.s32 0, %v4646
      %v4648 = vsel %vm4638, %v4647, %v4646
      %vm4649 = vcmp.lt.s32.totalorder %v4251, 0
      %v4650 = vsub.s32 0, %v4251
      %v4651 = vsel %vm4649, %v4650, %v4251
      %v4652 = vmul.u32.u64.compose %v4651, 2863311531
      %v4653 = vextract.low.u32 %v4652
      %v4654 = vextract.high.u32 %v4652
      %v4655 = vshrl.u32 %v4654, 4
      %v4656 = vmul.u32 %v4655, 24
      %v4657 = vsub.s32 %v4651, %v4656
      %v4658 = vsub.s32 0, %v4657
      %v4659 = vsel %vm4649, %v4658, %v4657
      %vm4660 = vcmp.lt.s32.totalorder %v4252, 0
      %v4661 = vsub.s32 0, %v4252
      %v4662 = vsel %vm4660, %v4661, %v4252
      %v4663 = vmul.u32.u64.compose %v4662, 2863311531
      %v4664 = vextract.low.u32 %v4663
      %v4665 = vextract.high.u32 %v4663
      %v4666 = vshrl.u32 %v4665, 4
      %v4667 = vmul.u32 %v4666, 24
      %v4668 = vsub.s32 %v4662, %v4667
      %v4669 = vsub.s32 0, %v4668
      %v4670 = vsel %vm4660, %v4669, %v4668
      %vm4671 = vcmp.lt.s32.totalorder %v4253, 0
      %v4672 = vsub.s32 0, %v4253
      %v4673 = vsel %vm4671, %v4672, %v4253
      %v4674 = vmul.u32.u64.compose %v4673, 2863311531
      %v4675 = vextract.low.u32 %v4674
      %v4676 = vextract.high.u32 %v4674
      %v4677 = vshrl.u32 %v4676, 4
      %v4678 = vmul.u32 %v4677, 24
      %v4679 = vsub.s32 %v4673, %v4678
      %v4680 = vsub.s32 0, %v4679
      %v4681 = vsel %vm4671, %v4680, %v4679
      %vm4682 = vcmp.lt.s32.totalorder %v4254, 0
      %v4683 = vsub.s32 0, %v4254
      %v4684 = vsel %vm4682, %v4683, %v4254
      %v4685 = vmul.u32.u64.compose %v4684, 2863311531
      %v4686 = vextract.low.u32 %v4685
      %v4687 = vextract.high.u32 %v4685
      %v4688 = vshrl.u32 %v4687, 4
      %v4689 = vmul.u32 %v4688, 24
      %v4690 = vsub.s32 %v4684, %v4689
      %v4691 = vsub.s32 0, %v4690
      %v4692 = vsel %vm4682, %v4691, %v4690
      %vm4693 = vcmp.lt.s32.totalorder %v4255, 0
      %v4694 = vsub.s32 0, %v4255
      %v4695 = vsel %vm4693, %v4694, %v4255
      %v4696 = vmul.u32.u64.compose %v4695, 2863311531
      %v4697 = vextract.low.u32 %v4696
      %v4698 = vextract.high.u32 %v4696
      %v4699 = vshrl.u32 %v4698, 4
      %v4700 = vmul.u32 %v4699, 24
      %v4701 = vsub.s32 %v4695, %v4700
      %v4702 = vsub.s32 0, %v4701
      %v4703 = vsel %vm4693, %v4702, %v4701
      %vm4704 = vcmp.lt.s32.totalorder %v4256, 0
      %v4705 = vsub.s32 0, %v4256
      %v4706 = vsel %vm4704, %v4705, %v4256
      %v4707 = vmul.u32.u64.compose %v4706, 2863311531
      %v4708 = vextract.low.u32 %v4707
      %v4709 = vextract.high.u32 %v4707
      %v4710 = vshrl.u32 %v4709, 4
      %v4711 = vmul.u32 %v4710, 24
      %v4712 = vsub.s32 %v4706, %v4711
      %v4713 = vsub.s32 0, %v4712
      %v4714 = vsel %vm4704, %v4713, %v4712
      %vm4715 = vcmp.lt.s32.totalorder %v4257, 0
      %v4716 = vsub.s32 0, %v4257
      %v4717 = vsel %vm4715, %v4716, %v4257
      %v4718 = vmul.u32.u64.compose %v4717, 2863311531
      %v4719 = vextract.low.u32 %v4718
      %v4720 = vextract.high.u32 %v4718
      %v4721 = vshrl.u32 %v4720, 4
      %v4722 = vmul.u32 %v4721, 24
      %v4723 = vsub.s32 %v4717, %v4722
      %v4724 = vsub.s32 0, %v4723
      %v4725 = vsel %vm4715, %v4724, %v4723
      %vm4726 = vcmp.lt.s32.totalorder %v4258, 0
      %v4727 = vsub.s32 0, %v4258
      %v4728 = vsel %vm4726, %v4727, %v4258
      %v4729 = vmul.u32.u64.compose %v4728, 2863311531
      %v4730 = vextract.low.u32 %v4729
      %v4731 = vextract.high.u32 %v4729
      %v4732 = vshrl.u32 %v4731, 4
      %v4733 = vmul.u32 %v4732, 24
      %v4734 = vsub.s32 %v4728, %v4733
      %v4735 = vsub.s32 0, %v4734
      %v4736 = vsel %vm4726, %v4735, %v4734
      %vm4737 = vcmp.lt.s32.totalorder %v4259, 0
      %v4738 = vsub.s32 0, %v4259
      %v4739 = vsel %vm4737, %v4738, %v4259
      %v4740 = vmul.u32.u64.compose %v4739, 2863311531
      %v4741 = vextract.low.u32 %v4740
      %v4742 = vextract.high.u32 %v4740
      %v4743 = vshrl.u32 %v4742, 4
      %v4744 = vmul.u32 %v4743, 24
      %v4745 = vsub.s32 %v4739, %v4744
      %v4746 = vsub.s32 0, %v4745
      %v4747 = vsel %vm4737, %v4746, %v4745
      %vm4748 = vcmp.lt.s32.totalorder %v4260, 0
      %v4749 = vsub.s32 0, %v4260
      %v4750 = vsel %vm4748, %v4749, %v4260
      %v4751 = vmul.u32.u64.compose %v4750, 2863311531
      %v4752 = vextract.low.u32 %v4751
      %v4753 = vextract.high.u32 %v4751
      %v4754 = vshrl.u32 %v4753, 4
      %v4755 = vmul.u32 %v4754, 24
      %v4756 = vsub.s32 %v4750, %v4755
      %v4757 = vsub.s32 0, %v4756
      %v4758 = vsel %vm4748, %v4757, %v4756
      %vm4759 = vcmp.lt.s32.totalorder %v4261, 0
      %v4760 = vsub.s32 0, %v4261
      %v4761 = vsel %vm4759, %v4760, %v4261
      %v4762 = vmul.u32.u64.compose %v4761, 2863311531
      %v4763 = vextract.low.u32 %v4762
      %v4764 = vextract.high.u32 %v4762
      %v4765 = vshrl.u32 %v4764, 4
      %v4766 = vmul.u32 %v4765, 24
      %v4767 = vsub.s32 %v4761, %v4766
      %v4768 = vsub.s32 0, %v4767
      %v4769 = vsel %vm4759, %v4768, %v4767
      %vm4770 = vcmp.lt.s32.totalorder %v4262, 0
      %v4771 = vsub.s32 0, %v4262
      %v4772 = vsel %vm4770, %v4771, %v4262
      %v4773 = vmul.u32.u64.compose %v4772, 2863311531
      %v4774 = vextract.low.u32 %v4773
      %v4775 = vextract.high.u32 %v4773
      %v4776 = vshrl.u32 %v4775, 4
      %v4777 = vmul.u32 %v4776, 24
      %v4778 = vsub.s32 %v4772, %v4777
      %v4779 = vsub.s32 0, %v4778
      %v4780 = vsel %vm4770, %v4779, %v4778
      %vm4781 = vcmp.lt.s32.totalorder %v4263, 0
      %v4782 = vsub.s32 0, %v4263
      %v4783 = vsel %vm4781, %v4782, %v4263
      %v4784 = vmul.u32.u64.compose %v4783, 2863311531
      %v4785 = vextract.low.u32 %v4784
      %v4786 = vextract.high.u32 %v4784
      %v4787 = vshrl.u32 %v4786, 4
      %v4788 = vmul.u32 %v4787, 24
      %v4789 = vsub.s32 %v4783, %v4788
      %v4790 = vsub.s32 0, %v4789
      %v4791 = vsel %vm4781, %v4790, %v4789
      %vm4792 = vcmp.ne.s32.totalorder %v4274, 0
      %vm4793 = vcmp.ne.s32.totalorder %v4285, 0
      %vm4794 = vcmp.ne.s32.totalorder %v4296, 0
      %vm4795 = vcmp.ne.s32.totalorder %v4307, 0
      %vm4796 = vcmp.ne.s32.totalorder %v4318, 0
      %vm4797 = vcmp.ne.s32.totalorder %v4329, 0
      %vm4798 = vcmp.ne.s32.totalorder %v4340, 0
      %vm4799 = vcmp.ne.s32.totalorder %v4351, 0
      %vm4800 = vcmp.ne.s32.totalorder %v4362, 0
      %vm4801 = vcmp.ne.s32.totalorder %v4373, 0
      %vm4802 = vcmp.ne.s32.totalorder %v4384, 0
      %vm4803 = vcmp.ne.s32.totalorder %v4395, 0
      %vm4804 = vcmp.ne.s32.totalorder %v4406, 0
      %vm4805 = vcmp.ne.s32.totalorder %v4417, 0
      %vm4806 = vcmp.ne.s32.totalorder %v4428, 0
      %vm4807 = vcmp.ne.s32.totalorder %v4439, 0
      %vm4808 = vcmp.ne.s32.totalorder %v4450, 0
      %vm4809 = vcmp.ne.s32.totalorder %v4461, 0
      %vm4810 = vcmp.ne.s32.totalorder %v4472, 0
      %vm4811 = vcmp.ne.s32.totalorder %v4483, 0
      %vm4812 = vcmp.ne.s32.totalorder %v4494, 0
      %vm4813 = vcmp.ne.s32.totalorder %v4505, 0
      %vm4814 = vcmp.ne.s32.totalorder %v4516, 0
      %vm4815 = vcmp.ne.s32.totalorder %v4527, 0
      %vm4816 = vcmp.ne.s32.totalorder %v4538, 0
      %vm4817 = vcmp.ne.s32.totalorder %v4549, 0
      %vm4818 = vcmp.ne.s32.totalorder %v4560, 0
      %vm4819 = vcmp.ne.s32.totalorder %v4571, 0
      %vm4820 = vcmp.ne.s32.totalorder %v4582, 0
      %vm4821 = vcmp.ne.s32.totalorder %v4593, 0
      %vm4822 = vcmp.ne.s32.totalorder %v4604, 0
      %vm4823 = vcmp.ne.s32.totalorder %v4615, 0
      %vm4824 = vcmp.ne.s32.totalorder %v4626, 0
      %vm4825 = vcmp.ne.s32.totalorder %v4637, 0
      %vm4826 = vcmp.ne.s32.totalorder %v4648, 0
      %vm4827 = vcmp.ne.s32.totalorder %v4659, 0
      %vm4828 = vcmp.ne.s32.totalorder %v4670, 0
      %vm4829 = vcmp.ne.s32.totalorder %v4681, 0
      %vm4830 = vcmp.ne.s32.totalorder %v4692, 0
      %vm4831 = vcmp.ne.s32.totalorder %v4703, 0
      %vm4832 = vcmp.ne.s32.totalorder %v4714, 0
      %vm4833 = vcmp.ne.s32.totalorder %v4725, 0
      %vm4834 = vcmp.ne.s32.totalorder %v4736, 0
      %vm4835 = vcmp.ne.s32.totalorder %v4747, 0
      %vm4836 = vcmp.ne.s32.totalorder %v4758, 0
      %vm4837 = vcmp.ne.s32.totalorder %v4769, 0
      %vm4838 = vcmp.ne.s32.totalorder %v4780, 0
      %vm4839 = vcmp.ne.s32.totalorder %v4791, 0
      %vm4840 = vcmp.lt.s32.totalorder %v4274, 0
      %vm4841 = vcmp.lt.s32.totalorder %v4285, 0
      %vm4842 = vcmp.lt.s32.totalorder %v4296, 0
      %vm4843 = vcmp.lt.s32.totalorder %v4307, 0
      %vm4844 = vcmp.lt.s32.totalorder %v4318, 0
      %vm4845 = vcmp.lt.s32.totalorder %v4329, 0
      %vm4846 = vcmp.lt.s32.totalorder %v4340, 0
      %vm4847 = vcmp.lt.s32.totalorder %v4351, 0
      %vm4848 = vcmp.lt.s32.totalorder %v4362, 0
      %vm4849 = vcmp.lt.s32.totalorder %v4373, 0
      %vm4850 = vcmp.lt.s32.totalorder %v4384, 0
      %vm4851 = vcmp.lt.s32.totalorder %v4395, 0
      %vm4852 = vcmp.lt.s32.totalorder %v4406, 0
      %vm4853 = vcmp.lt.s32.totalorder %v4417, 0
      %vm4854 = vcmp.lt.s32.totalorder %v4428, 0
      %vm4855 = vcmp.lt.s32.totalorder %v4439, 0
      %vm4856 = vcmp.lt.s32.totalorder %v4450, 0
      %vm4857 = vcmp.lt.s32.totalorder %v4461, 0
      %vm4858 = vcmp.lt.s32.totalorder %v4472, 0
      %vm4859 = vcmp.lt.s32.totalorder %v4483, 0
      %vm4860 = vcmp.lt.s32.totalorder %v4494, 0
      %vm4861 = vcmp.lt.s32.totalorder %v4505, 0
      %vm4862 = vcmp.lt.s32.totalorder %v4516, 0
      %vm4863 = vcmp.lt.s32.totalorder %v4527, 0
      %vm4864 = vcmp.lt.s32.totalorder %v4538, 0
      %vm4865 = vcmp.lt.s32.totalorder %v4549, 0
      %vm4866 = vcmp.lt.s32.totalorder %v4560, 0
      %vm4867 = vcmp.lt.s32.totalorder %v4571, 0
      %vm4868 = vcmp.lt.s32.totalorder %v4582, 0
      %vm4869 = vcmp.lt.s32.totalorder %v4593, 0
      %vm4870 = vcmp.lt.s32.totalorder %v4604, 0
      %vm4871 = vcmp.lt.s32.totalorder %v4615, 0
      %vm4872 = vcmp.lt.s32.totalorder %v4626, 0
      %vm4873 = vcmp.lt.s32.totalorder %v4637, 0
      %vm4874 = vcmp.lt.s32.totalorder %v4648, 0
      %vm4875 = vcmp.lt.s32.totalorder %v4659, 0
      %vm4876 = vcmp.lt.s32.totalorder %v4670, 0
      %vm4877 = vcmp.lt.s32.totalorder %v4681, 0
      %vm4878 = vcmp.lt.s32.totalorder %v4692, 0
      %vm4879 = vcmp.lt.s32.totalorder %v4703, 0
      %vm4880 = vcmp.lt.s32.totalorder %v4714, 0
      %vm4881 = vcmp.lt.s32.totalorder %v4725, 0
      %vm4882 = vcmp.lt.s32.totalorder %v4736, 0
      %vm4883 = vcmp.lt.s32.totalorder %v4747, 0
      %vm4884 = vcmp.lt.s32.totalorder %v4758, 0
      %vm4885 = vcmp.lt.s32.totalorder %v4769, 0
      %vm4886 = vcmp.lt.s32.totalorder %v4780, 0
      %vm4887 = vcmp.lt.s32.totalorder %v4791, 0
      %vm4888 = vmand %vm4840, %vm4792
      %vm4889 = vmand %vm4841, %vm4793
      %vm4890 = vmand %vm4842, %vm4794
      %vm4891 = vmand %vm4843, %vm4795
      %vm4892 = vmand %vm4844, %vm4796
      %vm4893 = vmand %vm4845, %vm4797
      %vm4894 = vmand %vm4846, %vm4798
      %vm4895 = vmand %vm4847, %vm4799
      %vm4896 = vmand %vm4848, %vm4800
      %vm4897 = vmand %vm4849, %vm4801
      %vm4898 = vmand %vm4850, %vm4802
      %vm4899 = vmand %vm4851, %vm4803
      %vm4900 = vmand %vm4852, %vm4804
      %vm4901 = vmand %vm4853, %vm4805
      %vm4902 = vmand %vm4854, %vm4806
      %vm4903 = vmand %vm4855, %vm4807
      %vm4904 = vmand %vm4856, %vm4808
      %vm4905 = vmand %vm4857, %vm4809
      %vm4906 = vmand %vm4858, %vm4810
      %vm4907 = vmand %vm4859, %vm4811
      %vm4908 = vmand %vm4860, %vm4812
      %vm4909 = vmand %vm4861, %vm4813
      %vm4910 = vmand %vm4862, %vm4814
      %vm4911 = vmand %vm4863, %vm4815
      %vm4912 = vmand %vm4864, %vm4816
      %vm4913 = vmand %vm4865, %vm4817
      %vm4914 = vmand %vm4866, %vm4818
      %vm4915 = vmand %vm4867, %vm4819
      %vm4916 = vmand %vm4868, %vm4820
      %vm4917 = vmand %vm4869, %vm4821
      %vm4918 = vmand %vm4870, %vm4822
      %vm4919 = vmand %vm4871, %vm4823
      %vm4920 = vmand %vm4872, %vm4824
      %vm4921 = vmand %vm4873, %vm4825
      %vm4922 = vmand %vm4874, %vm4826
      %vm4923 = vmand %vm4875, %vm4827
      %vm4924 = vmand %vm4876, %vm4828
      %vm4925 = vmand %vm4877, %vm4829
      %vm4926 = vmand %vm4878, %vm4830
      %vm4927 = vmand %vm4879, %vm4831
      %vm4928 = vmand %vm4880, %vm4832
      %vm4929 = vmand %vm4881, %vm4833
      %vm4930 = vmand %vm4882, %vm4834
      %vm4931 = vmand %vm4883, %vm4835
      %vm4932 = vmand %vm4884, %vm4836
      %vm4933 = vmand %vm4885, %vm4837
      %vm4934 = vmand %vm4886, %vm4838
      %vm4935 = vmand %vm4887, %vm4839
      %v4936 = vadd.s32 %v4274, 24
      %v4937 = vadd.s32 %v4285, 24
      %v4938 = vadd.s32 %v4296, 24
      %v4939 = vadd.s32 %v4307, 24
      %v4940 = vadd.s32 %v4318, 24
      %v4941 = vadd.s32 %v4329, 24
      %v4942 = vadd.s32 %v4340, 24
      %v4943 = vadd.s32 %v4351, 24
      %v4944 = vadd.s32 %v4362, 24
      %v4945 = vadd.s32 %v4373, 24
      %v4946 = vadd.s32 %v4384, 24
      %v4947 = vadd.s32 %v4395, 24
      %v4948 = vadd.s32 %v4406, 24
      %v4949 = vadd.s32 %v4417, 24
      %v4950 = vadd.s32 %v4428, 24
      %v4951 = vadd.s32 %v4439, 24
      %v4952 = vadd.s32 %v4450, 24
      %v4953 = vadd.s32 %v4461, 24
      %v4954 = vadd.s32 %v4472, 24
      %v4955 = vadd.s32 %v4483, 24
      %v4956 = vadd.s32 %v4494, 24
      %v4957 = vadd.s32 %v4505, 24
      %v4958 = vadd.s32 %v4516, 24
      %v4959 = vadd.s32 %v4527, 24
      %v4960 = vadd.s32 %v4538, 24
      %v4961 = vadd.s32 %v4549, 24
      %v4962 = vadd.s32 %v4560, 24
      %v4963 = vadd.s32 %v4571, 24
      %v4964 = vadd.s32 %v4582, 24
      %v4965 = vadd.s32 %v4593, 24
      %v4966 = vadd.s32 %v4604, 24
      %v4967 = vadd.s32 %v4615, 24
      %v4968 = vadd.s32 %v4626, 24
      %v4969 = vadd.s32 %v4637, 24
      %v4970 = vadd.s32 %v4648, 24
      %v4971 = vadd.s32 %v4659, 24
      %v4972 = vadd.s32 %v4670, 24
      %v4973 = vadd.s32 %v4681, 24
      %v4974 = vadd.s32 %v4692, 24
      %v4975 = vadd.s32 %v4703, 24
      %v4976 = vadd.s32 %v4714, 24
      %v4977 = vadd.s32 %v4725, 24
      %v4978 = vadd.s32 %v4736, 24
      %v4979 = vadd.s32 %v4747, 24
      %v4980 = vadd.s32 %v4758, 24
      %v4981 = vadd.s32 %v4769, 24
      %v4982 = vadd.s32 %v4780, 24
      %v4983 = vadd.s32 %v4791, 24
      %v4984 = vsel %vm4888, %v4936, %v4274
      %v4985 = vsel %vm4889, %v4937, %v4285
      %v4986 = vsel %vm4890, %v4938, %v4296
      %v4987 = vsel %vm4891, %v4939, %v4307
      %v4988 = vsel %vm4892, %v4940, %v4318
      %v4989 = vsel %vm4893, %v4941, %v4329
      %v4990 = vsel %vm4894, %v4942, %v4340
      %v4991 = vsel %vm4895, %v4943, %v4351
      %v4992 = vsel %vm4896, %v4944, %v4362
      %v4993 = vsel %vm4897, %v4945, %v4373
      %v4994 = vsel %vm4898, %v4946, %v4384
      %v4995 = vsel %vm4899, %v4947, %v4395
      %v4996 = vsel %vm4900, %v4948, %v4406
      %v4997 = vsel %vm4901, %v4949, %v4417
      %v4998 = vsel %vm4902, %v4950, %v4428
      %v4999 = vsel %vm4903, %v4951, %v4439
      %v5000 = vsel %vm4904, %v4952, %v4450
      %v5001 = vsel %vm4905, %v4953, %v4461
      %v5002 = vsel %vm4906, %v4954, %v4472
      %v5003 = vsel %vm4907, %v4955, %v4483
      %v5004 = vsel %vm4908, %v4956, %v4494
      %v5005 = vsel %vm4909, %v4957, %v4505
      %v5006 = vsel %vm4910, %v4958, %v4516
      %v5007 = vsel %vm4911, %v4959, %v4527
      %v5008 = vsel %vm4912, %v4960, %v4538
      %v5009 = vsel %vm4913, %v4961, %v4549
      %v5010 = vsel %vm4914, %v4962, %v4560
      %v5011 = vsel %vm4915, %v4963, %v4571
      %v5012 = vsel %vm4916, %v4964, %v4582
      %v5013 = vsel %vm4917, %v4965, %v4593
      %v5014 = vsel %vm4918, %v4966, %v4604
      %v5015 = vsel %vm4919, %v4967, %v4615
      %v5016 = vsel %vm4920, %v4968, %v4626
      %v5017 = vsel %vm4921, %v4969, %v4637
      %v5018 = vsel %vm4922, %v4970, %v4648
      %v5019 = vsel %vm4923, %v4971, %v4659
      %v5020 = vsel %vm4924, %v4972, %v4670
      %v5021 = vsel %vm4925, %v4973, %v4681
      %v5022 = vsel %vm4926, %v4974, %v4692
      %v5023 = vsel %vm4927, %v4975, %v4703
      %v5024 = vsel %vm4928, %v4976, %v4714
      %v5025 = vsel %vm4929, %v4977, %v4725
      %v5026 = vsel %vm4930, %v4978, %v4736
      %v5027 = vsel %vm4931, %v4979, %v4747
      %v5028 = vsel %vm4932, %v4980, %v4758
      %v5029 = vsel %vm4933, %v4981, %v4769
      %v5030 = vsel %vm4934, %v4982, %v4780
      %v5031 = vsel %vm4935, %v4983, %v4791
      %vm5032 = vcmp.lt.s32.totalorder %v4984, 16
      %vm5033 = vcmp.lt.s32.totalorder %v4985, 16
      %vm5034 = vcmp.lt.s32.totalorder %v4986, 16
      %vm5035 = vcmp.lt.s32.totalorder %v4987, 16
      %vm5036 = vcmp.lt.s32.totalorder %v4988, 16
      %vm5037 = vcmp.lt.s32.totalorder %v4989, 16
      %vm5038 = vcmp.lt.s32.totalorder %v4990, 16
      %vm5039 = vcmp.lt.s32.totalorder %v4991, 16
      %vm5040 = vcmp.lt.s32.totalorder %v4992, 16
      %vm5041 = vcmp.lt.s32.totalorder %v4993, 16
      %vm5042 = vcmp.lt.s32.totalorder %v4994, 16
      %vm5043 = vcmp.lt.s32.totalorder %v4995, 16
      %vm5044 = vcmp.lt.s32.totalorder %v4996, 16
      %vm5045 = vcmp.lt.s32.totalorder %v4997, 16
      %vm5046 = vcmp.lt.s32.totalorder %v4998, 16
      %vm5047 = vcmp.lt.s32.totalorder %v4999, 16
      %vm5048 = vcmp.lt.s32.totalorder %v5000, 16
      %vm5049 = vcmp.lt.s32.totalorder %v5001, 16
      %vm5050 = vcmp.lt.s32.totalorder %v5002, 16
      %vm5051 = vcmp.lt.s32.totalorder %v5003, 16
      %vm5052 = vcmp.lt.s32.totalorder %v5004, 16
      %vm5053 = vcmp.lt.s32.totalorder %v5005, 16
      %vm5054 = vcmp.lt.s32.totalorder %v5006, 16
      %vm5055 = vcmp.lt.s32.totalorder %v5007, 16
      %vm5056 = vcmp.lt.s32.totalorder %v5008, 16
      %vm5057 = vcmp.lt.s32.totalorder %v5009, 16
      %vm5058 = vcmp.lt.s32.totalorder %v5010, 16
      %vm5059 = vcmp.lt.s32.totalorder %v5011, 16
      %vm5060 = vcmp.lt.s32.totalorder %v5012, 16
      %vm5061 = vcmp.lt.s32.totalorder %v5013, 16
      %vm5062 = vcmp.lt.s32.totalorder %v5014, 16
      %vm5063 = vcmp.lt.s32.totalorder %v5015, 16
      %vm5064 = vcmp.lt.s32.totalorder %v5016, 16
      %vm5065 = vcmp.lt.s32.totalorder %v5017, 16
      %vm5066 = vcmp.lt.s32.totalorder %v5018, 16
      %vm5067 = vcmp.lt.s32.totalorder %v5019, 16
      %vm5068 = vcmp.lt.s32.totalorder %v5020, 16
      %vm5069 = vcmp.lt.s32.totalorder %v5021, 16
      %vm5070 = vcmp.lt.s32.totalorder %v5022, 16
      %vm5071 = vcmp.lt.s32.totalorder %v5023, 16
      %vm5072 = vcmp.lt.s32.totalorder %v5024, 16
      %vm5073 = vcmp.lt.s32.totalorder %v5025, 16
      %vm5074 = vcmp.lt.s32.totalorder %v5026, 16
      %vm5075 = vcmp.lt.s32.totalorder %v5027, 16
      %vm5076 = vcmp.lt.s32.totalorder %v5028, 16
      %vm5077 = vcmp.lt.s32.totalorder %v5029, 16
      %vm5078 = vcmp.lt.s32.totalorder %v5030, 16
      %vm5079 = vcmp.lt.s32.totalorder %v5031, 16
      %v5080 = vsel %vm5032, 1, 0
      %v5081 = vsel %vm5033, 1, 0
      %v5082 = vsel %vm5034, 1, 0
      %v5083 = vsel %vm5035, 1, 0
      %v5084 = vsel %vm5036, 1, 0
      %v5085 = vsel %vm5037, 1, 0
      %v5086 = vsel %vm5038, 1, 0
      %v5087 = vsel %vm5039, 1, 0
      %v5088 = vsel %vm5040, 1, 0
      %v5089 = vsel %vm5041, 1, 0
      %v5090 = vsel %vm5042, 1, 0
      %v5091 = vsel %vm5043, 1, 0
      %v5092 = vsel %vm5044, 1, 0
      %v5093 = vsel %vm5045, 1, 0
      %v5094 = vsel %vm5046, 1, 0
      %v5095 = vsel %vm5047, 1, 0
      %v5096 = vsel %vm5048, 1, 0
      %v5097 = vsel %vm5049, 1, 0
      %v5098 = vsel %vm5050, 1, 0
      %v5099 = vsel %vm5051, 1, 0
      %v5100 = vsel %vm5052, 1, 0
      %v5101 = vsel %vm5053, 1, 0
      %v5102 = vsel %vm5054, 1, 0
      %v5103 = vsel %vm5055, 1, 0
      %v5104 = vsel %vm5056, 1, 0
      %v5105 = vsel %vm5057, 1, 0
      %v5106 = vsel %vm5058, 1, 0
      %v5107 = vsel %vm5059, 1, 0
      %v5108 = vsel %vm5060, 1, 0
      %v5109 = vsel %vm5061, 1, 0
      %v5110 = vsel %vm5062, 1, 0
      %v5111 = vsel %vm5063, 1, 0
      %v5112 = vsel %vm5064, 1, 0
      %v5113 = vsel %vm5065, 1, 0
      %v5114 = vsel %vm5066, 1, 0
      %v5115 = vsel %vm5067, 1, 0
      %v5116 = vsel %vm5068, 1, 0
      %v5117 = vsel %vm5069, 1, 0
      %v5118 = vsel %vm5070, 1, 0
      %v5119 = vsel %vm5071, 1, 0
      %v5120 = vsel %vm5072, 1, 0
      %v5121 = vsel %vm5073, 1, 0
      %v5122 = vsel %vm5074, 1, 0
      %v5123 = vsel %vm5075, 1, 0
      %v5124 = vsel %vm5076, 1, 0
      %v5125 = vsel %vm5077, 1, 0
      %v5126 = vsel %vm5078, 1, 0
      %v5127 = vsel %vm5079, 1, 0
      %vm5128 = vcmp.eq.s32.totalorder %v5080, 1
      %vm5129 = vcmp.eq.s32.totalorder %v5081, 1
      %vm5130 = vcmp.eq.s32.totalorder %v5082, 1
      %vm5131 = vcmp.eq.s32.totalorder %v5083, 1
      %vm5132 = vcmp.eq.s32.totalorder %v5084, 1
      %vm5133 = vcmp.eq.s32.totalorder %v5085, 1
      %vm5134 = vcmp.eq.s32.totalorder %v5086, 1
      %vm5135 = vcmp.eq.s32.totalorder %v5087, 1
      %vm5136 = vcmp.eq.s32.totalorder %v5088, 1
      %vm5137 = vcmp.eq.s32.totalorder %v5089, 1
      %vm5138 = vcmp.eq.s32.totalorder %v5090, 1
      %vm5139 = vcmp.eq.s32.totalorder %v5091, 1
      %vm5140 = vcmp.eq.s32.totalorder %v5092, 1
      %vm5141 = vcmp.eq.s32.totalorder %v5093, 1
      %vm5142 = vcmp.eq.s32.totalorder %v5094, 1
      %vm5143 = vcmp.eq.s32.totalorder %v5095, 1
      %vm5144 = vcmp.eq.s32.totalorder %v5096, 1
      %vm5145 = vcmp.eq.s32.totalorder %v5097, 1
      %vm5146 = vcmp.eq.s32.totalorder %v5098, 1
      %vm5147 = vcmp.eq.s32.totalorder %v5099, 1
      %vm5148 = vcmp.eq.s32.totalorder %v5100, 1
      %vm5149 = vcmp.eq.s32.totalorder %v5101, 1
      %vm5150 = vcmp.eq.s32.totalorder %v5102, 1
      %vm5151 = vcmp.eq.s32.totalorder %v5103, 1
      %vm5152 = vcmp.eq.s32.totalorder %v5104, 1
      %vm5153 = vcmp.eq.s32.totalorder %v5105, 1
      %vm5154 = vcmp.eq.s32.totalorder %v5106, 1
      %vm5155 = vcmp.eq.s32.totalorder %v5107, 1
      %vm5156 = vcmp.eq.s32.totalorder %v5108, 1
      %vm5157 = vcmp.eq.s32.totalorder %v5109, 1
      %vm5158 = vcmp.eq.s32.totalorder %v5110, 1
      %vm5159 = vcmp.eq.s32.totalorder %v5111, 1
      %vm5160 = vcmp.eq.s32.totalorder %v5112, 1
      %vm5161 = vcmp.eq.s32.totalorder %v5113, 1
      %vm5162 = vcmp.eq.s32.totalorder %v5114, 1
      %vm5163 = vcmp.eq.s32.totalorder %v5115, 1
      %vm5164 = vcmp.eq.s32.totalorder %v5116, 1
      %vm5165 = vcmp.eq.s32.totalorder %v5117, 1
      %vm5166 = vcmp.eq.s32.totalorder %v5118, 1
      %vm5167 = vcmp.eq.s32.totalorder %v5119, 1
      %vm5168 = vcmp.eq.s32.totalorder %v5120, 1
      %vm5169 = vcmp.eq.s32.totalorder %v5121, 1
      %vm5170 = vcmp.eq.s32.totalorder %v5122, 1
      %vm5171 = vcmp.eq.s32.totalorder %v5123, 1
      %vm5172 = vcmp.eq.s32.totalorder %v5124, 1
      %vm5173 = vcmp.eq.s32.totalorder %v5125, 1
      %vm5174 = vcmp.eq.s32.totalorder %v5126, 1
      %vm5175 = vcmp.eq.s32.totalorder %v5127, 1
      %v5176 = vsel %vm5128, %v3926, 0.0
      %v5177 = vsel %vm5129, %v3927, 0.0
      %v5178 = vsel %vm5130, %v3928, 0.0
      %v5179 = vsel %vm5131, %v3929, 0.0
      %v5180 = vsel %vm5132, %v3930, 0.0
      %v5181 = vsel %vm5133, %v3931, 0.0
      %v5182 = vsel %vm5134, %v3932, 0.0
      %v5183 = vsel %vm5135, %v3933, 0.0
      %v5184 = vsel %vm5136, %v3934, 0.0
      %v5185 = vsel %vm5137, %v3935, 0.0
      %v5186 = vsel %vm5138, %v3936, 0.0
      %v5187 = vsel %vm5139, %v3937, 0.0
      %v5188 = vsel %vm5140, %v3938, 0.0
      %v5189 = vsel %vm5141, %v3939, 0.0
      %v5190 = vsel %vm5142, %v3940, 0.0
      %v5191 = vsel %vm5143, %v3941, 0.0
      %v5192 = vsel %vm5144, %v3942, 0.0
      %v5193 = vsel %vm5145, %v3943, 0.0
      %v5194 = vsel %vm5146, %v3944, 0.0
      %v5195 = vsel %vm5147, %v3945, 0.0
      %v5196 = vsel %vm5148, %v3946, 0.0
      %v5197 = vsel %vm5149, %v3947, 0.0
      %v5198 = vsel %vm5150, %v3948, 0.0
      %v5199 = vsel %vm5151, %v3949, 0.0
      %v5200 = vsel %vm5152, %v3950, 0.0
      %v5201 = vsel %vm5153, %v3951, 0.0
      %v5202 = vsel %vm5154, %v3952, 0.0
      %v5203 = vsel %vm5155, %v3953, 0.0
      %v5204 = vsel %vm5156, %v3954, 0.0
      %v5205 = vsel %vm5157, %v3955, 0.0
      %v5206 = vsel %vm5158, %v3956, 0.0
      %v5207 = vsel %vm5159, %v3957, 0.0
      %v5208 = vsel %vm5160, %v3958, 0.0
      %v5209 = vsel %vm5161, %v3959, 0.0
      %v5210 = vsel %vm5162, %v3960, 0.0
      %v5211 = vsel %vm5163, %v3961, 0.0
      %v5212 = vsel %vm5164, %v3962, 0.0
      %v5213 = vsel %vm5165, %v3963, 0.0
      %v5214 = vsel %vm5166, %v3964, 0.0
      %v5215 = vsel %vm5167, %v3965, 0.0
      %v5216 = vsel %vm5168, %v3966, 0.0
      %v5217 = vsel %vm5169, %v3967, 0.0
      %v5218 = vsel %vm5170, %v3968, 0.0
      %v5219 = vsel %vm5171, %v3969, 0.0
      %v5220 = vsel %vm5172, %v3970, 0.0
      %v5221 = vsel %vm5173, %v3971, 0.0
      %v5222 = vsel %vm5174, %v3972, 0.0
      %v5223 = vsel %vm5175, %v3973, 0.0
      %v5224 = vsel %vm618, %v5176, 0.0
      %v5225 = vsel %vm618, %v5177, 0.0
      %v5226 = vadd.f32 %v5224, %v5225
      %v5227 = vsel %vm618, %v5178, 0.0
      %v5228 = vadd.f32 %v5226, %v5227
      %v5229 = vsel %vm618, %v5179, 0.0
      %v5230 = vadd.f32 %v5228, %v5229
      %v5231 = vsel %vm618, %v5180, 0.0
      %v5232 = vadd.f32 %v5230, %v5231
      %v5233 = vsel %vm618, %v5181, 0.0
      %v5234 = vadd.f32 %v5232, %v5233
      %v5235 = vsel %vm618, %v5182, 0.0
      %v5236 = vadd.f32 %v5234, %v5235
      %v5237 = vsel %vm618, %v5183, 0.0
      %v5238 = vadd.f32 %v5236, %v5237
      %v5239 = vsel %vm618, %v5184, 0.0
      %v5240 = vadd.f32 %v5238, %v5239
      %v5241 = vsel %vm618, %v5185, 0.0
      %v5242 = vadd.f32 %v5240, %v5241
      %v5243 = vsel %vm618, %v5186, 0.0
      %v5244 = vadd.f32 %v5242, %v5243
      %v5245 = vsel %vm618, %v5187, 0.0
      %v5246 = vadd.f32 %v5244, %v5245
      %v5247 = vsel %vm618, %v5188, 0.0
      %v5248 = vadd.f32 %v5246, %v5247
      %v5249 = vsel %vm618, %v5189, 0.0
      %v5250 = vadd.f32 %v5248, %v5249
      %v5251 = vsel %vm618, %v5190, 0.0
      %v5252 = vadd.f32 %v5250, %v5251
      %v5253 = vsel %vm618, %v5191, 0.0
      %v5254 = vadd.f32 %v5252, %v5253
      %v5255 = vsel %vm618, %v5192, 0.0
      %v5256 = vadd.f32 %v5254, %v5255
      %v5257 = vsel %vm618, %v5193, 0.0
      %v5258 = vadd.f32 %v5256, %v5257
      %v5259 = vsel %vm618, %v5194, 0.0
      %v5260 = vadd.f32 %v5258, %v5259
      %v5261 = vsel %vm618, %v5195, 0.0
      %v5262 = vadd.f32 %v5260, %v5261
      %v5263 = vsel %vm618, %v5196, 0.0
      %v5264 = vadd.f32 %v5262, %v5263
      %v5265 = vsel %vm618, %v5197, 0.0
      %v5266 = vadd.f32 %v5264, %v5265
      %v5267 = vsel %vm618, %v5198, 0.0
      %v5268 = vadd.f32 %v5266, %v5267
      %v5269 = vsel %vm618, %v5199, 0.0
      %v5270 = vadd.f32 %v5268, %v5269
      %v5271 = vsel %vm618, %v5200, 0.0
      %v5272 = vadd.f32 %v5270, %v5271
      %v5273 = vsel %vm618, %v5201, 0.0
      %v5274 = vadd.f32 %v5272, %v5273
      %v5275 = vsel %vm618, %v5202, 0.0
      %v5276 = vadd.f32 %v5274, %v5275
      %v5277 = vsel %vm618, %v5203, 0.0
      %v5278 = vadd.f32 %v5276, %v5277
      %v5279 = vsel %vm618, %v5204, 0.0
      %v5280 = vadd.f32 %v5278, %v5279
      %v5281 = vsel %vm618, %v5205, 0.0
      %v5282 = vadd.f32 %v5280, %v5281
      %v5283 = vsel %vm618, %v5206, 0.0
      %v5284 = vadd.f32 %v5282, %v5283
      %v5285 = vsel %vm618, %v5207, 0.0
      %v5286 = vadd.f32 %v5284, %v5285
      %v5287 = vsel %vm618, %v5208, 0.0
      %v5288 = vadd.f32 %v5286, %v5287
      %v5289 = vsel %vm618, %v5209, 0.0
      %v5290 = vadd.f32 %v5288, %v5289
      %v5291 = vsel %vm618, %v5210, 0.0
      %v5292 = vadd.f32 %v5290, %v5291
      %v5293 = vsel %vm618, %v5211, 0.0
      %v5294 = vadd.f32 %v5292, %v5293
      %v5295 = vsel %vm618, %v5212, 0.0
      %v5296 = vadd.f32 %v5294, %v5295
      %v5297 = vsel %vm618, %v5213, 0.0
      %v5298 = vadd.f32 %v5296, %v5297
      %v5299 = vsel %vm618, %v5214, 0.0
      %v5300 = vadd.f32 %v5298, %v5299
      %v5301 = vsel %vm618, %v5215, 0.0
      %v5302 = vadd.f32 %v5300, %v5301
      %v5303 = vsel %vm618, %v5216, 0.0
      %v5304 = vadd.f32 %v5302, %v5303
      %v5305 = vsel %vm618, %v5217, 0.0
      %v5306 = vadd.f32 %v5304, %v5305
      %v5307 = vsel %vm618, %v5218, 0.0
      %v5308 = vadd.f32 %v5306, %v5307
      %v5309 = vsel %vm618, %v5219, 0.0
      %v5310 = vadd.f32 %v5308, %v5309
      %v5311 = vsel %vm618, %v5220, 0.0
      %v5312 = vadd.f32 %v5310, %v5311
      %v5313 = vsel %vm618, %v5221, 0.0
      %v5314 = vadd.f32 %v5312, %v5313
      %v5315 = vsel %vm618, %v5222, 0.0
      %v5316 = vadd.f32 %v5314, %v5315
      %v5317 = vsel %vm618, %v5223, 0.0
      %v5318 = vadd.f32 %v5316, %v5317
      %v5319 = vrot.slane %v5318, 4
      %v5320 = vadd.f32 %v5318, %v5319
      %v5321 = vrot.slane %v5320, 2
      %v5322 = vadd.f32 %v5320, %v5321
      %v5323 = vrot.slane %v5322, 1
      %v5324 = vadd.f32 %v5322, %v5323
      %vm5325 = vcmask 253952
      %5326 = vst.msk [vmem:[%s208] sm:$0x1] %vm5325, %v5324
      %v5327 = vmul.f32 %v5176, %v5176
      %v5328 = vmul.f32 %v5177, %v5177
      %v5329 = vmul.f32 %v5178, %v5178
      %v5330 = vmul.f32 %v5179, %v5179
      %v5331 = vmul.f32 %v5180, %v5180
      %v5332 = vmul.f32 %v5181, %v5181
      %v5333 = vmul.f32 %v5182, %v5182
      %v5334 = vmul.f32 %v5183, %v5183
      %v5335 = vmul.f32 %v5184, %v5184
      %v5336 = vmul.f32 %v5185, %v5185
      %v5337 = vmul.f32 %v5186, %v5186
      %v5338 = vmul.f32 %v5187, %v5187
      %v5339 = vmul.f32 %v5188, %v5188
      %v5340 = vmul.f32 %v5189, %v5189
      %v5341 = vmul.f32 %v5190, %v5190
      %v5342 = vmul.f32 %v5191, %v5191
      %v5343 = vmul.f32 %v5192, %v5192
      %v5344 = vmul.f32 %v5193, %v5193
      %v5345 = vmul.f32 %v5194, %v5194
      %v5346 = vmul.f32 %v5195, %v5195
      %v5347 = vmul.f32 %v5196, %v5196
      %v5348 = vmul.f32 %v5197, %v5197
      %v5349 = vmul.f32 %v5198, %v5198
      %v5350 = vmul.f32 %v5199, %v5199
      %v5351 = vmul.f32 %v5200, %v5200
      %v5352 = vmul.f32 %v5201, %v5201
      %v5353 = vmul.f32 %v5202, %v5202
      %v5354 = vmul.f32 %v5203, %v5203
      %v5355 = vmul.f32 %v5204, %v5204
      %v5356 = vmul.f32 %v5205, %v5205
      %v5357 = vmul.f32 %v5206, %v5206
      %v5358 = vmul.f32 %v5207, %v5207
      %v5359 = vmul.f32 %v5208, %v5208
      %v5360 = vmul.f32 %v5209, %v5209
      %v5361 = vmul.f32 %v5210, %v5210
      %v5362 = vmul.f32 %v5211, %v5211
      %v5363 = vmul.f32 %v5212, %v5212
      %v5364 = vmul.f32 %v5213, %v5213
      %v5365 = vmul.f32 %v5214, %v5214
      %v5366 = vmul.f32 %v5215, %v5215
      %v5367 = vmul.f32 %v5216, %v5216
      %v5368 = vmul.f32 %v5217, %v5217
      %v5369 = vmul.f32 %v5218, %v5218
      %v5370 = vmul.f32 %v5219, %v5219
      %v5371 = vmul.f32 %v5220, %v5220
      %v5372 = vmul.f32 %v5221, %v5221
      %v5373 = vmul.f32 %v5222, %v5222
      %v5374 = vmul.f32 %v5223, %v5223
      %v5375 = vsel %vm618, %v5327, 0.0
      %v5376 = vsel %vm618, %v5328, 0.0
      %v5377 = vadd.f32 %v5375, %v5376
      %v5378 = vsel %vm618, %v5329, 0.0
      %v5379 = vadd.f32 %v5377, %v5378
      %v5380 = vsel %vm618, %v5330, 0.0
      %v5381 = vadd.f32 %v5379, %v5380
      %v5382 = vsel %vm618, %v5331, 0.0
      %v5383 = vadd.f32 %v5381, %v5382
      %v5384 = vsel %vm618, %v5332, 0.0
      %v5385 = vadd.f32 %v5383, %v5384
      %v5386 = vsel %vm618, %v5333, 0.0
      %v5387 = vadd.f32 %v5385, %v5386
      %v5388 = vsel %vm618, %v5334, 0.0
      %v5389 = vadd.f32 %v5387, %v5388
      %v5390 = vsel %vm618, %v5335, 0.0
      %v5391 = vadd.f32 %v5389, %v5390
      %v5392 = vsel %vm618, %v5336, 0.0
      %v5393 = vadd.f32 %v5391, %v5392
      %v5394 = vsel %vm618, %v5337, 0.0
      %v5395 = vadd.f32 %v5393, %v5394
      %v5396 = vsel %vm618, %v5338, 0.0
      %v5397 = vadd.f32 %v5395, %v5396
      %v5398 = vsel %vm618, %v5339, 0.0
      %v5399 = vadd.f32 %v5397, %v5398
      %v5400 = vsel %vm618, %v5340, 0.0
      %v5401 = vadd.f32 %v5399, %v5400
      %v5402 = vsel %vm618, %v5341, 0.0
      %v5403 = vadd.f32 %v5401, %v5402
      %v5404 = vsel %vm618, %v5342, 0.0
      %v5405 = vadd.f32 %v5403, %v5404
      %v5406 = vsel %vm618, %v5343, 0.0
      %v5407 = vadd.f32 %v5405, %v5406
      %v5408 = vsel %vm618, %v5344, 0.0
      %v5409 = vadd.f32 %v5407, %v5408
      %v5410 = vsel %vm618, %v5345, 0.0
      %v5411 = vadd.f32 %v5409, %v5410
      %v5412 = vsel %vm618, %v5346, 0.0
      %v5413 = vadd.f32 %v5411, %v5412
      %v5414 = vsel %vm618, %v5347, 0.0
      %v5415 = vadd.f32 %v5413, %v5414
      %v5416 = vsel %vm618, %v5348, 0.0
      %v5417 = vadd.f32 %v5415, %v5416
      %v5418 = vsel %vm618, %v5349, 0.0
      %v5419 = vadd.f32 %v5417, %v5418
      %v5420 = vsel %vm618, %v5350, 0.0
      %v5421 = vadd.f32 %v5419, %v5420
      %v5422 = vsel %vm618, %v5351, 0.0
      %v5423 = vadd.f32 %v5421, %v5422
      %v5424 = vsel %vm618, %v5352, 0.0
      %v5425 = vadd.f32 %v5423, %v5424
      %v5426 = vsel %vm618, %v5353, 0.0
      %v5427 = vadd.f32 %v5425, %v5426
      %v5428 = vsel %vm618, %v5354, 0.0
      %v5429 = vadd.f32 %v5427, %v5428
      %v5430 = vsel %vm618, %v5355, 0.0
      %v5431 = vadd.f32 %v5429, %v5430
      %v5432 = vsel %vm618, %v5356, 0.0
      %v5433 = vadd.f32 %v5431, %v5432
      %v5434 = vsel %vm618, %v5357, 0.0
      %v5435 = vadd.f32 %v5433, %v5434
      %v5436 = vsel %vm618, %v5358, 0.0
      %v5437 = vadd.f32 %v5435, %v5436
      %v5438 = vsel %vm618, %v5359, 0.0
      %v5439 = vadd.f32 %v5437, %v5438
      %v5440 = vsel %vm618, %v5360, 0.0
      %v5441 = vadd.f32 %v5439, %v5440
      %v5442 = vsel %vm618, %v5361, 0.0
      %v5443 = vadd.f32 %v5441, %v5442
      %v5444 = vsel %vm618, %v5362, 0.0
      %v5445 = vadd.f32 %v5443, %v5444
      %v5446 = vsel %vm618, %v5363, 0.0
      %v5447 = vadd.f32 %v5445, %v5446
      %v5448 = vsel %vm618, %v5364, 0.0
      %v5449 = vadd.f32 %v5447, %v5448
      %v5450 = vsel %vm618, %v5365, 0.0
      %v5451 = vadd.f32 %v5449, %v5450
      %v5452 = vsel %vm618, %v5366, 0.0
      %v5453 = vadd.f32 %v5451, %v5452
      %v5454 = vsel %vm618, %v5367, 0.0
      %v5455 = vadd.f32 %v5453, %v5454
      %v5456 = vsel %vm618, %v5368, 0.0
      %v5457 = vadd.f32 %v5455, %v5456
      %v5458 = vsel %vm618, %v5369, 0.0
      %v5459 = vadd.f32 %v5457, %v5458
      %v5460 = vsel %vm618, %v5370, 0.0
      %v5461 = vadd.f32 %v5459, %v5460
      %v5462 = vsel %vm618, %v5371, 0.0
      %v5463 = vadd.f32 %v5461, %v5462
      %v5464 = vsel %vm618, %v5372, 0.0
      %v5465 = vadd.f32 %v5463, %v5464
      %v5466 = vsel %vm618, %v5373, 0.0
      %v5467 = vadd.f32 %v5465, %v5466
      %v5468 = vsel %vm618, %v5374, 0.0
      %v5469 = vadd.f32 %v5467, %v5468
      %v5470 = vrot.slane %v5469, 4
      %v5471 = vadd.f32 %v5469, %v5470
      %v5472 = vrot.slane %v5471, 2
      %v5473 = vadd.f32 %v5471, %v5472
      %v5474 = vrot.slane %v5473, 1
      %v5475 = vadd.f32 %v5473, %v5474
      %5476 = vst.msk [vmem:[%s208 + $0x1] sm:$0x1] %vm5325, %v5475
      %p5477 = scmp.lt.s32.totalorder %s16, 1
      %s5478 = scalar_select %p5477, %s16, 1
      %s5479 = smul.addr %s5478, 48
      %s5480 = smul.addr %s5479, 4
      %s5481 = scalar_lea.vmem %s3, %s5480
      %p5482 = scmp.lt.s32.totalorder %s16, 1
      %s5483 = scalar_select %p5482, %s16, 1
      %s5484 = smul.addr %s5483, 8
      %s5485 = scalar_lea.vmem %s4, %s5484
      // Predicated region
      $region33: #{resunet_forward.5} parent=31 // pred_check
        %p5486 = pneg %p102
      $region34: #{resunet_forward.5} parent=31 // pred_check_branch
        %5488 = sbr.rel (%p5486) target = $region36
      $region35: #{resunet_forward.5} parent=31 // pred_region
        _
      $region36: #{resunet_forward.5} parent=31 // pred_fallthru
        _
      // Predicated region
      $region37: #{resunet_forward.5} parent=31 // pred_check
        %p5489 = pneg %p128
      $region38: #{resunet_forward.5} parent=31 // pred_check_branch
        %5491 = sbr.rel (%p5489) target = $region40
      $region39: #{resunet_forward.5} parent=31 // pred_region
        _
      $region40: #{resunet_forward.5} parent=31 // pred_fallthru
        _
    $region32: #{resunet_forward.5} parent=5 // pred_fallthru
      _
    %p5492 = scmp.le.s32.totalorder 2, %s11
    // Predicated region
    $region41: #{resunet_forward.5} parent=5 // pred_check
      %p5493 = pneg %p5492
    $region42: #{resunet_forward.5} parent=5 // pred_check_branch
      %5495 = sbr.rel (%p5493) target = $region44
    $region43: #{resunet_forward.5} parent=5 // pred_region
      %s5496 = ssub.s32 %s11, 2
      // Predicated region
      $region45: #{resunet_forward.5} parent=43 // pred_check
        %p5497 = pneg %p108
      $region46: #{resunet_forward.5} parent=43 // pred_check_branch
        %5499 = sbr.rel (%p5497) target = $region48
      $region47: #{resunet_forward.5} parent=43 // pred_region
        %p5500 = scmp.lt.s32.totalorder %s17, 1
        %s5501 = scalar_select %p5500, %s17, 1
        %s5502 = smul.addr %s5501, 48
        %s5503 = smul.addr %s5502, 4
        %s5504 = scalar_lea.vmem %s3, %s5503
      $region48: #{resunet_forward.5} parent=43 // pred_fallthru
        _
      // Predicated region
      $region49: #{resunet_forward.5} parent=43 // pred_check
        %p5505 = pneg %p134
      $region50: #{resunet_forward.5} parent=43 // pred_check_branch
        %5507 = sbr.rel (%p5505) target = $region52
      $region51: #{resunet_forward.5} parent=43 // pred_region
        %p5508 = scmp.lt.s32.totalorder %s17, 1
        %s5509 = scalar_select %p5508, %s17, 1
        %s5510 = smul.addr %s5509, 8
        %s5511 = scalar_lea.vmem %s4, %s5510
      $region52: #{resunet_forward.5} parent=43 // pred_fallthru
        _
    $region44: #{resunet_forward.5} parent=5 // pred_fallthru
      _
  $region6: #{resunet_forward.5} parent=0 // loop_footer
    %s15 = sadd.s32 1, %s11
  $region7: #{resunet_forward.5} parent=0 // loop_footer_branch
    %10 = sbr.rel target = $region3
  $region8: #{resunet_forward.5} parent=0 // loop_exit
    _

</llo_original>
